<compile_context>
chip_gen: v7x
topology: tpu7x:2x2x1
jax: 0.10.0
libtpu: 0.0.40
codegen_flags: <defaults>
</compile_context>

<pallas_src>
from functools import partial

import numpy as np
import jax
import jax.numpy as jnp
from jax.experimental import pallas as pl
from jax.experimental.pallas import tpu as pltpu


# --------------------------------------------------------------------------
# Packed-parameter row offsets (conv block)
#   rows [  0:250)  w2   (tap-major: row = (ki*5+kj)*10 + ci, col = co)
#   rows [250:256)  zero pad (keeps w1 slice 8-row aligned)
#   rows [256:281)  w1   (row = ki*5+kj, col = co)
#   row   281       conv1 bias
#   row   282       conv2 bias
# FC block (lane width = hidden H):
#   rows [0:160)        fc1  (row = s*10+c with s = pi*4+pj, col = h)
#   rows [160:160+H)    fc2
#   rows [160+H:160+2H) out_w (zero-padded to H cols; cols 0..9 valid)
#   rows 160+2H, +1, +2 fc1 bias, fc2 bias, out bias (padded)
# --------------------------------------------------------------------------
_W2_OFF, _W1_OFF, _B1_OFF, _B2_OFF, _CONV_ROWS = 0, 256, 281, 282, 283


# --------------------------------------------------------------------------
# Fused kernel.  Row layouts (channels on lanes):
#   p1 : (bt*576, 25)   conv1 im2col patches, rows (b, quad, ii, jj), cols (ki,kj)
#   y1 : (bt*576, 10)   conv1 activations, same row order
#   q1 : (bt*144+64,10) pool1 output, rows (b, ii, jj) raster order (+ zero pad)
#   y2 : (bt*144, 10)   conv2 activations on full 12x12 grid; only oi,oj < 8 valid
# --------------------------------------------------------------------------
def _fused_kernel(bt, hid, p1_ref, conv_ref, fc_ref, out_ref,
                  y1_ref, q1_ref, y2_ref):
    f32 = jnp.float32

    # ---- conv1: (bt*576, 25) @ (25, 10) + bias, ReLU (MXU), 288-row chunks ----
    w1 = conv_ref[pl.ds(_W1_OFF, 25), :]                   # (25, 10)
    b1 = conv_ref[pl.ds(_B1_OFF, 1), :]                    # (1, 10)
    for c in range(bt * 2):
        r0 = c * 288
        acc = jnp.dot(p1_ref[pl.ds(r0, 288), :], w1, preferred_element_type=f32)
        y1_ref[pl.ds(r0, 288), :] = jnp.maximum(acc + b1, 0.0)

    # ---- pool1: quad-major row order => 4 contiguous 144-row slices per image ----
    for b in range(bt):
        base = b * 576
        m = jnp.maximum(y1_ref[pl.ds(base, 144), :],
                        y1_ref[pl.ds(base + 144, 144), :])
        m = jnp.maximum(m, y1_ref[pl.ds(base + 288, 144), :])
        m = jnp.maximum(m, y1_ref[pl.ds(base + 432, 144), :])
        q1_ref[pl.ds(b * 144, 144), :] = m
    # zero pad tail: covers tap offsets (<= 52) past the last image; only ever
    # read by garbage conv2 rows that pool2 never touches.
    q1_ref[pl.ds(bt * 144, 64), :] = jnp.zeros((64, 10), f32)

    # ---- conv2: one big-K matmul per 72-row chunk --------------------------------
    # LHS columns are the 25 tap slices (constant row offset ki*12+kj) lane-packed
    # to K=250; RHS is the pre-reshaped (250, 10) conv2 weight.  Computed on the
    # full 12x12 grid; rows with oi>7 / oj>7 are garbage and never read again.
    w2 = conv_ref[pl.ds(_W2_OFF, 250), :]                  # (250, 10)
    b2 = conv_ref[pl.ds(_B2_OFF, 1), :]                    # (1, 10)
    for chunk in range(bt * 2):
        r0 = chunk * 72
        cols = jnp.concatenate(
            [q1_ref[pl.ds(r0 + ki * 12 + kj, 72), :]
             for ki in range(5) for kj in range(5)], axis=-1)      # (72, 250)
        acc = jnp.dot(cols, w2, preferred_element_type=f32)        # (72, 10)
        y2_ref[pl.ds(r0, 72), :] = jnp.maximum(acc + b2, 0.0)

    # ---- pool2 + flatten fused: build the lane-dense (bt, 160) fc1 operand -------
    # Feature order (s, c) with s = pi*4 + pj; PyTorch's (c, s) order is folded
    # into the pre-permuted fc1 weights.
    pieces = []
    for pi in range(4):
        for pj in range(4):
            base = (2 * pi) * 12 + 2 * pj
            m = jnp.maximum(y2_ref[pl.ds(base, bt, 144), :],
                            y2_ref[pl.ds(base + 1, bt, 144), :])
            m = jnp.maximum(m, y2_ref[pl.ds(base + 12, bt, 144), :])
            m = jnp.maximum(m, y2_ref[pl.ds(base + 13, bt, 144), :])
            pieces.append(m)                                        # (bt, 10)
    feat = jnp.concatenate(pieces, axis=-1)                         # (bt, 160)

    # ---- MLP head (fc1 -> relu -> fc2 -> relu -> output) -------------------------
    fc1w = fc_ref[pl.ds(0, 160), :]
    fc2w = fc_ref[pl.ds(160, hid), :]
    oww = fc_ref[pl.ds(160 + hid, hid), :]
    boff = 160 + 2 * hid
    fc1b = fc_ref[pl.ds(boff, 1), :]
    fc2b = fc_ref[pl.ds(boff + 1, 1), :]
    obb = fc_ref[pl.ds(boff + 2, 1), :]

    h = jnp.maximum(jnp.dot(feat, fc1w, preferred_element_type=f32) + fc1b, 0.0)
    h = jnp.maximum(jnp.dot(h, fc2w, preferred_element_type=f32) + fc2b, 0.0)
    o = jnp.dot(h, oww, preferred_element_type=f32) + obb           # (bt, hid)
    out_ref[...] = o[:, :10]


# --------------------------------------------------------------------------
# XLA glue: conv1 im2col of the raw input only (fuses into the input feed).
# Row order is quad-major so pool1 windows become contiguous 144-row blocks:
#   row = b*576 + (di*2+dj)*144 + ii*12 + jj ;  output position (2ii+di, 2jj+dj)
# --------------------------------------------------------------------------
def im2col_conv1(x):
    """x: (B, 1, 28, 28) -> (B*576, 25)."""
    B = x.shape[0]
    img = x[:, 0]                                          # (B, 28, 28)
    cols = []
    for ki in range(5):
        for kj in range(5):
            win = img[:, ki:ki + 24, kj:kj + 24]           # (B, 24, 24)
            win = win.reshape(B, 12, 2, 12, 2)             # (b, ii, di, jj, dj)
            cols.append(win.transpose(0, 2, 4, 1, 3))      # (b, di, dj, ii, jj)
    patches = jnp.stack(cols, axis=-1)                     # (B, 2, 2, 12, 12, 25)
    return patches.reshape(B * 576, 25)


# --------------------------------------------------------------------------
# One-time parameter rearrangement + packing (PyTorch layout -> 2 operands).
# --------------------------------------------------------------------------
def prepare_params(params):
    f32 = jnp.float32
    hid = params["fc1_w"].shape[0]
    assert hid >= 10, "packed output head requires hidden >= 10"

    w1 = params["conv1_w"].reshape(10, 25).T.astype(f32)                       # (25, 10)
    w2 = jnp.transpose(params["conv2_w"], (2, 3, 1, 0)).reshape(250, 10).astype(f32)
    conv_blk = jnp.concatenate([
        w2,                                   # rows 0..249
        jnp.zeros((6, 10), f32),              # rows 250..255 (alignment pad)
        w1,                                   # rows 256..280
        params["conv1_b"].reshape(1, 10).astype(f32),   # row 281
        params["conv2_b"].reshape(1, 10).astype(f32),   # row 282
    ], axis=0)

    # fc1 columns permuted from PyTorch's (c*16 + s) order to the kernel's (s*10 + c)
    fc1 = params["fc1_w"].reshape(hid, 10, 16).transpose(0, 2, 1) \
                         .reshape(hid, 160).T.astype(f32)                      # (160, hid)
    fc2 = params["fc2_w"].T.astype(f32)                                        # (hid, hid)
    ow = jnp.zeros((hid, hid), f32).at[:, :10].set(params["out_w"].T.astype(f32))
    fc1b = params["fc1_b"].reshape(1, hid).astype(f32)
    fc2b = params["fc2_b"].reshape(1, hid).astype(f32)
    ob = jnp.zeros((1, hid), f32).at[:, :10].set(params["out_b"].reshape(1, 10).astype(f32))
    fc_blk = jnp.concatenate([fc1, fc2, ow, fc1b, fc2b, ob], axis=0)           # (160+2H+3, hid)

    return dict(conv_blk=conv_blk, fc_blk=fc_blk)


# --------------------------------------------------------------------------
# Forward pass: one XLA im2col fusion + ONE fused Pallas kernel (batch grid).
# --------------------------------------------------------------------------
@partial(jax.jit, static_argnames=("batch_tile",))
def ppo_rewards_forward(image, prep, batch_tile=None):
    x = image.reshape(-1, 1, 28, 28).astype(jnp.float32)
    B = x.shape[0]
    hid = prep["fc_blk"].shape[1]
    bt = B if batch_tile is None else batch_tile
    assert B % bt == 0 and (bt == B or bt % 8 == 0), "batch_tile must divide B (mult of 8 if < B)"

    p1 = im2col_conv1(x)                                   # (B*576, 25)

    out = pl.pallas_call(
        partial(_fused_kernel, bt, hid),
        out_shape=jax.ShapeDtypeStruct((B, 10), jnp.float32),
        grid_spec=pltpu.PrefetchScalarGridSpec(
            num_scalar_prefetch=0,
            grid=(B // bt,),
            in_specs=[
                pl.BlockSpec((bt * 576, 25), lambda i: (i, 0)),
                pl.BlockSpec(prep["conv_blk"].shape, lambda i: (0, 0)),
                pl.BlockSpec(prep["fc_blk"].shape, lambda i: (0, 0)),
            ],
            out_specs=pl.BlockSpec((bt, 10), lambda i: (i, 0)),
            scratch_shapes=[
                pltpu.VMEM((bt * 576, 10), jnp.float32),        # conv1 activations
                pltpu.VMEM((bt * 144 + 64, 10), jnp.float32),   # pool1 (+ zero pad)
                pltpu.VMEM((bt * 144, 10), jnp.float32),        # conv2 activations
            ],
        ),
        compiler_params=pltpu.CompilerParams(dimension_semantics=("parallel",)),
    )(p1, prep["conv_blk"], prep["fc_blk"])

    return out.reshape(B, 2, 5)


# --------------------------------------------------------------------------
# Deterministic parameter init (PyTorch-default-like uniform, PyTorch layout)
# --------------------------------------------------------------------------
def init_params(key, hidden=64):
    ks = jax.random.split(key, 10)

    def u(k, shape, fan_in):
        bound = 1.0 / np.sqrt(fan_in)
        return jax.random.uniform(k, shape, jnp.float32, -bound, bound)

    return {
        "conv1_w": u(ks[0], (10, 1, 5, 5), 25),
        "conv1_b": u(ks[1], (10,), 25),
        "conv2_w": u(ks[2], (10, 10, 5, 5), 250),
        "conv2_b": u(ks[3], (10,), 250),
        "fc1_w": u(ks[4], (hidden, 160), 160),
        "fc1_b": u(ks[5], (hidden,), 160),
        "fc2_w": u(ks[6], (hidden, hidden), hidden),
        "fc2_b": u(ks[7], (hidden,), hidden),
        "out_w": u(ks[8], (10, hidden), hidden),
        "out_b": u(ks[9], (10,), hidden),
    }


# --------------------------------------------------------------------------
# Pure-JAX reference (independent path: lax.conv + reduce_window)
# --------------------------------------------------------------------------
def reference_forward(image, params):
    B = image.shape[0]
    hp = jax.lax.Precision.HIGHEST
    x = image.reshape(B, 1, 28, 28).astype(jnp.float32)
    y = jax.lax.conv_general_dilated(
        x, params["conv1_w"], (1, 1), "VALID",
        dimension_numbers=("NCHW", "OIHW", "NCHW"), precision=hp)
    y = jax.nn.relu(y + params["conv1_b"].reshape(1, 10, 1, 1))
    y = jax.lax.reduce_window(y, -jnp.inf, jax.lax.max, (1, 1, 2, 2), (1, 1, 2, 2), "VALID")
    y = jax.lax.conv_general_dilated(
        y, params["conv2_w"], (1, 1), "VALID",
        dimension_numbers=("NCHW", "OIHW", "NCHW"), precision=hp)
    y = jax.nn.relu(y + params["conv2_b"].reshape(1, 10, 1, 1))
    y = jax.lax.reduce_window(y, -jnp.inf, jax.lax.max, (1, 1, 2, 2), (1, 1, 2, 2), "VALID")
    feat = y.reshape(B, 160)
    h = jax.nn.relu(jnp.matmul(feat, params["fc1_w"].T, precision=hp) + params["fc1_b"])
    h = jax.nn.relu(jnp.matmul(h, params["fc2_w"].T, precision=hp) + params["fc2_b"])
    out = jnp.matmul(h, params["out_w"].T, precision=hp) + params["out_b"]
    return out.reshape(B, 2, 5)


if __name__ == "__main__":
    key = jax.random.PRNGKey(0)
    k_params, k_input = jax.random.split(key)

    params = init_params(k_params, hidden=64)
    prep = prepare_params(params)
    image = jax.random.normal(k_input, (2, 1, 28, 28), dtype=jnp.float32)

    rewards = ppo_rewards_forward(image, prep)
    jax.block_until_ready(rewards)

    assert rewards.shape == (2, 2, 5), rewards.shape
    assert rewards.dtype == jnp.float32

    ref = reference_forward(image, params)
    np.testing.assert_allclose(np.asarray(rewards), np.asarray(ref), rtol=5e-2, atol=5e-2)

    print("KERNEL_OK")
</pallas_src>

<mosaic_0001>
module attributes {stable_mosaic.version = 11 : i64} {
  func.func @_fused_kernel(%arg0: i32, %arg1: memref<1152x25xf32, #tpu.memory_space<vmem>>, %arg2: memref<283x10xf32, #tpu.memory_space<vmem>>, %arg3: memref<291x64xf32, #tpu.memory_space<vmem>>, %arg4: memref<2x10xf32, #tpu.memory_space<vmem>>, %arg5: memref<1152x10xf32, #tpu.memory_space<vmem>>, %arg6: memref<352x10xf32, #tpu.memory_space<vmem>>, %arg7: memref<288x10xf32, #tpu.memory_space<vmem>>) attributes {dimension_semantics = [#tpu.dimension_semantics<parallel>], iteration_bounds = array<i64: 1>, scalar_prefetch = 0 : i64, scratch_operands = 3 : i64, tpu.core_type = #tpu.core_type<tc>, window_params = [{transform_indices = @transform_0, window_bounds = array<i64: 1152, 25>}, {pipeline_mode = #tpu.pipeline_mode<synchronous>, transform_indices = @transform_1, window_bounds = array<i64: 283, 10>}, {pipeline_mode = #tpu.pipeline_mode<synchronous>, transform_indices = @transform_2, window_bounds = array<i64: 291, 64>}, {transform_indices = @transform_3, window_bounds = array<i64: 2, 10>}]} {
    %c256 = arith.constant 256 : index
    %c0 = arith.constant 0 : index
    %0 = vector.load %arg2[%c256, %c0] : memref<283x10xf32, #tpu.memory_space<vmem>>, vector<25x10xf32>
    %c281 = arith.constant 281 : index
    %c0_0 = arith.constant 0 : index
    %1 = vector.load %arg2[%c281, %c0_0] : memref<283x10xf32, #tpu.memory_space<vmem>>, vector<1x10xf32>
    %c0_1 = arith.constant 0 : index
    %c0_2 = arith.constant 0 : index
    %2 = vector.load %arg1[%c0_1, %c0_2] : memref<1152x25xf32, #tpu.memory_space<vmem>>, vector<288x25xf32>
    %cst = arith.constant dense<0.000000e+00> : vector<288x10xf32>
    %3 = tpu.matmul %2, %0, %cst {dimension_numbers = #tpu.dot_dimension_numbers<[1], [0], [0], [1], [0, 0, 1, 1], [], []>} : vector<288x25xf32>, vector<25x10xf32>, vector<288x10xf32> -> vector<288x10xf32>
    %4 = vector.broadcast %1 : vector<1x10xf32> to vector<288x10xf32>
    %5 = arith.addf %3, %4 : vector<288x10xf32>
    %cst_3 = arith.constant 0.000000e+00 : f32
    %6 = vector.broadcast %cst_3 : f32 to vector<288x10xf32>
    %7 = arith.maximumf %5, %6 : vector<288x10xf32>
    %c0_4 = arith.constant 0 : index
    %c0_5 = arith.constant 0 : index
    %8 = vector.load %arg5[%c0_4, %c0_5] : memref<1152x10xf32, #tpu.memory_space<vmem>>, vector<288x10xf32>
    tpu.vector_store %arg5[%c0_4, %c0_5], %7 {strides = array<i32>} : memref<1152x10xf32, #tpu.memory_space<vmem>>, vector<288x10xf32>,
    %c288 = arith.constant 288 : index
    %c0_6 = arith.constant 0 : index
    %9 = vector.load %arg1[%c288, %c0_6] : memref<1152x25xf32, #tpu.memory_space<vmem>>, vector<288x25xf32>
    %cst_7 = arith.constant dense<0.000000e+00> : vector<288x10xf32>
    %10 = tpu.matmul %9, %0, %cst_7 {dimension_numbers = #tpu.dot_dimension_numbers<[1], [0], [0], [1], [0, 0, 1, 1], [], []>} : vector<288x25xf32>, vector<25x10xf32>, vector<288x10xf32> -> vector<288x10xf32>
    %11 = vector.broadcast %1 : vector<1x10xf32> to vector<288x10xf32>
    %12 = arith.addf %10, %11 : vector<288x10xf32>
    %cst_8 = arith.constant 0.000000e+00 : f32
    %13 = vector.broadcast %cst_8 : f32 to vector<288x10xf32>
    %14 = arith.maximumf %12, %13 : vector<288x10xf32>
    %c288_9 = arith.constant 288 : index
    %c0_10 = arith.constant 0 : index
    %15 = vector.load %arg5[%c288_9, %c0_10] : memref<1152x10xf32, #tpu.memory_space<vmem>>, vector<288x10xf32>
    tpu.vector_store %arg5[%c288_9, %c0_10], %14 {strides = array<i32>} : memref<1152x10xf32, #tpu.memory_space<vmem>>, vector<288x10xf32>,
    %c576 = arith.constant 576 : index
    %c0_11 = arith.constant 0 : index
    %16 = vector.load %arg1[%c576, %c0_11] : memref<1152x25xf32, #tpu.memory_space<vmem>>, vector<288x25xf32>
    %cst_12 = arith.constant dense<0.000000e+00> : vector<288x10xf32>
    %17 = tpu.matmul %16, %0, %cst_12 {dimension_numbers = #tpu.dot_dimension_numbers<[1], [0], [0], [1], [0, 0, 1, 1], [], []>} : vector<288x25xf32>, vector<25x10xf32>, vector<288x10xf32> -> vector<288x10xf32>
    %18 = vector.broadcast %1 : vector<1x10xf32> to vector<288x10xf32>
    %19 = arith.addf %17, %18 : vector<288x10xf32>
    %cst_13 = arith.constant 0.000000e+00 : f32
    %20 = vector.broadcast %cst_13 : f32 to vector<288x10xf32>
    %21 = arith.maximumf %19, %20 : vector<288x10xf32>
    %c576_14 = arith.constant 576 : index
    %c0_15 = arith.constant 0 : index
    %22 = vector.load %arg5[%c576_14, %c0_15] : memref<1152x10xf32, #tpu.memory_space<vmem>>, vector<288x10xf32>
    tpu.vector_store %arg5[%c576_14, %c0_15], %21 {strides = array<i32>} : memref<1152x10xf32, #tpu.memory_space<vmem>>, vector<288x10xf32>,
    %c864 = arith.constant 864 : index
    %c0_16 = arith.constant 0 : index
    %23 = vector.load %arg1[%c864, %c0_16] : memref<1152x25xf32, #tpu.memory_space<vmem>>, vector<288x25xf32>
    %cst_17 = arith.constant dense<0.000000e+00> : vector<288x10xf32>
    %24 = tpu.matmul %23, %0, %cst_17 {dimension_numbers = #tpu.dot_dimension_numbers<[1], [0], [0], [1], [0, 0, 1, 1], [], []>} : vector<288x25xf32>, vector<25x10xf32>, vector<288x10xf32> -> vector<288x10xf32>
    %25 = vector.broadcast %1 : vector<1x10xf32> to vector<288x10xf32>
    %26 = arith.addf %24, %25 : vector<288x10xf32>
    %cst_18 = arith.constant 0.000000e+00 : f32
    %27 = vector.broadcast %cst_18 : f32 to vector<288x10xf32>
    %28 = arith.maximumf %26, %27 : vector<288x10xf32>
    %c864_19 = arith.constant 864 : index
    %c0_20 = arith.constant 0 : index
    %29 = vector.load %arg5[%c864_19, %c0_20] : memref<1152x10xf32, #tpu.memory_space<vmem>>, vector<288x10xf32>
    tpu.vector_store %arg5[%c864_19, %c0_20], %28 {strides = array<i32>} : memref<1152x10xf32, #tpu.memory_space<vmem>>, vector<288x10xf32>,
    %c0_21 = arith.constant 0 : index
    %c0_22 = arith.constant 0 : index
    %30 = vector.load %arg5[%c0_21, %c0_22] : memref<1152x10xf32, #tpu.memory_space<vmem>>, vector<144x10xf32>
    %c144 = arith.constant 144 : index
    %c0_23 = arith.constant 0 : index
    %31 = vector.load %arg5[%c144, %c0_23] : memref<1152x10xf32, #tpu.memory_space<vmem>>, vector<144x10xf32>
    %32 = arith.maximumf %30, %31 : vector<144x10xf32>
    %c288_24 = arith.constant 288 : index
    %c0_25 = arith.constant 0 : index
    %33 = vector.load %arg5[%c288_24, %c0_25] : memref<1152x10xf32, #tpu.memory_space<vmem>>, vector<144x10xf32>
    %34 = arith.maximumf %32, %33 : vector<144x10xf32>
    %c432 = arith.constant 432 : index
    %c0_26 = arith.constant 0 : index
    %35 = vector.load %arg5[%c432, %c0_26] : memref<1152x10xf32, #tpu.memory_space<vmem>>, vector<144x10xf32>
    %36 = arith.maximumf %34, %35 : vector<144x10xf32>
    %c0_27 = arith.constant 0 : index
    %c0_28 = arith.constant 0 : index
    %37 = vector.load %arg6[%c0_27, %c0_28] : memref<352x10xf32, #tpu.memory_space<vmem>>, vector<144x10xf32>
    tpu.vector_store %arg6[%c0_27, %c0_28], %36 {strides = array<i32>} : memref<352x10xf32, #tpu.memory_space<vmem>>, vector<144x10xf32>,
    %c576_29 = arith.constant 576 : index
    %c0_30 = arith.constant 0 : index
    %38 = vector.load %arg5[%c576_29, %c0_30] : memref<1152x10xf32, #tpu.memory_space<vmem>>, vector<144x10xf32>
    %c720 = arith.constant 720 : index
    %c0_31 = arith.constant 0 : index
    %39 = vector.load %arg5[%c720, %c0_31] : memref<1152x10xf32, #tpu.memory_space<vmem>>, vector<144x10xf32>
    %40 = arith.maximumf %38, %39 : vector<144x10xf32>
    %c864_32 = arith.constant 864 : index
    %c0_33 = arith.constant 0 : index
    %41 = vector.load %arg5[%c864_32, %c0_33] : memref<1152x10xf32, #tpu.memory_space<vmem>>, vector<144x10xf32>
    %42 = arith.maximumf %40, %41 : vector<144x10xf32>
    %c1008 = arith.constant 1008 : index
    %c0_34 = arith.constant 0 : index
    %43 = vector.load %arg5[%c1008, %c0_34] : memref<1152x10xf32, #tpu.memory_space<vmem>>, vector<144x10xf32>
    %44 = arith.maximumf %42, %43 : vector<144x10xf32>
    %c144_35 = arith.constant 144 : index
    %c0_36 = arith.constant 0 : index
    %45 = vector.load %arg6[%c144_35, %c0_36] : memref<352x10xf32, #tpu.memory_space<vmem>>, vector<144x10xf32>
    tpu.vector_store %arg6[%c144_35, %c0_36], %44 {strides = array<i32>} : memref<352x10xf32, #tpu.memory_space<vmem>>, vector<144x10xf32>,
    %cst_37 = arith.constant 0.000000e+00 : f32
    %46 = vector.broadcast %cst_37 : f32 to vector<64x10xf32>
    %c288_38 = arith.constant 288 : index
    %c0_39 = arith.constant 0 : index
    %47 = vector.load %arg6[%c288_38, %c0_39] : memref<352x10xf32, #tpu.memory_space<vmem>>, vector<64x10xf32>
    tpu.vector_store %arg6[%c288_38, %c0_39], %46 {strides = array<i32>} : memref<352x10xf32, #tpu.memory_space<vmem>>, vector<64x10xf32>,
    %c0_40 = arith.constant 0 : index
    %c0_41 = arith.constant 0 : index
    %48 = vector.load %arg2[%c0_40, %c0_41] : memref<283x10xf32, #tpu.memory_space<vmem>>, vector<250x10xf32>
    %c282 = arith.constant 282 : index
    %c0_42 = arith.constant 0 : index
    %49 = vector.load %arg2[%c282, %c0_42] : memref<283x10xf32, #tpu.memory_space<vmem>>, vector<1x10xf32>
    %c0_43 = arith.constant 0 : index
    %c0_44 = arith.constant 0 : index
    %50 = vector.load %arg6[%c0_43, %c0_44] : memref<352x10xf32, #tpu.memory_space<vmem>>, vector<72x10xf32>
    %c1 = arith.constant 1 : index
    %c0_45 = arith.constant 0 : index
    %51 = vector.load %arg6[%c1, %c0_45] : memref<352x10xf32, #tpu.memory_space<vmem>>, vector<72x10xf32>
    %c2 = arith.constant 2 : index
    %c0_46 = arith.constant 0 : index
    %52 = vector.load %arg6[%c2, %c0_46] : memref<352x10xf32, #tpu.memory_space<vmem>>, vector<72x10xf32>
    %c3 = arith.constant 3 : index
    %c0_47 = arith.constant 0 : index
    %53 = vector.load %arg6[%c3, %c0_47] : memref<352x10xf32, #tpu.memory_space<vmem>>, vector<72x10xf32>
    %c4 = arith.constant 4 : index
    %c0_48 = arith.constant 0 : index
    %54 = vector.load %arg6[%c4, %c0_48] : memref<352x10xf32, #tpu.memory_space<vmem>>, vector<72x10xf32>
    %c12 = arith.constant 12 : index
    %c0_49 = arith.constant 0 : index
    %55 = vector.load %arg6[%c12, %c0_49] : memref<352x10xf32, #tpu.memory_space<vmem>>, vector<72x10xf32>
    %c13 = arith.constant 13 : index
    %c0_50 = arith.constant 0 : index
    %56 = vector.load %arg6[%c13, %c0_50] : memref<352x10xf32, #tpu.memory_space<vmem>>, vector<72x10xf32>
    %c14 = arith.constant 14 : index
    %c0_51 = arith.constant 0 : index
    %57 = vector.load %arg6[%c14, %c0_51] : memref<352x10xf32, #tpu.memory_space<vmem>>, vector<72x10xf32>
    %c15 = arith.constant 15 : index
    %c0_52 = arith.constant 0 : index
    %58 = vector.load %arg6[%c15, %c0_52] : memref<352x10xf32, #tpu.memory_space<vmem>>, vector<72x10xf32>
    %c16 = arith.constant 16 : index
    %c0_53 = arith.constant 0 : index
    %59 = vector.load %arg6[%c16, %c0_53] : memref<352x10xf32, #tpu.memory_space<vmem>>, vector<72x10xf32>
    %c24 = arith.constant 24 : index
    %c0_54 = arith.constant 0 : index
    %60 = vector.load %arg6[%c24, %c0_54] : memref<352x10xf32, #tpu.memory_space<vmem>>, vector<72x10xf32>
    %c25 = arith.constant 25 : index
    %c0_55 = arith.constant 0 : index
    %61 = vector.load %arg6[%c25, %c0_55] : memref<352x10xf32, #tpu.memory_space<vmem>>, vector<72x10xf32>
    %c26 = arith.constant 26 : index
    %c0_56 = arith.constant 0 : index
    %62 = vector.load %arg6[%c26, %c0_56] : memref<352x10xf32, #tpu.memory_space<vmem>>, vector<72x10xf32>
    %c27 = arith.constant 27 : index
    %c0_57 = arith.constant 0 : index
    %63 = vector.load %arg6[%c27, %c0_57] : memref<352x10xf32, #tpu.memory_space<vmem>>, vector<72x10xf32>
    %c28 = arith.constant 28 : index
    %c0_58 = arith.constant 0 : index
    %64 = vector.load %arg6[%c28, %c0_58] : memref<352x10xf32, #tpu.memory_space<vmem>>, vector<72x10xf32>
    %c36 = arith.constant 36 : index
    %c0_59 = arith.constant 0 : index
    %65 = vector.load %arg6[%c36, %c0_59] : memref<352x10xf32, #tpu.memory_space<vmem>>, vector<72x10xf32>
    %c37 = arith.constant 37 : index
    %c0_60 = arith.constant 0 : index
    %66 = vector.load %arg6[%c37, %c0_60] : memref<352x10xf32, #tpu.memory_space<vmem>>, vector<72x10xf32>
    %c38 = arith.constant 38 : index
    %c0_61 = arith.constant 0 : index
    %67 = vector.load %arg6[%c38, %c0_61] : memref<352x10xf32, #tpu.memory_space<vmem>>, vector<72x10xf32>
    %c39 = arith.constant 39 : index
    %c0_62 = arith.constant 0 : index
    %68 = vector.load %arg6[%c39, %c0_62] : memref<352x10xf32, #tpu.memory_space<vmem>>, vector<72x10xf32>
    %c40 = arith.constant 40 : index
    %c0_63 = arith.constant 0 : index
    %69 = vector.load %arg6[%c40, %c0_63] : memref<352x10xf32, #tpu.memory_space<vmem>>, vector<72x10xf32>
    %c48 = arith.constant 48 : index
    %c0_64 = arith.constant 0 : index
    %70 = vector.load %arg6[%c48, %c0_64] : memref<352x10xf32, #tpu.memory_space<vmem>>, vector<72x10xf32>
    %c49 = arith.constant 49 : index
    %c0_65 = arith.constant 0 : index
    %71 = vector.load %arg6[%c49, %c0_65] : memref<352x10xf32, #tpu.memory_space<vmem>>, vector<72x10xf32>
    %c50 = arith.constant 50 : index
    %c0_66 = arith.constant 0 : index
    %72 = vector.load %arg6[%c50, %c0_66] : memref<352x10xf32, #tpu.memory_space<vmem>>, vector<72x10xf32>
    %c51 = arith.constant 51 : index
    %c0_67 = arith.constant 0 : index
    %73 = vector.load %arg6[%c51, %c0_67] : memref<352x10xf32, #tpu.memory_space<vmem>>, vector<72x10xf32>
    %c52 = arith.constant 52 : index
    %c0_68 = arith.constant 0 : index
    %74 = vector.load %arg6[%c52, %c0_68] : memref<352x10xf32, #tpu.memory_space<vmem>>, vector<72x10xf32>
    %75 = tpu.concatenate %50, %51, %52, %53, %54, %55, %56, %57, %58, %59, %60, %61, %62, %63, %64, %65 in 1 : vector<72x10xf32>, vector<72x10xf32>, vector<72x10xf32>, vector<72x10xf32>, vector<72x10xf32>, vector<72x10xf32>, vector<72x10xf32>, vector<72x10xf32>, vector<72x10xf32>, vector<72x10xf32>, vector<72x10xf32>, vector<72x10xf32>, vector<72x10xf32>, vector<72x10xf32>, vector<72x10xf32>, vector<72x10xf32> -> vector<72x160xf32>
    %76 = tpu.concatenate %66, %67, %68, %69, %70, %71, %72, %73, %74 in 1 : vector<72x10xf32>, vector<72x10xf32>, vector<72x10xf32>, vector<72x10xf32>, vector<72x10xf32>, vector<72x10xf32>, vector<72x10xf32>, vector<72x10xf32>, vector<72x10xf32> -> vector<72x90xf32>
    %77 = tpu.concatenate %75, %76 in 1 : vector<72x160xf32>, vector<72x90xf32> -> vector<72x250xf32>
    %cst_69 = arith.constant dense<0.000000e+00> : vector<72x10xf32>
    %78 = tpu.matmul %77, %48, %cst_69 {dimension_numbers = #tpu.dot_dimension_numbers<[1], [0], [0], [1], [0, 0, 1, 1], [], []>} : vector<72x250xf32>, vector<250x10xf32>, vector<72x10xf32> -> vector<72x10xf32>
    %79 = vector.broadcast %49 : vector<1x10xf32> to vector<72x10xf32>
    %80 = arith.addf %78, %79 : vector<72x10xf32>
    %cst_70 = arith.constant 0.000000e+00 : f32
    %81 = vector.broadcast %cst_70 : f32 to vector<72x10xf32>
    %82 = arith.maximumf %80, %81 : vector<72x10xf32>
    %c0_71 = arith.constant 0 : index
    %c0_72 = arith.constant 0 : index
    %83 = vector.load %arg7[%c0_71, %c0_72] : memref<288x10xf32, #tpu.memory_space<vmem>>, vector<72x10xf32>
    tpu.vector_store %arg7[%c0_71, %c0_72], %82 {strides = array<i32>} : memref<288x10xf32, #tpu.memory_space<vmem>>, vector<72x10xf32>,
    %c72 = arith.constant 72 : index
    %c0_73 = arith.constant 0 : index
    %84 = vector.load %arg6[%c72, %c0_73] : memref<352x10xf32, #tpu.memory_space<vmem>>, vector<72x10xf32>
    %c73 = arith.constant 73 : index
    %c0_74 = arith.constant 0 : index
    %85 = vector.load %arg6[%c73, %c0_74] : memref<352x10xf32, #tpu.memory_space<vmem>>, vector<72x10xf32>
    %c74 = arith.constant 74 : index
    %c0_75 = arith.constant 0 : index
    %86 = vector.load %arg6[%c74, %c0_75] : memref<352x10xf32, #tpu.memory_space<vmem>>, vector<72x10xf32>
    %c75 = arith.constant 75 : index
    %c0_76 = arith.constant 0 : index
    %87 = vector.load %arg6[%c75, %c0_76] : memref<352x10xf32, #tpu.memory_space<vmem>>, vector<72x10xf32>
    %c76 = arith.constant 76 : index
    %c0_77 = arith.constant 0 : index
    %88 = vector.load %arg6[%c76, %c0_77] : memref<352x10xf32, #tpu.memory_space<vmem>>, vector<72x10xf32>
    %c84 = arith.constant 84 : index
    %c0_78 = arith.constant 0 : index
    %89 = vector.load %arg6[%c84, %c0_78] : memref<352x10xf32, #tpu.memory_space<vmem>>, vector<72x10xf32>
    %c85 = arith.constant 85 : index
    %c0_79 = arith.constant 0 : index
    %90 = vector.load %arg6[%c85, %c0_79] : memref<352x10xf32, #tpu.memory_space<vmem>>, vector<72x10xf32>
    %c86 = arith.constant 86 : index
    %c0_80 = arith.constant 0 : index
    %91 = vector.load %arg6[%c86, %c0_80] : memref<352x10xf32, #tpu.memory_space<vmem>>, vector<72x10xf32>
    %c87 = arith.constant 87 : index
    %c0_81 = arith.constant 0 : index
    %92 = vector.load %arg6[%c87, %c0_81] : memref<352x10xf32, #tpu.memory_space<vmem>>, vector<72x10xf32>
    %c88 = arith.constant 88 : index
    %c0_82 = arith.constant 0 : index
    %93 = vector.load %arg6[%c88, %c0_82] : memref<352x10xf32, #tpu.memory_space<vmem>>, vector<72x10xf32>
    %c96 = arith.constant 96 : index
    %c0_83 = arith.constant 0 : index
    %94 = vector.load %arg6[%c96, %c0_83] : memref<352x10xf32, #tpu.memory_space<vmem>>, vector<72x10xf32>
    %c97 = arith.constant 97 : index
    %c0_84 = arith.constant 0 : index
    %95 = vector.load %arg6[%c97, %c0_84] : memref<352x10xf32, #tpu.memory_space<vmem>>, vector<72x10xf32>
    %c98 = arith.constant 98 : index
    %c0_85 = arith.constant 0 : index
    %96 = vector.load %arg6[%c98, %c0_85] : memref<352x10xf32, #tpu.memory_space<vmem>>, vector<72x10xf32>
    %c99 = arith.constant 99 : index
    %c0_86 = arith.constant 0 : index
    %97 = vector.load %arg6[%c99, %c0_86] : memref<352x10xf32, #tpu.memory_space<vmem>>, vector<72x10xf32>
    %c100 = arith.constant 100 : index
    %c0_87 = arith.constant 0 : index
    %98 = vector.load %arg6[%c100, %c0_87] : memref<352x10xf32, #tpu.memory_space<vmem>>, vector<72x10xf32>
    %c108 = arith.constant 108 : index
    %c0_88 = arith.constant 0 : index
    %99 = vector.load %arg6[%c108, %c0_88] : memref<352x10xf32, #tpu.memory_space<vmem>>, vector<72x10xf32>
    %c109 = arith.constant 109 : index
    %c0_89 = arith.constant 0 : index
    %100 = vector.load %arg6[%c109, %c0_89] : memref<352x10xf32, #tpu.memory_space<vmem>>, vector<72x10xf32>
    %c110 = arith.constant 110 : index
    %c0_90 = arith.constant 0 : index
    %101 = vector.load %arg6[%c110, %c0_90] : memref<352x10xf32, #tpu.memory_space<vmem>>, vector<72x10xf32>
    %c111 = arith.constant 111 : index
    %c0_91 = arith.constant 0 : index
    %102 = vector.load %arg6[%c111, %c0_91] : memref<352x10xf32, #tpu.memory_space<vmem>>, vector<72x10xf32>
    %c112 = arith.constant 112 : index
    %c0_92 = arith.constant 0 : index
    %103 = vector.load %arg6[%c112, %c0_92] : memref<352x10xf32, #tpu.memory_space<vmem>>, vector<72x10xf32>
    %c120 = arith.constant 120 : index
    %c0_93 = arith.constant 0 : index
    %104 = vector.load %arg6[%c120, %c0_93] : memref<352x10xf32, #tpu.memory_space<vmem>>, vector<72x10xf32>
    %c121 = arith.constant 121 : index
    %c0_94 = arith.constant 0 : index
    %105 = vector.load %arg6[%c121, %c0_94] : memref<352x10xf32, #tpu.memory_space<vmem>>, vector<72x10xf32>
    %c122 = arith.constant 122 : index
    %c0_95 = arith.constant 0 : index
    %106 = vector.load %arg6[%c122, %c0_95] : memref<352x10xf32, #tpu.memory_space<vmem>>, vector<72x10xf32>
    %c123 = arith.constant 123 : index
    %c0_96 = arith.constant 0 : index
    %107 = vector.load %arg6[%c123, %c0_96] : memref<352x10xf32, #tpu.memory_space<vmem>>, vector<72x10xf32>
    %c124 = arith.constant 124 : index
    %c0_97 = arith.constant 0 : index
    %108 = vector.load %arg6[%c124, %c0_97] : memref<352x10xf32, #tpu.memory_space<vmem>>, vector<72x10xf32>
    %109 = tpu.concatenate %84, %85, %86, %87, %88, %89, %90, %91, %92, %93, %94, %95, %96, %97, %98, %99 in 1 : vector<72x10xf32>, vector<72x10xf32>, vector<72x10xf32>, vector<72x10xf32>, vector<72x10xf32>, vector<72x10xf32>, vector<72x10xf32>, vector<72x10xf32>, vector<72x10xf32>, vector<72x10xf32>, vector<72x10xf32>, vector<72x10xf32>, vector<72x10xf32>, vector<72x10xf32>, vector<72x10xf32>, vector<72x10xf32> -> vector<72x160xf32>
    %110 = tpu.concatenate %100, %101, %102, %103, %104, %105, %106, %107, %108 in 1 : vector<72x10xf32>, vector<72x10xf32>, vector<72x10xf32>, vector<72x10xf32>, vector<72x10xf32>, vector<72x10xf32>, vector<72x10xf32>, vector<72x10xf32>, vector<72x10xf32> -> vector<72x90xf32>
    %111 = tpu.concatenate %109, %110 in 1 : vector<72x160xf32>, vector<72x90xf32> -> vector<72x250xf32>
    %cst_98 = arith.constant dense<0.000000e+00> : vector<72x10xf32>
    %112 = tpu.matmul %111, %48, %cst_98 {dimension_numbers = #tpu.dot_dimension_numbers<[1], [0], [0], [1], [0, 0, 1, 1], [], []>} : vector<72x250xf32>, vector<250x10xf32>, vector<72x10xf32> -> vector<72x10xf32>
    %113 = vector.broadcast %49 : vector<1x10xf32> to vector<72x10xf32>
    %114 = arith.addf %112, %113 : vector<72x10xf32>
    %cst_99 = arith.constant 0.000000e+00 : f32
    %115 = vector.broadcast %cst_99 : f32 to vector<72x10xf32>
    %116 = arith.maximumf %114, %115 : vector<72x10xf32>
    %c72_100 = arith.constant 72 : index
    %c0_101 = arith.constant 0 : index
    %117 = vector.load %arg7[%c72_100, %c0_101] : memref<288x10xf32, #tpu.memory_space<vmem>>, vector<72x10xf32>
    tpu.vector_store %arg7[%c72_100, %c0_101], %116 {strides = array<i32>} : memref<288x10xf32, #tpu.memory_space<vmem>>, vector<72x10xf32>,
    %c144_102 = arith.constant 144 : index
    %c0_103 = arith.constant 0 : index
    %118 = vector.load %arg6[%c144_102, %c0_103] : memref<352x10xf32, #tpu.memory_space<vmem>>, vector<72x10xf32>
    %c145 = arith.constant 145 : index
    %c0_104 = arith.constant 0 : index
    %119 = vector.load %arg6[%c145, %c0_104] : memref<352x10xf32, #tpu.memory_space<vmem>>, vector<72x10xf32>
    %c146 = arith.constant 146 : index
    %c0_105 = arith.constant 0 : index
    %120 = vector.load %arg6[%c146, %c0_105] : memref<352x10xf32, #tpu.memory_space<vmem>>, vector<72x10xf32>
    %c147 = arith.constant 147 : index
    %c0_106 = arith.constant 0 : index
    %121 = vector.load %arg6[%c147, %c0_106] : memref<352x10xf32, #tpu.memory_space<vmem>>, vector<72x10xf32>
    %c148 = arith.constant 148 : index
    %c0_107 = arith.constant 0 : index
    %122 = vector.load %arg6[%c148, %c0_107] : memref<352x10xf32, #tpu.memory_space<vmem>>, vector<72x10xf32>
    %c156 = arith.constant 156 : index
    %c0_108 = arith.constant 0 : index
    %123 = vector.load %arg6[%c156, %c0_108] : memref<352x10xf32, #tpu.memory_space<vmem>>, vector<72x10xf32>
    %c157 = arith.constant 157 : index
    %c0_109 = arith.constant 0 : index
    %124 = vector.load %arg6[%c157, %c0_109] : memref<352x10xf32, #tpu.memory_space<vmem>>, vector<72x10xf32>
    %c158 = arith.constant 158 : index
    %c0_110 = arith.constant 0 : index
    %125 = vector.load %arg6[%c158, %c0_110] : memref<352x10xf32, #tpu.memory_space<vmem>>, vector<72x10xf32>
    %c159 = arith.constant 159 : index
    %c0_111 = arith.constant 0 : index
    %126 = vector.load %arg6[%c159, %c0_111] : memref<352x10xf32, #tpu.memory_space<vmem>>, vector<72x10xf32>
    %c160 = arith.constant 160 : index
    %c0_112 = arith.constant 0 : index
    %127 = vector.load %arg6[%c160, %c0_112] : memref<352x10xf32, #tpu.memory_space<vmem>>, vector<72x10xf32>
    %c168 = arith.constant 168 : index
    %c0_113 = arith.constant 0 : index
    %128 = vector.load %arg6[%c168, %c0_113] : memref<352x10xf32, #tpu.memory_space<vmem>>, vector<72x10xf32>
    %c169 = arith.constant 169 : index
    %c0_114 = arith.constant 0 : index
    %129 = vector.load %arg6[%c169, %c0_114] : memref<352x10xf32, #tpu.memory_space<vmem>>, vector<72x10xf32>
    %c170 = arith.constant 170 : index
    %c0_115 = arith.constant 0 : index
    %130 = vector.load %arg6[%c170, %c0_115] : memref<352x10xf32, #tpu.memory_space<vmem>>, vector<72x10xf32>
    %c171 = arith.constant 171 : index
    %c0_116 = arith.constant 0 : index
    %131 = vector.load %arg6[%c171, %c0_116] : memref<352x10xf32, #tpu.memory_space<vmem>>, vector<72x10xf32>
    %c172 = arith.constant 172 : index
    %c0_117 = arith.constant 0 : index
    %132 = vector.load %arg6[%c172, %c0_117] : memref<352x10xf32, #tpu.memory_space<vmem>>, vector<72x10xf32>
    %c180 = arith.constant 180 : index
    %c0_118 = arith.constant 0 : index
    %133 = vector.load %arg6[%c180, %c0_118] : memref<352x10xf32, #tpu.memory_space<vmem>>, vector<72x10xf32>
    %c181 = arith.constant 181 : index
    %c0_119 = arith.constant 0 : index
    %134 = vector.load %arg6[%c181, %c0_119] : memref<352x10xf32, #tpu.memory_space<vmem>>, vector<72x10xf32>
    %c182 = arith.constant 182 : index
    %c0_120 = arith.constant 0 : index
    %135 = vector.load %arg6[%c182, %c0_120] : memref<352x10xf32, #tpu.memory_space<vmem>>, vector<72x10xf32>
    %c183 = arith.constant 183 : index
    %c0_121 = arith.constant 0 : index
    %136 = vector.load %arg6[%c183, %c0_121] : memref<352x10xf32, #tpu.memory_space<vmem>>, vector<72x10xf32>
    %c184 = arith.constant 184 : index
    %c0_122 = arith.constant 0 : index
    %137 = vector.load %arg6[%c184, %c0_122] : memref<352x10xf32, #tpu.memory_space<vmem>>, vector<72x10xf32>
    %c192 = arith.constant 192 : index
    %c0_123 = arith.constant 0 : index
    %138 = vector.load %arg6[%c192, %c0_123] : memref<352x10xf32, #tpu.memory_space<vmem>>, vector<72x10xf32>
    %c193 = arith.constant 193 : index
    %c0_124 = arith.constant 0 : index
    %139 = vector.load %arg6[%c193, %c0_124] : memref<352x10xf32, #tpu.memory_space<vmem>>, vector<72x10xf32>
    %c194 = arith.constant 194 : index
    %c0_125 = arith.constant 0 : index
    %140 = vector.load %arg6[%c194, %c0_125] : memref<352x10xf32, #tpu.memory_space<vmem>>, vector<72x10xf32>
    %c195 = arith.constant 195 : index
    %c0_126 = arith.constant 0 : index
    %141 = vector.load %arg6[%c195, %c0_126] : memref<352x10xf32, #tpu.memory_space<vmem>>, vector<72x10xf32>
    %c196 = arith.constant 196 : index
    %c0_127 = arith.constant 0 : index
    %142 = vector.load %arg6[%c196, %c0_127] : memref<352x10xf32, #tpu.memory_space<vmem>>, vector<72x10xf32>
    %143 = tpu.concatenate %118, %119, %120, %121, %122, %123, %124, %125, %126, %127, %128, %129, %130, %131, %132, %133 in 1 : vector<72x10xf32>, vector<72x10xf32>, vector<72x10xf32>, vector<72x10xf32>, vector<72x10xf32>, vector<72x10xf32>, vector<72x10xf32>, vector<72x10xf32>, vector<72x10xf32>, vector<72x10xf32>, vector<72x10xf32>, vector<72x10xf32>, vector<72x10xf32>, vector<72x10xf32>, vector<72x10xf32>, vector<72x10xf32> -> vector<72x160xf32>
    %144 = tpu.concatenate %134, %135, %136, %137, %138, %139, %140, %141, %142 in 1 : vector<72x10xf32>, vector<72x10xf32>, vector<72x10xf32>, vector<72x10xf32>, vector<72x10xf32>, vector<72x10xf32>, vector<72x10xf32>, vector<72x10xf32>, vector<72x10xf32> -> vector<72x90xf32>
    %145 = tpu.concatenate %143, %144 in 1 : vector<72x160xf32>, vector<72x90xf32> -> vector<72x250xf32>
    %cst_128 = arith.constant dense<0.000000e+00> : vector<72x10xf32>
    %146 = tpu.matmul %145, %48, %cst_128 {dimension_numbers = #tpu.dot_dimension_numbers<[1], [0], [0], [1], [0, 0, 1, 1], [], []>} : vector<72x250xf32>, vector<250x10xf32>, vector<72x10xf32> -> vector<72x10xf32>
    %147 = vector.broadcast %49 : vector<1x10xf32> to vector<72x10xf32>
    %148 = arith.addf %146, %147 : vector<72x10xf32>
    %cst_129 = arith.constant 0.000000e+00 : f32
    %149 = vector.broadcast %cst_129 : f32 to vector<72x10xf32>
    %150 = arith.maximumf %148, %149 : vector<72x10xf32>
    %c144_130 = arith.constant 144 : index
    %c0_131 = arith.constant 0 : index
    %151 = vector.load %arg7[%c144_130, %c0_131] : memref<288x10xf32, #tpu.memory_space<vmem>>, vector<72x10xf32>
    tpu.vector_store %arg7[%c144_130, %c0_131], %150 {strides = array<i32>} : memref<288x10xf32, #tpu.memory_space<vmem>>, vector<72x10xf32>,
    %c216 = arith.constant 216 : index
    %c0_132 = arith.constant 0 : index
    %152 = vector.load %arg6[%c216, %c0_132] : memref<352x10xf32, #tpu.memory_space<vmem>>, vector<72x10xf32>
    %c217 = arith.constant 217 : index
    %c0_133 = arith.constant 0 : index
    %153 = vector.load %arg6[%c217, %c0_133] : memref<352x10xf32, #tpu.memory_space<vmem>>, vector<72x10xf32>
    %c218 = arith.constant 218 : index
    %c0_134 = arith.constant 0 : index
    %154 = vector.load %arg6[%c218, %c0_134] : memref<352x10xf32, #tpu.memory_space<vmem>>, vector<72x10xf32>
    %c219 = arith.constant 219 : index
    %c0_135 = arith.constant 0 : index
    %155 = vector.load %arg6[%c219, %c0_135] : memref<352x10xf32, #tpu.memory_space<vmem>>, vector<72x10xf32>
    %c220 = arith.constant 220 : index
    %c0_136 = arith.constant 0 : index
    %156 = vector.load %arg6[%c220, %c0_136] : memref<352x10xf32, #tpu.memory_space<vmem>>, vector<72x10xf32>
    %c228 = arith.constant 228 : index
    %c0_137 = arith.constant 0 : index
    %157 = vector.load %arg6[%c228, %c0_137] : memref<352x10xf32, #tpu.memory_space<vmem>>, vector<72x10xf32>
    %c229 = arith.constant 229 : index
    %c0_138 = arith.constant 0 : index
    %158 = vector.load %arg6[%c229, %c0_138] : memref<352x10xf32, #tpu.memory_space<vmem>>, vector<72x10xf32>
    %c230 = arith.constant 230 : index
    %c0_139 = arith.constant 0 : index
    %159 = vector.load %arg6[%c230, %c0_139] : memref<352x10xf32, #tpu.memory_space<vmem>>, vector<72x10xf32>
    %c231 = arith.constant 231 : index
    %c0_140 = arith.constant 0 : index
    %160 = vector.load %arg6[%c231, %c0_140] : memref<352x10xf32, #tpu.memory_space<vmem>>, vector<72x10xf32>
    %c232 = arith.constant 232 : index
    %c0_141 = arith.constant 0 : index
    %161 = vector.load %arg6[%c232, %c0_141] : memref<352x10xf32, #tpu.memory_space<vmem>>, vector<72x10xf32>
    %c240 = arith.constant 240 : index
    %c0_142 = arith.constant 0 : index
    %162 = vector.load %arg6[%c240, %c0_142] : memref<352x10xf32, #tpu.memory_space<vmem>>, vector<72x10xf32>
    %c241 = arith.constant 241 : index
    %c0_143 = arith.constant 0 : index
    %163 = vector.load %arg6[%c241, %c0_143] : memref<352x10xf32, #tpu.memory_space<vmem>>, vector<72x10xf32>
    %c242 = arith.constant 242 : index
    %c0_144 = arith.constant 0 : index
    %164 = vector.load %arg6[%c242, %c0_144] : memref<352x10xf32, #tpu.memory_space<vmem>>, vector<72x10xf32>
    %c243 = arith.constant 243 : index
    %c0_145 = arith.constant 0 : index
    %165 = vector.load %arg6[%c243, %c0_145] : memref<352x10xf32, #tpu.memory_space<vmem>>, vector<72x10xf32>
    %c244 = arith.constant 244 : index
    %c0_146 = arith.constant 0 : index
    %166 = vector.load %arg6[%c244, %c0_146] : memref<352x10xf32, #tpu.memory_space<vmem>>, vector<72x10xf32>
    %c252 = arith.constant 252 : index
    %c0_147 = arith.constant 0 : index
    %167 = vector.load %arg6[%c252, %c0_147] : memref<352x10xf32, #tpu.memory_space<vmem>>, vector<72x10xf32>
    %c253 = arith.constant 253 : index
    %c0_148 = arith.constant 0 : index
    %168 = vector.load %arg6[%c253, %c0_148] : memref<352x10xf32, #tpu.memory_space<vmem>>, vector<72x10xf32>
    %c254 = arith.constant 254 : index
    %c0_149 = arith.constant 0 : index
    %169 = vector.load %arg6[%c254, %c0_149] : memref<352x10xf32, #tpu.memory_space<vmem>>, vector<72x10xf32>
    %c255 = arith.constant 255 : index
    %c0_150 = arith.constant 0 : index
    %170 = vector.load %arg6[%c255, %c0_150] : memref<352x10xf32, #tpu.memory_space<vmem>>, vector<72x10xf32>
    %c256_151 = arith.constant 256 : index
    %c0_152 = arith.constant 0 : index
    %171 = vector.load %arg6[%c256_151, %c0_152] : memref<352x10xf32, #tpu.memory_space<vmem>>, vector<72x10xf32>
    %c264 = arith.constant 264 : index
    %c0_153 = arith.constant 0 : index
    %172 = vector.load %arg6[%c264, %c0_153] : memref<352x10xf32, #tpu.memory_space<vmem>>, vector<72x10xf32>
    %c265 = arith.constant 265 : index
    %c0_154 = arith.constant 0 : index
    %173 = vector.load %arg6[%c265, %c0_154] : memref<352x10xf32, #tpu.memory_space<vmem>>, vector<72x10xf32>
    %c266 = arith.constant 266 : index
    %c0_155 = arith.constant 0 : index
    %174 = vector.load %arg6[%c266, %c0_155] : memref<352x10xf32, #tpu.memory_space<vmem>>, vector<72x10xf32>
    %c267 = arith.constant 267 : index
    %c0_156 = arith.constant 0 : index
    %175 = vector.load %arg6[%c267, %c0_156] : memref<352x10xf32, #tpu.memory_space<vmem>>, vector<72x10xf32>
    %c268 = arith.constant 268 : index
    %c0_157 = arith.constant 0 : index
    %176 = vector.load %arg6[%c268, %c0_157] : memref<352x10xf32, #tpu.memory_space<vmem>>, vector<72x10xf32>
    %177 = tpu.concatenate %152, %153, %154, %155, %156, %157, %158, %159, %160, %161, %162, %163, %164, %165, %166, %167 in 1 : vector<72x10xf32>, vector<72x10xf32>, vector<72x10xf32>, vector<72x10xf32>, vector<72x10xf32>, vector<72x10xf32>, vector<72x10xf32>, vector<72x10xf32>, vector<72x10xf32>, vector<72x10xf32>, vector<72x10xf32>, vector<72x10xf32>, vector<72x10xf32>, vector<72x10xf32>, vector<72x10xf32>, vector<72x10xf32> -> vector<72x160xf32>
    %178 = tpu.concatenate %168, %169, %170, %171, %172, %173, %174, %175, %176 in 1 : vector<72x10xf32>, vector<72x10xf32>, vector<72x10xf32>, vector<72x10xf32>, vector<72x10xf32>, vector<72x10xf32>, vector<72x10xf32>, vector<72x10xf32>, vector<72x10xf32> -> vector<72x90xf32>
    %179 = tpu.concatenate %177, %178 in 1 : vector<72x160xf32>, vector<72x90xf32> -> vector<72x250xf32>
    %cst_158 = arith.constant dense<0.000000e+00> : vector<72x10xf32>
    %180 = tpu.matmul %179, %48, %cst_158 {dimension_numbers = #tpu.dot_dimension_numbers<[1], [0], [0], [1], [0, 0, 1, 1], [], []>} : vector<72x250xf32>, vector<250x10xf32>, vector<72x10xf32> -> vector<72x10xf32>
    %181 = vector.broadcast %49 : vector<1x10xf32> to vector<72x10xf32>
    %182 = arith.addf %180, %181 : vector<72x10xf32>
    %cst_159 = arith.constant 0.000000e+00 : f32
    %183 = vector.broadcast %cst_159 : f32 to vector<72x10xf32>
    %184 = arith.maximumf %182, %183 : vector<72x10xf32>
    %c216_160 = arith.constant 216 : index
    %c0_161 = arith.constant 0 : index
    %185 = vector.load %arg7[%c216_160, %c0_161] : memref<288x10xf32, #tpu.memory_space<vmem>>, vector<72x10xf32>
    tpu.vector_store %arg7[%c216_160, %c0_161], %184 {strides = array<i32>} : memref<288x10xf32, #tpu.memory_space<vmem>>, vector<72x10xf32>,
    %c0_162 = arith.constant 0 : index
    %c0_163 = arith.constant 0 : index
    %186 = tpu.strided_load %arg7[%c0_162, %c0_163] {strides = array<i32: 144, 1>} : memref<288x10xf32, #tpu.memory_space<vmem>>, vector<2x10xf32>
    %c1_164 = arith.constant 1 : index
    %c0_165 = arith.constant 0 : index
    %187 = tpu.strided_load %arg7[%c1_164, %c0_165] {strides = array<i32: 144, 1>} : memref<288x10xf32, #tpu.memory_space<vmem>>, vector<2x10xf32>
    %188 = arith.maximumf %186, %187 : vector<2x10xf32>
    %c12_166 = arith.constant 12 : index
    %c0_167 = arith.constant 0 : index
    %189 = tpu.strided_load %arg7[%c12_166, %c0_167] {strides = array<i32: 144, 1>} : memref<288x10xf32, #tpu.memory_space<vmem>>, vector<2x10xf32>
    %190 = arith.maximumf %188, %189 : vector<2x10xf32>
    %c13_168 = arith.constant 13 : index
    %c0_169 = arith.constant 0 : index
    %191 = tpu.strided_load %arg7[%c13_168, %c0_169] {strides = array<i32: 144, 1>} : memref<288x10xf32, #tpu.memory_space<vmem>>, vector<2x10xf32>
    %192 = arith.maximumf %190, %191 : vector<2x10xf32>
    %c2_170 = arith.constant 2 : index
    %c0_171 = arith.constant 0 : index
    %193 = tpu.strided_load %arg7[%c2_170, %c0_171] {strides = array<i32: 144, 1>} : memref<288x10xf32, #tpu.memory_space<vmem>>, vector<2x10xf32>
    %c3_172 = arith.constant 3 : index
    %c0_173 = arith.constant 0 : index
    %194 = tpu.strided_load %arg7[%c3_172, %c0_173] {strides = array<i32: 144, 1>} : memref<288x10xf32, #tpu.memory_space<vmem>>, vector<2x10xf32>
    %195 = arith.maximumf %193, %194 : vector<2x10xf32>
    %c14_174 = arith.constant 14 : index
    %c0_175 = arith.constant 0 : index
    %196 = tpu.strided_load %arg7[%c14_174, %c0_175] {strides = array<i32: 144, 1>} : memref<288x10xf32, #tpu.memory_space<vmem>>, vector<2x10xf32>
    %197 = arith.maximumf %195, %196 : vector<2x10xf32>
    %c15_176 = arith.constant 15 : index
    %c0_177 = arith.constant 0 : index
    %198 = tpu.strided_load %arg7[%c15_176, %c0_177] {strides = array<i32: 144, 1>} : memref<288x10xf32, #tpu.memory_space<vmem>>, vector<2x10xf32>
    %199 = arith.maximumf %197, %198 : vector<2x10xf32>
    %c4_178 = arith.constant 4 : index
    %c0_179 = arith.constant 0 : index
    %200 = tpu.strided_load %arg7[%c4_178, %c0_179] {strides = array<i32: 144, 1>} : memref<288x10xf32, #tpu.memory_space<vmem>>, vector<2x10xf32>
    %c5 = arith.constant 5 : index
    %c0_180 = arith.constant 0 : index
    %201 = tpu.strided_load %arg7[%c5, %c0_180] {strides = array<i32: 144, 1>} : memref<288x10xf32, #tpu.memory_space<vmem>>, vector<2x10xf32>
    %202 = arith.maximumf %200, %201 : vector<2x10xf32>
    %c16_181 = arith.constant 16 : index
    %c0_182 = arith.constant 0 : index
    %203 = tpu.strided_load %arg7[%c16_181, %c0_182] {strides = array<i32: 144, 1>} : memref<288x10xf32, #tpu.memory_space<vmem>>, vector<2x10xf32>
    %204 = arith.maximumf %202, %203 : vector<2x10xf32>
    %c17 = arith.constant 17 : index
    %c0_183 = arith.constant 0 : index
    %205 = tpu.strided_load %arg7[%c17, %c0_183] {strides = array<i32: 144, 1>} : memref<288x10xf32, #tpu.memory_space<vmem>>, vector<2x10xf32>
    %206 = arith.maximumf %204, %205 : vector<2x10xf32>
    %c6 = arith.constant 6 : index
    %c0_184 = arith.constant 0 : index
    %207 = tpu.strided_load %arg7[%c6, %c0_184] {strides = array<i32: 144, 1>} : memref<288x10xf32, #tpu.memory_space<vmem>>, vector<2x10xf32>
    %c7 = arith.constant 7 : index
    %c0_185 = arith.constant 0 : index
    %208 = tpu.strided_load %arg7[%c7, %c0_185] {strides = array<i32: 144, 1>} : memref<288x10xf32, #tpu.memory_space<vmem>>, vector<2x10xf32>
    %209 = arith.maximumf %207, %208 : vector<2x10xf32>
    %c18 = arith.constant 18 : index
    %c0_186 = arith.constant 0 : index
    %210 = tpu.strided_load %arg7[%c18, %c0_186] {strides = array<i32: 144, 1>} : memref<288x10xf32, #tpu.memory_space<vmem>>, vector<2x10xf32>
    %211 = arith.maximumf %209, %210 : vector<2x10xf32>
    %c19 = arith.constant 19 : index
    %c0_187 = arith.constant 0 : index
    %212 = tpu.strided_load %arg7[%c19, %c0_187] {strides = array<i32: 144, 1>} : memref<288x10xf32, #tpu.memory_space<vmem>>, vector<2x10xf32>
    %213 = arith.maximumf %211, %212 : vector<2x10xf32>
    %c24_188 = arith.constant 24 : index
    %c0_189 = arith.constant 0 : index
    %214 = tpu.strided_load %arg7[%c24_188, %c0_189] {strides = array<i32: 144, 1>} : memref<288x10xf32, #tpu.memory_space<vmem>>, vector<2x10xf32>
    %c25_190 = arith.constant 25 : index
    %c0_191 = arith.constant 0 : index
    %215 = tpu.strided_load %arg7[%c25_190, %c0_191] {strides = array<i32: 144, 1>} : memref<288x10xf32, #tpu.memory_space<vmem>>, vector<2x10xf32>
    %216 = arith.maximumf %214, %215 : vector<2x10xf32>
    %c36_192 = arith.constant 36 : index
    %c0_193 = arith.constant 0 : index
    %217 = tpu.strided_load %arg7[%c36_192, %c0_193] {strides = array<i32: 144, 1>} : memref<288x10xf32, #tpu.memory_space<vmem>>, vector<2x10xf32>
    %218 = arith.maximumf %216, %217 : vector<2x10xf32>
    %c37_194 = arith.constant 37 : index
    %c0_195 = arith.constant 0 : index
    %219 = tpu.strided_load %arg7[%c37_194, %c0_195] {strides = array<i32: 144, 1>} : memref<288x10xf32, #tpu.memory_space<vmem>>, vector<2x10xf32>
    %220 = arith.maximumf %218, %219 : vector<2x10xf32>
    %c26_196 = arith.constant 26 : index
    %c0_197 = arith.constant 0 : index
    %221 = tpu.strided_load %arg7[%c26_196, %c0_197] {strides = array<i32: 144, 1>} : memref<288x10xf32, #tpu.memory_space<vmem>>, vector<2x10xf32>
    %c27_198 = arith.constant 27 : index
    %c0_199 = arith.constant 0 : index
    %222 = tpu.strided_load %arg7[%c27_198, %c0_199] {strides = array<i32: 144, 1>} : memref<288x10xf32, #tpu.memory_space<vmem>>, vector<2x10xf32>
    %223 = arith.maximumf %221, %222 : vector<2x10xf32>
    %c38_200 = arith.constant 38 : index
    %c0_201 = arith.constant 0 : index
    %224 = tpu.strided_load %arg7[%c38_200, %c0_201] {strides = array<i32: 144, 1>} : memref<288x10xf32, #tpu.memory_space<vmem>>, vector<2x10xf32>
    %225 = arith.maximumf %223, %224 : vector<2x10xf32>
    %c39_202 = arith.constant 39 : index
    %c0_203 = arith.constant 0 : index
    %226 = tpu.strided_load %arg7[%c39_202, %c0_203] {strides = array<i32: 144, 1>} : memref<288x10xf32, #tpu.memory_space<vmem>>, vector<2x10xf32>
    %227 = arith.maximumf %225, %226 : vector<2x10xf32>
    %c28_204 = arith.constant 28 : index
    %c0_205 = arith.constant 0 : index
    %228 = tpu.strided_load %arg7[%c28_204, %c0_205] {strides = array<i32: 144, 1>} : memref<288x10xf32, #tpu.memory_space<vmem>>, vector<2x10xf32>
    %c29 = arith.constant 29 : index
    %c0_206 = arith.constant 0 : index
    %229 = tpu.strided_load %arg7[%c29, %c0_206] {strides = array<i32: 144, 1>} : memref<288x10xf32, #tpu.memory_space<vmem>>, vector<2x10xf32>
    %230 = arith.maximumf %228, %229 : vector<2x10xf32>
    %c40_207 = arith.constant 40 : index
    %c0_208 = arith.constant 0 : index
    %231 = tpu.strided_load %arg7[%c40_207, %c0_208] {strides = array<i32: 144, 1>} : memref<288x10xf32, #tpu.memory_space<vmem>>, vector<2x10xf32>
    %232 = arith.maximumf %230, %231 : vector<2x10xf32>
    %c41 = arith.constant 41 : index
    %c0_209 = arith.constant 0 : index
    %233 = tpu.strided_load %arg7[%c41, %c0_209] {strides = array<i32: 144, 1>} : memref<288x10xf32, #tpu.memory_space<vmem>>, vector<2x10xf32>
    %234 = arith.maximumf %232, %233 : vector<2x10xf32>
    %c30 = arith.constant 30 : index
    %c0_210 = arith.constant 0 : index
    %235 = tpu.strided_load %arg7[%c30, %c0_210] {strides = array<i32: 144, 1>} : memref<288x10xf32, #tpu.memory_space<vmem>>, vector<2x10xf32>
    %c31 = arith.constant 31 : index
    %c0_211 = arith.constant 0 : index
    %236 = tpu.strided_load %arg7[%c31, %c0_211] {strides = array<i32: 144, 1>} : memref<288x10xf32, #tpu.memory_space<vmem>>, vector<2x10xf32>
    %237 = arith.maximumf %235, %236 : vector<2x10xf32>
    %c42 = arith.constant 42 : index
    %c0_212 = arith.constant 0 : index
    %238 = tpu.strided_load %arg7[%c42, %c0_212] {strides = array<i32: 144, 1>} : memref<288x10xf32, #tpu.memory_space<vmem>>, vector<2x10xf32>
    %239 = arith.maximumf %237, %238 : vector<2x10xf32>
    %c43 = arith.constant 43 : index
    %c0_213 = arith.constant 0 : index
    %240 = tpu.strided_load %arg7[%c43, %c0_213] {strides = array<i32: 144, 1>} : memref<288x10xf32, #tpu.memory_space<vmem>>, vector<2x10xf32>
    %241 = arith.maximumf %239, %240 : vector<2x10xf32>
    %c48_214 = arith.constant 48 : index
    %c0_215 = arith.constant 0 : index
    %242 = tpu.strided_load %arg7[%c48_214, %c0_215] {strides = array<i32: 144, 1>} : memref<288x10xf32, #tpu.memory_space<vmem>>, vector<2x10xf32>
    %c49_216 = arith.constant 49 : index
    %c0_217 = arith.constant 0 : index
    %243 = tpu.strided_load %arg7[%c49_216, %c0_217] {strides = array<i32: 144, 1>} : memref<288x10xf32, #tpu.memory_space<vmem>>, vector<2x10xf32>
    %244 = arith.maximumf %242, %243 : vector<2x10xf32>
    %c60 = arith.constant 60 : index
    %c0_218 = arith.constant 0 : index
    %245 = tpu.strided_load %arg7[%c60, %c0_218] {strides = array<i32: 144, 1>} : memref<288x10xf32, #tpu.memory_space<vmem>>, vector<2x10xf32>
    %246 = arith.maximumf %244, %245 : vector<2x10xf32>
    %c61 = arith.constant 61 : index
    %c0_219 = arith.constant 0 : index
    %247 = tpu.strided_load %arg7[%c61, %c0_219] {strides = array<i32: 144, 1>} : memref<288x10xf32, #tpu.memory_space<vmem>>, vector<2x10xf32>
    %248 = arith.maximumf %246, %247 : vector<2x10xf32>
    %c50_220 = arith.constant 50 : index
    %c0_221 = arith.constant 0 : index
    %249 = tpu.strided_load %arg7[%c50_220, %c0_221] {strides = array<i32: 144, 1>} : memref<288x10xf32, #tpu.memory_space<vmem>>, vector<2x10xf32>
    %c51_222 = arith.constant 51 : index
    %c0_223 = arith.constant 0 : index
    %250 = tpu.strided_load %arg7[%c51_222, %c0_223] {strides = array<i32: 144, 1>} : memref<288x10xf32, #tpu.memory_space<vmem>>, vector<2x10xf32>
    %251 = arith.maximumf %249, %250 : vector<2x10xf32>
    %c62 = arith.constant 62 : index
    %c0_224 = arith.constant 0 : index
    %252 = tpu.strided_load %arg7[%c62, %c0_224] {strides = array<i32: 144, 1>} : memref<288x10xf32, #tpu.memory_space<vmem>>, vector<2x10xf32>
    %253 = arith.maximumf %251, %252 : vector<2x10xf32>
    %c63 = arith.constant 63 : index
    %c0_225 = arith.constant 0 : index
    %254 = tpu.strided_load %arg7[%c63, %c0_225] {strides = array<i32: 144, 1>} : memref<288x10xf32, #tpu.memory_space<vmem>>, vector<2x10xf32>
    %255 = arith.maximumf %253, %254 : vector<2x10xf32>
    %c52_226 = arith.constant 52 : index
    %c0_227 = arith.constant 0 : index
    %256 = tpu.strided_load %arg7[%c52_226, %c0_227] {strides = array<i32: 144, 1>} : memref<288x10xf32, #tpu.memory_space<vmem>>, vector<2x10xf32>
    %c53 = arith.constant 53 : index
    %c0_228 = arith.constant 0 : index
    %257 = tpu.strided_load %arg7[%c53, %c0_228] {strides = array<i32: 144, 1>} : memref<288x10xf32, #tpu.memory_space<vmem>>, vector<2x10xf32>
    %258 = arith.maximumf %256, %257 : vector<2x10xf32>
    %c64 = arith.constant 64 : index
    %c0_229 = arith.constant 0 : index
    %259 = tpu.strided_load %arg7[%c64, %c0_229] {strides = array<i32: 144, 1>} : memref<288x10xf32, #tpu.memory_space<vmem>>, vector<2x10xf32>
    %260 = arith.maximumf %258, %259 : vector<2x10xf32>
    %c65 = arith.constant 65 : index
    %c0_230 = arith.constant 0 : index
    %261 = tpu.strided_load %arg7[%c65, %c0_230] {strides = array<i32: 144, 1>} : memref<288x10xf32, #tpu.memory_space<vmem>>, vector<2x10xf32>
    %262 = arith.maximumf %260, %261 : vector<2x10xf32>
    %c54 = arith.constant 54 : index
    %c0_231 = arith.constant 0 : index
    %263 = tpu.strided_load %arg7[%c54, %c0_231] {strides = array<i32: 144, 1>} : memref<288x10xf32, #tpu.memory_space<vmem>>, vector<2x10xf32>
    %c55 = arith.constant 55 : index
    %c0_232 = arith.constant 0 : index
    %264 = tpu.strided_load %arg7[%c55, %c0_232] {strides = array<i32: 144, 1>} : memref<288x10xf32, #tpu.memory_space<vmem>>, vector<2x10xf32>
    %265 = arith.maximumf %263, %264 : vector<2x10xf32>
    %c66 = arith.constant 66 : index
    %c0_233 = arith.constant 0 : index
    %266 = tpu.strided_load %arg7[%c66, %c0_233] {strides = array<i32: 144, 1>} : memref<288x10xf32, #tpu.memory_space<vmem>>, vector<2x10xf32>
    %267 = arith.maximumf %265, %266 : vector<2x10xf32>
    %c67 = arith.constant 67 : index
    %c0_234 = arith.constant 0 : index
    %268 = tpu.strided_load %arg7[%c67, %c0_234] {strides = array<i32: 144, 1>} : memref<288x10xf32, #tpu.memory_space<vmem>>, vector<2x10xf32>
    %269 = arith.maximumf %267, %268 : vector<2x10xf32>
    %c72_235 = arith.constant 72 : index
    %c0_236 = arith.constant 0 : index
    %270 = tpu.strided_load %arg7[%c72_235, %c0_236] {strides = array<i32: 144, 1>} : memref<288x10xf32, #tpu.memory_space<vmem>>, vector<2x10xf32>
    %c73_237 = arith.constant 73 : index
    %c0_238 = arith.constant 0 : index
    %271 = tpu.strided_load %arg7[%c73_237, %c0_238] {strides = array<i32: 144, 1>} : memref<288x10xf32, #tpu.memory_space<vmem>>, vector<2x10xf32>
    %272 = arith.maximumf %270, %271 : vector<2x10xf32>
    %c84_239 = arith.constant 84 : index
    %c0_240 = arith.constant 0 : index
    %273 = tpu.strided_load %arg7[%c84_239, %c0_240] {strides = array<i32: 144, 1>} : memref<288x10xf32, #tpu.memory_space<vmem>>, vector<2x10xf32>
    %274 = arith.maximumf %272, %273 : vector<2x10xf32>
    %c85_241 = arith.constant 85 : index
    %c0_242 = arith.constant 0 : index
    %275 = tpu.strided_load %arg7[%c85_241, %c0_242] {strides = array<i32: 144, 1>} : memref<288x10xf32, #tpu.memory_space<vmem>>, vector<2x10xf32>
    %276 = arith.maximumf %274, %275 : vector<2x10xf32>
    %c74_243 = arith.constant 74 : index
    %c0_244 = arith.constant 0 : index
    %277 = tpu.strided_load %arg7[%c74_243, %c0_244] {strides = array<i32: 144, 1>} : memref<288x10xf32, #tpu.memory_space<vmem>>, vector<2x10xf32>
    %c75_245 = arith.constant 75 : index
    %c0_246 = arith.constant 0 : index
    %278 = tpu.strided_load %arg7[%c75_245, %c0_246] {strides = array<i32: 144, 1>} : memref<288x10xf32, #tpu.memory_space<vmem>>, vector<2x10xf32>
    %279 = arith.maximumf %277, %278 : vector<2x10xf32>
    %c86_247 = arith.constant 86 : index
    %c0_248 = arith.constant 0 : index
    %280 = tpu.strided_load %arg7[%c86_247, %c0_248] {strides = array<i32: 144, 1>} : memref<288x10xf32, #tpu.memory_space<vmem>>, vector<2x10xf32>
    %281 = arith.maximumf %279, %280 : vector<2x10xf32>
    %c87_249 = arith.constant 87 : index
    %c0_250 = arith.constant 0 : index
    %282 = tpu.strided_load %arg7[%c87_249, %c0_250] {strides = array<i32: 144, 1>} : memref<288x10xf32, #tpu.memory_space<vmem>>, vector<2x10xf32>
    %283 = arith.maximumf %281, %282 : vector<2x10xf32>
    %c76_251 = arith.constant 76 : index
    %c0_252 = arith.constant 0 : index
    %284 = tpu.strided_load %arg7[%c76_251, %c0_252] {strides = array<i32: 144, 1>} : memref<288x10xf32, #tpu.memory_space<vmem>>, vector<2x10xf32>
    %c77 = arith.constant 77 : index
    %c0_253 = arith.constant 0 : index
    %285 = tpu.strided_load %arg7[%c77, %c0_253] {strides = array<i32: 144, 1>} : memref<288x10xf32, #tpu.memory_space<vmem>>, vector<2x10xf32>
    %286 = arith.maximumf %284, %285 : vector<2x10xf32>
    %c88_254 = arith.constant 88 : index
    %c0_255 = arith.constant 0 : index
    %287 = tpu.strided_load %arg7[%c88_254, %c0_255] {strides = array<i32: 144, 1>} : memref<288x10xf32, #tpu.memory_space<vmem>>, vector<2x10xf32>
    %288 = arith.maximumf %286, %287 : vector<2x10xf32>
    %c89 = arith.constant 89 : index
    %c0_256 = arith.constant 0 : index
    %289 = tpu.strided_load %arg7[%c89, %c0_256] {strides = array<i32: 144, 1>} : memref<288x10xf32, #tpu.memory_space<vmem>>, vector<2x10xf32>
    %290 = arith.maximumf %288, %289 : vector<2x10xf32>
    %c78 = arith.constant 78 : index
    %c0_257 = arith.constant 0 : index
    %291 = tpu.strided_load %arg7[%c78, %c0_257] {strides = array<i32: 144, 1>} : memref<288x10xf32, #tpu.memory_space<vmem>>, vector<2x10xf32>
    %c79 = arith.constant 79 : index
    %c0_258 = arith.constant 0 : index
    %292 = tpu.strided_load %arg7[%c79, %c0_258] {strides = array<i32: 144, 1>} : memref<288x10xf32, #tpu.memory_space<vmem>>, vector<2x10xf32>
    %293 = arith.maximumf %291, %292 : vector<2x10xf32>
    %c90 = arith.constant 90 : index
    %c0_259 = arith.constant 0 : index
    %294 = tpu.strided_load %arg7[%c90, %c0_259] {strides = array<i32: 144, 1>} : memref<288x10xf32, #tpu.memory_space<vmem>>, vector<2x10xf32>
    %295 = arith.maximumf %293, %294 : vector<2x10xf32>
    %c91 = arith.constant 91 : index
    %c0_260 = arith.constant 0 : index
    %296 = tpu.strided_load %arg7[%c91, %c0_260] {strides = array<i32: 144, 1>} : memref<288x10xf32, #tpu.memory_space<vmem>>, vector<2x10xf32>
    %297 = arith.maximumf %295, %296 : vector<2x10xf32>
    %298 = tpu.concatenate %192, %199, %206, %213, %220, %227, %234, %241, %248, %255, %262, %269, %276, %283, %290, %297 in 1 : vector<2x10xf32>, vector<2x10xf32>, vector<2x10xf32>, vector<2x10xf32>, vector<2x10xf32>, vector<2x10xf32>, vector<2x10xf32>, vector<2x10xf32>, vector<2x10xf32>, vector<2x10xf32>, vector<2x10xf32>, vector<2x10xf32>, vector<2x10xf32>, vector<2x10xf32>, vector<2x10xf32>, vector<2x10xf32> -> vector<2x160xf32>
    %c0_261 = arith.constant 0 : index
    %c0_262 = arith.constant 0 : index
    %299 = vector.load %arg3[%c0_261, %c0_262] : memref<291x64xf32, #tpu.memory_space<vmem>>, vector<160x64xf32>
    %c160_263 = arith.constant 160 : index
    %c0_264 = arith.constant 0 : index
    %300 = vector.load %arg3[%c160_263, %c0_264] : memref<291x64xf32, #tpu.memory_space<vmem>>, vector<64x64xf32>
    %c224 = arith.constant 224 : index
    %c0_265 = arith.constant 0 : index
    %301 = vector.load %arg3[%c224, %c0_265] : memref<291x64xf32, #tpu.memory_space<vmem>>, vector<64x64xf32>
    %c288_266 = arith.constant 288 : index
    %c0_267 = arith.constant 0 : index
    %302 = vector.load %arg3[%c288_266, %c0_267] : memref<291x64xf32, #tpu.memory_space<vmem>>, vector<1x64xf32>
    %c289 = arith.constant 289 : index
    %c0_268 = arith.constant 0 : index
    %303 = vector.load %arg3[%c289, %c0_268] : memref<291x64xf32, #tpu.memory_space<vmem>>, vector<1x64xf32>
    %c290 = arith.constant 290 : index
    %c0_269 = arith.constant 0 : index
    %304 = vector.load %arg3[%c290, %c0_269] : memref<291x64xf32, #tpu.memory_space<vmem>>, vector<1x64xf32>
    %cst_270 = arith.constant dense<0.000000e+00> : vector<2x64xf32>
    %305 = tpu.matmul %298, %299, %cst_270 {dimension_numbers = #tpu.dot_dimension_numbers<[1], [0], [0], [1], [0, 0, 1, 1], [], []>} : vector<2x160xf32>, vector<160x64xf32>, vector<2x64xf32> -> vector<2x64xf32>
    %306 = vector.broadcast %302 : vector<1x64xf32> to vector<2x64xf32>
    %307 = arith.addf %305, %306 : vector<2x64xf32>
    %cst_271 = arith.constant 0.000000e+00 : f32
    %308 = vector.broadcast %cst_271 : f32 to vector<2x64xf32>
    %309 = arith.maximumf %307, %308 : vector<2x64xf32>
    %cst_272 = arith.constant dense<0.000000e+00> : vector<2x64xf32>
    %310 = tpu.matmul %309, %300, %cst_272 {dimension_numbers = #tpu.dot_dimension_numbers<[1], [0], [0], [1], [0, 0, 1, 1], [], []>} : vector<2x64xf32>, vector<64x64xf32>, vector<2x64xf32> -> vector<2x64xf32>
    %311 = vector.broadcast %303 : vector<1x64xf32> to vector<2x64xf32>
    %312 = arith.addf %310, %311 : vector<2x64xf32>
    %cst_273 = arith.constant 0.000000e+00 : f32
    %313 = vector.broadcast %cst_273 : f32 to vector<2x64xf32>
    %314 = arith.maximumf %312, %313 : vector<2x64xf32>
    %cst_274 = arith.constant dense<0.000000e+00> : vector<2x64xf32>
    %315 = tpu.matmul %314, %301, %cst_274 {dimension_numbers = #tpu.dot_dimension_numbers<[1], [0], [0], [1], [0, 0, 1, 1], [], []>} : vector<2x64xf32>, vector<64x64xf32>, vector<2x64xf32> -> vector<2x64xf32>
    %316 = vector.broadcast %304 : vector<1x64xf32> to vector<2x64xf32>
    %317 = arith.addf %315, %316 : vector<2x64xf32>
    %318 = vector.extract_strided_slice %317 {offsets = [0, 0], sizes = [2, 10], strides = [1, 1]} : vector<2x64xf32> to vector<2x10xf32>
    %c0_275 = arith.constant 0 : index
    %c0_276 = arith.constant 0 : index
    %319 = vector.load %arg4[%c0_275, %c0_276] : memref<2x10xf32, #tpu.memory_space<vmem>>, vector<2x10xf32>
    tpu.vector_store %arg4[%c0_275, %c0_276], %318 {strides = array<i32>} : memref<2x10xf32, #tpu.memory_space<vmem>>, vector<2x10xf32>,
    return
  }
  func.func @transform_0(%arg0: i32) -> (i32, i32) {
    %c0_i32 = arith.constant 0 : i32
    %c0_i32_0 = arith.constant 0 : i32
    return %arg0, %c0_i32 : i32, i32
  }
  func.func @transform_1(%arg0: i32) -> (i32, i32) {
    %c0_i32 = arith.constant 0 : i32
    %c0_i32_0 = arith.constant 0 : i32
    %c0_i32_1 = arith.constant 0 : i32
    return %c0_i32, %c0_i32_0 : i32, i32
  }
  func.func @transform_2(%arg0: i32) -> (i32, i32) {
    %c0_i32 = arith.constant 0 : i32
    %c0_i32_0 = arith.constant 0 : i32
    %c0_i32_1 = arith.constant 0 : i32
    return %c0_i32, %c0_i32_0 : i32, i32
  }
  func.func @transform_3(%arg0: i32) -> (i32, i32) {
    %c0_i32 = arith.constant 0 : i32
    %c0_i32_0 = arith.constant 0 : i32
    return %arg0, %c0_i32 : i32, i32
  }
}

</mosaic_0001>

<llo_original>
// kernel: ppo_rewards_forward.1
$region0: #{ppo_rewards_forward.1}
  #allocation0 [shape = 'u32[]', space=smem, size = 0x4, offset = 0x4, fixed_abs, tag = 'smem constant byte address 0x4 - core index']
  #allocation1 [shape = 'u32[144,128]{1,0:T(1,128)}', space=vmem, size = 0x12000, scoped, tag = 'internal scratch']
  #allocation2 [shape = 'f32[1152,10]{1,0:T(8,128)}', space=vmem, size = 0x90000, scoped, tag = 'scratch operand']
  #allocation3 [shape = 'f32[352,10]{1,0:T(8,128)}', space=vmem, size = 0x2c000, scoped, tag = 'scratch operand']
  #allocation4 [shape = 'f32[288,10]{1,0:T(8,128)}', space=vmem, size = 0x24000, scoped, tag = 'scratch operand']
  %s0 = inlined_call_operand.vmem [shape: f32[1152,25], index: 0, kind: input, shape index: {}]
  %s1 = inlined_call_operand.vmem [shape: f32[283,10], index: 1, kind: input, shape index: {}]
  %s2 = inlined_call_operand.vmem [shape: f32[291,64], index: 2, kind: input, shape index: {}]
  %s3 = inlined_call_operand.vmem [shape: f32[2,10], index: 3, kind: output, shape index: {}]
  %s4 = sld [smem:[#allocation0]]
  $region22: #{ppo_rewards_forward.1} parent=0
    _
  %s6 = ssub.s32 1, %s4
  %s7 = scalar_select 0, %s6, %s4
  // Predicated region
  $region2: #{ppo_rewards_forward.1} parent=0 // pred_check
    _
  $region3: #{ppo_rewards_forward.1} parent=0 // pred_check_branch
    %9 = sbr.rel (0) target = $region5
  $region4: #{ppo_rewards_forward.1} parent=0 // pred_region
    _
  $region5: #{ppo_rewards_forward.1} parent=0 // pred_fallthru
    _
  // Predicated region
  $region6: #{ppo_rewards_forward.1} parent=0 // pred_check
    _
  $region7: #{ppo_rewards_forward.1} parent=0 // pred_check_branch
    %11 = sbr.rel (0) target = $region9
  $region8: #{ppo_rewards_forward.1} parent=0 // pred_region
    _
  $region9: #{ppo_rewards_forward.1} parent=0 // pred_fallthru
    _
  // Predicated region
  $region10: #{ppo_rewards_forward.1} parent=0 // pred_check
    _
  $region11: #{ppo_rewards_forward.1} parent=0 // pred_check_branch
    %13 = sbr.rel (0) target = $region13
  $region12: #{ppo_rewards_forward.1} parent=0 // pred_region
    _
  $region13: #{ppo_rewards_forward.1} parent=0 // pred_fallthru
    _
  %v14 = vld [vmem:[%s1 + $0x100] sm:$0xff]
  %v15 = vld [vmem:[%s1 + $0x108] sm:$0xff]
  %v16 = vld [vmem:[%s1 + $0x110] sm:$0xff]
  %v17 = vld [vmem:[%s1 + $0x118] sm:$0x1]
  %v18 = vld [vmem:[%s1 + $0x119] sm:$0x1]
  %v19 = vld [vmem:[%s0] sm:$0xff]
  %v20 = vld [vmem:[%s0 + $0x8] sm:$0xff]
  %v21 = vld [vmem:[%s0 + $0x10] sm:$0xff]
  %v22 = vld [vmem:[%s0 + $0x18] sm:$0xff]
  %v23 = vld [vmem:[%s0 + $0x20] sm:$0xff]
  %v24 = vld [vmem:[%s0 + $0x28] sm:$0xff]
  %v25 = vld [vmem:[%s0 + $0x30] sm:$0xff]
  %v26 = vld [vmem:[%s0 + $0x38] sm:$0xff]
  %v27 = vld [vmem:[%s0 + $0x40] sm:$0xff]
  %v28 = vld [vmem:[%s0 + $0x48] sm:$0xff]
  %v29 = vld [vmem:[%s0 + $0x50] sm:$0xff]
  %v30 = vld [vmem:[%s0 + $0x58] sm:$0xff]
  %v31 = vld [vmem:[%s0 + $0x60] sm:$0xff]
  %v32 = vld [vmem:[%s0 + $0x68] sm:$0xff]
  %v33 = vld [vmem:[%s0 + $0x70] sm:$0xff]
  %v34 = vld [vmem:[%s0 + $0x78] sm:$0xff]
  %v35 = vld [vmem:[%s0 + $0x80] sm:$0xff]
  %v36 = vld [vmem:[%s0 + $0x88] sm:$0xff]
  %v37 = vld [vmem:[%s0 + $0x90] sm:$0xff]
  %v38 = vld [vmem:[%s0 + $0x98] sm:$0xff]
  %v39 = vld [vmem:[%s0 + $0xa0] sm:$0xff]
  %v40 = vld [vmem:[%s0 + $0xa8] sm:$0xff]
  %v41 = vld [vmem:[%s0 + $0xb0] sm:$0xff]
  %v42 = vld [vmem:[%s0 + $0xb8] sm:$0xff]
  %v43 = vld [vmem:[%s0 + $0xc0] sm:$0xff]
  %v44 = vld [vmem:[%s0 + $0xc8] sm:$0xff]
  %v45 = vld [vmem:[%s0 + $0xd0] sm:$0xff]
  %v46 = vld [vmem:[%s0 + $0xd8] sm:$0xff]
  %v47 = vld [vmem:[%s0 + $0xe0] sm:$0xff]
  %v48 = vld [vmem:[%s0 + $0xe8] sm:$0xff]
  %v49 = vld [vmem:[%s0 + $0xf0] sm:$0xff]
  %v50 = vld [vmem:[%s0 + $0xf8] sm:$0xff]
  %v51 = vld [vmem:[%s0 + $0x100] sm:$0xff]
  %v52 = vld [vmem:[%s0 + $0x108] sm:$0xff]
  %v53 = vld [vmem:[%s0 + $0x110] sm:$0xff]
  %v54 = vld [vmem:[%s0 + $0x118] sm:$0xff]
  %v55 = vlaneseq
  %v56 = vshrl.u32 %v55, 7
  %v57 = vsub.s32 0, %v56
  %v58 = vrot.slane %v18, %v57
  %vm59 = vcmask 203776
  %v61 = vsel %vm59, %v19, 0
  %v64 = vsel %vm59, %v20, 0
  %v67 = vsel %vm59, %v21, 0
  %v70 = vsel %vm59, %v22, 0
  %v73 = vsel %vm59, %v23, 0
  %v76 = vsel %vm59, %v24, 0
  %v79 = vsel %vm59, %v25, 0
  %v82 = vsel %vm59, %v26, 0
  %v85 = vsel %vm59, %v27, 0
  %v88 = vsel %vm59, %v28, 0
  %v91 = vsel %vm59, %v29, 0
  %v94 = vsel %vm59, %v30, 0
  %v97 = vsel %vm59, %v31, 0
  %v100 = vsel %vm59, %v32, 0
  %v103 = vsel %vm59, %v33, 0
  %v106 = vsel %vm59, %v34, 0
  %v109 = vsel %vm59, %v35, 0
  %v112 = vsel %vm59, %v36, 0
  %v115 = vsel %vm59, %v37, 0
  %v118 = vsel %vm59, %v38, 0
  %v121 = vsel %vm59, %v39, 0
  %v124 = vsel %vm59, %v40, 0
  %v127 = vsel %vm59, %v41, 0
  %v130 = vsel %vm59, %v42, 0
  %v133 = vsel %vm59, %v43, 0
  %v136 = vsel %vm59, %v44, 0
  %v139 = vsel %vm59, %v45, 0
  %v142 = vsel %vm59, %v46, 0
  %v145 = vsel %vm59, %v47, 0
  %v148 = vsel %vm59, %v48, 0
  %v151 = vsel %vm59, %v49, 0
  %v154 = vsel %vm59, %v50, 0
  %v157 = vsel %vm59, %v51, 0
  %v160 = vsel %vm59, %v52, 0
  %v163 = vsel %vm59, %v53, 0
  %v166 = vsel %vm59, %v54, 0
  %vm168 = vcmask 1040384
  %v170 = vsel %vm168, %v17, 0
  %172 = vmatprep.subr.mxu0 0.0
  %173 = vmatpush1.msra.mxu0 %v14
  %174 = vmatprep.subr.mxu0 0.0
  %175 = vmatpush1.msra.mxu0 %v15
  %176 = vmatprep.subr.mxu0 0.0
  %177 = vmatpush1.msra.mxu0 %v16
  %178 = vmatprep.subr.mxu0 0.0
  %179 = vmatpush1.msra.mxu0 %v170
  %180 = vmatprep.subr.mxu0 0.0
  %181 = vmatpush1.msra.mxu0 0.0
  %182 = vmatprep.subr.mxu0 0.0
  %183 = vmatpush1.msra.mxu0 0.0
  %184 = vmatprep.subr.mxu0 0.0
  %185 = vmatpush1.msra.mxu0 0.0
  %186 = vmatprep.subr.mxu0 0.0
  %187 = vmatpush1.msra.mxu0 0.0
  %188 = vmatprep.subr.mxu0 0.0
  %189 = vmatpush1.msra.mxu0 0.0
  %190 = vmatprep.subr.mxu0 0.0
  %191 = vmatpush1.msra.mxu0 0.0
  %192 = vmatprep.subr.mxu0 0.0
  %193 = vmatpush1.msra.mxu0 0.0
  %194 = vmatprep.subr.mxu0 0.0
  %195 = vmatpush1.msra.mxu0 0.0
  %196 = vmatprep.subr.mxu0 0.0
  %197 = vmatpush1.msra.mxu0 0.0
  %198 = vmatprep.subr.mxu0 0.0
  %199 = vmatpush1.msra.mxu0 0.0
  %200 = vmatprep.subr.mxu0 0.0
  %201 = vmatpush1.msra.mxu0 0.0
  %202 = vmatprep.subr.mxu0 0.0
  %203 = vmatpush1.msra.mxu0 0.0
  %204 = vmatprep.subr.mxu0 0.0
  %205 = vmatpush1.msra.mxu0 0.0
  %206 = vmatprep.subr.mxu0 0.0
  %207 = vmatpush1.msra.mxu0 0.0
  %208 = vmatprep.subr.mxu0 0.0
  %209 = vmatpush1.msra.mxu0 0.0
  %210 = vmatprep.subr.mxu0 0.0
  %211 = vmatpush1.msra.mxu0 0.0
  %212 = vmatprep.subr.mxu0 0.0
  %213 = vmatpush1.msra.mxu0 0.0
  %214 = vmatprep.subr.mxu0 0.0
  %215 = vmatpush1.msra.mxu0 0.0
  %216 = vmatprep.subr.mxu0 0.0
  %217 = vmatpush1.msra.mxu0 0.0
  %218 = vmatprep.subr.mxu0 0.0
  %219 = vmatpush1.msra.mxu0 0.0
  %220 = vmatprep.subr.mxu0 0.0
  %221 = vmatpush1.msra.mxu0 0.0
  %222 = vmatprep.subr.mxu0 0.0
  %223 = vmatpush1.msra.mxu0 0.0
  %224 = vmatprep.subr.mxu0 0.0
  %225 = vmatpush1.msra.mxu0 0.0
  %226 = vmatprep.subr.mxu0 0.0
  %227 = vmatpush1.msra.mxu0 0.0
  %228 = vmatprep.subr.mxu0 0.0
  %229 = vmatpush1.msra.mxu0 0.0
  %230 = vmatprep.subr.mxu0 0.0
  %231 = vmatpush1.msra.mxu0 0.0
  %232 = vmatprep.subr.mxu0 0.0
  %233 = vmatpush1.msra.mxu0 0.0
  %234 = vmatprep.subr.mxu0 0.0
  %235 = vmatpush1.msra.mxu0 0.0
  %236 = vmatprep.mubr.f32.mxu0 0.0
  %237 = vmatmul.mubr.f32.gmra.mrb[0].mxu0 %v61
  %v238 = vpop.f32.mrb[0].mxu0
  %v239 = vadd.f32 %v58, %v238
  %v240 = vpop.f32.mrb[0].mxu0
  %241 = vmatprep.mubr.f32.mxu0 0.0
  %242 = vmatmul.mubr.f32.gmra.mrb[0].mxu0 %v64
  %v243 = vpop.f32.mrb[0].mxu0
  %v244 = vadd.f32 %v58, %v243
  %v245 = vpop.f32.mrb[0].mxu0
  %246 = vmatprep.mubr.f32.mxu0 0.0
  %247 = vmatmul.mubr.f32.gmra.mrb[0].mxu0 %v67
  %v248 = vpop.f32.mrb[0].mxu0
  %v249 = vadd.f32 %v58, %v248
  %v250 = vpop.f32.mrb[0].mxu0
  %251 = vmatprep.mubr.f32.mxu0 0.0
  %252 = vmatmul.mubr.f32.gmra.mrb[0].mxu0 %v70
  %v253 = vpop.f32.mrb[0].mxu0
  %v254 = vadd.f32 %v58, %v253
  %v255 = vpop.f32.mrb[0].mxu0
  %256 = vmatprep.mubr.f32.mxu0 0.0
  %257 = vmatmul.mubr.f32.gmra.mrb[0].mxu0 %v73
  %v258 = vpop.f32.mrb[0].mxu0
  %v259 = vadd.f32 %v58, %v258
  %v260 = vpop.f32.mrb[0].mxu0
  %261 = vmatprep.mubr.f32.mxu0 0.0
  %262 = vmatmul.mubr.f32.gmra.mrb[0].mxu0 %v76
  %v263 = vpop.f32.mrb[0].mxu0
  %v264 = vadd.f32 %v58, %v263
  %v265 = vpop.f32.mrb[0].mxu0
  %266 = vmatprep.mubr.f32.mxu0 0.0
  %267 = vmatmul.mubr.f32.gmra.mrb[0].mxu0 %v79
  %v268 = vpop.f32.mrb[0].mxu0
  %v269 = vadd.f32 %v58, %v268
  %v270 = vpop.f32.mrb[0].mxu0
  %271 = vmatprep.mubr.f32.mxu0 0.0
  %272 = vmatmul.mubr.f32.gmra.mrb[0].mxu0 %v82
  %v273 = vpop.f32.mrb[0].mxu0
  %v274 = vadd.f32 %v58, %v273
  %v275 = vpop.f32.mrb[0].mxu0
  %276 = vmatprep.mubr.f32.mxu0 0.0
  %277 = vmatmul.mubr.f32.gmra.mrb[0].mxu0 %v85
  %v278 = vpop.f32.mrb[0].mxu0
  %v279 = vadd.f32 %v58, %v278
  %v280 = vpop.f32.mrb[0].mxu0
  %281 = vmatprep.mubr.f32.mxu0 0.0
  %282 = vmatmul.mubr.f32.gmra.mrb[0].mxu0 %v88
  %v283 = vpop.f32.mrb[0].mxu0
  %v284 = vadd.f32 %v58, %v283
  %v285 = vpop.f32.mrb[0].mxu0
  %286 = vmatprep.mubr.f32.mxu0 0.0
  %287 = vmatmul.mubr.f32.gmra.mrb[0].mxu0 %v91
  %v288 = vpop.f32.mrb[0].mxu0
  %v289 = vadd.f32 %v58, %v288
  %v290 = vpop.f32.mrb[0].mxu0
  %291 = vmatprep.mubr.f32.mxu0 0.0
  %292 = vmatmul.mubr.f32.gmra.mrb[0].mxu0 %v94
  %v293 = vpop.f32.mrb[0].mxu0
  %v294 = vadd.f32 %v58, %v293
  %v295 = vpop.f32.mrb[0].mxu0
  %296 = vmatprep.mubr.f32.mxu0 0.0
  %297 = vmatmul.mubr.f32.gmra.mrb[0].mxu0 %v97
  %v298 = vpop.f32.mrb[0].mxu0
  %v299 = vadd.f32 %v58, %v298
  %v300 = vpop.f32.mrb[0].mxu0
  %301 = vmatprep.mubr.f32.mxu0 0.0
  %302 = vmatmul.mubr.f32.gmra.mrb[0].mxu0 %v100
  %v303 = vpop.f32.mrb[0].mxu0
  %v304 = vadd.f32 %v58, %v303
  %v305 = vpop.f32.mrb[0].mxu0
  %306 = vmatprep.mubr.f32.mxu0 0.0
  %307 = vmatmul.mubr.f32.gmra.mrb[0].mxu0 %v103
  %v308 = vpop.f32.mrb[0].mxu0
  %v309 = vadd.f32 %v58, %v308
  %v310 = vpop.f32.mrb[0].mxu0
  %311 = vmatprep.mubr.f32.mxu0 0.0
  %312 = vmatmul.mubr.f32.gmra.mrb[0].mxu0 %v106
  %v313 = vpop.f32.mrb[0].mxu0
  %v314 = vadd.f32 %v58, %v313
  %v315 = vpop.f32.mrb[0].mxu0
  %316 = vmatprep.mubr.f32.mxu0 0.0
  %317 = vmatmul.mubr.f32.gmra.mrb[0].mxu0 %v109
  %v318 = vpop.f32.mrb[0].mxu0
  %v319 = vadd.f32 %v58, %v318
  %v320 = vpop.f32.mrb[0].mxu0
  %321 = vmatprep.mubr.f32.mxu0 0.0
  %322 = vmatmul.mubr.f32.gmra.mrb[0].mxu0 %v112
  %v323 = vpop.f32.mrb[0].mxu0
  %v324 = vadd.f32 %v58, %v323
  %v325 = vpop.f32.mrb[0].mxu0
  %326 = vmatprep.mubr.f32.mxu0 0.0
  %327 = vmatmul.mubr.f32.gmra.mrb[0].mxu0 %v115
  %v328 = vpop.f32.mrb[0].mxu0
  %v329 = vadd.f32 %v58, %v328
  %v330 = vpop.f32.mrb[0].mxu0
  %331 = vmatprep.mubr.f32.mxu0 0.0
  %332 = vmatmul.mubr.f32.gmra.mrb[0].mxu0 %v118
  %v333 = vpop.f32.mrb[0].mxu0
  %v334 = vadd.f32 %v58, %v333
  %v335 = vpop.f32.mrb[0].mxu0
  %336 = vmatprep.mubr.f32.mxu0 0.0
  %337 = vmatmul.mubr.f32.gmra.mrb[0].mxu0 %v121
  %v338 = vpop.f32.mrb[0].mxu0
  %v339 = vadd.f32 %v58, %v338
  %v340 = vpop.f32.mrb[0].mxu0
  %341 = vmatprep.mubr.f32.mxu0 0.0
  %342 = vmatmul.mubr.f32.gmra.mrb[0].mxu0 %v124
  %v343 = vpop.f32.mrb[0].mxu0
  %v344 = vadd.f32 %v58, %v343
  %v345 = vpop.f32.mrb[0].mxu0
  %346 = vmatprep.mubr.f32.mxu0 0.0
  %347 = vmatmul.mubr.f32.gmra.mrb[0].mxu0 %v127
  %v348 = vpop.f32.mrb[0].mxu0
  %v349 = vadd.f32 %v58, %v348
  %v350 = vpop.f32.mrb[0].mxu0
  %351 = vmatprep.mubr.f32.mxu0 0.0
  %352 = vmatmul.mubr.f32.gmra.mrb[0].mxu0 %v130
  %v353 = vpop.f32.mrb[0].mxu0
  %v354 = vadd.f32 %v58, %v353
  %v355 = vpop.f32.mrb[0].mxu0
  %356 = vmatprep.mubr.f32.mxu0 0.0
  %357 = vmatmul.mubr.f32.gmra.mrb[0].mxu0 %v133
  %v358 = vpop.f32.mrb[0].mxu0
  %v359 = vadd.f32 %v58, %v358
  %v360 = vpop.f32.mrb[0].mxu0
  %361 = vmatprep.mubr.f32.mxu0 0.0
  %362 = vmatmul.mubr.f32.gmra.mrb[0].mxu0 %v136
  %v363 = vpop.f32.mrb[0].mxu0
  %v364 = vadd.f32 %v58, %v363
  %v365 = vpop.f32.mrb[0].mxu0
  %366 = vmatprep.mubr.f32.mxu0 0.0
  %367 = vmatmul.mubr.f32.gmra.mrb[0].mxu0 %v139
  %v368 = vpop.f32.mrb[0].mxu0
  %v369 = vadd.f32 %v58, %v368
  %v370 = vpop.f32.mrb[0].mxu0
  %371 = vmatprep.mubr.f32.mxu0 0.0
  %372 = vmatmul.mubr.f32.gmra.mrb[0].mxu0 %v142
  %v373 = vpop.f32.mrb[0].mxu0
  %v374 = vadd.f32 %v58, %v373
  %v375 = vpop.f32.mrb[0].mxu0
  %376 = vmatprep.mubr.f32.mxu0 0.0
  %377 = vmatmul.mubr.f32.gmra.mrb[0].mxu0 %v145
  %v378 = vpop.f32.mrb[0].mxu0
  %v379 = vadd.f32 %v58, %v378
  %v380 = vpop.f32.mrb[0].mxu0
  %381 = vmatprep.mubr.f32.mxu0 0.0
  %382 = vmatmul.mubr.f32.gmra.mrb[0].mxu0 %v148
  %v383 = vpop.f32.mrb[0].mxu0
  %v384 = vadd.f32 %v58, %v383
  %v385 = vpop.f32.mrb[0].mxu0
  %386 = vmatprep.mubr.f32.mxu0 0.0
  %387 = vmatmul.mubr.f32.gmra.mrb[0].mxu0 %v151
  %v388 = vpop.f32.mrb[0].mxu0
  %v389 = vadd.f32 %v58, %v388
  %v390 = vpop.f32.mrb[0].mxu0
  %391 = vmatprep.mubr.f32.mxu0 0.0
  %392 = vmatmul.mubr.f32.gmra.mrb[0].mxu0 %v154
  %v393 = vpop.f32.mrb[0].mxu0
  %v394 = vadd.f32 %v58, %v393
  %v395 = vpop.f32.mrb[0].mxu0
  %396 = vmatprep.mubr.f32.mxu0 0.0
  %397 = vmatmul.mubr.f32.gmra.mrb[0].mxu0 %v157
  %v398 = vpop.f32.mrb[0].mxu0
  %v399 = vadd.f32 %v58, %v398
  %v400 = vpop.f32.mrb[0].mxu0
  %401 = vmatprep.mubr.f32.mxu0 0.0
  %402 = vmatmul.mubr.f32.gmra.mrb[0].mxu0 %v160
  %v403 = vpop.f32.mrb[0].mxu0
  %v404 = vadd.f32 %v58, %v403
  %v405 = vpop.f32.mrb[0].mxu0
  %406 = vmatprep.mubr.f32.mxu0 0.0
  %407 = vmatmul.mubr.f32.gmra.mrb[0].mxu0 %v163
  %v408 = vpop.f32.mrb[0].mxu0
  %v409 = vadd.f32 %v58, %v408
  %v410 = vpop.f32.mrb[0].mxu0
  %411 = vmatprep.mubr.f32.mxu0 0.0
  %412 = vmatmul.mubr.f32.gmra.mrb[0].mxu0 %v166
  %v413 = vpop.f32.mrb[0].mxu0
  %v414 = vadd.f32 %v58, %v413
  %v415 = vpop.f32.mrb[0].mxu0
  %416 = vdwg.mxu0
  %v417 = vmax.f32 %v239, 0.0
  %v418 = vmax.f32 %v244, 0.0
  %v419 = vmax.f32 %v249, 0.0
  %v420 = vmax.f32 %v254, 0.0
  %v421 = vmax.f32 %v259, 0.0
  %v422 = vmax.f32 %v264, 0.0
  %v423 = vmax.f32 %v269, 0.0
  %v424 = vmax.f32 %v274, 0.0
  %v425 = vmax.f32 %v279, 0.0
  %v426 = vmax.f32 %v284, 0.0
  %v427 = vmax.f32 %v289, 0.0
  %v428 = vmax.f32 %v294, 0.0
  %v429 = vmax.f32 %v299, 0.0
  %v430 = vmax.f32 %v304, 0.0
  %v431 = vmax.f32 %v309, 0.0
  %v432 = vmax.f32 %v314, 0.0
  %v433 = vmax.f32 %v319, 0.0
  %v434 = vmax.f32 %v324, 0.0
  %v435 = vmax.f32 %v329, 0.0
  %v436 = vmax.f32 %v334, 0.0
  %v437 = vmax.f32 %v339, 0.0
  %v438 = vmax.f32 %v344, 0.0
  %v439 = vmax.f32 %v349, 0.0
  %v440 = vmax.f32 %v354, 0.0
  %v441 = vmax.f32 %v359, 0.0
  %v442 = vmax.f32 %v364, 0.0
  %v443 = vmax.f32 %v369, 0.0
  %v444 = vmax.f32 %v374, 0.0
  %v445 = vmax.f32 %v379, 0.0
  %v446 = vmax.f32 %v384, 0.0
  %v447 = vmax.f32 %v389, 0.0
  %v448 = vmax.f32 %v394, 0.0
  %v449 = vmax.f32 %v399, 0.0
  %v450 = vmax.f32 %v404, 0.0
  %v451 = vmax.f32 %v409, 0.0
  %v452 = vmax.f32 %v414, 0.0
  %vm453 = vcmask 80896
  %454 = vst.msk [vmem:[#allocation2] sm:$0xff] %vm453, %v417
  %455 = vst.msk [vmem:[#allocation2 + $0x8] sm:$0xff] %vm453, %v418
  %456 = vst.msk [vmem:[#allocation2 + $0x10] sm:$0xff] %vm453, %v419
  %457 = vst.msk [vmem:[#allocation2 + $0x18] sm:$0xff] %vm453, %v420
  %458 = vst.msk [vmem:[#allocation2 + $0x20] sm:$0xff] %vm453, %v421
  %459 = vst.msk [vmem:[#allocation2 + $0x28] sm:$0xff] %vm453, %v422
  %460 = vst.msk [vmem:[#allocation2 + $0x30] sm:$0xff] %vm453, %v423
  %461 = vst.msk [vmem:[#allocation2 + $0x38] sm:$0xff] %vm453, %v424
  %462 = vst.msk [vmem:[#allocation2 + $0x40] sm:$0xff] %vm453, %v425
  %463 = vst.msk [vmem:[#allocation2 + $0x48] sm:$0xff] %vm453, %v426
  %464 = vst.msk [vmem:[#allocation2 + $0x50] sm:$0xff] %vm453, %v427
  %465 = vst.msk [vmem:[#allocation2 + $0x58] sm:$0xff] %vm453, %v428
  %466 = vst.msk [vmem:[#allocation2 + $0x60] sm:$0xff] %vm453, %v429
  %467 = vst.msk [vmem:[#allocation2 + $0x68] sm:$0xff] %vm453, %v430
  %468 = vst.msk [vmem:[#allocation2 + $0x70] sm:$0xff] %vm453, %v431
  %469 = vst.msk [vmem:[#allocation2 + $0x78] sm:$0xff] %vm453, %v432
  %470 = vst.msk [vmem:[#allocation2 + $0x80] sm:$0xff] %vm453, %v433
  %471 = vst.msk [vmem:[#allocation2 + $0x88] sm:$0xff] %vm453, %v434
  %472 = vst.msk [vmem:[#allocation2 + $0x90] sm:$0xff] %vm453, %v435
  %473 = vst.msk [vmem:[#allocation2 + $0x98] sm:$0xff] %vm453, %v436
  %474 = vst.msk [vmem:[#allocation2 + $0xa0] sm:$0xff] %vm453, %v437
  %475 = vst.msk [vmem:[#allocation2 + $0xa8] sm:$0xff] %vm453, %v438
  %476 = vst.msk [vmem:[#allocation2 + $0xb0] sm:$0xff] %vm453, %v439
  %477 = vst.msk [vmem:[#allocation2 + $0xb8] sm:$0xff] %vm453, %v440
  %478 = vst.msk [vmem:[#allocation2 + $0xc0] sm:$0xff] %vm453, %v441
  %479 = vst.msk [vmem:[#allocation2 + $0xc8] sm:$0xff] %vm453, %v442
  %480 = vst.msk [vmem:[#allocation2 + $0xd0] sm:$0xff] %vm453, %v443
  %481 = vst.msk [vmem:[#allocation2 + $0xd8] sm:$0xff] %vm453, %v444
  %482 = vst.msk [vmem:[#allocation2 + $0xe0] sm:$0xff] %vm453, %v445
  %483 = vst.msk [vmem:[#allocation2 + $0xe8] sm:$0xff] %vm453, %v446
  %484 = vst.msk [vmem:[#allocation2 + $0xf0] sm:$0xff] %vm453, %v447
  %485 = vst.msk [vmem:[#allocation2 + $0xf8] sm:$0xff] %vm453, %v448
  %486 = vst.msk [vmem:[#allocation2 + $0x100] sm:$0xff] %vm453, %v449
  %487 = vst.msk [vmem:[#allocation2 + $0x108] sm:$0xff] %vm453, %v450
  %488 = vst.msk [vmem:[#allocation2 + $0x110] sm:$0xff] %vm453, %v451
  %489 = vst.msk [vmem:[#allocation2 + $0x118] sm:$0xff] %vm453, %v452
  %v490 = vld [vmem:[%s0 + $0x120] sm:$0xff]
  %v491 = vld [vmem:[%s0 + $0x128] sm:$0xff]
  %v492 = vld [vmem:[%s0 + $0x130] sm:$0xff]
  %v493 = vld [vmem:[%s0 + $0x138] sm:$0xff]
  %v494 = vld [vmem:[%s0 + $0x140] sm:$0xff]
  %v495 = vld [vmem:[%s0 + $0x148] sm:$0xff]
  %v496 = vld [vmem:[%s0 + $0x150] sm:$0xff]
  %v497 = vld [vmem:[%s0 + $0x158] sm:$0xff]
  %v498 = vld [vmem:[%s0 + $0x160] sm:$0xff]
  %v499 = vld [vmem:[%s0 + $0x168] sm:$0xff]
  %v500 = vld [vmem:[%s0 + $0x170] sm:$0xff]
  %v501 = vld [vmem:[%s0 + $0x178] sm:$0xff]
  %v502 = vld [vmem:[%s0 + $0x180] sm:$0xff]
  %v503 = vld [vmem:[%s0 + $0x188] sm:$0xff]
  %v504 = vld [vmem:[%s0 + $0x190] sm:$0xff]
  %v505 = vld [vmem:[%s0 + $0x198] sm:$0xff]
  %v506 = vld [vmem:[%s0 + $0x1a0] sm:$0xff]
  %v507 = vld [vmem:[%s0 + $0x1a8] sm:$0xff]
  %v508 = vld [vmem:[%s0 + $0x1b0] sm:$0xff]
  %v509 = vld [vmem:[%s0 + $0x1b8] sm:$0xff]
  %v510 = vld [vmem:[%s0 + $0x1c0] sm:$0xff]
  %v511 = vld [vmem:[%s0 + $0x1c8] sm:$0xff]
  %v512 = vld [vmem:[%s0 + $0x1d0] sm:$0xff]
  %v513 = vld [vmem:[%s0 + $0x1d8] sm:$0xff]
  %v514 = vld [vmem:[%s0 + $0x1e0] sm:$0xff]
  %v515 = vld [vmem:[%s0 + $0x1e8] sm:$0xff]
  %v516 = vld [vmem:[%s0 + $0x1f0] sm:$0xff]
  %v517 = vld [vmem:[%s0 + $0x1f8] sm:$0xff]
  %v518 = vld [vmem:[%s0 + $0x200] sm:$0xff]
  %v519 = vld [vmem:[%s0 + $0x208] sm:$0xff]
  %v520 = vld [vmem:[%s0 + $0x210] sm:$0xff]
  %v521 = vld [vmem:[%s0 + $0x218] sm:$0xff]
  %v522 = vld [vmem:[%s0 + $0x220] sm:$0xff]
  %v523 = vld [vmem:[%s0 + $0x228] sm:$0xff]
  %v524 = vld [vmem:[%s0 + $0x230] sm:$0xff]
  %v525 = vld [vmem:[%s0 + $0x238] sm:$0xff]
  %v527 = vsel %vm59, %v490, 0
  %v530 = vsel %vm59, %v491, 0
  %v533 = vsel %vm59, %v492, 0
  %v536 = vsel %vm59, %v493, 0
  %v539 = vsel %vm59, %v494, 0
  %v542 = vsel %vm59, %v495, 0
  %v545 = vsel %vm59, %v496, 0
  %v548 = vsel %vm59, %v497, 0
  %v551 = vsel %vm59, %v498, 0
  %v554 = vsel %vm59, %v499, 0
  %v557 = vsel %vm59, %v500, 0
  %v560 = vsel %vm59, %v501, 0
  %v563 = vsel %vm59, %v502, 0
  %v566 = vsel %vm59, %v503, 0
  %v569 = vsel %vm59, %v504, 0
  %v572 = vsel %vm59, %v505, 0
  %v575 = vsel %vm59, %v506, 0
  %v578 = vsel %vm59, %v507, 0
  %v581 = vsel %vm59, %v508, 0
  %v584 = vsel %vm59, %v509, 0
  %v587 = vsel %vm59, %v510, 0
  %v590 = vsel %vm59, %v511, 0
  %v593 = vsel %vm59, %v512, 0
  %v596 = vsel %vm59, %v513, 0
  %v599 = vsel %vm59, %v514, 0
  %v602 = vsel %vm59, %v515, 0
  %v605 = vsel %vm59, %v516, 0
  %v608 = vsel %vm59, %v517, 0
  %v611 = vsel %vm59, %v518, 0
  %v614 = vsel %vm59, %v519, 0
  %v617 = vsel %vm59, %v520, 0
  %v620 = vsel %vm59, %v521, 0
  %v623 = vsel %vm59, %v522, 0
  %v626 = vsel %vm59, %v523, 0
  %v629 = vsel %vm59, %v524, 0
  %v632 = vsel %vm59, %v525, 0
  %634 = vmatprep.subr.mxu0 0.0
  %635 = vmatpush1.msra.mxu0 %v14
  %636 = vmatprep.subr.mxu0 0.0
  %637 = vmatpush1.msra.mxu0 %v15
  %638 = vmatprep.subr.mxu0 0.0
  %639 = vmatpush1.msra.mxu0 %v16
  %640 = vmatprep.subr.mxu0 0.0
  %641 = vmatpush1.msra.mxu0 %v170
  %642 = vmatprep.subr.mxu0 0.0
  %643 = vmatpush1.msra.mxu0 0.0
  %644 = vmatprep.subr.mxu0 0.0
  %645 = vmatpush1.msra.mxu0 0.0
  %646 = vmatprep.subr.mxu0 0.0
  %647 = vmatpush1.msra.mxu0 0.0
  %648 = vmatprep.subr.mxu0 0.0
  %649 = vmatpush1.msra.mxu0 0.0
  %650 = vmatprep.subr.mxu0 0.0
  %651 = vmatpush1.msra.mxu0 0.0
  %652 = vmatprep.subr.mxu0 0.0
  %653 = vmatpush1.msra.mxu0 0.0
  %654 = vmatprep.subr.mxu0 0.0
  %655 = vmatpush1.msra.mxu0 0.0
  %656 = vmatprep.subr.mxu0 0.0
  %657 = vmatpush1.msra.mxu0 0.0
  %658 = vmatprep.subr.mxu0 0.0
  %659 = vmatpush1.msra.mxu0 0.0
  %660 = vmatprep.subr.mxu0 0.0
  %661 = vmatpush1.msra.mxu0 0.0
  %662 = vmatprep.subr.mxu0 0.0
  %663 = vmatpush1.msra.mxu0 0.0
  %664 = vmatprep.subr.mxu0 0.0
  %665 = vmatpush1.msra.mxu0 0.0
  %666 = vmatprep.subr.mxu0 0.0
  %667 = vmatpush1.msra.mxu0 0.0
  %668 = vmatprep.subr.mxu0 0.0
  %669 = vmatpush1.msra.mxu0 0.0
  %670 = vmatprep.subr.mxu0 0.0
  %671 = vmatpush1.msra.mxu0 0.0
  %672 = vmatprep.subr.mxu0 0.0
  %673 = vmatpush1.msra.mxu0 0.0
  %674 = vmatprep.subr.mxu0 0.0
  %675 = vmatpush1.msra.mxu0 0.0
  %676 = vmatprep.subr.mxu0 0.0
  %677 = vmatpush1.msra.mxu0 0.0
  %678 = vmatprep.subr.mxu0 0.0
  %679 = vmatpush1.msra.mxu0 0.0
  %680 = vmatprep.subr.mxu0 0.0
  %681 = vmatpush1.msra.mxu0 0.0
  %682 = vmatprep.subr.mxu0 0.0
  %683 = vmatpush1.msra.mxu0 0.0
  %684 = vmatprep.subr.mxu0 0.0
  %685 = vmatpush1.msra.mxu0 0.0
  %686 = vmatprep.subr.mxu0 0.0
  %687 = vmatpush1.msra.mxu0 0.0
  %688 = vmatprep.subr.mxu0 0.0
  %689 = vmatpush1.msra.mxu0 0.0
  %690 = vmatprep.subr.mxu0 0.0
  %691 = vmatpush1.msra.mxu0 0.0
  %692 = vmatprep.subr.mxu0 0.0
  %693 = vmatpush1.msra.mxu0 0.0
  %694 = vmatprep.subr.mxu0 0.0
  %695 = vmatpush1.msra.mxu0 0.0
  %696 = vmatprep.subr.mxu0 0.0
  %697 = vmatpush1.msra.mxu0 0.0
  %698 = vmatprep.mubr.f32.mxu0 0.0
  %699 = vmatmul.mubr.f32.gmra.mrb[0].mxu0 %v527
  %v700 = vpop.f32.mrb[0].mxu0
  %v701 = vadd.f32 %v58, %v700
  %v702 = vpop.f32.mrb[0].mxu0
  %703 = vmatprep.mubr.f32.mxu0 0.0
  %704 = vmatmul.mubr.f32.gmra.mrb[0].mxu0 %v530
  %v705 = vpop.f32.mrb[0].mxu0
  %v706 = vadd.f32 %v58, %v705
  %v707 = vpop.f32.mrb[0].mxu0
  %708 = vmatprep.mubr.f32.mxu0 0.0
  %709 = vmatmul.mubr.f32.gmra.mrb[0].mxu0 %v533
  %v710 = vpop.f32.mrb[0].mxu0
  %v711 = vadd.f32 %v58, %v710
  %v712 = vpop.f32.mrb[0].mxu0
  %713 = vmatprep.mubr.f32.mxu0 0.0
  %714 = vmatmul.mubr.f32.gmra.mrb[0].mxu0 %v536
  %v715 = vpop.f32.mrb[0].mxu0
  %v716 = vadd.f32 %v58, %v715
  %v717 = vpop.f32.mrb[0].mxu0
  %718 = vmatprep.mubr.f32.mxu0 0.0
  %719 = vmatmul.mubr.f32.gmra.mrb[0].mxu0 %v539
  %v720 = vpop.f32.mrb[0].mxu0
  %v721 = vadd.f32 %v58, %v720
  %v722 = vpop.f32.mrb[0].mxu0
  %723 = vmatprep.mubr.f32.mxu0 0.0
  %724 = vmatmul.mubr.f32.gmra.mrb[0].mxu0 %v542
  %v725 = vpop.f32.mrb[0].mxu0
  %v726 = vadd.f32 %v58, %v725
  %v727 = vpop.f32.mrb[0].mxu0
  %728 = vmatprep.mubr.f32.mxu0 0.0
  %729 = vmatmul.mubr.f32.gmra.mrb[0].mxu0 %v545
  %v730 = vpop.f32.mrb[0].mxu0
  %v731 = vadd.f32 %v58, %v730
  %v732 = vpop.f32.mrb[0].mxu0
  %733 = vmatprep.mubr.f32.mxu0 0.0
  %734 = vmatmul.mubr.f32.gmra.mrb[0].mxu0 %v548
  %v735 = vpop.f32.mrb[0].mxu0
  %v736 = vadd.f32 %v58, %v735
  %v737 = vpop.f32.mrb[0].mxu0
  %738 = vmatprep.mubr.f32.mxu0 0.0
  %739 = vmatmul.mubr.f32.gmra.mrb[0].mxu0 %v551
  %v740 = vpop.f32.mrb[0].mxu0
  %v741 = vadd.f32 %v58, %v740
  %v742 = vpop.f32.mrb[0].mxu0
  %743 = vmatprep.mubr.f32.mxu0 0.0
  %744 = vmatmul.mubr.f32.gmra.mrb[0].mxu0 %v554
  %v745 = vpop.f32.mrb[0].mxu0
  %v746 = vadd.f32 %v58, %v745
  %v747 = vpop.f32.mrb[0].mxu0
  %748 = vmatprep.mubr.f32.mxu0 0.0
  %749 = vmatmul.mubr.f32.gmra.mrb[0].mxu0 %v557
  %v750 = vpop.f32.mrb[0].mxu0
  %v751 = vadd.f32 %v58, %v750
  %v752 = vpop.f32.mrb[0].mxu0
  %753 = vmatprep.mubr.f32.mxu0 0.0
  %754 = vmatmul.mubr.f32.gmra.mrb[0].mxu0 %v560
  %v755 = vpop.f32.mrb[0].mxu0
  %v756 = vadd.f32 %v58, %v755
  %v757 = vpop.f32.mrb[0].mxu0
  %758 = vmatprep.mubr.f32.mxu0 0.0
  %759 = vmatmul.mubr.f32.gmra.mrb[0].mxu0 %v563
  %v760 = vpop.f32.mrb[0].mxu0
  %v761 = vadd.f32 %v58, %v760
  %v762 = vpop.f32.mrb[0].mxu0
  %763 = vmatprep.mubr.f32.mxu0 0.0
  %764 = vmatmul.mubr.f32.gmra.mrb[0].mxu0 %v566
  %v765 = vpop.f32.mrb[0].mxu0
  %v766 = vadd.f32 %v58, %v765
  %v767 = vpop.f32.mrb[0].mxu0
  %768 = vmatprep.mubr.f32.mxu0 0.0
  %769 = vmatmul.mubr.f32.gmra.mrb[0].mxu0 %v569
  %v770 = vpop.f32.mrb[0].mxu0
  %v771 = vadd.f32 %v58, %v770
  %v772 = vpop.f32.mrb[0].mxu0
  %773 = vmatprep.mubr.f32.mxu0 0.0
  %774 = vmatmul.mubr.f32.gmra.mrb[0].mxu0 %v572
  %v775 = vpop.f32.mrb[0].mxu0
  %v776 = vadd.f32 %v58, %v775
  %v777 = vpop.f32.mrb[0].mxu0
  %778 = vmatprep.mubr.f32.mxu0 0.0
  %779 = vmatmul.mubr.f32.gmra.mrb[0].mxu0 %v575
  %v780 = vpop.f32.mrb[0].mxu0
  %v781 = vadd.f32 %v58, %v780
  %v782 = vpop.f32.mrb[0].mxu0
  %783 = vmatprep.mubr.f32.mxu0 0.0
  %784 = vmatmul.mubr.f32.gmra.mrb[0].mxu0 %v578
  %v785 = vpop.f32.mrb[0].mxu0
  %v786 = vadd.f32 %v58, %v785
  %v787 = vpop.f32.mrb[0].mxu0
  %788 = vmatprep.mubr.f32.mxu0 0.0
  %789 = vmatmul.mubr.f32.gmra.mrb[0].mxu0 %v581
  %v790 = vpop.f32.mrb[0].mxu0
  %v791 = vadd.f32 %v58, %v790
  %v792 = vpop.f32.mrb[0].mxu0
  %793 = vmatprep.mubr.f32.mxu0 0.0
  %794 = vmatmul.mubr.f32.gmra.mrb[0].mxu0 %v584
  %v795 = vpop.f32.mrb[0].mxu0
  %v796 = vadd.f32 %v58, %v795
  %v797 = vpop.f32.mrb[0].mxu0
  %798 = vmatprep.mubr.f32.mxu0 0.0
  %799 = vmatmul.mubr.f32.gmra.mrb[0].mxu0 %v587
  %v800 = vpop.f32.mrb[0].mxu0
  %v801 = vadd.f32 %v58, %v800
  %v802 = vpop.f32.mrb[0].mxu0
  %803 = vmatprep.mubr.f32.mxu0 0.0
  %804 = vmatmul.mubr.f32.gmra.mrb[0].mxu0 %v590
  %v805 = vpop.f32.mrb[0].mxu0
  %v806 = vadd.f32 %v58, %v805
  %v807 = vpop.f32.mrb[0].mxu0
  %808 = vmatprep.mubr.f32.mxu0 0.0
  %809 = vmatmul.mubr.f32.gmra.mrb[0].mxu0 %v593
  %v810 = vpop.f32.mrb[0].mxu0
  %v811 = vadd.f32 %v58, %v810
  %v812 = vpop.f32.mrb[0].mxu0
  %813 = vmatprep.mubr.f32.mxu0 0.0
  %814 = vmatmul.mubr.f32.gmra.mrb[0].mxu0 %v596
  %v815 = vpop.f32.mrb[0].mxu0
  %v816 = vadd.f32 %v58, %v815
  %v817 = vpop.f32.mrb[0].mxu0
  %818 = vmatprep.mubr.f32.mxu0 0.0
  %819 = vmatmul.mubr.f32.gmra.mrb[0].mxu0 %v599
  %v820 = vpop.f32.mrb[0].mxu0
  %v821 = vadd.f32 %v58, %v820
  %v822 = vpop.f32.mrb[0].mxu0
  %823 = vmatprep.mubr.f32.mxu0 0.0
  %824 = vmatmul.mubr.f32.gmra.mrb[0].mxu0 %v602
  %v825 = vpop.f32.mrb[0].mxu0
  %v826 = vadd.f32 %v58, %v825
  %v827 = vpop.f32.mrb[0].mxu0
  %828 = vmatprep.mubr.f32.mxu0 0.0
  %829 = vmatmul.mubr.f32.gmra.mrb[0].mxu0 %v605
  %v830 = vpop.f32.mrb[0].mxu0
  %v831 = vadd.f32 %v58, %v830
  %v832 = vpop.f32.mrb[0].mxu0
  %833 = vmatprep.mubr.f32.mxu0 0.0
  %834 = vmatmul.mubr.f32.gmra.mrb[0].mxu0 %v608
  %v835 = vpop.f32.mrb[0].mxu0
  %v836 = vadd.f32 %v58, %v835
  %v837 = vpop.f32.mrb[0].mxu0
  %838 = vmatprep.mubr.f32.mxu0 0.0
  %839 = vmatmul.mubr.f32.gmra.mrb[0].mxu0 %v611
  %v840 = vpop.f32.mrb[0].mxu0
  %v841 = vadd.f32 %v58, %v840
  %v842 = vpop.f32.mrb[0].mxu0
  %843 = vmatprep.mubr.f32.mxu0 0.0
  %844 = vmatmul.mubr.f32.gmra.mrb[0].mxu0 %v614
  %v845 = vpop.f32.mrb[0].mxu0
  %v846 = vadd.f32 %v58, %v845
  %v847 = vpop.f32.mrb[0].mxu0
  %848 = vmatprep.mubr.f32.mxu0 0.0
  %849 = vmatmul.mubr.f32.gmra.mrb[0].mxu0 %v617
  %v850 = vpop.f32.mrb[0].mxu0
  %v851 = vadd.f32 %v58, %v850
  %v852 = vpop.f32.mrb[0].mxu0
  %853 = vmatprep.mubr.f32.mxu0 0.0
  %854 = vmatmul.mubr.f32.gmra.mrb[0].mxu0 %v620
  %v855 = vpop.f32.mrb[0].mxu0
  %v856 = vadd.f32 %v58, %v855
  %v857 = vpop.f32.mrb[0].mxu0
  %858 = vmatprep.mubr.f32.mxu0 0.0
  %859 = vmatmul.mubr.f32.gmra.mrb[0].mxu0 %v623
  %v860 = vpop.f32.mrb[0].mxu0
  %v861 = vadd.f32 %v58, %v860
  %v862 = vpop.f32.mrb[0].mxu0
  %863 = vmatprep.mubr.f32.mxu0 0.0
  %864 = vmatmul.mubr.f32.gmra.mrb[0].mxu0 %v626
  %v865 = vpop.f32.mrb[0].mxu0
  %v866 = vadd.f32 %v58, %v865
  %v867 = vpop.f32.mrb[0].mxu0
  %868 = vmatprep.mubr.f32.mxu0 0.0
  %869 = vmatmul.mubr.f32.gmra.mrb[0].mxu0 %v629
  %v870 = vpop.f32.mrb[0].mxu0
  %v871 = vadd.f32 %v58, %v870
  %v872 = vpop.f32.mrb[0].mxu0
  %873 = vmatprep.mubr.f32.mxu0 0.0
  %874 = vmatmul.mubr.f32.gmra.mrb[0].mxu0 %v632
  %v875 = vpop.f32.mrb[0].mxu0
  %v876 = vadd.f32 %v58, %v875
  %v877 = vpop.f32.mrb[0].mxu0
  %878 = vdwg.mxu0
  %v879 = vmax.f32 %v701, 0.0
  %v880 = vmax.f32 %v706, 0.0
  %v881 = vmax.f32 %v711, 0.0
  %v882 = vmax.f32 %v716, 0.0
  %v883 = vmax.f32 %v721, 0.0
  %v884 = vmax.f32 %v726, 0.0
  %v885 = vmax.f32 %v731, 0.0
  %v886 = vmax.f32 %v736, 0.0
  %v887 = vmax.f32 %v741, 0.0
  %v888 = vmax.f32 %v746, 0.0
  %v889 = vmax.f32 %v751, 0.0
  %v890 = vmax.f32 %v756, 0.0
  %v891 = vmax.f32 %v761, 0.0
  %v892 = vmax.f32 %v766, 0.0
  %v893 = vmax.f32 %v771, 0.0
  %v894 = vmax.f32 %v776, 0.0
  %v895 = vmax.f32 %v781, 0.0
  %v896 = vmax.f32 %v786, 0.0
  %v897 = vmax.f32 %v791, 0.0
  %v898 = vmax.f32 %v796, 0.0
  %v899 = vmax.f32 %v801, 0.0
  %v900 = vmax.f32 %v806, 0.0
  %v901 = vmax.f32 %v811, 0.0
  %v902 = vmax.f32 %v816, 0.0
  %v903 = vmax.f32 %v821, 0.0
  %v904 = vmax.f32 %v826, 0.0
  %v905 = vmax.f32 %v831, 0.0
  %v906 = vmax.f32 %v836, 0.0
  %v907 = vmax.f32 %v841, 0.0
  %v908 = vmax.f32 %v846, 0.0
  %v909 = vmax.f32 %v851, 0.0
  %v910 = vmax.f32 %v856, 0.0
  %v911 = vmax.f32 %v861, 0.0
  %v912 = vmax.f32 %v866, 0.0
  %v913 = vmax.f32 %v871, 0.0
  %v914 = vmax.f32 %v876, 0.0
  %915 = vst.msk [vmem:[#allocation2 + $0x120] sm:$0xff] %vm453, %v879
  %916 = vst.msk [vmem:[#allocation2 + $0x128] sm:$0xff] %vm453, %v880
  %917 = vst.msk [vmem:[#allocation2 + $0x130] sm:$0xff] %vm453, %v881
  %918 = vst.msk [vmem:[#allocation2 + $0x138] sm:$0xff] %vm453, %v882
  %919 = vst.msk [vmem:[#allocation2 + $0x140] sm:$0xff] %vm453, %v883
  %920 = vst.msk [vmem:[#allocation2 + $0x148] sm:$0xff] %vm453, %v884
  %921 = vst.msk [vmem:[#allocation2 + $0x150] sm:$0xff] %vm453, %v885
  %922 = vst.msk [vmem:[#allocation2 + $0x158] sm:$0xff] %vm453, %v886
  %923 = vst.msk [vmem:[#allocation2 + $0x160] sm:$0xff] %vm453, %v887
  %924 = vst.msk [vmem:[#allocation2 + $0x168] sm:$0xff] %vm453, %v888
  %925 = vst.msk [vmem:[#allocation2 + $0x170] sm:$0xff] %vm453, %v889
  %926 = vst.msk [vmem:[#allocation2 + $0x178] sm:$0xff] %vm453, %v890
  %927 = vst.msk [vmem:[#allocation2 + $0x180] sm:$0xff] %vm453, %v891
  %928 = vst.msk [vmem:[#allocation2 + $0x188] sm:$0xff] %vm453, %v892
  %929 = vst.msk [vmem:[#allocation2 + $0x190] sm:$0xff] %vm453, %v893
  %930 = vst.msk [vmem:[#allocation2 + $0x198] sm:$0xff] %vm453, %v894
  %931 = vst.msk [vmem:[#allocation2 + $0x1a0] sm:$0xff] %vm453, %v895
  %932 = vst.msk [vmem:[#allocation2 + $0x1a8] sm:$0xff] %vm453, %v896
  %933 = vst.msk [vmem:[#allocation2 + $0x1b0] sm:$0xff] %vm453, %v897
  %934 = vst.msk [vmem:[#allocation2 + $0x1b8] sm:$0xff] %vm453, %v898
  %935 = vst.msk [vmem:[#allocation2 + $0x1c0] sm:$0xff] %vm453, %v899
  %936 = vst.msk [vmem:[#allocation2 + $0x1c8] sm:$0xff] %vm453, %v900
  %937 = vst.msk [vmem:[#allocation2 + $0x1d0] sm:$0xff] %vm453, %v901
  %938 = vst.msk [vmem:[#allocation2 + $0x1d8] sm:$0xff] %vm453, %v902
  %939 = vst.msk [vmem:[#allocation2 + $0x1e0] sm:$0xff] %vm453, %v903
  %940 = vst.msk [vmem:[#allocation2 + $0x1e8] sm:$0xff] %vm453, %v904
  %941 = vst.msk [vmem:[#allocation2 + $0x1f0] sm:$0xff] %vm453, %v905
  %942 = vst.msk [vmem:[#allocation2 + $0x1f8] sm:$0xff] %vm453, %v906
  %943 = vst.msk [vmem:[#allocation2 + $0x200] sm:$0xff] %vm453, %v907
  %944 = vst.msk [vmem:[#allocation2 + $0x208] sm:$0xff] %vm453, %v908
  %945 = vst.msk [vmem:[#allocation2 + $0x210] sm:$0xff] %vm453, %v909
  %946 = vst.msk [vmem:[#allocation2 + $0x218] sm:$0xff] %vm453, %v910
  %947 = vst.msk [vmem:[#allocation2 + $0x220] sm:$0xff] %vm453, %v911
  %948 = vst.msk [vmem:[#allocation2 + $0x228] sm:$0xff] %vm453, %v912
  %949 = vst.msk [vmem:[#allocation2 + $0x230] sm:$0xff] %vm453, %v913
  %950 = vst.msk [vmem:[#allocation2 + $0x238] sm:$0xff] %vm453, %v914
  %v951 = vld [vmem:[%s0 + $0x240] sm:$0xff]
  %v952 = vld [vmem:[%s0 + $0x248] sm:$0xff]
  %v953 = vld [vmem:[%s0 + $0x250] sm:$0xff]
  %v954 = vld [vmem:[%s0 + $0x258] sm:$0xff]
  %v955 = vld [vmem:[%s0 + $0x260] sm:$0xff]
  %v956 = vld [vmem:[%s0 + $0x268] sm:$0xff]
  %v957 = vld [vmem:[%s0 + $0x270] sm:$0xff]
  %v958 = vld [vmem:[%s0 + $0x278] sm:$0xff]
  %v959 = vld [vmem:[%s0 + $0x280] sm:$0xff]
  %v960 = vld [vmem:[%s0 + $0x288] sm:$0xff]
  %v961 = vld [vmem:[%s0 + $0x290] sm:$0xff]
  %v962 = vld [vmem:[%s0 + $0x298] sm:$0xff]
  %v963 = vld [vmem:[%s0 + $0x2a0] sm:$0xff]
  %v964 = vld [vmem:[%s0 + $0x2a8] sm:$0xff]
  %v965 = vld [vmem:[%s0 + $0x2b0] sm:$0xff]
  %v966 = vld [vmem:[%s0 + $0x2b8] sm:$0xff]
  %v967 = vld [vmem:[%s0 + $0x2c0] sm:$0xff]
  %v968 = vld [vmem:[%s0 + $0x2c8] sm:$0xff]
  %v969 = vld [vmem:[%s0 + $0x2d0] sm:$0xff]
  %v970 = vld [vmem:[%s0 + $0x2d8] sm:$0xff]
  %v971 = vld [vmem:[%s0 + $0x2e0] sm:$0xff]
  %v972 = vld [vmem:[%s0 + $0x2e8] sm:$0xff]
  %v973 = vld [vmem:[%s0 + $0x2f0] sm:$0xff]
  %v974 = vld [vmem:[%s0 + $0x2f8] sm:$0xff]
  %v975 = vld [vmem:[%s0 + $0x300] sm:$0xff]
  %v976 = vld [vmem:[%s0 + $0x308] sm:$0xff]
  %v977 = vld [vmem:[%s0 + $0x310] sm:$0xff]
  %v978 = vld [vmem:[%s0 + $0x318] sm:$0xff]
  %v979 = vld [vmem:[%s0 + $0x320] sm:$0xff]
  %v980 = vld [vmem:[%s0 + $0x328] sm:$0xff]
  %v981 = vld [vmem:[%s0 + $0x330] sm:$0xff]
  %v982 = vld [vmem:[%s0 + $0x338] sm:$0xff]
  %v983 = vld [vmem:[%s0 + $0x340] sm:$0xff]
  %v984 = vld [vmem:[%s0 + $0x348] sm:$0xff]
  %v985 = vld [vmem:[%s0 + $0x350] sm:$0xff]
  %v986 = vld [vmem:[%s0 + $0x358] sm:$0xff]
  %v988 = vsel %vm59, %v951, 0
  %v991 = vsel %vm59, %v952, 0
  %v994 = vsel %vm59, %v953, 0
  %v997 = vsel %vm59, %v954, 0
  %v1000 = vsel %vm59, %v955, 0
  %v1003 = vsel %vm59, %v956, 0
  %v1006 = vsel %vm59, %v957, 0
  %v1009 = vsel %vm59, %v958, 0
  %v1012 = vsel %vm59, %v959, 0
  %v1015 = vsel %vm59, %v960, 0
  %v1018 = vsel %vm59, %v961, 0
  %v1021 = vsel %vm59, %v962, 0
  %v1024 = vsel %vm59, %v963, 0
  %v1027 = vsel %vm59, %v964, 0
  %v1030 = vsel %vm59, %v965, 0
  %v1033 = vsel %vm59, %v966, 0
  %v1036 = vsel %vm59, %v967, 0
  %v1039 = vsel %vm59, %v968, 0
  %v1042 = vsel %vm59, %v969, 0
  %v1045 = vsel %vm59, %v970, 0
  %v1048 = vsel %vm59, %v971, 0
  %v1051 = vsel %vm59, %v972, 0
  %v1054 = vsel %vm59, %v973, 0
  %v1057 = vsel %vm59, %v974, 0
  %v1060 = vsel %vm59, %v975, 0
  %v1063 = vsel %vm59, %v976, 0
  %v1066 = vsel %vm59, %v977, 0
  %v1069 = vsel %vm59, %v978, 0
  %v1072 = vsel %vm59, %v979, 0
  %v1075 = vsel %vm59, %v980, 0
  %v1078 = vsel %vm59, %v981, 0
  %v1081 = vsel %vm59, %v982, 0
  %v1084 = vsel %vm59, %v983, 0
  %v1087 = vsel %vm59, %v984, 0
  %v1090 = vsel %vm59, %v985, 0
  %v1093 = vsel %vm59, %v986, 0
  %1095 = vmatprep.subr.mxu0 0.0
  %1096 = vmatpush1.msra.mxu0 %v14
  %1097 = vmatprep.subr.mxu0 0.0
  %1098 = vmatpush1.msra.mxu0 %v15
  %1099 = vmatprep.subr.mxu0 0.0
  %1100 = vmatpush1.msra.mxu0 %v16
  %1101 = vmatprep.subr.mxu0 0.0
  %1102 = vmatpush1.msra.mxu0 %v170
  %1103 = vmatprep.subr.mxu0 0.0
  %1104 = vmatpush1.msra.mxu0 0.0
  %1105 = vmatprep.subr.mxu0 0.0
  %1106 = vmatpush1.msra.mxu0 0.0
  %1107 = vmatprep.subr.mxu0 0.0
  %1108 = vmatpush1.msra.mxu0 0.0
  %1109 = vmatprep.subr.mxu0 0.0
  %1110 = vmatpush1.msra.mxu0 0.0
  %1111 = vmatprep.subr.mxu0 0.0
  %1112 = vmatpush1.msra.mxu0 0.0
  %1113 = vmatprep.subr.mxu0 0.0
  %1114 = vmatpush1.msra.mxu0 0.0
  %1115 = vmatprep.subr.mxu0 0.0
  %1116 = vmatpush1.msra.mxu0 0.0
  %1117 = vmatprep.subr.mxu0 0.0
  %1118 = vmatpush1.msra.mxu0 0.0
  %1119 = vmatprep.subr.mxu0 0.0
  %1120 = vmatpush1.msra.mxu0 0.0
  %1121 = vmatprep.subr.mxu0 0.0
  %1122 = vmatpush1.msra.mxu0 0.0
  %1123 = vmatprep.subr.mxu0 0.0
  %1124 = vmatpush1.msra.mxu0 0.0
  %1125 = vmatprep.subr.mxu0 0.0
  %1126 = vmatpush1.msra.mxu0 0.0
  %1127 = vmatprep.subr.mxu0 0.0
  %1128 = vmatpush1.msra.mxu0 0.0
  %1129 = vmatprep.subr.mxu0 0.0
  %1130 = vmatpush1.msra.mxu0 0.0
  %1131 = vmatprep.subr.mxu0 0.0
  %1132 = vmatpush1.msra.mxu0 0.0
  %1133 = vmatprep.subr.mxu0 0.0
  %1134 = vmatpush1.msra.mxu0 0.0
  %1135 = vmatprep.subr.mxu0 0.0
  %1136 = vmatpush1.msra.mxu0 0.0
  %1137 = vmatprep.subr.mxu0 0.0
  %1138 = vmatpush1.msra.mxu0 0.0
  %1139 = vmatprep.subr.mxu0 0.0
  %1140 = vmatpush1.msra.mxu0 0.0
  %1141 = vmatprep.subr.mxu0 0.0
  %1142 = vmatpush1.msra.mxu0 0.0
  %1143 = vmatprep.subr.mxu0 0.0
  %1144 = vmatpush1.msra.mxu0 0.0
  %1145 = vmatprep.subr.mxu0 0.0
  %1146 = vmatpush1.msra.mxu0 0.0
  %1147 = vmatprep.subr.mxu0 0.0
  %1148 = vmatpush1.msra.mxu0 0.0
  %1149 = vmatprep.subr.mxu0 0.0
  %1150 = vmatpush1.msra.mxu0 0.0
  %1151 = vmatprep.subr.mxu0 0.0
  %1152 = vmatpush1.msra.mxu0 0.0
  %1153 = vmatprep.subr.mxu0 0.0
  %1154 = vmatpush1.msra.mxu0 0.0
  %1155 = vmatprep.subr.mxu0 0.0
  %1156 = vmatpush1.msra.mxu0 0.0
  %1157 = vmatprep.subr.mxu0 0.0
  %1158 = vmatpush1.msra.mxu0 0.0
  %1159 = vmatprep.mubr.f32.mxu0 0.0
  %1160 = vmatmul.mubr.f32.gmra.mrb[0].mxu0 %v988
  %v1161 = vpop.f32.mrb[0].mxu0
  %v1162 = vadd.f32 %v58, %v1161
  %v1163 = vpop.f32.mrb[0].mxu0
  %1164 = vmatprep.mubr.f32.mxu0 0.0
  %1165 = vmatmul.mubr.f32.gmra.mrb[0].mxu0 %v991
  %v1166 = vpop.f32.mrb[0].mxu0
  %v1167 = vadd.f32 %v58, %v1166
  %v1168 = vpop.f32.mrb[0].mxu0
  %1169 = vmatprep.mubr.f32.mxu0 0.0
  %1170 = vmatmul.mubr.f32.gmra.mrb[0].mxu0 %v994
  %v1171 = vpop.f32.mrb[0].mxu0
  %v1172 = vadd.f32 %v58, %v1171
  %v1173 = vpop.f32.mrb[0].mxu0
  %1174 = vmatprep.mubr.f32.mxu0 0.0
  %1175 = vmatmul.mubr.f32.gmra.mrb[0].mxu0 %v997
  %v1176 = vpop.f32.mrb[0].mxu0
  %v1177 = vadd.f32 %v58, %v1176
  %v1178 = vpop.f32.mrb[0].mxu0
  %1179 = vmatprep.mubr.f32.mxu0 0.0
  %1180 = vmatmul.mubr.f32.gmra.mrb[0].mxu0 %v1000
  %v1181 = vpop.f32.mrb[0].mxu0
  %v1182 = vadd.f32 %v58, %v1181
  %v1183 = vpop.f32.mrb[0].mxu0
  %1184 = vmatprep.mubr.f32.mxu0 0.0
  %1185 = vmatmul.mubr.f32.gmra.mrb[0].mxu0 %v1003
  %v1186 = vpop.f32.mrb[0].mxu0
  %v1187 = vadd.f32 %v58, %v1186
  %v1188 = vpop.f32.mrb[0].mxu0
  %1189 = vmatprep.mubr.f32.mxu0 0.0
  %1190 = vmatmul.mubr.f32.gmra.mrb[0].mxu0 %v1006
  %v1191 = vpop.f32.mrb[0].mxu0
  %v1192 = vadd.f32 %v58, %v1191
  %v1193 = vpop.f32.mrb[0].mxu0
  %1194 = vmatprep.mubr.f32.mxu0 0.0
  %1195 = vmatmul.mubr.f32.gmra.mrb[0].mxu0 %v1009
  %v1196 = vpop.f32.mrb[0].mxu0
  %v1197 = vadd.f32 %v58, %v1196
  %v1198 = vpop.f32.mrb[0].mxu0
  %1199 = vmatprep.mubr.f32.mxu0 0.0
  %1200 = vmatmul.mubr.f32.gmra.mrb[0].mxu0 %v1012
  %v1201 = vpop.f32.mrb[0].mxu0
  %v1202 = vadd.f32 %v58, %v1201
  %v1203 = vpop.f32.mrb[0].mxu0
  %1204 = vmatprep.mubr.f32.mxu0 0.0
  %1205 = vmatmul.mubr.f32.gmra.mrb[0].mxu0 %v1015
  %v1206 = vpop.f32.mrb[0].mxu0
  %v1207 = vadd.f32 %v58, %v1206
  %v1208 = vpop.f32.mrb[0].mxu0
  %1209 = vmatprep.mubr.f32.mxu0 0.0
  %1210 = vmatmul.mubr.f32.gmra.mrb[0].mxu0 %v1018
  %v1211 = vpop.f32.mrb[0].mxu0
  %v1212 = vadd.f32 %v58, %v1211
  %v1213 = vpop.f32.mrb[0].mxu0
  %1214 = vmatprep.mubr.f32.mxu0 0.0
  %1215 = vmatmul.mubr.f32.gmra.mrb[0].mxu0 %v1021
  %v1216 = vpop.f32.mrb[0].mxu0
  %v1217 = vadd.f32 %v58, %v1216
  %v1218 = vpop.f32.mrb[0].mxu0
  %1219 = vmatprep.mubr.f32.mxu0 0.0
  %1220 = vmatmul.mubr.f32.gmra.mrb[0].mxu0 %v1024
  %v1221 = vpop.f32.mrb[0].mxu0
  %v1222 = vadd.f32 %v58, %v1221
  %v1223 = vpop.f32.mrb[0].mxu0
  %1224 = vmatprep.mubr.f32.mxu0 0.0
  %1225 = vmatmul.mubr.f32.gmra.mrb[0].mxu0 %v1027
  %v1226 = vpop.f32.mrb[0].mxu0
  %v1227 = vadd.f32 %v58, %v1226
  %v1228 = vpop.f32.mrb[0].mxu0
  %1229 = vmatprep.mubr.f32.mxu0 0.0
  %1230 = vmatmul.mubr.f32.gmra.mrb[0].mxu0 %v1030
  %v1231 = vpop.f32.mrb[0].mxu0
  %v1232 = vadd.f32 %v58, %v1231
  %v1233 = vpop.f32.mrb[0].mxu0
  %1234 = vmatprep.mubr.f32.mxu0 0.0
  %1235 = vmatmul.mubr.f32.gmra.mrb[0].mxu0 %v1033
  %v1236 = vpop.f32.mrb[0].mxu0
  %v1237 = vadd.f32 %v58, %v1236
  %v1238 = vpop.f32.mrb[0].mxu0
  %1239 = vmatprep.mubr.f32.mxu0 0.0
  %1240 = vmatmul.mubr.f32.gmra.mrb[0].mxu0 %v1036
  %v1241 = vpop.f32.mrb[0].mxu0
  %v1242 = vadd.f32 %v58, %v1241
  %v1243 = vpop.f32.mrb[0].mxu0
  %1244 = vmatprep.mubr.f32.mxu0 0.0
  %1245 = vmatmul.mubr.f32.gmra.mrb[0].mxu0 %v1039
  %v1246 = vpop.f32.mrb[0].mxu0
  %v1247 = vadd.f32 %v58, %v1246
  %v1248 = vpop.f32.mrb[0].mxu0
  %1249 = vmatprep.mubr.f32.mxu0 0.0
  %1250 = vmatmul.mubr.f32.gmra.mrb[0].mxu0 %v1042
  %v1251 = vpop.f32.mrb[0].mxu0
  %v1252 = vadd.f32 %v58, %v1251
  %v1253 = vpop.f32.mrb[0].mxu0
  %1254 = vmatprep.mubr.f32.mxu0 0.0
  %1255 = vmatmul.mubr.f32.gmra.mrb[0].mxu0 %v1045
  %v1256 = vpop.f32.mrb[0].mxu0
  %v1257 = vadd.f32 %v58, %v1256
  %v1258 = vpop.f32.mrb[0].mxu0
  %1259 = vmatprep.mubr.f32.mxu0 0.0
  %1260 = vmatmul.mubr.f32.gmra.mrb[0].mxu0 %v1048
  %v1261 = vpop.f32.mrb[0].mxu0
  %v1262 = vadd.f32 %v58, %v1261
  %v1263 = vpop.f32.mrb[0].mxu0
  %1264 = vmatprep.mubr.f32.mxu0 0.0
  %1265 = vmatmul.mubr.f32.gmra.mrb[0].mxu0 %v1051
  %v1266 = vpop.f32.mrb[0].mxu0
  %v1267 = vadd.f32 %v58, %v1266
  %v1268 = vpop.f32.mrb[0].mxu0
  %1269 = vmatprep.mubr.f32.mxu0 0.0
  %1270 = vmatmul.mubr.f32.gmra.mrb[0].mxu0 %v1054
  %v1271 = vpop.f32.mrb[0].mxu0
  %v1272 = vadd.f32 %v58, %v1271
  %v1273 = vpop.f32.mrb[0].mxu0
  %1274 = vmatprep.mubr.f32.mxu0 0.0
  %1275 = vmatmul.mubr.f32.gmra.mrb[0].mxu0 %v1057
  %v1276 = vpop.f32.mrb[0].mxu0
  %v1277 = vadd.f32 %v58, %v1276
  %v1278 = vpop.f32.mrb[0].mxu0
  %1279 = vmatprep.mubr.f32.mxu0 0.0
  %1280 = vmatmul.mubr.f32.gmra.mrb[0].mxu0 %v1060
  %v1281 = vpop.f32.mrb[0].mxu0
  %v1282 = vadd.f32 %v58, %v1281
  %v1283 = vpop.f32.mrb[0].mxu0
  %1284 = vmatprep.mubr.f32.mxu0 0.0
  %1285 = vmatmul.mubr.f32.gmra.mrb[0].mxu0 %v1063
  %v1286 = vpop.f32.mrb[0].mxu0
  %v1287 = vadd.f32 %v58, %v1286
  %v1288 = vpop.f32.mrb[0].mxu0
  %1289 = vmatprep.mubr.f32.mxu0 0.0
  %1290 = vmatmul.mubr.f32.gmra.mrb[0].mxu0 %v1066
  %v1291 = vpop.f32.mrb[0].mxu0
  %v1292 = vadd.f32 %v58, %v1291
  %v1293 = vpop.f32.mrb[0].mxu0
  %1294 = vmatprep.mubr.f32.mxu0 0.0
  %1295 = vmatmul.mubr.f32.gmra.mrb[0].mxu0 %v1069
  %v1296 = vpop.f32.mrb[0].mxu0
  %v1297 = vadd.f32 %v58, %v1296
  %v1298 = vpop.f32.mrb[0].mxu0
  %1299 = vmatprep.mubr.f32.mxu0 0.0
  %1300 = vmatmul.mubr.f32.gmra.mrb[0].mxu0 %v1072
  %v1301 = vpop.f32.mrb[0].mxu0
  %v1302 = vadd.f32 %v58, %v1301
  %v1303 = vpop.f32.mrb[0].mxu0
  %1304 = vmatprep.mubr.f32.mxu0 0.0
  %1305 = vmatmul.mubr.f32.gmra.mrb[0].mxu0 %v1075
  %v1306 = vpop.f32.mrb[0].mxu0
  %v1307 = vadd.f32 %v58, %v1306
  %v1308 = vpop.f32.mrb[0].mxu0
  %1309 = vmatprep.mubr.f32.mxu0 0.0
  %1310 = vmatmul.mubr.f32.gmra.mrb[0].mxu0 %v1078
  %v1311 = vpop.f32.mrb[0].mxu0
  %v1312 = vadd.f32 %v58, %v1311
  %v1313 = vpop.f32.mrb[0].mxu0
  %1314 = vmatprep.mubr.f32.mxu0 0.0
  %1315 = vmatmul.mubr.f32.gmra.mrb[0].mxu0 %v1081
  %v1316 = vpop.f32.mrb[0].mxu0
  %v1317 = vadd.f32 %v58, %v1316
  %v1318 = vpop.f32.mrb[0].mxu0
  %1319 = vmatprep.mubr.f32.mxu0 0.0
  %1320 = vmatmul.mubr.f32.gmra.mrb[0].mxu0 %v1084
  %v1321 = vpop.f32.mrb[0].mxu0
  %v1322 = vadd.f32 %v58, %v1321
  %v1323 = vpop.f32.mrb[0].mxu0
  %1324 = vmatprep.mubr.f32.mxu0 0.0
  %1325 = vmatmul.mubr.f32.gmra.mrb[0].mxu0 %v1087
  %v1326 = vpop.f32.mrb[0].mxu0
  %v1327 = vadd.f32 %v58, %v1326
  %v1328 = vpop.f32.mrb[0].mxu0
  %1329 = vmatprep.mubr.f32.mxu0 0.0
  %1330 = vmatmul.mubr.f32.gmra.mrb[0].mxu0 %v1090
  %v1331 = vpop.f32.mrb[0].mxu0
  %v1332 = vadd.f32 %v58, %v1331
  %v1333 = vpop.f32.mrb[0].mxu0
  %1334 = vmatprep.mubr.f32.mxu0 0.0
  %1335 = vmatmul.mubr.f32.gmra.mrb[0].mxu0 %v1093
  %v1336 = vpop.f32.mrb[0].mxu0
  %v1337 = vadd.f32 %v58, %v1336
  %v1338 = vpop.f32.mrb[0].mxu0
  %1339 = vdwg.mxu0
  %v1340 = vmax.f32 %v1162, 0.0
  %v1341 = vmax.f32 %v1167, 0.0
  %v1342 = vmax.f32 %v1172, 0.0
  %v1343 = vmax.f32 %v1177, 0.0
  %v1344 = vmax.f32 %v1182, 0.0
  %v1345 = vmax.f32 %v1187, 0.0
  %v1346 = vmax.f32 %v1192, 0.0
  %v1347 = vmax.f32 %v1197, 0.0
  %v1348 = vmax.f32 %v1202, 0.0
  %v1349 = vmax.f32 %v1207, 0.0
  %v1350 = vmax.f32 %v1212, 0.0
  %v1351 = vmax.f32 %v1217, 0.0
  %v1352 = vmax.f32 %v1222, 0.0
  %v1353 = vmax.f32 %v1227, 0.0
  %v1354 = vmax.f32 %v1232, 0.0
  %v1355 = vmax.f32 %v1237, 0.0
  %v1356 = vmax.f32 %v1242, 0.0
  %v1357 = vmax.f32 %v1247, 0.0
  %v1358 = vmax.f32 %v1252, 0.0
  %v1359 = vmax.f32 %v1257, 0.0
  %v1360 = vmax.f32 %v1262, 0.0
  %v1361 = vmax.f32 %v1267, 0.0
  %v1362 = vmax.f32 %v1272, 0.0
  %v1363 = vmax.f32 %v1277, 0.0
  %v1364 = vmax.f32 %v1282, 0.0
  %v1365 = vmax.f32 %v1287, 0.0
  %v1366 = vmax.f32 %v1292, 0.0
  %v1367 = vmax.f32 %v1297, 0.0
  %v1368 = vmax.f32 %v1302, 0.0
  %v1369 = vmax.f32 %v1307, 0.0
  %v1370 = vmax.f32 %v1312, 0.0
  %v1371 = vmax.f32 %v1317, 0.0
  %v1372 = vmax.f32 %v1322, 0.0
  %v1373 = vmax.f32 %v1327, 0.0
  %v1374 = vmax.f32 %v1332, 0.0
  %v1375 = vmax.f32 %v1337, 0.0
  %1376 = vst.msk [vmem:[#allocation2 + $0x240] sm:$0xff] %vm453, %v1340
  %1377 = vst.msk [vmem:[#allocation2 + $0x248] sm:$0xff] %vm453, %v1341
  %1378 = vst.msk [vmem:[#allocation2 + $0x250] sm:$0xff] %vm453, %v1342
  %1379 = vst.msk [vmem:[#allocation2 + $0x258] sm:$0xff] %vm453, %v1343
  %1380 = vst.msk [vmem:[#allocation2 + $0x260] sm:$0xff] %vm453, %v1344
  %1381 = vst.msk [vmem:[#allocation2 + $0x268] sm:$0xff] %vm453, %v1345
  %1382 = vst.msk [vmem:[#allocation2 + $0x270] sm:$0xff] %vm453, %v1346
  %1383 = vst.msk [vmem:[#allocation2 + $0x278] sm:$0xff] %vm453, %v1347
  %1384 = vst.msk [vmem:[#allocation2 + $0x280] sm:$0xff] %vm453, %v1348
  %1385 = vst.msk [vmem:[#allocation2 + $0x288] sm:$0xff] %vm453, %v1349
  %1386 = vst.msk [vmem:[#allocation2 + $0x290] sm:$0xff] %vm453, %v1350
  %1387 = vst.msk [vmem:[#allocation2 + $0x298] sm:$0xff] %vm453, %v1351
  %1388 = vst.msk [vmem:[#allocation2 + $0x2a0] sm:$0xff] %vm453, %v1352
  %1389 = vst.msk [vmem:[#allocation2 + $0x2a8] sm:$0xff] %vm453, %v1353
  %1390 = vst.msk [vmem:[#allocation2 + $0x2b0] sm:$0xff] %vm453, %v1354
  %1391 = vst.msk [vmem:[#allocation2 + $0x2b8] sm:$0xff] %vm453, %v1355
  %1392 = vst.msk [vmem:[#allocation2 + $0x2c0] sm:$0xff] %vm453, %v1356
  %1393 = vst.msk [vmem:[#allocation2 + $0x2c8] sm:$0xff] %vm453, %v1357
  %1394 = vst.msk [vmem:[#allocation2 + $0x2d0] sm:$0xff] %vm453, %v1358
  %1395 = vst.msk [vmem:[#allocation2 + $0x2d8] sm:$0xff] %vm453, %v1359
  %1396 = vst.msk [vmem:[#allocation2 + $0x2e0] sm:$0xff] %vm453, %v1360
  %1397 = vst.msk [vmem:[#allocation2 + $0x2e8] sm:$0xff] %vm453, %v1361
  %1398 = vst.msk [vmem:[#allocation2 + $0x2f0] sm:$0xff] %vm453, %v1362
  %1399 = vst.msk [vmem:[#allocation2 + $0x2f8] sm:$0xff] %vm453, %v1363
  %1400 = vst.msk [vmem:[#allocation2 + $0x300] sm:$0xff] %vm453, %v1364
  %1401 = vst.msk [vmem:[#allocation2 + $0x308] sm:$0xff] %vm453, %v1365
  %1402 = vst.msk [vmem:[#allocation2 + $0x310] sm:$0xff] %vm453, %v1366
  %1403 = vst.msk [vmem:[#allocation2 + $0x318] sm:$0xff] %vm453, %v1367
  %1404 = vst.msk [vmem:[#allocation2 + $0x320] sm:$0xff] %vm453, %v1368
  %1405 = vst.msk [vmem:[#allocation2 + $0x328] sm:$0xff] %vm453, %v1369
  %1406 = vst.msk [vmem:[#allocation2 + $0x330] sm:$0xff] %vm453, %v1370
  %1407 = vst.msk [vmem:[#allocation2 + $0x338] sm:$0xff] %vm453, %v1371
  %1408 = vst.msk [vmem:[#allocation2 + $0x340] sm:$0xff] %vm453, %v1372
  %1409 = vst.msk [vmem:[#allocation2 + $0x348] sm:$0xff] %vm453, %v1373
  %1410 = vst.msk [vmem:[#allocation2 + $0x350] sm:$0xff] %vm453, %v1374
  %1411 = vst.msk [vmem:[#allocation2 + $0x358] sm:$0xff] %vm453, %v1375
  %v1412 = vld [vmem:[%s0 + $0x360] sm:$0xff]
  %v1413 = vld [vmem:[%s0 + $0x368] sm:$0xff]
  %v1414 = vld [vmem:[%s0 + $0x370] sm:$0xff]
  %v1415 = vld [vmem:[%s0 + $0x378] sm:$0xff]
  %v1416 = vld [vmem:[%s0 + $0x380] sm:$0xff]
  %v1417 = vld [vmem:[%s0 + $0x388] sm:$0xff]
  %v1418 = vld [vmem:[%s0 + $0x390] sm:$0xff]
  %v1419 = vld [vmem:[%s0 + $0x398] sm:$0xff]
  %v1420 = vld [vmem:[%s0 + $0x3a0] sm:$0xff]
  %v1421 = vld [vmem:[%s0 + $0x3a8] sm:$0xff]
  %v1422 = vld [vmem:[%s0 + $0x3b0] sm:$0xff]
  %v1423 = vld [vmem:[%s0 + $0x3b8] sm:$0xff]
  %v1424 = vld [vmem:[%s0 + $0x3c0] sm:$0xff]
  %v1425 = vld [vmem:[%s0 + $0x3c8] sm:$0xff]
  %v1426 = vld [vmem:[%s0 + $0x3d0] sm:$0xff]
  %v1427 = vld [vmem:[%s0 + $0x3d8] sm:$0xff]
  %v1428 = vld [vmem:[%s0 + $0x3e0] sm:$0xff]
  %v1429 = vld [vmem:[%s0 + $0x3e8] sm:$0xff]
  %v1430 = vld [vmem:[%s0 + $0x3f0] sm:$0xff]
  %v1431 = vld [vmem:[%s0 + $0x3f8] sm:$0xff]
  %v1432 = vld [vmem:[%s0 + $0x400] sm:$0xff]
  %v1433 = vld [vmem:[%s0 + $0x408] sm:$0xff]
  %v1434 = vld [vmem:[%s0 + $0x410] sm:$0xff]
  %v1435 = vld [vmem:[%s0 + $0x418] sm:$0xff]
  %v1436 = vld [vmem:[%s0 + $0x420] sm:$0xff]
  %v1437 = vld [vmem:[%s0 + $0x428] sm:$0xff]
  %v1438 = vld [vmem:[%s0 + $0x430] sm:$0xff]
  %v1439 = vld [vmem:[%s0 + $0x438] sm:$0xff]
  %v1440 = vld [vmem:[%s0 + $0x440] sm:$0xff]
  %v1441 = vld [vmem:[%s0 + $0x448] sm:$0xff]
  %v1442 = vld [vmem:[%s0 + $0x450] sm:$0xff]
  %v1443 = vld [vmem:[%s0 + $0x458] sm:$0xff]
  %v1444 = vld [vmem:[%s0 + $0x460] sm:$0xff]
  %v1445 = vld [vmem:[%s0 + $0x468] sm:$0xff]
  %v1446 = vld [vmem:[%s0 + $0x470] sm:$0xff]
  %v1447 = vld [vmem:[%s0 + $0x478] sm:$0xff]
  %v1449 = vsel %vm59, %v1412, 0
  %v1452 = vsel %vm59, %v1413, 0
  %v1455 = vsel %vm59, %v1414, 0
  %v1458 = vsel %vm59, %v1415, 0
  %v1461 = vsel %vm59, %v1416, 0
  %v1464 = vsel %vm59, %v1417, 0
  %v1467 = vsel %vm59, %v1418, 0
  %v1470 = vsel %vm59, %v1419, 0
  %v1473 = vsel %vm59, %v1420, 0
  %v1476 = vsel %vm59, %v1421, 0
  %v1479 = vsel %vm59, %v1422, 0
  %v1482 = vsel %vm59, %v1423, 0
  %v1485 = vsel %vm59, %v1424, 0
  %v1488 = vsel %vm59, %v1425, 0
  %v1491 = vsel %vm59, %v1426, 0
  %v1494 = vsel %vm59, %v1427, 0
  %v1497 = vsel %vm59, %v1428, 0
  %v1500 = vsel %vm59, %v1429, 0
  %v1503 = vsel %vm59, %v1430, 0
  %v1506 = vsel %vm59, %v1431, 0
  %v1509 = vsel %vm59, %v1432, 0
  %v1512 = vsel %vm59, %v1433, 0
  %v1515 = vsel %vm59, %v1434, 0
  %v1518 = vsel %vm59, %v1435, 0
  %v1521 = vsel %vm59, %v1436, 0
  %v1524 = vsel %vm59, %v1437, 0
  %v1527 = vsel %vm59, %v1438, 0
  %v1530 = vsel %vm59, %v1439, 0
  %v1533 = vsel %vm59, %v1440, 0
  %v1536 = vsel %vm59, %v1441, 0
  %v1539 = vsel %vm59, %v1442, 0
  %v1542 = vsel %vm59, %v1443, 0
  %v1545 = vsel %vm59, %v1444, 0
  %v1548 = vsel %vm59, %v1445, 0
  %v1551 = vsel %vm59, %v1446, 0
  %v1554 = vsel %vm59, %v1447, 0
  %1556 = vmatprep.subr.mxu0 0.0
  %1557 = vmatpush1.msra.mxu0 %v14
  %1558 = vmatprep.subr.mxu0 0.0
  %1559 = vmatpush1.msra.mxu0 %v15
  %1560 = vmatprep.subr.mxu0 0.0
  %1561 = vmatpush1.msra.mxu0 %v16
  %1562 = vmatprep.subr.mxu0 0.0
  %1563 = vmatpush1.msra.mxu0 %v170
  %1564 = vmatprep.subr.mxu0 0.0
  %1565 = vmatpush1.msra.mxu0 0.0
  %1566 = vmatprep.subr.mxu0 0.0
  %1567 = vmatpush1.msra.mxu0 0.0
  %1568 = vmatprep.subr.mxu0 0.0
  %1569 = vmatpush1.msra.mxu0 0.0
  %1570 = vmatprep.subr.mxu0 0.0
  %1571 = vmatpush1.msra.mxu0 0.0
  %1572 = vmatprep.subr.mxu0 0.0
  %1573 = vmatpush1.msra.mxu0 0.0
  %1574 = vmatprep.subr.mxu0 0.0
  %1575 = vmatpush1.msra.mxu0 0.0
  %1576 = vmatprep.subr.mxu0 0.0
  %1577 = vmatpush1.msra.mxu0 0.0
  %1578 = vmatprep.subr.mxu0 0.0
  %1579 = vmatpush1.msra.mxu0 0.0
  %1580 = vmatprep.subr.mxu0 0.0
  %1581 = vmatpush1.msra.mxu0 0.0
  %1582 = vmatprep.subr.mxu0 0.0
  %1583 = vmatpush1.msra.mxu0 0.0
  %1584 = vmatprep.subr.mxu0 0.0
  %1585 = vmatpush1.msra.mxu0 0.0
  %1586 = vmatprep.subr.mxu0 0.0
  %1587 = vmatpush1.msra.mxu0 0.0
  %1588 = vmatprep.subr.mxu0 0.0
  %1589 = vmatpush1.msra.mxu0 0.0
  %1590 = vmatprep.subr.mxu0 0.0
  %1591 = vmatpush1.msra.mxu0 0.0
  %1592 = vmatprep.subr.mxu0 0.0
  %1593 = vmatpush1.msra.mxu0 0.0
  %1594 = vmatprep.subr.mxu0 0.0
  %1595 = vmatpush1.msra.mxu0 0.0
  %1596 = vmatprep.subr.mxu0 0.0
  %1597 = vmatpush1.msra.mxu0 0.0
  %1598 = vmatprep.subr.mxu0 0.0
  %1599 = vmatpush1.msra.mxu0 0.0
  %1600 = vmatprep.subr.mxu0 0.0
  %1601 = vmatpush1.msra.mxu0 0.0
  %1602 = vmatprep.subr.mxu0 0.0
  %1603 = vmatpush1.msra.mxu0 0.0
  %1604 = vmatprep.subr.mxu0 0.0
  %1605 = vmatpush1.msra.mxu0 0.0
  %1606 = vmatprep.subr.mxu0 0.0
  %1607 = vmatpush1.msra.mxu0 0.0
  %1608 = vmatprep.subr.mxu0 0.0
  %1609 = vmatpush1.msra.mxu0 0.0
  %1610 = vmatprep.subr.mxu0 0.0
  %1611 = vmatpush1.msra.mxu0 0.0
  %1612 = vmatprep.subr.mxu0 0.0
  %1613 = vmatpush1.msra.mxu0 0.0
  %1614 = vmatprep.subr.mxu0 0.0
  %1615 = vmatpush1.msra.mxu0 0.0
  %1616 = vmatprep.subr.mxu0 0.0
  %1617 = vmatpush1.msra.mxu0 0.0
  %1618 = vmatprep.subr.mxu0 0.0
  %1619 = vmatpush1.msra.mxu0 0.0
  %1620 = vmatprep.mubr.f32.mxu0 0.0
  %1621 = vmatmul.mubr.f32.gmra.mrb[0].mxu0 %v1449
  %v1622 = vpop.f32.mrb[0].mxu0
  %v1623 = vadd.f32 %v58, %v1622
  %v1624 = vpop.f32.mrb[0].mxu0
  %1625 = vmatprep.mubr.f32.mxu0 0.0
  %1626 = vmatmul.mubr.f32.gmra.mrb[0].mxu0 %v1452
  %v1627 = vpop.f32.mrb[0].mxu0
  %v1628 = vadd.f32 %v58, %v1627
  %v1629 = vpop.f32.mrb[0].mxu0
  %1630 = vmatprep.mubr.f32.mxu0 0.0
  %1631 = vmatmul.mubr.f32.gmra.mrb[0].mxu0 %v1455
  %v1632 = vpop.f32.mrb[0].mxu0
  %v1633 = vadd.f32 %v58, %v1632
  %v1634 = vpop.f32.mrb[0].mxu0
  %1635 = vmatprep.mubr.f32.mxu0 0.0
  %1636 = vmatmul.mubr.f32.gmra.mrb[0].mxu0 %v1458
  %v1637 = vpop.f32.mrb[0].mxu0
  %v1638 = vadd.f32 %v58, %v1637
  %v1639 = vpop.f32.mrb[0].mxu0
  %1640 = vmatprep.mubr.f32.mxu0 0.0
  %1641 = vmatmul.mubr.f32.gmra.mrb[0].mxu0 %v1461
  %v1642 = vpop.f32.mrb[0].mxu0
  %v1643 = vadd.f32 %v58, %v1642
  %v1644 = vpop.f32.mrb[0].mxu0
  %1645 = vmatprep.mubr.f32.mxu0 0.0
  %1646 = vmatmul.mubr.f32.gmra.mrb[0].mxu0 %v1464
  %v1647 = vpop.f32.mrb[0].mxu0
  %v1648 = vadd.f32 %v58, %v1647
  %v1649 = vpop.f32.mrb[0].mxu0
  %1650 = vmatprep.mubr.f32.mxu0 0.0
  %1651 = vmatmul.mubr.f32.gmra.mrb[0].mxu0 %v1467
  %v1652 = vpop.f32.mrb[0].mxu0
  %v1653 = vadd.f32 %v58, %v1652
  %v1654 = vpop.f32.mrb[0].mxu0
  %1655 = vmatprep.mubr.f32.mxu0 0.0
  %1656 = vmatmul.mubr.f32.gmra.mrb[0].mxu0 %v1470
  %v1657 = vpop.f32.mrb[0].mxu0
  %v1658 = vadd.f32 %v58, %v1657
  %v1659 = vpop.f32.mrb[0].mxu0
  %1660 = vmatprep.mubr.f32.mxu0 0.0
  %1661 = vmatmul.mubr.f32.gmra.mrb[0].mxu0 %v1473
  %v1662 = vpop.f32.mrb[0].mxu0
  %v1663 = vadd.f32 %v58, %v1662
  %v1664 = vpop.f32.mrb[0].mxu0
  %1665 = vmatprep.mubr.f32.mxu0 0.0
  %1666 = vmatmul.mubr.f32.gmra.mrb[0].mxu0 %v1476
  %v1667 = vpop.f32.mrb[0].mxu0
  %v1668 = vadd.f32 %v58, %v1667
  %v1669 = vpop.f32.mrb[0].mxu0
  %1670 = vmatprep.mubr.f32.mxu0 0.0
  %1671 = vmatmul.mubr.f32.gmra.mrb[0].mxu0 %v1479
  %v1672 = vpop.f32.mrb[0].mxu0
  %v1673 = vadd.f32 %v58, %v1672
  %v1674 = vpop.f32.mrb[0].mxu0
  %1675 = vmatprep.mubr.f32.mxu0 0.0
  %1676 = vmatmul.mubr.f32.gmra.mrb[0].mxu0 %v1482
  %v1677 = vpop.f32.mrb[0].mxu0
  %v1678 = vadd.f32 %v58, %v1677
  %v1679 = vpop.f32.mrb[0].mxu0
  %1680 = vmatprep.mubr.f32.mxu0 0.0
  %1681 = vmatmul.mubr.f32.gmra.mrb[0].mxu0 %v1485
  %v1682 = vpop.f32.mrb[0].mxu0
  %v1683 = vadd.f32 %v58, %v1682
  %v1684 = vpop.f32.mrb[0].mxu0
  %1685 = vmatprep.mubr.f32.mxu0 0.0
  %1686 = vmatmul.mubr.f32.gmra.mrb[0].mxu0 %v1488
  %v1687 = vpop.f32.mrb[0].mxu0
  %v1688 = vadd.f32 %v58, %v1687
  %v1689 = vpop.f32.mrb[0].mxu0
  %1690 = vmatprep.mubr.f32.mxu0 0.0
  %1691 = vmatmul.mubr.f32.gmra.mrb[0].mxu0 %v1491
  %v1692 = vpop.f32.mrb[0].mxu0
  %v1693 = vadd.f32 %v58, %v1692
  %v1694 = vpop.f32.mrb[0].mxu0
  %1695 = vmatprep.mubr.f32.mxu0 0.0
  %1696 = vmatmul.mubr.f32.gmra.mrb[0].mxu0 %v1494
  %v1697 = vpop.f32.mrb[0].mxu0
  %v1698 = vadd.f32 %v58, %v1697
  %v1699 = vpop.f32.mrb[0].mxu0
  %1700 = vmatprep.mubr.f32.mxu0 0.0
  %1701 = vmatmul.mubr.f32.gmra.mrb[0].mxu0 %v1497
  %v1702 = vpop.f32.mrb[0].mxu0
  %v1703 = vadd.f32 %v58, %v1702
  %v1704 = vpop.f32.mrb[0].mxu0
  %1705 = vmatprep.mubr.f32.mxu0 0.0
  %1706 = vmatmul.mubr.f32.gmra.mrb[0].mxu0 %v1500
  %v1707 = vpop.f32.mrb[0].mxu0
  %v1708 = vadd.f32 %v58, %v1707
  %v1709 = vpop.f32.mrb[0].mxu0
  %1710 = vmatprep.mubr.f32.mxu0 0.0
  %1711 = vmatmul.mubr.f32.gmra.mrb[0].mxu0 %v1503
  %v1712 = vpop.f32.mrb[0].mxu0
  %v1713 = vadd.f32 %v58, %v1712
  %v1714 = vpop.f32.mrb[0].mxu0
  %1715 = vmatprep.mubr.f32.mxu0 0.0
  %1716 = vmatmul.mubr.f32.gmra.mrb[0].mxu0 %v1506
  %v1717 = vpop.f32.mrb[0].mxu0
  %v1718 = vadd.f32 %v58, %v1717
  %v1719 = vpop.f32.mrb[0].mxu0
  %1720 = vmatprep.mubr.f32.mxu0 0.0
  %1721 = vmatmul.mubr.f32.gmra.mrb[0].mxu0 %v1509
  %v1722 = vpop.f32.mrb[0].mxu0
  %v1723 = vadd.f32 %v58, %v1722
  %v1724 = vpop.f32.mrb[0].mxu0
  %1725 = vmatprep.mubr.f32.mxu0 0.0
  %1726 = vmatmul.mubr.f32.gmra.mrb[0].mxu0 %v1512
  %v1727 = vpop.f32.mrb[0].mxu0
  %v1728 = vadd.f32 %v58, %v1727
  %v1729 = vpop.f32.mrb[0].mxu0
  %1730 = vmatprep.mubr.f32.mxu0 0.0
  %1731 = vmatmul.mubr.f32.gmra.mrb[0].mxu0 %v1515
  %v1732 = vpop.f32.mrb[0].mxu0
  %v1733 = vadd.f32 %v58, %v1732
  %v1734 = vpop.f32.mrb[0].mxu0
  %1735 = vmatprep.mubr.f32.mxu0 0.0
  %1736 = vmatmul.mubr.f32.gmra.mrb[0].mxu0 %v1518
  %v1737 = vpop.f32.mrb[0].mxu0
  %v1738 = vadd.f32 %v58, %v1737
  %v1739 = vpop.f32.mrb[0].mxu0
  %1740 = vmatprep.mubr.f32.mxu0 0.0
  %1741 = vmatmul.mubr.f32.gmra.mrb[0].mxu0 %v1521
  %v1742 = vpop.f32.mrb[0].mxu0
  %v1743 = vadd.f32 %v58, %v1742
  %v1744 = vpop.f32.mrb[0].mxu0
  %1745 = vmatprep.mubr.f32.mxu0 0.0
  %1746 = vmatmul.mubr.f32.gmra.mrb[0].mxu0 %v1524
  %v1747 = vpop.f32.mrb[0].mxu0
  %v1748 = vadd.f32 %v58, %v1747
  %v1749 = vpop.f32.mrb[0].mxu0
  %1750 = vmatprep.mubr.f32.mxu0 0.0
  %1751 = vmatmul.mubr.f32.gmra.mrb[0].mxu0 %v1527
  %v1752 = vpop.f32.mrb[0].mxu0
  %v1753 = vadd.f32 %v58, %v1752
  %v1754 = vpop.f32.mrb[0].mxu0
  %1755 = vmatprep.mubr.f32.mxu0 0.0
  %1756 = vmatmul.mubr.f32.gmra.mrb[0].mxu0 %v1530
  %v1757 = vpop.f32.mrb[0].mxu0
  %v1758 = vadd.f32 %v58, %v1757
  %v1759 = vpop.f32.mrb[0].mxu0
  %1760 = vmatprep.mubr.f32.mxu0 0.0
  %1761 = vmatmul.mubr.f32.gmra.mrb[0].mxu0 %v1533
  %v1762 = vpop.f32.mrb[0].mxu0
  %v1763 = vadd.f32 %v58, %v1762
  %v1764 = vpop.f32.mrb[0].mxu0
  %1765 = vmatprep.mubr.f32.mxu0 0.0
  %1766 = vmatmul.mubr.f32.gmra.mrb[0].mxu0 %v1536
  %v1767 = vpop.f32.mrb[0].mxu0
  %v1768 = vadd.f32 %v58, %v1767
  %v1769 = vpop.f32.mrb[0].mxu0
  %1770 = vmatprep.mubr.f32.mxu0 0.0
  %1771 = vmatmul.mubr.f32.gmra.mrb[0].mxu0 %v1539
  %v1772 = vpop.f32.mrb[0].mxu0
  %v1773 = vadd.f32 %v58, %v1772
  %v1774 = vpop.f32.mrb[0].mxu0
  %1775 = vmatprep.mubr.f32.mxu0 0.0
  %1776 = vmatmul.mubr.f32.gmra.mrb[0].mxu0 %v1542
  %v1777 = vpop.f32.mrb[0].mxu0
  %v1778 = vadd.f32 %v58, %v1777
  %v1779 = vpop.f32.mrb[0].mxu0
  %1780 = vmatprep.mubr.f32.mxu0 0.0
  %1781 = vmatmul.mubr.f32.gmra.mrb[0].mxu0 %v1545
  %v1782 = vpop.f32.mrb[0].mxu0
  %v1783 = vadd.f32 %v58, %v1782
  %v1784 = vpop.f32.mrb[0].mxu0
  %1785 = vmatprep.mubr.f32.mxu0 0.0
  %1786 = vmatmul.mubr.f32.gmra.mrb[0].mxu0 %v1548
  %v1787 = vpop.f32.mrb[0].mxu0
  %v1788 = vadd.f32 %v58, %v1787
  %v1789 = vpop.f32.mrb[0].mxu0
  %1790 = vmatprep.mubr.f32.mxu0 0.0
  %1791 = vmatmul.mubr.f32.gmra.mrb[0].mxu0 %v1551
  %v1792 = vpop.f32.mrb[0].mxu0
  %v1793 = vadd.f32 %v58, %v1792
  %v1794 = vpop.f32.mrb[0].mxu0
  %1795 = vmatprep.mubr.f32.mxu0 0.0
  %1796 = vmatmul.mubr.f32.gmra.mrb[0].mxu0 %v1554
  %v1797 = vpop.f32.mrb[0].mxu0
  %v1798 = vadd.f32 %v58, %v1797
  %v1799 = vpop.f32.mrb[0].mxu0
  %1800 = vdwg.mxu0
  %v1801 = vmax.f32 %v1623, 0.0
  %v1802 = vmax.f32 %v1628, 0.0
  %v1803 = vmax.f32 %v1633, 0.0
  %v1804 = vmax.f32 %v1638, 0.0
  %v1805 = vmax.f32 %v1643, 0.0
  %v1806 = vmax.f32 %v1648, 0.0
  %v1807 = vmax.f32 %v1653, 0.0
  %v1808 = vmax.f32 %v1658, 0.0
  %v1809 = vmax.f32 %v1663, 0.0
  %v1810 = vmax.f32 %v1668, 0.0
  %v1811 = vmax.f32 %v1673, 0.0
  %v1812 = vmax.f32 %v1678, 0.0
  %v1813 = vmax.f32 %v1683, 0.0
  %v1814 = vmax.f32 %v1688, 0.0
  %v1815 = vmax.f32 %v1693, 0.0
  %v1816 = vmax.f32 %v1698, 0.0
  %v1817 = vmax.f32 %v1703, 0.0
  %v1818 = vmax.f32 %v1708, 0.0
  %v1819 = vmax.f32 %v1713, 0.0
  %v1820 = vmax.f32 %v1718, 0.0
  %v1821 = vmax.f32 %v1723, 0.0
  %v1822 = vmax.f32 %v1728, 0.0
  %v1823 = vmax.f32 %v1733, 0.0
  %v1824 = vmax.f32 %v1738, 0.0
  %v1825 = vmax.f32 %v1743, 0.0
  %v1826 = vmax.f32 %v1748, 0.0
  %v1827 = vmax.f32 %v1753, 0.0
  %v1828 = vmax.f32 %v1758, 0.0
  %v1829 = vmax.f32 %v1763, 0.0
  %v1830 = vmax.f32 %v1768, 0.0
  %v1831 = vmax.f32 %v1773, 0.0
  %v1832 = vmax.f32 %v1778, 0.0
  %v1833 = vmax.f32 %v1783, 0.0
  %v1834 = vmax.f32 %v1788, 0.0
  %v1835 = vmax.f32 %v1793, 0.0
  %v1836 = vmax.f32 %v1798, 0.0
  %1837 = vst.msk [vmem:[#allocation2 + $0x360] sm:$0xff] %vm453, %v1801
  %1838 = vst.msk [vmem:[#allocation2 + $0x368] sm:$0xff] %vm453, %v1802
  %1839 = vst.msk [vmem:[#allocation2 + $0x370] sm:$0xff] %vm453, %v1803
  %1840 = vst.msk [vmem:[#allocation2 + $0x378] sm:$0xff] %vm453, %v1804
  %1841 = vst.msk [vmem:[#allocation2 + $0x380] sm:$0xff] %vm453, %v1805
  %1842 = vst.msk [vmem:[#allocation2 + $0x388] sm:$0xff] %vm453, %v1806
  %1843 = vst.msk [vmem:[#allocation2 + $0x390] sm:$0xff] %vm453, %v1807
  %1844 = vst.msk [vmem:[#allocation2 + $0x398] sm:$0xff] %vm453, %v1808
  %1845 = vst.msk [vmem:[#allocation2 + $0x3a0] sm:$0xff] %vm453, %v1809
  %1846 = vst.msk [vmem:[#allocation2 + $0x3a8] sm:$0xff] %vm453, %v1810
  %1847 = vst.msk [vmem:[#allocation2 + $0x3b0] sm:$0xff] %vm453, %v1811
  %1848 = vst.msk [vmem:[#allocation2 + $0x3b8] sm:$0xff] %vm453, %v1812
  %1849 = vst.msk [vmem:[#allocation2 + $0x3c0] sm:$0xff] %vm453, %v1813
  %1850 = vst.msk [vmem:[#allocation2 + $0x3c8] sm:$0xff] %vm453, %v1814
  %1851 = vst.msk [vmem:[#allocation2 + $0x3d0] sm:$0xff] %vm453, %v1815
  %1852 = vst.msk [vmem:[#allocation2 + $0x3d8] sm:$0xff] %vm453, %v1816
  %1853 = vst.msk [vmem:[#allocation2 + $0x3e0] sm:$0xff] %vm453, %v1817
  %1854 = vst.msk [vmem:[#allocation2 + $0x3e8] sm:$0xff] %vm453, %v1818
  %1855 = vst.msk [vmem:[#allocation2 + $0x3f0] sm:$0xff] %vm453, %v1819
  %1856 = vst.msk [vmem:[#allocation2 + $0x3f8] sm:$0xff] %vm453, %v1820
  %1857 = vst.msk [vmem:[#allocation2 + $0x400] sm:$0xff] %vm453, %v1821
  %1858 = vst.msk [vmem:[#allocation2 + $0x408] sm:$0xff] %vm453, %v1822
  %1859 = vst.msk [vmem:[#allocation2 + $0x410] sm:$0xff] %vm453, %v1823
  %1860 = vst.msk [vmem:[#allocation2 + $0x418] sm:$0xff] %vm453, %v1824
  %1861 = vst.msk [vmem:[#allocation2 + $0x420] sm:$0xff] %vm453, %v1825
  %1862 = vst.msk [vmem:[#allocation2 + $0x428] sm:$0xff] %vm453, %v1826
  %1863 = vst.msk [vmem:[#allocation2 + $0x430] sm:$0xff] %vm453, %v1827
  %1864 = vst.msk [vmem:[#allocation2 + $0x438] sm:$0xff] %vm453, %v1828
  %1865 = vst.msk [vmem:[#allocation2 + $0x440] sm:$0xff] %vm453, %v1829
  %1866 = vst.msk [vmem:[#allocation2 + $0x448] sm:$0xff] %vm453, %v1830
  %1867 = vst.msk [vmem:[#allocation2 + $0x450] sm:$0xff] %vm453, %v1831
  %1868 = vst.msk [vmem:[#allocation2 + $0x458] sm:$0xff] %vm453, %v1832
  %1869 = vst.msk [vmem:[#allocation2 + $0x460] sm:$0xff] %vm453, %v1833
  %1870 = vst.msk [vmem:[#allocation2 + $0x468] sm:$0xff] %vm453, %v1834
  %1871 = vst.msk [vmem:[#allocation2 + $0x470] sm:$0xff] %vm453, %v1835
  %1872 = vst.msk [vmem:[#allocation2 + $0x478] sm:$0xff] %vm453, %v1836
  %v1873 = vld [vmem:[#allocation2] sm:$0xff]
  %v1874 = vld [vmem:[#allocation2 + $0x8] sm:$0xff]
  %v1875 = vld [vmem:[#allocation2 + $0x10] sm:$0xff]
  %v1876 = vld [vmem:[#allocation2 + $0x18] sm:$0xff]
  %v1877 = vld [vmem:[#allocation2 + $0x20] sm:$0xff]
  %v1878 = vld [vmem:[#allocation2 + $0x28] sm:$0xff]
  %v1879 = vld [vmem:[#allocation2 + $0x30] sm:$0xff]
  %v1880 = vld [vmem:[#allocation2 + $0x38] sm:$0xff]
  %v1881 = vld [vmem:[#allocation2 + $0x40] sm:$0xff]
  %v1882 = vld [vmem:[#allocation2 + $0x48] sm:$0xff]
  %v1883 = vld [vmem:[#allocation2 + $0x50] sm:$0xff]
  %v1884 = vld [vmem:[#allocation2 + $0x58] sm:$0xff]
  %v1885 = vld [vmem:[#allocation2 + $0x60] sm:$0xff]
  %v1886 = vld [vmem:[#allocation2 + $0x68] sm:$0xff]
  %v1887 = vld [vmem:[#allocation2 + $0x70] sm:$0xff]
  %v1888 = vld [vmem:[#allocation2 + $0x78] sm:$0xff]
  %v1889 = vld [vmem:[#allocation2 + $0x80] sm:$0xff]
  %v1890 = vld [vmem:[#allocation2 + $0x88] sm:$0xff]
  %v1891 = vld [vmem:[#allocation2 + $0x90] sm:$0xff]
  %v1892 = vld [vmem:[#allocation2 + $0x98] sm:$0xff]
  %v1893 = vld [vmem:[#allocation2 + $0xa0] sm:$0xff]
  %v1894 = vld [vmem:[#allocation2 + $0xa8] sm:$0xff]
  %v1895 = vld [vmem:[#allocation2 + $0xb0] sm:$0xff]
  %v1896 = vld [vmem:[#allocation2 + $0xb8] sm:$0xff]
  %v1897 = vld [vmem:[#allocation2 + $0xc0] sm:$0xff]
  %v1898 = vld [vmem:[#allocation2 + $0xc8] sm:$0xff]
  %v1899 = vld [vmem:[#allocation2 + $0xd0] sm:$0xff]
  %v1900 = vld [vmem:[#allocation2 + $0xd8] sm:$0xff]
  %v1901 = vld [vmem:[#allocation2 + $0xe0] sm:$0xff]
  %v1902 = vld [vmem:[#allocation2 + $0xe8] sm:$0xff]
  %v1903 = vld [vmem:[#allocation2 + $0xf0] sm:$0xff]
  %v1904 = vld [vmem:[#allocation2 + $0xf8] sm:$0xff]
  %v1905 = vld [vmem:[#allocation2 + $0x100] sm:$0xff]
  %v1906 = vld [vmem:[#allocation2 + $0x108] sm:$0xff]
  %v1907 = vld [vmem:[#allocation2 + $0x110] sm:$0xff]
  %v1908 = vld [vmem:[#allocation2 + $0x118] sm:$0xff]
  %v1909 = vmax.f32 %v1873, %v1891
  %v1910 = vmax.f32 %v1874, %v1892
  %v1911 = vmax.f32 %v1875, %v1893
  %v1912 = vmax.f32 %v1876, %v1894
  %v1913 = vmax.f32 %v1877, %v1895
  %v1914 = vmax.f32 %v1878, %v1896
  %v1915 = vmax.f32 %v1879, %v1897
  %v1916 = vmax.f32 %v1880, %v1898
  %v1917 = vmax.f32 %v1881, %v1899
  %v1918 = vmax.f32 %v1882, %v1900
  %v1919 = vmax.f32 %v1883, %v1901
  %v1920 = vmax.f32 %v1884, %v1902
  %v1921 = vmax.f32 %v1885, %v1903
  %v1922 = vmax.f32 %v1886, %v1904
  %v1923 = vmax.f32 %v1887, %v1905
  %v1924 = vmax.f32 %v1888, %v1906
  %v1925 = vmax.f32 %v1889, %v1907
  %v1926 = vmax.f32 %v1890, %v1908
  %v1927 = vld [vmem:[#allocation2 + $0x120] sm:$0xff]
  %v1928 = vld [vmem:[#allocation2 + $0x128] sm:$0xff]
  %v1929 = vld [vmem:[#allocation2 + $0x130] sm:$0xff]
  %v1930 = vld [vmem:[#allocation2 + $0x138] sm:$0xff]
  %v1931 = vld [vmem:[#allocation2 + $0x140] sm:$0xff]
  %v1932 = vld [vmem:[#allocation2 + $0x148] sm:$0xff]
  %v1933 = vld [vmem:[#allocation2 + $0x150] sm:$0xff]
  %v1934 = vld [vmem:[#allocation2 + $0x158] sm:$0xff]
  %v1935 = vld [vmem:[#allocation2 + $0x160] sm:$0xff]
  %v1936 = vld [vmem:[#allocation2 + $0x168] sm:$0xff]
  %v1937 = vld [vmem:[#allocation2 + $0x170] sm:$0xff]
  %v1938 = vld [vmem:[#allocation2 + $0x178] sm:$0xff]
  %v1939 = vld [vmem:[#allocation2 + $0x180] sm:$0xff]
  %v1940 = vld [vmem:[#allocation2 + $0x188] sm:$0xff]
  %v1941 = vld [vmem:[#allocation2 + $0x190] sm:$0xff]
  %v1942 = vld [vmem:[#allocation2 + $0x198] sm:$0xff]
  %v1943 = vld [vmem:[#allocation2 + $0x1a0] sm:$0xff]
  %v1944 = vld [vmem:[#allocation2 + $0x1a8] sm:$0xff]
  %v1945 = vmax.f32 %v1909, %v1927
  %v1946 = vmax.f32 %v1910, %v1928
  %v1947 = vmax.f32 %v1911, %v1929
  %v1948 = vmax.f32 %v1912, %v1930
  %v1949 = vmax.f32 %v1913, %v1931
  %v1950 = vmax.f32 %v1914, %v1932
  %v1951 = vmax.f32 %v1915, %v1933
  %v1952 = vmax.f32 %v1916, %v1934
  %v1953 = vmax.f32 %v1917, %v1935
  %v1954 = vmax.f32 %v1918, %v1936
  %v1955 = vmax.f32 %v1919, %v1937
  %v1956 = vmax.f32 %v1920, %v1938
  %v1957 = vmax.f32 %v1921, %v1939
  %v1958 = vmax.f32 %v1922, %v1940
  %v1959 = vmax.f32 %v1923, %v1941
  %v1960 = vmax.f32 %v1924, %v1942
  %v1961 = vmax.f32 %v1925, %v1943
  %v1962 = vmax.f32 %v1926, %v1944
  %v1963 = vld [vmem:[#allocation2 + $0x1b0] sm:$0xff]
  %v1964 = vld [vmem:[#allocation2 + $0x1b8] sm:$0xff]
  %v1965 = vld [vmem:[#allocation2 + $0x1c0] sm:$0xff]
  %v1966 = vld [vmem:[#allocation2 + $0x1c8] sm:$0xff]
  %v1967 = vld [vmem:[#allocation2 + $0x1d0] sm:$0xff]
  %v1968 = vld [vmem:[#allocation2 + $0x1d8] sm:$0xff]
  %v1969 = vld [vmem:[#allocation2 + $0x1e0] sm:$0xff]
  %v1970 = vld [vmem:[#allocation2 + $0x1e8] sm:$0xff]
  %v1971 = vld [vmem:[#allocation2 + $0x1f0] sm:$0xff]
  %v1972 = vld [vmem:[#allocation2 + $0x1f8] sm:$0xff]
  %v1973 = vld [vmem:[#allocation2 + $0x200] sm:$0xff]
  %v1974 = vld [vmem:[#allocation2 + $0x208] sm:$0xff]
  %v1975 = vld [vmem:[#allocation2 + $0x210] sm:$0xff]
  %v1976 = vld [vmem:[#allocation2 + $0x218] sm:$0xff]
  %v1977 = vld [vmem:[#allocation2 + $0x220] sm:$0xff]
  %v1978 = vld [vmem:[#allocation2 + $0x228] sm:$0xff]
  %v1979 = vld [vmem:[#allocation2 + $0x230] sm:$0xff]
  %v1980 = vld [vmem:[#allocation2 + $0x238] sm:$0xff]
  %v1981 = vmax.f32 %v1945, %v1963
  %v1982 = vmax.f32 %v1946, %v1964
  %v1983 = vmax.f32 %v1947, %v1965
  %v1984 = vmax.f32 %v1948, %v1966
  %v1985 = vmax.f32 %v1949, %v1967
  %v1986 = vmax.f32 %v1950, %v1968
  %v1987 = vmax.f32 %v1951, %v1969
  %v1988 = vmax.f32 %v1952, %v1970
  %v1989 = vmax.f32 %v1953, %v1971
  %v1990 = vmax.f32 %v1954, %v1972
  %v1991 = vmax.f32 %v1955, %v1973
  %v1992 = vmax.f32 %v1956, %v1974
  %v1993 = vmax.f32 %v1957, %v1975
  %v1994 = vmax.f32 %v1958, %v1976
  %v1995 = vmax.f32 %v1959, %v1977
  %v1996 = vmax.f32 %v1960, %v1978
  %v1997 = vmax.f32 %v1961, %v1979
  %v1998 = vmax.f32 %v1962, %v1980
  %1999 = vst.msk [vmem:[#allocation3] sm:$0xff] %vm453, %v1981
  %2000 = vst.msk [vmem:[#allocation3 + $0x8] sm:$0xff] %vm453, %v1982
  %2001 = vst.msk [vmem:[#allocation3 + $0x10] sm:$0xff] %vm453, %v1983
  %2002 = vst.msk [vmem:[#allocation3 + $0x18] sm:$0xff] %vm453, %v1984
  %2003 = vst.msk [vmem:[#allocation3 + $0x20] sm:$0xff] %vm453, %v1985
  %2004 = vst.msk [vmem:[#allocation3 + $0x28] sm:$0xff] %vm453, %v1986
  %2005 = vst.msk [vmem:[#allocation3 + $0x30] sm:$0xff] %vm453, %v1987
  %2006 = vst.msk [vmem:[#allocation3 + $0x38] sm:$0xff] %vm453, %v1988
  %2007 = vst.msk [vmem:[#allocation3 + $0x40] sm:$0xff] %vm453, %v1989
  %2008 = vst.msk [vmem:[#allocation3 + $0x48] sm:$0xff] %vm453, %v1990
  %2009 = vst.msk [vmem:[#allocation3 + $0x50] sm:$0xff] %vm453, %v1991
  %2010 = vst.msk [vmem:[#allocation3 + $0x58] sm:$0xff] %vm453, %v1992
  %2011 = vst.msk [vmem:[#allocation3 + $0x60] sm:$0xff] %vm453, %v1993
  %2012 = vst.msk [vmem:[#allocation3 + $0x68] sm:$0xff] %vm453, %v1994
  %2013 = vst.msk [vmem:[#allocation3 + $0x70] sm:$0xff] %vm453, %v1995
  %2014 = vst.msk [vmem:[#allocation3 + $0x78] sm:$0xff] %vm453, %v1996
  %2015 = vst.msk [vmem:[#allocation3 + $0x80] sm:$0xff] %vm453, %v1997
  %2016 = vst.msk [vmem:[#allocation3 + $0x88] sm:$0xff] %vm453, %v1998
  %v2017 = vld [vmem:[#allocation2 + $0x240] sm:$0xff]
  %v2018 = vld [vmem:[#allocation2 + $0x248] sm:$0xff]
  %v2019 = vld [vmem:[#allocation2 + $0x250] sm:$0xff]
  %v2020 = vld [vmem:[#allocation2 + $0x258] sm:$0xff]
  %v2021 = vld [vmem:[#allocation2 + $0x260] sm:$0xff]
  %v2022 = vld [vmem:[#allocation2 + $0x268] sm:$0xff]
  %v2023 = vld [vmem:[#allocation2 + $0x270] sm:$0xff]
  %v2024 = vld [vmem:[#allocation2 + $0x278] sm:$0xff]
  %v2025 = vld [vmem:[#allocation2 + $0x280] sm:$0xff]
  %v2026 = vld [vmem:[#allocation2 + $0x288] sm:$0xff]
  %v2027 = vld [vmem:[#allocation2 + $0x290] sm:$0xff]
  %v2028 = vld [vmem:[#allocation2 + $0x298] sm:$0xff]
  %v2029 = vld [vmem:[#allocation2 + $0x2a0] sm:$0xff]
  %v2030 = vld [vmem:[#allocation2 + $0x2a8] sm:$0xff]
  %v2031 = vld [vmem:[#allocation2 + $0x2b0] sm:$0xff]
  %v2032 = vld [vmem:[#allocation2 + $0x2b8] sm:$0xff]
  %v2033 = vld [vmem:[#allocation2 + $0x2c0] sm:$0xff]
  %v2034 = vld [vmem:[#allocation2 + $0x2c8] sm:$0xff]
  %v2035 = vld [vmem:[#allocation2 + $0x2d0] sm:$0xff]
  %v2036 = vld [vmem:[#allocation2 + $0x2d8] sm:$0xff]
  %v2037 = vld [vmem:[#allocation2 + $0x2e0] sm:$0xff]
  %v2038 = vld [vmem:[#allocation2 + $0x2e8] sm:$0xff]
  %v2039 = vld [vmem:[#allocation2 + $0x2f0] sm:$0xff]
  %v2040 = vld [vmem:[#allocation2 + $0x2f8] sm:$0xff]
  %v2041 = vld [vmem:[#allocation2 + $0x300] sm:$0xff]
  %v2042 = vld [vmem:[#allocation2 + $0x308] sm:$0xff]
  %v2043 = vld [vmem:[#allocation2 + $0x310] sm:$0xff]
  %v2044 = vld [vmem:[#allocation2 + $0x318] sm:$0xff]
  %v2045 = vld [vmem:[#allocation2 + $0x320] sm:$0xff]
  %v2046 = vld [vmem:[#allocation2 + $0x328] sm:$0xff]
  %v2047 = vld [vmem:[#allocation2 + $0x330] sm:$0xff]
  %v2048 = vld [vmem:[#allocation2 + $0x338] sm:$0xff]
  %v2049 = vld [vmem:[#allocation2 + $0x340] sm:$0xff]
  %v2050 = vld [vmem:[#allocation2 + $0x348] sm:$0xff]
  %v2051 = vld [vmem:[#allocation2 + $0x350] sm:$0xff]
  %v2052 = vld [vmem:[#allocation2 + $0x358] sm:$0xff]
  %v2053 = vmax.f32 %v2017, %v2035
  %v2054 = vmax.f32 %v2018, %v2036
  %v2055 = vmax.f32 %v2019, %v2037
  %v2056 = vmax.f32 %v2020, %v2038
  %v2057 = vmax.f32 %v2021, %v2039
  %v2058 = vmax.f32 %v2022, %v2040
  %v2059 = vmax.f32 %v2023, %v2041
  %v2060 = vmax.f32 %v2024, %v2042
  %v2061 = vmax.f32 %v2025, %v2043
  %v2062 = vmax.f32 %v2026, %v2044
  %v2063 = vmax.f32 %v2027, %v2045
  %v2064 = vmax.f32 %v2028, %v2046
  %v2065 = vmax.f32 %v2029, %v2047
  %v2066 = vmax.f32 %v2030, %v2048
  %v2067 = vmax.f32 %v2031, %v2049
  %v2068 = vmax.f32 %v2032, %v2050
  %v2069 = vmax.f32 %v2033, %v2051
  %v2070 = vmax.f32 %v2034, %v2052
  %v2071 = vld [vmem:[#allocation2 + $0x360] sm:$0xff]
  %v2072 = vld [vmem:[#allocation2 + $0x368] sm:$0xff]
  %v2073 = vld [vmem:[#allocation2 + $0x370] sm:$0xff]
  %v2074 = vld [vmem:[#allocation2 + $0x378] sm:$0xff]
  %v2075 = vld [vmem:[#allocation2 + $0x380] sm:$0xff]
  %v2076 = vld [vmem:[#allocation2 + $0x388] sm:$0xff]
  %v2077 = vld [vmem:[#allocation2 + $0x390] sm:$0xff]
  %v2078 = vld [vmem:[#allocation2 + $0x398] sm:$0xff]
  %v2079 = vld [vmem:[#allocation2 + $0x3a0] sm:$0xff]
  %v2080 = vld [vmem:[#allocation2 + $0x3a8] sm:$0xff]
  %v2081 = vld [vmem:[#allocation2 + $0x3b0] sm:$0xff]
  %v2082 = vld [vmem:[#allocation2 + $0x3b8] sm:$0xff]
  %v2083 = vld [vmem:[#allocation2 + $0x3c0] sm:$0xff]
  %v2084 = vld [vmem:[#allocation2 + $0x3c8] sm:$0xff]
  %v2085 = vld [vmem:[#allocation2 + $0x3d0] sm:$0xff]
  %v2086 = vld [vmem:[#allocation2 + $0x3d8] sm:$0xff]
  %v2087 = vld [vmem:[#allocation2 + $0x3e0] sm:$0xff]
  %v2088 = vld [vmem:[#allocation2 + $0x3e8] sm:$0xff]
  %v2089 = vmax.f32 %v2053, %v2071
  %v2090 = vmax.f32 %v2054, %v2072
  %v2091 = vmax.f32 %v2055, %v2073
  %v2092 = vmax.f32 %v2056, %v2074
  %v2093 = vmax.f32 %v2057, %v2075
  %v2094 = vmax.f32 %v2058, %v2076
  %v2095 = vmax.f32 %v2059, %v2077
  %v2096 = vmax.f32 %v2060, %v2078
  %v2097 = vmax.f32 %v2061, %v2079
  %v2098 = vmax.f32 %v2062, %v2080
  %v2099 = vmax.f32 %v2063, %v2081
  %v2100 = vmax.f32 %v2064, %v2082
  %v2101 = vmax.f32 %v2065, %v2083
  %v2102 = vmax.f32 %v2066, %v2084
  %v2103 = vmax.f32 %v2067, %v2085
  %v2104 = vmax.f32 %v2068, %v2086
  %v2105 = vmax.f32 %v2069, %v2087
  %v2106 = vmax.f32 %v2070, %v2088
  %v2107 = vld [vmem:[#allocation2 + $0x3f0] sm:$0xff]
  %v2108 = vld [vmem:[#allocation2 + $0x3f8] sm:$0xff]
  %v2109 = vld [vmem:[#allocation2 + $0x400] sm:$0xff]
  %v2110 = vld [vmem:[#allocation2 + $0x408] sm:$0xff]
  %v2111 = vld [vmem:[#allocation2 + $0x410] sm:$0xff]
  %v2112 = vld [vmem:[#allocation2 + $0x418] sm:$0xff]
  %v2113 = vld [vmem:[#allocation2 + $0x420] sm:$0xff]
  %v2114 = vld [vmem:[#allocation2 + $0x428] sm:$0xff]
  %v2115 = vld [vmem:[#allocation2 + $0x430] sm:$0xff]
  %v2116 = vld [vmem:[#allocation2 + $0x438] sm:$0xff]
  %v2117 = vld [vmem:[#allocation2 + $0x440] sm:$0xff]
  %v2118 = vld [vmem:[#allocation2 + $0x448] sm:$0xff]
  %v2119 = vld [vmem:[#allocation2 + $0x450] sm:$0xff]
  %v2120 = vld [vmem:[#allocation2 + $0x458] sm:$0xff]
  %v2121 = vld [vmem:[#allocation2 + $0x460] sm:$0xff]
  %v2122 = vld [vmem:[#allocation2 + $0x468] sm:$0xff]
  %v2123 = vld [vmem:[#allocation2 + $0x470] sm:$0xff]
  %v2124 = vld [vmem:[#allocation2 + $0x478] sm:$0xff]
  %v2125 = vmax.f32 %v2089, %v2107
  %v2126 = vmax.f32 %v2090, %v2108
  %v2127 = vmax.f32 %v2091, %v2109
  %v2128 = vmax.f32 %v2092, %v2110
  %v2129 = vmax.f32 %v2093, %v2111
  %v2130 = vmax.f32 %v2094, %v2112
  %v2131 = vmax.f32 %v2095, %v2113
  %v2132 = vmax.f32 %v2096, %v2114
  %v2133 = vmax.f32 %v2097, %v2115
  %v2134 = vmax.f32 %v2098, %v2116
  %v2135 = vmax.f32 %v2099, %v2117
  %v2136 = vmax.f32 %v2100, %v2118
  %v2137 = vmax.f32 %v2101, %v2119
  %v2138 = vmax.f32 %v2102, %v2120
  %v2139 = vmax.f32 %v2103, %v2121
  %v2140 = vmax.f32 %v2104, %v2122
  %v2141 = vmax.f32 %v2105, %v2123
  %v2142 = vmax.f32 %v2106, %v2124
  %2143 = vst.msk [vmem:[#allocation3 + $0x90] sm:$0xff] %vm453, %v2125
  %2144 = vst.msk [vmem:[#allocation3 + $0x98] sm:$0xff] %vm453, %v2126
  %2145 = vst.msk [vmem:[#allocation3 + $0xa0] sm:$0xff] %vm453, %v2127
  %2146 = vst.msk [vmem:[#allocation3 + $0xa8] sm:$0xff] %vm453, %v2128
  %2147 = vst.msk [vmem:[#allocation3 + $0xb0] sm:$0xff] %vm453, %v2129
  %2148 = vst.msk [vmem:[#allocation3 + $0xb8] sm:$0xff] %vm453, %v2130
  %2149 = vst.msk [vmem:[#allocation3 + $0xc0] sm:$0xff] %vm453, %v2131
  %2150 = vst.msk [vmem:[#allocation3 + $0xc8] sm:$0xff] %vm453, %v2132
  %2151 = vst.msk [vmem:[#allocation3 + $0xd0] sm:$0xff] %vm453, %v2133
  %2152 = vst.msk [vmem:[#allocation3 + $0xd8] sm:$0xff] %vm453, %v2134
  %2153 = vst.msk [vmem:[#allocation3 + $0xe0] sm:$0xff] %vm453, %v2135
  %2154 = vst.msk [vmem:[#allocation3 + $0xe8] sm:$0xff] %vm453, %v2136
  %2155 = vst.msk [vmem:[#allocation3 + $0xf0] sm:$0xff] %vm453, %v2137
  %2156 = vst.msk [vmem:[#allocation3 + $0xf8] sm:$0xff] %vm453, %v2138
  %2157 = vst.msk [vmem:[#allocation3 + $0x100] sm:$0xff] %vm453, %v2139
  %2158 = vst.msk [vmem:[#allocation3 + $0x108] sm:$0xff] %vm453, %v2140
  %2159 = vst.msk [vmem:[#allocation3 + $0x110] sm:$0xff] %vm453, %v2141
  %2160 = vst.msk [vmem:[#allocation3 + $0x118] sm:$0xff] %vm453, %v2142
  %2161 = vst.msk [vmem:[#allocation3 + $0x120] sm:$0xff] %vm453, 0.0
  %2162 = vst.msk [vmem:[#allocation3 + $0x128] sm:$0xff] %vm453, 0.0
  %2163 = vst.msk [vmem:[#allocation3 + $0x130] sm:$0xff] %vm453, 0.0
  %2164 = vst.msk [vmem:[#allocation3 + $0x138] sm:$0xff] %vm453, 0.0
  %2165 = vst.msk [vmem:[#allocation3 + $0x140] sm:$0xff] %vm453, 0.0
  %2166 = vst.msk [vmem:[#allocation3 + $0x148] sm:$0xff] %vm453, 0.0
  %2167 = vst.msk [vmem:[#allocation3 + $0x150] sm:$0xff] %vm453, 0.0
  %2168 = vst.msk [vmem:[#allocation3 + $0x158] sm:$0xff] %vm453, 0.0
  %v2169 = vld [vmem:[%s1] sm:$0xff]
  %v2170 = vld [vmem:[%s1 + $0x8] sm:$0xff]
  %v2171 = vld [vmem:[%s1 + $0x10] sm:$0xff]
  %v2172 = vld [vmem:[%s1 + $0x18] sm:$0xff]
  %v2173 = vld [vmem:[%s1 + $0x20] sm:$0xff]
  %v2174 = vld [vmem:[%s1 + $0x28] sm:$0xff]
  %v2175 = vld [vmem:[%s1 + $0x30] sm:$0xff]
  %v2176 = vld [vmem:[%s1 + $0x38] sm:$0xff]
  %v2177 = vld [vmem:[%s1 + $0x40] sm:$0xff]
  %v2178 = vld [vmem:[%s1 + $0x48] sm:$0xff]
  %v2179 = vld [vmem:[%s1 + $0x50] sm:$0xff]
  %v2180 = vld [vmem:[%s1 + $0x58] sm:$0xff]
  %v2181 = vld [vmem:[%s1 + $0x60] sm:$0xff]
  %v2182 = vld [vmem:[%s1 + $0x68] sm:$0xff]
  %v2183 = vld [vmem:[%s1 + $0x70] sm:$0xff]
  %v2184 = vld [vmem:[%s1 + $0x78] sm:$0xff]
  %v2185 = vld [vmem:[%s1 + $0x80] sm:$0xff]
  %v2186 = vld [vmem:[%s1 + $0x88] sm:$0xff]
  %v2187 = vld [vmem:[%s1 + $0x90] sm:$0xff]
  %v2188 = vld [vmem:[%s1 + $0x98] sm:$0xff]
  %v2189 = vld [vmem:[%s1 + $0xa0] sm:$0xff]
  %v2190 = vld [vmem:[%s1 + $0xa8] sm:$0xff]
  %v2191 = vld [vmem:[%s1 + $0xb0] sm:$0xff]
  %v2192 = vld [vmem:[%s1 + $0xb8] sm:$0xff]
  %v2193 = vld [vmem:[%s1 + $0xc0] sm:$0xff]
  %v2194 = vld [vmem:[%s1 + $0xc8] sm:$0xff]
  %v2195 = vld [vmem:[%s1 + $0xd0] sm:$0xff]
  %v2196 = vld [vmem:[%s1 + $0xd8] sm:$0xff]
  %v2197 = vld [vmem:[%s1 + $0xe0] sm:$0xff]
  %v2198 = vld [vmem:[%s1 + $0xe8] sm:$0xff]
  %v2199 = vld [vmem:[%s1 + $0xf0] sm:$0xff]
  %v2200 = vld [vmem:[%s1 + $0xf8] sm:$0x3]
  %v2201 = vld [vmem:[%s1 + $0x11a] sm:$0x1]
  %v2202 = vld [vmem:[#allocation3] sm:$0xff]
  %v2203 = vld [vmem:[#allocation3 + $0x8] sm:$0xff]
  %v2204 = vld [vmem:[#allocation3 + $0x10] sm:$0xff]
  %v2205 = vld [vmem:[#allocation3 + $0x18] sm:$0xff]
  %v2206 = vld [vmem:[#allocation3 + $0x20] sm:$0xff]
  %v2207 = vld [vmem:[#allocation3 + $0x28] sm:$0xff]
  %v2208 = vld [vmem:[#allocation3 + $0x30] sm:$0xff]
  %v2209 = vld [vmem:[#allocation3 + $0x38] sm:$0xff]
  %v2210 = vld [vmem:[#allocation3 + $0x40] sm:$0xff]
  %v2211 = vld [vmem:[#allocation3 + $0x1] sm:$0xff]
  %v2212 = vld [vmem:[#allocation3 + $0x9] sm:$0xff]
  %v2213 = vld [vmem:[#allocation3 + $0x11] sm:$0xff]
  %v2214 = vld [vmem:[#allocation3 + $0x19] sm:$0xff]
  %v2215 = vld [vmem:[#allocation3 + $0x21] sm:$0xff]
  %v2216 = vld [vmem:[#allocation3 + $0x29] sm:$0xff]
  %v2217 = vld [vmem:[#allocation3 + $0x31] sm:$0xff]
  %v2218 = vld [vmem:[#allocation3 + $0x39] sm:$0xff]
  %v2219 = vld [vmem:[#allocation3 + $0x41] sm:$0xff]
  %v2220 = vld [vmem:[#allocation3 + $0x2] sm:$0xff]
  %v2221 = vld [vmem:[#allocation3 + $0xa] sm:$0xff]
  %v2222 = vld [vmem:[#allocation3 + $0x12] sm:$0xff]
  %v2223 = vld [vmem:[#allocation3 + $0x1a] sm:$0xff]
  %v2224 = vld [vmem:[#allocation3 + $0x22] sm:$0xff]
  %v2225 = vld [vmem:[#allocation3 + $0x2a] sm:$0xff]
  %v2226 = vld [vmem:[#allocation3 + $0x32] sm:$0xff]
  %v2227 = vld [vmem:[#allocation3 + $0x3a] sm:$0xff]
  %v2228 = vld [vmem:[#allocation3 + $0x42] sm:$0xff]
  %v2229 = vld [vmem:[#allocation3 + $0x3] sm:$0xff]
  %v2230 = vld [vmem:[#allocation3 + $0xb] sm:$0xff]
  %v2231 = vld [vmem:[#allocation3 + $0x13] sm:$0xff]
  %v2232 = vld [vmem:[#allocation3 + $0x1b] sm:$0xff]
  %v2233 = vld [vmem:[#allocation3 + $0x23] sm:$0xff]
  %v2234 = vld [vmem:[#allocation3 + $0x2b] sm:$0xff]
  %v2235 = vld [vmem:[#allocation3 + $0x33] sm:$0xff]
  %v2236 = vld [vmem:[#allocation3 + $0x3b] sm:$0xff]
  %v2237 = vld [vmem:[#allocation3 + $0x43] sm:$0xff]
  %v2238 = vld [vmem:[#allocation3 + $0x4] sm:$0xff]
  %v2239 = vld [vmem:[#allocation3 + $0xc] sm:$0xff]
  %v2240 = vld [vmem:[#allocation3 + $0x14] sm:$0xff]
  %v2241 = vld [vmem:[#allocation3 + $0x1c] sm:$0xff]
  %v2242 = vld [vmem:[#allocation3 + $0x24] sm:$0xff]
  %v2243 = vld [vmem:[#allocation3 + $0x2c] sm:$0xff]
  %v2244 = vld [vmem:[#allocation3 + $0x34] sm:$0xff]
  %v2245 = vld [vmem:[#allocation3 + $0x3c] sm:$0xff]
  %v2246 = vld [vmem:[#allocation3 + $0x44] sm:$0xff]
  %v2247 = vld [vmem:[#allocation3 + $0x4c] sm:$0xff]
  %v2248 = vld [vmem:[#allocation3 + $0xd] sm:$0xff]
  %v2249 = vld [vmem:[#allocation3 + $0x15] sm:$0xff]
  %v2250 = vld [vmem:[#allocation3 + $0x1d] sm:$0xff]
  %v2251 = vld [vmem:[#allocation3 + $0x25] sm:$0xff]
  %v2252 = vld [vmem:[#allocation3 + $0x2d] sm:$0xff]
  %v2253 = vld [vmem:[#allocation3 + $0x35] sm:$0xff]
  %v2254 = vld [vmem:[#allocation3 + $0x3d] sm:$0xff]
  %v2255 = vld [vmem:[#allocation3 + $0x45] sm:$0xff]
  %v2256 = vld [vmem:[#allocation3 + $0x4d] sm:$0xff]
  %v2257 = vld [vmem:[#allocation3 + $0xe] sm:$0xff]
  %v2258 = vld [vmem:[#allocation3 + $0x16] sm:$0xff]
  %v2259 = vld [vmem:[#allocation3 + $0x1e] sm:$0xff]
  %v2260 = vld [vmem:[#allocation3 + $0x26] sm:$0xff]
  %v2261 = vld [vmem:[#allocation3 + $0x2e] sm:$0xff]
  %v2262 = vld [vmem:[#allocation3 + $0x36] sm:$0xff]
  %v2263 = vld [vmem:[#allocation3 + $0x3e] sm:$0xff]
  %v2264 = vld [vmem:[#allocation3 + $0x46] sm:$0xff]
  %v2265 = vld [vmem:[#allocation3 + $0x4e] sm:$0xff]
  %v2266 = vld [vmem:[#allocation3 + $0xf] sm:$0xff]
  %v2267 = vld [vmem:[#allocation3 + $0x17] sm:$0xff]
  %v2268 = vld [vmem:[#allocation3 + $0x1f] sm:$0xff]
  %v2269 = vld [vmem:[#allocation3 + $0x27] sm:$0xff]
  %v2270 = vld [vmem:[#allocation3 + $0x2f] sm:$0xff]
  %v2271 = vld [vmem:[#allocation3 + $0x37] sm:$0xff]
  %v2272 = vld [vmem:[#allocation3 + $0x3f] sm:$0xff]
  %v2273 = vld [vmem:[#allocation3 + $0x47] sm:$0xff]
  %v2274 = vld [vmem:[#allocation3 + $0x4f] sm:$0xff]
  %v2275 = vld [vmem:[#allocation3 + $0x48] sm:$0xff]
  %v2276 = vld [vmem:[#allocation3 + $0x50] sm:$0xff]
  %v2277 = vld [vmem:[#allocation3 + $0x58] sm:$0xff]
  %v2278 = vld [vmem:[#allocation3 + $0x49] sm:$0xff]
  %v2279 = vld [vmem:[#allocation3 + $0x51] sm:$0xff]
  %v2280 = vld [vmem:[#allocation3 + $0x59] sm:$0xff]
  %v2281 = vld [vmem:[#allocation3 + $0x4a] sm:$0xff]
  %v2282 = vld [vmem:[#allocation3 + $0x52] sm:$0xff]
  %v2283 = vld [vmem:[#allocation3 + $0x5a] sm:$0xff]
  %v2284 = vld [vmem:[#allocation3 + $0x4b] sm:$0xff]
  %v2285 = vld [vmem:[#allocation3 + $0x53] sm:$0xff]
  %v2286 = vld [vmem:[#allocation3 + $0x5b] sm:$0xff]
  %v2287 = vld [vmem:[#allocation3 + $0x54] sm:$0xff]
  %v2288 = vld [vmem:[#allocation3 + $0x5c] sm:$0xff]
  %v2289 = vld [vmem:[#allocation3 + $0x64] sm:$0xff]
  %v2290 = vld [vmem:[#allocation3 + $0x55] sm:$0xff]
  %v2291 = vld [vmem:[#allocation3 + $0x5d] sm:$0xff]
  %v2292 = vld [vmem:[#allocation3 + $0x65] sm:$0xff]
  %v2293 = vld [vmem:[#allocation3 + $0x56] sm:$0xff]
  %v2294 = vld [vmem:[#allocation3 + $0x5e] sm:$0xff]
  %v2295 = vld [vmem:[#allocation3 + $0x66] sm:$0xff]
  %v2296 = vld [vmem:[#allocation3 + $0x57] sm:$0xff]
  %v2297 = vld [vmem:[#allocation3 + $0x5f] sm:$0xff]
  %v2298 = vld [vmem:[#allocation3 + $0x67] sm:$0xff]
  %v2299 = vld [vmem:[#allocation3 + $0x60] sm:$0xff]
  %v2300 = vld [vmem:[#allocation3 + $0x68] sm:$0xff]
  %v2301 = vld [vmem:[#allocation3 + $0x70] sm:$0xff]
  %v2302 = vld [vmem:[#allocation3 + $0x61] sm:$0xff]
  %v2303 = vld [vmem:[#allocation3 + $0x69] sm:$0xff]
  %v2304 = vld [vmem:[#allocation3 + $0x71] sm:$0xff]
  %v2305 = vld [vmem:[#allocation3 + $0x62] sm:$0xff]
  %v2306 = vld [vmem:[#allocation3 + $0x6a] sm:$0xff]
  %v2307 = vld [vmem:[#allocation3 + $0x72] sm:$0xff]
  %v2308 = vld [vmem:[#allocation3 + $0x63] sm:$0xff]
  %v2309 = vld [vmem:[#allocation3 + $0x6b] sm:$0xff]
  %v2310 = vld [vmem:[#allocation3 + $0x73] sm:$0xff]
  %v2311 = vld [vmem:[#allocation3 + $0x6c] sm:$0xff]
  %v2312 = vld [vmem:[#allocation3 + $0x74] sm:$0xff]
  %2322 = vrot.lane.b32.xlu0 %v2211, 10
  %v2323 = vpop.permute.xlu0 %2322
  %2324 = vrot.lane.b32.xlu0 %v2212, 10
  %v2325 = vpop.permute.xlu0 %2324
  %2326 = vrot.lane.b32.xlu0 %v2213, 10
  %v2327 = vpop.permute.xlu0 %2326
  %2328 = vrot.lane.b32.xlu0 %v2214, 10
  %v2329 = vpop.permute.xlu0 %2328
  %2330 = vrot.lane.b32.xlu0 %v2215, 10
  %v2331 = vpop.permute.xlu0 %2330
  %2332 = vrot.lane.b32.xlu0 %v2216, 10
  %v2333 = vpop.permute.xlu0 %2332
  %2334 = vrot.lane.b32.xlu0 %v2217, 10
  %v2335 = vpop.permute.xlu0 %2334
  %2336 = vrot.lane.b32.xlu0 %v2218, 10
  %v2337 = vpop.permute.xlu0 %2336
  %2338 = vrot.lane.b32.xlu0 %v2219, 10
  %v2339 = vpop.permute.xlu0 %2338
  %2358 = vrot.lane.b32.xlu0 %v2220, 20
  %v2359 = vpop.permute.xlu0 %2358
  %2360 = vrot.lane.b32.xlu0 %v2221, 20
  %v2361 = vpop.permute.xlu0 %2360
  %2362 = vrot.lane.b32.xlu0 %v2222, 20
  %v2363 = vpop.permute.xlu0 %2362
  %2364 = vrot.lane.b32.xlu0 %v2223, 20
  %v2365 = vpop.permute.xlu0 %2364
  %2366 = vrot.lane.b32.xlu0 %v2224, 20
  %v2367 = vpop.permute.xlu0 %2366
  %2368 = vrot.lane.b32.xlu0 %v2225, 20
  %v2369 = vpop.permute.xlu0 %2368
  %2370 = vrot.lane.b32.xlu0 %v2226, 20
  %v2371 = vpop.permute.xlu0 %2370
  %2372 = vrot.lane.b32.xlu0 %v2227, 20
  %v2373 = vpop.permute.xlu0 %2372
  %2374 = vrot.lane.b32.xlu0 %v2228, 20
  %v2375 = vpop.permute.xlu0 %2374
  %2394 = vrot.lane.b32.xlu0 %v2229, 30
  %v2395 = vpop.permute.xlu0 %2394
  %2396 = vrot.lane.b32.xlu0 %v2230, 30
  %v2397 = vpop.permute.xlu0 %2396
  %2398 = vrot.lane.b32.xlu0 %v2231, 30
  %v2399 = vpop.permute.xlu0 %2398
  %2400 = vrot.lane.b32.xlu0 %v2232, 30
  %v2401 = vpop.permute.xlu0 %2400
  %2402 = vrot.lane.b32.xlu0 %v2233, 30
  %v2403 = vpop.permute.xlu0 %2402
  %2404 = vrot.lane.b32.xlu0 %v2234, 30
  %v2405 = vpop.permute.xlu0 %2404
  %2406 = vrot.lane.b32.xlu0 %v2235, 30
  %v2407 = vpop.permute.xlu0 %2406
  %2408 = vrot.lane.b32.xlu0 %v2236, 30
  %v2409 = vpop.permute.xlu0 %2408
  %2410 = vrot.lane.b32.xlu0 %v2237, 30
  %v2411 = vpop.permute.xlu0 %2410
  %2430 = vrot.lane.b32.xlu0 %v2238, 40
  %v2431 = vpop.permute.xlu0 %2430
  %2432 = vrot.lane.b32.xlu0 %v2239, 40
  %v2433 = vpop.permute.xlu0 %2432
  %2434 = vrot.lane.b32.xlu0 %v2240, 40
  %v2435 = vpop.permute.xlu0 %2434
  %2436 = vrot.lane.b32.xlu0 %v2241, 40
  %v2437 = vpop.permute.xlu0 %2436
  %2438 = vrot.lane.b32.xlu0 %v2242, 40
  %v2439 = vpop.permute.xlu0 %2438
  %2440 = vrot.lane.b32.xlu0 %v2243, 40
  %v2441 = vpop.permute.xlu0 %2440
  %2442 = vrot.lane.b32.xlu0 %v2244, 40
  %v2443 = vpop.permute.xlu0 %2442
  %2444 = vrot.lane.b32.xlu0 %v2245, 40
  %v2445 = vpop.permute.xlu0 %2444
  %2446 = vrot.lane.b32.xlu0 %v2246, 40
  %v2447 = vpop.permute.xlu0 %2446
  %2458 = vrot.lane.b32.xlu0 %v2239, 50
  %v2459 = vpop.permute.xlu0 %2458
  %2460 = vrot.lane.b32.xlu0 %v2240, 50
  %v2461 = vpop.permute.xlu0 %2460
  %2462 = vrot.lane.b32.xlu0 %v2241, 50
  %v2463 = vpop.permute.xlu0 %2462
  %2464 = vrot.lane.b32.xlu0 %v2242, 50
  %v2465 = vpop.permute.xlu0 %2464
  %2466 = vrot.lane.b32.xlu0 %v2243, 50
  %v2467 = vpop.permute.xlu0 %2466
  %2468 = vrot.lane.b32.xlu0 %v2244, 50
  %v2469 = vpop.permute.xlu0 %2468
  %2470 = vrot.lane.b32.xlu0 %v2245, 50
  %v2471 = vpop.permute.xlu0 %2470
  %2472 = vrot.lane.b32.xlu0 %v2246, 50
  %v2473 = vpop.permute.xlu0 %2472
  %2474 = vrot.lane.b32.xlu0 %v2247, 50
  %v2475 = vpop.permute.xlu0 %2474
  %2494 = vrot.lane.b32.xlu0 %v2248, 60
  %v2495 = vpop.permute.xlu0 %2494
  %2496 = vrot.lane.b32.xlu0 %v2249, 60
  %v2497 = vpop.permute.xlu0 %2496
  %2498 = vrot.lane.b32.xlu0 %v2250, 60
  %v2499 = vpop.permute.xlu0 %2498
  %2500 = vrot.lane.b32.xlu0 %v2251, 60
  %v2501 = vpop.permute.xlu0 %2500
  %2502 = vrot.lane.b32.xlu0 %v2252, 60
  %v2503 = vpop.permute.xlu0 %2502
  %2504 = vrot.lane.b32.xlu0 %v2253, 60
  %v2505 = vpop.permute.xlu0 %2504
  %2506 = vrot.lane.b32.xlu0 %v2254, 60
  %v2507 = vpop.permute.xlu0 %2506
  %2508 = vrot.lane.b32.xlu0 %v2255, 60
  %v2509 = vpop.permute.xlu0 %2508
  %2510 = vrot.lane.b32.xlu0 %v2256, 60
  %v2511 = vpop.permute.xlu0 %2510
  %2530 = vrot.lane.b32.xlu0 %v2257, 70
  %v2531 = vpop.permute.xlu0 %2530
  %2532 = vrot.lane.b32.xlu0 %v2258, 70
  %v2533 = vpop.permute.xlu0 %2532
  %2534 = vrot.lane.b32.xlu0 %v2259, 70
  %v2535 = vpop.permute.xlu0 %2534
  %2536 = vrot.lane.b32.xlu0 %v2260, 70
  %v2537 = vpop.permute.xlu0 %2536
  %2538 = vrot.lane.b32.xlu0 %v2261, 70
  %v2539 = vpop.permute.xlu0 %2538
  %2540 = vrot.lane.b32.xlu0 %v2262, 70
  %v2541 = vpop.permute.xlu0 %2540
  %2542 = vrot.lane.b32.xlu0 %v2263, 70
  %v2543 = vpop.permute.xlu0 %2542
  %2544 = vrot.lane.b32.xlu0 %v2264, 70
  %v2545 = vpop.permute.xlu0 %2544
  %2546 = vrot.lane.b32.xlu0 %v2265, 70
  %v2547 = vpop.permute.xlu0 %2546
  %2566 = vrot.lane.b32.xlu0 %v2266, 80
  %v2567 = vpop.permute.xlu0 %2566
  %2568 = vrot.lane.b32.xlu0 %v2267, 80
  %v2569 = vpop.permute.xlu0 %2568
  %2570 = vrot.lane.b32.xlu0 %v2268, 80
  %v2571 = vpop.permute.xlu0 %2570
  %2572 = vrot.lane.b32.xlu0 %v2269, 80
  %v2573 = vpop.permute.xlu0 %2572
  %2574 = vrot.lane.b32.xlu0 %v2270, 80
  %v2575 = vpop.permute.xlu0 %2574
  %2576 = vrot.lane.b32.xlu0 %v2271, 80
  %v2577 = vpop.permute.xlu0 %2576
  %2578 = vrot.lane.b32.xlu0 %v2272, 80
  %v2579 = vpop.permute.xlu0 %2578
  %2580 = vrot.lane.b32.xlu0 %v2273, 80
  %v2581 = vpop.permute.xlu0 %2580
  %2582 = vrot.lane.b32.xlu0 %v2274, 80
  %v2583 = vpop.permute.xlu0 %2582
  %2602 = vrot.lane.b32.xlu0 %v2204, 90
  %v2603 = vpop.permute.xlu0 %2602
  %2604 = vrot.lane.b32.xlu0 %v2205, 90
  %v2605 = vpop.permute.xlu0 %2604
  %2606 = vrot.lane.b32.xlu0 %v2206, 90
  %v2607 = vpop.permute.xlu0 %2606
  %2608 = vrot.lane.b32.xlu0 %v2207, 90
  %v2609 = vpop.permute.xlu0 %2608
  %2610 = vrot.lane.b32.xlu0 %v2208, 90
  %v2611 = vpop.permute.xlu0 %2610
  %2612 = vrot.lane.b32.xlu0 %v2209, 90
  %v2613 = vpop.permute.xlu0 %2612
  %2614 = vrot.lane.b32.xlu0 %v2210, 90
  %v2615 = vpop.permute.xlu0 %2614
  %2616 = vrot.lane.b32.xlu0 %v2275, 90
  %v2617 = vpop.permute.xlu0 %2616
  %2618 = vrot.lane.b32.xlu0 %v2276, 90
  %v2619 = vpop.permute.xlu0 %2618
  %2630 = vrot.lane.b32.xlu0 %v2205, 100
  %v2631 = vpop.permute.xlu0 %2630
  %2632 = vrot.lane.b32.xlu0 %v2206, 100
  %v2633 = vpop.permute.xlu0 %2632
  %2634 = vrot.lane.b32.xlu0 %v2207, 100
  %v2635 = vpop.permute.xlu0 %2634
  %2636 = vrot.lane.b32.xlu0 %v2208, 100
  %v2637 = vpop.permute.xlu0 %2636
  %2638 = vrot.lane.b32.xlu0 %v2209, 100
  %v2639 = vpop.permute.xlu0 %2638
  %2640 = vrot.lane.b32.xlu0 %v2210, 100
  %v2641 = vpop.permute.xlu0 %2640
  %2642 = vrot.lane.b32.xlu0 %v2275, 100
  %v2643 = vpop.permute.xlu0 %2642
  %2644 = vrot.lane.b32.xlu0 %v2276, 100
  %v2645 = vpop.permute.xlu0 %2644
  %2646 = vrot.lane.b32.xlu0 %v2277, 100
  %v2647 = vpop.permute.xlu0 %2646
  %2660 = vrot.lane.b32.xlu0 %v2214, 110
  %v2661 = vpop.permute.xlu0 %2660
  %2662 = vrot.lane.b32.xlu0 %v2215, 110
  %v2663 = vpop.permute.xlu0 %2662
  %2664 = vrot.lane.b32.xlu0 %v2216, 110
  %v2665 = vpop.permute.xlu0 %2664
  %2666 = vrot.lane.b32.xlu0 %v2217, 110
  %v2667 = vpop.permute.xlu0 %2666
  %2668 = vrot.lane.b32.xlu0 %v2218, 110
  %v2669 = vpop.permute.xlu0 %2668
  %2670 = vrot.lane.b32.xlu0 %v2219, 110
  %v2671 = vpop.permute.xlu0 %2670
  %2672 = vrot.lane.b32.xlu0 %v2278, 110
  %v2673 = vpop.permute.xlu0 %2672
  %2674 = vrot.lane.b32.xlu0 %v2279, 110
  %v2675 = vpop.permute.xlu0 %2674
  %2676 = vrot.lane.b32.xlu0 %v2280, 110
  %v2677 = vpop.permute.xlu0 %2676
  %2690 = vrot.lane.b32.xlu0 %v2223, 120
  %v2691 = vpop.permute.xlu0 %2690
  %2692 = vrot.lane.b32.xlu0 %v2224, 120
  %v2693 = vpop.permute.xlu0 %2692
  %2694 = vrot.lane.b32.xlu0 %v2225, 120
  %v2695 = vpop.permute.xlu0 %2694
  %2696 = vrot.lane.b32.xlu0 %v2226, 120
  %v2697 = vpop.permute.xlu0 %2696
  %2698 = vrot.lane.b32.xlu0 %v2227, 120
  %v2699 = vpop.permute.xlu0 %2698
  %2700 = vrot.lane.b32.xlu0 %v2228, 120
  %v2701 = vpop.permute.xlu0 %2700
  %2702 = vrot.lane.b32.xlu0 %v2281, 120
  %v2703 = vpop.permute.xlu0 %2702
  %2704 = vrot.lane.b32.xlu0 %v2282, 120
  %v2705 = vpop.permute.xlu0 %2704
  %2706 = vrot.lane.b32.xlu0 %v2283, 120
  %v2707 = vpop.permute.xlu0 %2706
  %2720 = vrot.lane.b32.xlu0 %v2232, 2
  %v2721 = vpop.permute.xlu0 %2720
  %2722 = vrot.lane.b32.xlu0 %v2233, 2
  %v2723 = vpop.permute.xlu0 %2722
  %2724 = vrot.lane.b32.xlu0 %v2234, 2
  %v2725 = vpop.permute.xlu0 %2724
  %2726 = vrot.lane.b32.xlu0 %v2235, 2
  %v2727 = vpop.permute.xlu0 %2726
  %2728 = vrot.lane.b32.xlu0 %v2236, 2
  %v2729 = vpop.permute.xlu0 %2728
  %2730 = vrot.lane.b32.xlu0 %v2237, 2
  %v2731 = vpop.permute.xlu0 %2730
  %2732 = vrot.lane.b32.xlu0 %v2284, 2
  %v2733 = vpop.permute.xlu0 %2732
  %2734 = vrot.lane.b32.xlu0 %v2285, 2
  %v2735 = vpop.permute.xlu0 %2734
  %2736 = vrot.lane.b32.xlu0 %v2286, 2
  %v2737 = vpop.permute.xlu0 %2736
  %2749 = vrot.lane.b32.xlu0 %v2241, 12
  %v2750 = vpop.permute.xlu0 %2749
  %2751 = vrot.lane.b32.xlu0 %v2242, 12
  %v2752 = vpop.permute.xlu0 %2751
  %2753 = vrot.lane.b32.xlu0 %v2243, 12
  %v2754 = vpop.permute.xlu0 %2753
  %2755 = vrot.lane.b32.xlu0 %v2244, 12
  %v2756 = vpop.permute.xlu0 %2755
  %2757 = vrot.lane.b32.xlu0 %v2245, 12
  %v2758 = vpop.permute.xlu0 %2757
  %2759 = vrot.lane.b32.xlu0 %v2246, 12
  %v2760 = vpop.permute.xlu0 %2759
  %2761 = vrot.lane.b32.xlu0 %v2247, 12
  %v2762 = vpop.permute.xlu0 %2761
  %2763 = vrot.lane.b32.xlu0 %v2287, 12
  %v2764 = vpop.permute.xlu0 %2763
  %2765 = vrot.lane.b32.xlu0 %v2288, 12
  %v2766 = vpop.permute.xlu0 %2765
  %2777 = vrot.lane.b32.xlu0 %v2242, 22
  %v2778 = vpop.permute.xlu0 %2777
  %2779 = vrot.lane.b32.xlu0 %v2243, 22
  %v2780 = vpop.permute.xlu0 %2779
  %2781 = vrot.lane.b32.xlu0 %v2244, 22
  %v2782 = vpop.permute.xlu0 %2781
  %2783 = vrot.lane.b32.xlu0 %v2245, 22
  %v2784 = vpop.permute.xlu0 %2783
  %2785 = vrot.lane.b32.xlu0 %v2246, 22
  %v2786 = vpop.permute.xlu0 %2785
  %2787 = vrot.lane.b32.xlu0 %v2247, 22
  %v2788 = vpop.permute.xlu0 %2787
  %2789 = vrot.lane.b32.xlu0 %v2287, 22
  %v2790 = vpop.permute.xlu0 %2789
  %2791 = vrot.lane.b32.xlu0 %v2288, 22
  %v2792 = vpop.permute.xlu0 %2791
  %2793 = vrot.lane.b32.xlu0 %v2289, 22
  %v2794 = vpop.permute.xlu0 %2793
  %v2804 = vsel %vm453, %v2202, %v2323
  %v2805 = vsel %vm453, %v2203, %v2325
  %v2806 = vsel %vm453, %v2204, %v2327
  %v2807 = vsel %vm453, %v2205, %v2329
  %v2808 = vsel %vm453, %v2206, %v2331
  %v2809 = vsel %vm453, %v2207, %v2333
  %v2810 = vsel %vm453, %v2208, %v2335
  %v2811 = vsel %vm453, %v2209, %v2337
  %v2812 = vsel %vm453, %v2210, %v2339
  %vm2813 = vcmask 162816
  %v2814 = vsel %vm2813, %v2804, %v2359
  %v2815 = vsel %vm2813, %v2805, %v2361
  %v2816 = vsel %vm2813, %v2806, %v2363
  %v2817 = vsel %vm2813, %v2807, %v2365
  %v2818 = vsel %vm2813, %v2808, %v2367
  %v2819 = vsel %vm2813, %v2809, %v2369
  %v2820 = vsel %vm2813, %v2810, %v2371
  %v2821 = vsel %vm2813, %v2811, %v2373
  %v2822 = vsel %vm2813, %v2812, %v2375
  %vm2823 = vcmask 244736
  %v2824 = vsel %vm2823, %v2814, %v2395
  %v2825 = vsel %vm2823, %v2815, %v2397
  %v2826 = vsel %vm2823, %v2816, %v2399
  %v2827 = vsel %vm2823, %v2817, %v2401
  %v2828 = vsel %vm2823, %v2818, %v2403
  %v2829 = vsel %vm2823, %v2819, %v2405
  %v2830 = vsel %vm2823, %v2820, %v2407
  %v2831 = vsel %vm2823, %v2821, %v2409
  %v2832 = vsel %vm2823, %v2822, %v2411
  %vm2833 = vcmask 326656
  %v2834 = vsel %vm2833, %v2824, %v2431
  %v2835 = vsel %vm2833, %v2825, %v2433
  %v2836 = vsel %vm2833, %v2826, %v2435
  %v2837 = vsel %vm2833, %v2827, %v2437
  %v2838 = vsel %vm2833, %v2828, %v2439
  %v2839 = vsel %vm2833, %v2829, %v2441
  %v2840 = vsel %vm2833, %v2830, %v2443
  %v2841 = vsel %vm2833, %v2831, %v2445
  %v2842 = vsel %vm2833, %v2832, %v2447
  %vm2843 = vcmask 408576
  %v2844 = vsel %vm2843, %v2834, %v2459
  %v2845 = vsel %vm2843, %v2835, %v2461
  %v2846 = vsel %vm2843, %v2836, %v2463
  %v2847 = vsel %vm2843, %v2837, %v2465
  %v2848 = vsel %vm2843, %v2838, %v2467
  %v2849 = vsel %vm2843, %v2839, %v2469
  %v2850 = vsel %vm2843, %v2840, %v2471
  %v2851 = vsel %vm2843, %v2841, %v2473
  %v2852 = vsel %vm2843, %v2842, %v2475
  %vm2853 = vcmask 490496
  %v2854 = vsel %vm2853, %v2844, %v2495
  %v2855 = vsel %vm2853, %v2845, %v2497
  %v2856 = vsel %vm2853, %v2846, %v2499
  %v2857 = vsel %vm2853, %v2847, %v2501
  %v2858 = vsel %vm2853, %v2848, %v2503
  %v2859 = vsel %vm2853, %v2849, %v2505
  %v2860 = vsel %vm2853, %v2850, %v2507
  %v2861 = vsel %vm2853, %v2851, %v2509
  %v2862 = vsel %vm2853, %v2852, %v2511
  %vm2863 = vcmask 572416
  %v2864 = vsel %vm2863, %v2854, %v2531
  %v2865 = vsel %vm2863, %v2855, %v2533
  %v2866 = vsel %vm2863, %v2856, %v2535
  %v2867 = vsel %vm2863, %v2857, %v2537
  %v2868 = vsel %vm2863, %v2858, %v2539
  %v2869 = vsel %vm2863, %v2859, %v2541
  %v2870 = vsel %vm2863, %v2860, %v2543
  %v2871 = vsel %vm2863, %v2861, %v2545
  %v2872 = vsel %vm2863, %v2862, %v2547
  %vm2873 = vcmask 654336
  %v2874 = vsel %vm2873, %v2864, %v2567
  %v2875 = vsel %vm2873, %v2865, %v2569
  %v2876 = vsel %vm2873, %v2866, %v2571
  %v2877 = vsel %vm2873, %v2867, %v2573
  %v2878 = vsel %vm2873, %v2868, %v2575
  %v2879 = vsel %vm2873, %v2869, %v2577
  %v2880 = vsel %vm2873, %v2870, %v2579
  %v2881 = vsel %vm2873, %v2871, %v2581
  %v2882 = vsel %vm2873, %v2872, %v2583
  %vm2883 = vcmask 736256
  %v2884 = vsel %vm2883, %v2874, %v2603
  %v2885 = vsel %vm2883, %v2875, %v2605
  %v2886 = vsel %vm2883, %v2876, %v2607
  %v2887 = vsel %vm2883, %v2877, %v2609
  %v2888 = vsel %vm2883, %v2878, %v2611
  %v2889 = vsel %vm2883, %v2879, %v2613
  %v2890 = vsel %vm2883, %v2880, %v2615
  %v2891 = vsel %vm2883, %v2881, %v2617
  %v2892 = vsel %vm2883, %v2882, %v2619
  %vm2893 = vcmask 818176
  %v2894 = vsel %vm2893, %v2884, %v2631
  %v2895 = vsel %vm2893, %v2885, %v2633
  %v2896 = vsel %vm2893, %v2886, %v2635
  %v2897 = vsel %vm2893, %v2887, %v2637
  %v2898 = vsel %vm2893, %v2888, %v2639
  %v2899 = vsel %vm2893, %v2889, %v2641
  %v2900 = vsel %vm2893, %v2890, %v2643
  %v2901 = vsel %vm2893, %v2891, %v2645
  %v2902 = vsel %vm2893, %v2892, %v2647
  %vm2903 = vcmask 900096
  %v2904 = vsel %vm2903, %v2894, %v2661
  %v2905 = vsel %vm2903, %v2895, %v2663
  %v2906 = vsel %vm2903, %v2896, %v2665
  %v2907 = vsel %vm2903, %v2897, %v2667
  %v2908 = vsel %vm2903, %v2898, %v2669
  %v2909 = vsel %vm2903, %v2899, %v2671
  %v2910 = vsel %vm2903, %v2900, %v2673
  %v2911 = vsel %vm2903, %v2901, %v2675
  %v2912 = vsel %vm2903, %v2902, %v2677
  %vm2913 = vcmask 982016
  %v2914 = vsel %vm2913, %v2904, %v2691
  %v2915 = vsel %vm2913, %v2905, %v2693
  %v2916 = vsel %vm2913, %v2906, %v2695
  %v2917 = vsel %vm2913, %v2907, %v2697
  %v2918 = vsel %vm2913, %v2908, %v2699
  %v2919 = vsel %vm2913, %v2909, %v2701
  %v2920 = vsel %vm2913, %v2910, %v2703
  %v2921 = vsel %vm2913, %v2911, %v2705
  %v2922 = vsel %vm2913, %v2912, %v2707
  %vm2923 = vcmask 15360
  %v2924 = vsel %vm2923, %v2691, %v2721
  %v2925 = vsel %vm2923, %v2693, %v2723
  %v2926 = vsel %vm2923, %v2695, %v2725
  %v2927 = vsel %vm2923, %v2697, %v2727
  %v2928 = vsel %vm2923, %v2699, %v2729
  %v2929 = vsel %vm2923, %v2701, %v2731
  %v2930 = vsel %vm2923, %v2703, %v2733
  %v2931 = vsel %vm2923, %v2705, %v2735
  %v2932 = vsel %vm2923, %v2707, %v2737
  %vm2933 = vcmask 97280
  %v2934 = vsel %vm2933, %v2924, %v2750
  %v2935 = vsel %vm2933, %v2925, %v2752
  %v2936 = vsel %vm2933, %v2926, %v2754
  %v2937 = vsel %vm2933, %v2927, %v2756
  %v2938 = vsel %vm2933, %v2928, %v2758
  %v2939 = vsel %vm2933, %v2929, %v2760
  %v2940 = vsel %vm2933, %v2930, %v2762
  %v2941 = vsel %vm2933, %v2931, %v2764
  %v2942 = vsel %vm2933, %v2932, %v2766
  %vm2943 = vcmask 179200
  %v2944 = vsel %vm2943, %v2934, %v2778
  %v2945 = vsel %vm2943, %v2935, %v2780
  %v2946 = vsel %vm2943, %v2936, %v2782
  %v2947 = vsel %vm2943, %v2937, %v2784
  %v2948 = vsel %vm2943, %v2938, %v2786
  %v2949 = vsel %vm2943, %v2939, %v2788
  %v2950 = vsel %vm2943, %v2940, %v2790
  %v2951 = vsel %vm2943, %v2941, %v2792
  %v2952 = vsel %vm2943, %v2942, %v2794
  %2956 = vrot.lane.b32.xlu0 %v2260, 10
  %v2957 = vpop.permute.xlu0 %2956
  %2958 = vrot.lane.b32.xlu0 %v2261, 10
  %v2959 = vpop.permute.xlu0 %2958
  %2960 = vrot.lane.b32.xlu0 %v2262, 10
  %v2961 = vpop.permute.xlu0 %2960
  %2962 = vrot.lane.b32.xlu0 %v2263, 10
  %v2963 = vpop.permute.xlu0 %2962
  %2964 = vrot.lane.b32.xlu0 %v2264, 10
  %v2965 = vpop.permute.xlu0 %2964
  %2966 = vrot.lane.b32.xlu0 %v2265, 10
  %v2967 = vpop.permute.xlu0 %2966
  %2968 = vrot.lane.b32.xlu0 %v2293, 10
  %v2969 = vpop.permute.xlu0 %2968
  %2970 = vrot.lane.b32.xlu0 %v2294, 10
  %v2971 = vpop.permute.xlu0 %2970
  %2972 = vrot.lane.b32.xlu0 %v2295, 10
  %v2973 = vpop.permute.xlu0 %2972
  %2986 = vrot.lane.b32.xlu0 %v2269, 20
  %v2987 = vpop.permute.xlu0 %2986
  %2988 = vrot.lane.b32.xlu0 %v2270, 20
  %v2989 = vpop.permute.xlu0 %2988
  %2990 = vrot.lane.b32.xlu0 %v2271, 20
  %v2991 = vpop.permute.xlu0 %2990
  %2992 = vrot.lane.b32.xlu0 %v2272, 20
  %v2993 = vpop.permute.xlu0 %2992
  %2994 = vrot.lane.b32.xlu0 %v2273, 20
  %v2995 = vpop.permute.xlu0 %2994
  %2996 = vrot.lane.b32.xlu0 %v2274, 20
  %v2997 = vpop.permute.xlu0 %2996
  %2998 = vrot.lane.b32.xlu0 %v2296, 20
  %v2999 = vpop.permute.xlu0 %2998
  %3000 = vrot.lane.b32.xlu0 %v2297, 20
  %v3001 = vpop.permute.xlu0 %3000
  %3002 = vrot.lane.b32.xlu0 %v2298, 20
  %v3003 = vpop.permute.xlu0 %3002
  %3015 = vrot.lane.b32.xlu0 %v2207, 30
  %v3016 = vpop.permute.xlu0 %3015
  %3017 = vrot.lane.b32.xlu0 %v2208, 30
  %v3018 = vpop.permute.xlu0 %3017
  %3019 = vrot.lane.b32.xlu0 %v2209, 30
  %v3020 = vpop.permute.xlu0 %3019
  %3021 = vrot.lane.b32.xlu0 %v2210, 30
  %v3022 = vpop.permute.xlu0 %3021
  %3023 = vrot.lane.b32.xlu0 %v2275, 30
  %v3024 = vpop.permute.xlu0 %3023
  %3025 = vrot.lane.b32.xlu0 %v2276, 30
  %v3026 = vpop.permute.xlu0 %3025
  %3027 = vrot.lane.b32.xlu0 %v2277, 30
  %v3028 = vpop.permute.xlu0 %3027
  %3029 = vrot.lane.b32.xlu0 %v2299, 30
  %v3030 = vpop.permute.xlu0 %3029
  %3031 = vrot.lane.b32.xlu0 %v2300, 30
  %v3032 = vpop.permute.xlu0 %3031
  %3043 = vrot.lane.b32.xlu0 %v2208, 40
  %v3044 = vpop.permute.xlu0 %3043
  %3045 = vrot.lane.b32.xlu0 %v2209, 40
  %v3046 = vpop.permute.xlu0 %3045
  %3047 = vrot.lane.b32.xlu0 %v2210, 40
  %v3048 = vpop.permute.xlu0 %3047
  %3049 = vrot.lane.b32.xlu0 %v2275, 40
  %v3050 = vpop.permute.xlu0 %3049
  %3051 = vrot.lane.b32.xlu0 %v2276, 40
  %v3052 = vpop.permute.xlu0 %3051
  %3053 = vrot.lane.b32.xlu0 %v2277, 40
  %v3054 = vpop.permute.xlu0 %3053
  %3055 = vrot.lane.b32.xlu0 %v2299, 40
  %v3056 = vpop.permute.xlu0 %3055
  %3057 = vrot.lane.b32.xlu0 %v2300, 40
  %v3058 = vpop.permute.xlu0 %3057
  %3059 = vrot.lane.b32.xlu0 %v2301, 40
  %v3060 = vpop.permute.xlu0 %3059
  %3073 = vrot.lane.b32.xlu0 %v2217, 50
  %v3074 = vpop.permute.xlu0 %3073
  %3075 = vrot.lane.b32.xlu0 %v2218, 50
  %v3076 = vpop.permute.xlu0 %3075
  %3077 = vrot.lane.b32.xlu0 %v2219, 50
  %v3078 = vpop.permute.xlu0 %3077
  %3079 = vrot.lane.b32.xlu0 %v2278, 50
  %v3080 = vpop.permute.xlu0 %3079
  %3081 = vrot.lane.b32.xlu0 %v2279, 50
  %v3082 = vpop.permute.xlu0 %3081
  %3083 = vrot.lane.b32.xlu0 %v2280, 50
  %v3084 = vpop.permute.xlu0 %3083
  %3085 = vrot.lane.b32.xlu0 %v2302, 50
  %v3086 = vpop.permute.xlu0 %3085
  %3087 = vrot.lane.b32.xlu0 %v2303, 50
  %v3088 = vpop.permute.xlu0 %3087
  %3089 = vrot.lane.b32.xlu0 %v2304, 50
  %v3090 = vpop.permute.xlu0 %3089
  %3103 = vrot.lane.b32.xlu0 %v2226, 60
  %v3104 = vpop.permute.xlu0 %3103
  %3105 = vrot.lane.b32.xlu0 %v2227, 60
  %v3106 = vpop.permute.xlu0 %3105
  %3107 = vrot.lane.b32.xlu0 %v2228, 60
  %v3108 = vpop.permute.xlu0 %3107
  %3109 = vrot.lane.b32.xlu0 %v2281, 60
  %v3110 = vpop.permute.xlu0 %3109
  %3111 = vrot.lane.b32.xlu0 %v2282, 60
  %v3112 = vpop.permute.xlu0 %3111
  %3113 = vrot.lane.b32.xlu0 %v2283, 60
  %v3114 = vpop.permute.xlu0 %3113
  %3115 = vrot.lane.b32.xlu0 %v2305, 60
  %v3116 = vpop.permute.xlu0 %3115
  %3117 = vrot.lane.b32.xlu0 %v2306, 60
  %v3118 = vpop.permute.xlu0 %3117
  %3119 = vrot.lane.b32.xlu0 %v2307, 60
  %v3120 = vpop.permute.xlu0 %3119
  %3133 = vrot.lane.b32.xlu0 %v2235, 70
  %v3134 = vpop.permute.xlu0 %3133
  %3135 = vrot.lane.b32.xlu0 %v2236, 70
  %v3136 = vpop.permute.xlu0 %3135
  %3137 = vrot.lane.b32.xlu0 %v2237, 70
  %v3138 = vpop.permute.xlu0 %3137
  %3139 = vrot.lane.b32.xlu0 %v2284, 70
  %v3140 = vpop.permute.xlu0 %3139
  %3141 = vrot.lane.b32.xlu0 %v2285, 70
  %v3142 = vpop.permute.xlu0 %3141
  %3143 = vrot.lane.b32.xlu0 %v2286, 70
  %v3144 = vpop.permute.xlu0 %3143
  %3145 = vrot.lane.b32.xlu0 %v2308, 70
  %v3146 = vpop.permute.xlu0 %3145
  %3147 = vrot.lane.b32.xlu0 %v2309, 70
  %v3148 = vpop.permute.xlu0 %3147
  %3149 = vrot.lane.b32.xlu0 %v2310, 70
  %v3150 = vpop.permute.xlu0 %3149
  %3162 = vrot.lane.b32.xlu0 %v2244, 80
  %v3163 = vpop.permute.xlu0 %3162
  %3164 = vrot.lane.b32.xlu0 %v2245, 80
  %v3165 = vpop.permute.xlu0 %3164
  %3166 = vrot.lane.b32.xlu0 %v2246, 80
  %v3167 = vpop.permute.xlu0 %3166
  %3168 = vrot.lane.b32.xlu0 %v2247, 80
  %v3169 = vpop.permute.xlu0 %3168
  %3170 = vrot.lane.b32.xlu0 %v2287, 80
  %v3171 = vpop.permute.xlu0 %3170
  %3172 = vrot.lane.b32.xlu0 %v2288, 80
  %v3173 = vpop.permute.xlu0 %3172
  %3174 = vrot.lane.b32.xlu0 %v2289, 80
  %v3175 = vpop.permute.xlu0 %3174
  %3176 = vrot.lane.b32.xlu0 %v2311, 80
  %v3177 = vpop.permute.xlu0 %3176
  %3178 = vrot.lane.b32.xlu0 %v2312, 80
  %v3179 = vpop.permute.xlu0 %3178
  %v3189 = vsel %vm453, %v2251, %v2957
  %v3190 = vsel %vm453, %v2252, %v2959
  %v3191 = vsel %vm453, %v2253, %v2961
  %v3192 = vsel %vm453, %v2254, %v2963
  %v3193 = vsel %vm453, %v2255, %v2965
  %v3194 = vsel %vm453, %v2256, %v2967
  %v3195 = vsel %vm453, %v2290, %v2969
  %v3196 = vsel %vm453, %v2291, %v2971
  %v3197 = vsel %vm453, %v2292, %v2973
  %v3198 = vsel %vm2813, %v3189, %v2987
  %v3199 = vsel %vm2813, %v3190, %v2989
  %v3200 = vsel %vm2813, %v3191, %v2991
  %v3201 = vsel %vm2813, %v3192, %v2993
  %v3202 = vsel %vm2813, %v3193, %v2995
  %v3203 = vsel %vm2813, %v3194, %v2997
  %v3204 = vsel %vm2813, %v3195, %v2999
  %v3205 = vsel %vm2813, %v3196, %v3001
  %v3206 = vsel %vm2813, %v3197, %v3003
  %v3207 = vsel %vm2823, %v3198, %v3016
  %v3208 = vsel %vm2823, %v3199, %v3018
  %v3209 = vsel %vm2823, %v3200, %v3020
  %v3210 = vsel %vm2823, %v3201, %v3022
  %v3211 = vsel %vm2823, %v3202, %v3024
  %v3212 = vsel %vm2823, %v3203, %v3026
  %v3213 = vsel %vm2823, %v3204, %v3028
  %v3214 = vsel %vm2823, %v3205, %v3030
  %v3215 = vsel %vm2823, %v3206, %v3032
  %v3216 = vsel %vm2833, %v3207, %v3044
  %v3217 = vsel %vm2833, %v3208, %v3046
  %v3218 = vsel %vm2833, %v3209, %v3048
  %v3219 = vsel %vm2833, %v3210, %v3050
  %v3220 = vsel %vm2833, %v3211, %v3052
  %v3221 = vsel %vm2833, %v3212, %v3054
  %v3222 = vsel %vm2833, %v3213, %v3056
  %v3223 = vsel %vm2833, %v3214, %v3058
  %v3224 = vsel %vm2833, %v3215, %v3060
  %v3225 = vsel %vm2843, %v3216, %v3074
  %v3226 = vsel %vm2843, %v3217, %v3076
  %v3227 = vsel %vm2843, %v3218, %v3078
  %v3228 = vsel %vm2843, %v3219, %v3080
  %v3229 = vsel %vm2843, %v3220, %v3082
  %v3230 = vsel %vm2843, %v3221, %v3084
  %v3231 = vsel %vm2843, %v3222, %v3086
  %v3232 = vsel %vm2843, %v3223, %v3088
  %v3233 = vsel %vm2843, %v3224, %v3090
  %v3234 = vsel %vm2853, %v3225, %v3104
  %v3235 = vsel %vm2853, %v3226, %v3106
  %v3236 = vsel %vm2853, %v3227, %v3108
  %v3237 = vsel %vm2853, %v3228, %v3110
  %v3238 = vsel %vm2853, %v3229, %v3112
  %v3239 = vsel %vm2853, %v3230, %v3114
  %v3240 = vsel %vm2853, %v3231, %v3116
  %v3241 = vsel %vm2853, %v3232, %v3118
  %v3242 = vsel %vm2853, %v3233, %v3120
  %v3243 = vsel %vm2863, %v3234, %v3134
  %v3244 = vsel %vm2863, %v3235, %v3136
  %v3245 = vsel %vm2863, %v3236, %v3138
  %v3246 = vsel %vm2863, %v3237, %v3140
  %v3247 = vsel %vm2863, %v3238, %v3142
  %v3248 = vsel %vm2863, %v3239, %v3144
  %v3249 = vsel %vm2863, %v3240, %v3146
  %v3250 = vsel %vm2863, %v3241, %v3148
  %v3251 = vsel %vm2863, %v3242, %v3150
  %v3252 = vsel %vm2873, %v3243, %v3163
  %v3253 = vsel %vm2873, %v3244, %v3165
  %v3254 = vsel %vm2873, %v3245, %v3167
  %v3255 = vsel %vm2873, %v3246, %v3169
  %v3256 = vsel %vm2873, %v3247, %v3171
  %v3257 = vsel %vm2873, %v3248, %v3173
  %v3258 = vsel %vm2873, %v3249, %v3175
  %v3259 = vsel %vm2873, %v3250, %v3177
  %v3260 = vsel %vm2873, %v3251, %v3179
  %3270 = vrot.lane.b32.xlu0 %v3252, 32
  %v3271 = vpop.permute.xlu0 %3270
  %3272 = vrot.lane.b32.xlu0 %v3253, 32
  %v3273 = vpop.permute.xlu0 %3272
  %3274 = vrot.lane.b32.xlu0 %v3254, 32
  %v3275 = vpop.permute.xlu0 %3274
  %3276 = vrot.lane.b32.xlu0 %v3255, 32
  %v3277 = vpop.permute.xlu0 %3276
  %3278 = vrot.lane.b32.xlu0 %v3256, 32
  %v3279 = vpop.permute.xlu0 %3278
  %3280 = vrot.lane.b32.xlu0 %v3257, 32
  %v3281 = vpop.permute.xlu0 %3280
  %3282 = vrot.lane.b32.xlu0 %v3258, 32
  %v3283 = vpop.permute.xlu0 %3282
  %3284 = vrot.lane.b32.xlu0 %v3259, 32
  %v3285 = vpop.permute.xlu0 %3284
  %3286 = vrot.lane.b32.xlu0 %v3260, 32
  %v3287 = vpop.permute.xlu0 %3286
  %vm3297 = vcmask 261120
  %v3298 = vsel %vm3297, %v2944, %v3271
  %v3299 = vsel %vm3297, %v2945, %v3273
  %v3300 = vsel %vm3297, %v2946, %v3275
  %v3301 = vsel %vm3297, %v2947, %v3277
  %v3302 = vsel %vm3297, %v2948, %v3279
  %v3303 = vsel %vm3297, %v2949, %v3281
  %v3304 = vsel %vm3297, %v2950, %v3283
  %v3305 = vsel %vm3297, %v2951, %v3285
  %v3306 = vsel %vm3297, %v2952, %v3287
  %v3307 = vlaneseq
  %v3308 = vshrl.u32 %v3307, 7
  %v3309 = vsub.s32 0, %v3308
  %v3310 = vrot.slane %v2201, %v3309
  %vm3311 = vcmask 998400
  %v3313 = vsel %vm3311, %v3298, 0
  %v3316 = vsel %vm3311, %v3299, 0
  %v3319 = vsel %vm3311, %v3300, 0
  %v3322 = vsel %vm3311, %v3301, 0
  %v3325 = vsel %vm3311, %v3302, 0
  %v3328 = vsel %vm3311, %v3303, 0
  %v3331 = vsel %vm3311, %v3304, 0
  %v3334 = vsel %vm3311, %v3305, 0
  %v3337 = vsel %vm3311, %v3306, 0
  %vm3339 = vcmask 1041408
  %v3341 = vsel %vm3339, %v2200, 0
  %3343 = vmatprep.subr.mxu0 0.0
  %3344 = vmatpush1.msra.mxu0 %v2169
  %3345 = vmatprep.subr.mxu0 0.0
  %3346 = vmatpush1.msra.mxu0 %v2170
  %3347 = vmatprep.subr.mxu0 0.0
  %3348 = vmatpush1.msra.mxu0 %v2171
  %3349 = vmatprep.subr.mxu0 0.0
  %3350 = vmatpush1.msra.mxu0 %v2172
  %3351 = vmatprep.subr.mxu0 0.0
  %3352 = vmatpush1.msra.mxu0 %v2173
  %3353 = vmatprep.subr.mxu0 0.0
  %3354 = vmatpush1.msra.mxu0 %v2174
  %3355 = vmatprep.subr.mxu0 0.0
  %3356 = vmatpush1.msra.mxu0 %v2175
  %3357 = vmatprep.subr.mxu0 0.0
  %3358 = vmatpush1.msra.mxu0 %v2176
  %3359 = vmatprep.subr.mxu0 0.0
  %3360 = vmatpush1.msra.mxu0 %v2177
  %3361 = vmatprep.subr.mxu0 0.0
  %3362 = vmatpush1.msra.mxu0 %v2178
  %3363 = vmatprep.subr.mxu0 0.0
  %3364 = vmatpush1.msra.mxu0 %v2179
  %3365 = vmatprep.subr.mxu0 0.0
  %3366 = vmatpush1.msra.mxu0 %v2180
  %3367 = vmatprep.subr.mxu0 0.0
  %3368 = vmatpush1.msra.mxu0 %v2181
  %3369 = vmatprep.subr.mxu0 0.0
  %3370 = vmatpush1.msra.mxu0 %v2182
  %3371 = vmatprep.subr.mxu0 0.0
  %3372 = vmatpush1.msra.mxu0 %v2183
  %3373 = vmatprep.subr.mxu0 0.0
  %3374 = vmatpush1.msra.mxu0 %v2184
  %3375 = vmatprep.subr.mxu0 0.0
  %3376 = vmatpush1.msra.mxu0 %v2185
  %3377 = vmatprep.subr.mxu0 0.0
  %3378 = vmatpush1.msra.mxu0 %v2186
  %3379 = vmatprep.subr.mxu0 0.0
  %3380 = vmatpush1.msra.mxu0 %v2187
  %3381 = vmatprep.subr.mxu0 0.0
  %3382 = vmatpush1.msra.mxu0 %v2188
  %3383 = vmatprep.subr.mxu0 0.0
  %3384 = vmatpush1.msra.mxu0 %v2189
  %3385 = vmatprep.subr.mxu0 0.0
  %3386 = vmatpush1.msra.mxu0 %v2190
  %3387 = vmatprep.subr.mxu0 0.0
  %3388 = vmatpush1.msra.mxu0 %v2191
  %3389 = vmatprep.subr.mxu0 0.0
  %3390 = vmatpush1.msra.mxu0 %v2192
  %3391 = vmatprep.subr.mxu0 0.0
  %3392 = vmatpush1.msra.mxu0 %v2193
  %3393 = vmatprep.subr.mxu0 0.0
  %3394 = vmatpush1.msra.mxu0 %v2194
  %3395 = vmatprep.subr.mxu0 0.0
  %3396 = vmatpush1.msra.mxu0 %v2195
  %3397 = vmatprep.subr.mxu0 0.0
  %3398 = vmatpush1.msra.mxu0 %v2196
  %3399 = vmatprep.subr.mxu0 0.0
  %3400 = vmatpush1.msra.mxu0 %v2197
  %3401 = vmatprep.subr.mxu0 0.0
  %3402 = vmatpush1.msra.mxu0 %v2198
  %3403 = vmatprep.subr.mxu0 0.0
  %3404 = vmatpush1.msra.mxu0 %v2199
  %3405 = vmatprep.subr.mxu0 0.0
  %3406 = vmatpush1.msra.mxu0 %v3341
  %3407 = vmatprep.mubr.f32.mxu0 %v3313
  %3408 = vmatmul.mubr.f32.gmra.mrb[0].mxu0 %v2914
  %v3409 = vpop.f32.mrb[0].mxu0
  %v3410 = vadd.f32 %v3310, %v3409
  %v3411 = vpop.f32.mrb[0].mxu0
  %3412 = vmatprep.mubr.f32.mxu0 %v3316
  %3413 = vmatmul.mubr.f32.gmra.mrb[0].mxu0 %v2915
  %v3414 = vpop.f32.mrb[0].mxu0
  %v3415 = vadd.f32 %v3310, %v3414
  %v3416 = vpop.f32.mrb[0].mxu0
  %3417 = vmatprep.mubr.f32.mxu0 %v3319
  %3418 = vmatmul.mubr.f32.gmra.mrb[0].mxu0 %v2916
  %v3419 = vpop.f32.mrb[0].mxu0
  %v3420 = vadd.f32 %v3310, %v3419
  %v3421 = vpop.f32.mrb[0].mxu0
  %3422 = vmatprep.mubr.f32.mxu0 %v3322
  %3423 = vmatmul.mubr.f32.gmra.mrb[0].mxu0 %v2917
  %v3424 = vpop.f32.mrb[0].mxu0
  %v3425 = vadd.f32 %v3310, %v3424
  %v3426 = vpop.f32.mrb[0].mxu0
  %3427 = vmatprep.mubr.f32.mxu0 %v3325
  %3428 = vmatmul.mubr.f32.gmra.mrb[0].mxu0 %v2918
  %v3429 = vpop.f32.mrb[0].mxu0
  %v3430 = vadd.f32 %v3310, %v3429
  %v3431 = vpop.f32.mrb[0].mxu0
  %3432 = vmatprep.mubr.f32.mxu0 %v3328
  %3433 = vmatmul.mubr.f32.gmra.mrb[0].mxu0 %v2919
  %v3434 = vpop.f32.mrb[0].mxu0
  %v3435 = vadd.f32 %v3310, %v3434
  %v3436 = vpop.f32.mrb[0].mxu0
  %3437 = vmatprep.mubr.f32.mxu0 %v3331
  %3438 = vmatmul.mubr.f32.gmra.mrb[0].mxu0 %v2920
  %v3439 = vpop.f32.mrb[0].mxu0
  %v3440 = vadd.f32 %v3310, %v3439
  %v3441 = vpop.f32.mrb[0].mxu0
  %3442 = vmatprep.mubr.f32.mxu0 %v3334
  %3443 = vmatmul.mubr.f32.gmra.mrb[0].mxu0 %v2921
  %v3444 = vpop.f32.mrb[0].mxu0
  %v3445 = vadd.f32 %v3310, %v3444
  %v3446 = vpop.f32.mrb[0].mxu0
  %3447 = vmatprep.mubr.f32.mxu0 %v3337
  %3448 = vmatmul.mubr.f32.gmra.mrb[0].mxu0 %v2922
  %v3449 = vpop.f32.mrb[0].mxu0
  %v3450 = vadd.f32 %v3310, %v3449
  %v3451 = vpop.f32.mrb[0].mxu0
  %3452 = vdwg.mxu0
  %v3453 = vmax.f32 %v3410, 0.0
  %v3454 = vmax.f32 %v3415, 0.0
  %v3455 = vmax.f32 %v3420, 0.0
  %v3456 = vmax.f32 %v3425, 0.0
  %v3457 = vmax.f32 %v3430, 0.0
  %v3458 = vmax.f32 %v3435, 0.0
  %v3459 = vmax.f32 %v3440, 0.0
  %v3460 = vmax.f32 %v3445, 0.0
  %v3461 = vmax.f32 %v3450, 0.0
  %3462 = vst.msk [vmem:[#allocation4] sm:$0xff] %vm453, %v3453
  %3463 = vst.msk [vmem:[#allocation4 + $0x8] sm:$0xff] %vm453, %v3454
  %3464 = vst.msk [vmem:[#allocation4 + $0x10] sm:$0xff] %vm453, %v3455
  %3465 = vst.msk [vmem:[#allocation4 + $0x18] sm:$0xff] %vm453, %v3456
  %3466 = vst.msk [vmem:[#allocation4 + $0x20] sm:$0xff] %vm453, %v3457
  %3467 = vst.msk [vmem:[#allocation4 + $0x28] sm:$0xff] %vm453, %v3458
  %3468 = vst.msk [vmem:[#allocation4 + $0x30] sm:$0xff] %vm453, %v3459
  %3469 = vst.msk [vmem:[#allocation4 + $0x38] sm:$0xff] %vm453, %v3460
  %3470 = vst.msk [vmem:[#allocation4 + $0x40] sm:$0xff] %vm453, %v3461
  %v3471 = vld [vmem:[#allocation3 + $0x48] sm:$0xff]
  %v3472 = vld [vmem:[#allocation3 + $0x50] sm:$0xff]
  %v3473 = vld [vmem:[#allocation3 + $0x58] sm:$0xff]
  %v3474 = vld [vmem:[#allocation3 + $0x60] sm:$0xff]
  %v3475 = vld [vmem:[#allocation3 + $0x68] sm:$0xff]
  %v3476 = vld [vmem:[#allocation3 + $0x70] sm:$0xff]
  %v3477 = vld [vmem:[#allocation3 + $0x78] sm:$0xff]
  %v3478 = vld [vmem:[#allocation3 + $0x80] sm:$0xff]
  %v3479 = vld [vmem:[#allocation3 + $0x88] sm:$0xff]
  %v3480 = vld [vmem:[#allocation3 + $0x49] sm:$0xff]
  %v3481 = vld [vmem:[#allocation3 + $0x51] sm:$0xff]
  %v3482 = vld [vmem:[#allocation3 + $0x59] sm:$0xff]
  %v3483 = vld [vmem:[#allocation3 + $0x61] sm:$0xff]
  %v3484 = vld [vmem:[#allocation3 + $0x69] sm:$0xff]
  %v3485 = vld [vmem:[#allocation3 + $0x71] sm:$0xff]
  %v3486 = vld [vmem:[#allocation3 + $0x79] sm:$0xff]
  %v3487 = vld [vmem:[#allocation3 + $0x81] sm:$0xff]
  %v3488 = vld [vmem:[#allocation3 + $0x89] sm:$0xff]
  %v3489 = vld [vmem:[#allocation3 + $0x4a] sm:$0xff]
  %v3490 = vld [vmem:[#allocation3 + $0x52] sm:$0xff]
  %v3491 = vld [vmem:[#allocation3 + $0x5a] sm:$0xff]
  %v3492 = vld [vmem:[#allocation3 + $0x62] sm:$0xff]
  %v3493 = vld [vmem:[#allocation3 + $0x6a] sm:$0xff]
  %v3494 = vld [vmem:[#allocation3 + $0x72] sm:$0xff]
  %v3495 = vld [vmem:[#allocation3 + $0x7a] sm:$0xff]
  %v3496 = vld [vmem:[#allocation3 + $0x82] sm:$0xff]
  %v3497 = vld [vmem:[#allocation3 + $0x8a] sm:$0xff]
  %v3498 = vld [vmem:[#allocation3 + $0x4b] sm:$0xff]
  %v3499 = vld [vmem:[#allocation3 + $0x53] sm:$0xff]
  %v3500 = vld [vmem:[#allocation3 + $0x5b] sm:$0xff]
  %v3501 = vld [vmem:[#allocation3 + $0x63] sm:$0xff]
  %v3502 = vld [vmem:[#allocation3 + $0x6b] sm:$0xff]
  %v3503 = vld [vmem:[#allocation3 + $0x73] sm:$0xff]
  %v3504 = vld [vmem:[#allocation3 + $0x7b] sm:$0xff]
  %v3505 = vld [vmem:[#allocation3 + $0x83] sm:$0xff]
  %v3506 = vld [vmem:[#allocation3 + $0x8b] sm:$0xff]
  %v3507 = vld [vmem:[#allocation3 + $0x4c] sm:$0xff]
  %v3508 = vld [vmem:[#allocation3 + $0x54] sm:$0xff]
  %v3509 = vld [vmem:[#allocation3 + $0x5c] sm:$0xff]
  %v3510 = vld [vmem:[#allocation3 + $0x64] sm:$0xff]
  %v3511 = vld [vmem:[#allocation3 + $0x6c] sm:$0xff]
  %v3512 = vld [vmem:[#allocation3 + $0x74] sm:$0xff]
  %v3513 = vld [vmem:[#allocation3 + $0x7c] sm:$0xff]
  %v3514 = vld [vmem:[#allocation3 + $0x84] sm:$0xff]
  %v3515 = vld [vmem:[#allocation3 + $0x8c] sm:$0xff]
  %v3516 = vld [vmem:[#allocation3 + $0x94] sm:$0xff]
  %v3517 = vld [vmem:[#allocation3 + $0x55] sm:$0xff]
  %v3518 = vld [vmem:[#allocation3 + $0x5d] sm:$0xff]
  %v3519 = vld [vmem:[#allocation3 + $0x65] sm:$0xff]
  %v3520 = vld [vmem:[#allocation3 + $0x6d] sm:$0xff]
  %v3521 = vld [vmem:[#allocation3 + $0x75] sm:$0xff]
  %v3522 = vld [vmem:[#allocation3 + $0x7d] sm:$0xff]
  %v3523 = vld [vmem:[#allocation3 + $0x85] sm:$0xff]
  %v3524 = vld [vmem:[#allocation3 + $0x8d] sm:$0xff]
  %v3525 = vld [vmem:[#allocation3 + $0x95] sm:$0xff]
  %v3526 = vld [vmem:[#allocation3 + $0x56] sm:$0xff]
  %v3527 = vld [vmem:[#allocation3 + $0x5e] sm:$0xff]
  %v3528 = vld [vmem:[#allocation3 + $0x66] sm:$0xff]
  %v3529 = vld [vmem:[#allocation3 + $0x6e] sm:$0xff]
  %v3530 = vld [vmem:[#allocation3 + $0x76] sm:$0xff]
  %v3531 = vld [vmem:[#allocation3 + $0x7e] sm:$0xff]
  %v3532 = vld [vmem:[#allocation3 + $0x86] sm:$0xff]
  %v3533 = vld [vmem:[#allocation3 + $0x8e] sm:$0xff]
  %v3534 = vld [vmem:[#allocation3 + $0x96] sm:$0xff]
  %v3535 = vld [vmem:[#allocation3 + $0x57] sm:$0xff]
  %v3536 = vld [vmem:[#allocation3 + $0x5f] sm:$0xff]
  %v3537 = vld [vmem:[#allocation3 + $0x67] sm:$0xff]
  %v3538 = vld [vmem:[#allocation3 + $0x6f] sm:$0xff]
  %v3539 = vld [vmem:[#allocation3 + $0x77] sm:$0xff]
  %v3540 = vld [vmem:[#allocation3 + $0x7f] sm:$0xff]
  %v3541 = vld [vmem:[#allocation3 + $0x87] sm:$0xff]
  %v3542 = vld [vmem:[#allocation3 + $0x8f] sm:$0xff]
  %v3543 = vld [vmem:[#allocation3 + $0x97] sm:$0xff]
  %v3544 = vld [vmem:[#allocation3 + $0x90] sm:$0xff]
  %v3545 = vld [vmem:[#allocation3 + $0x98] sm:$0xff]
  %v3546 = vld [vmem:[#allocation3 + $0xa0] sm:$0xff]
  %v3547 = vld [vmem:[#allocation3 + $0x91] sm:$0xff]
  %v3548 = vld [vmem:[#allocation3 + $0x99] sm:$0xff]
  %v3549 = vld [vmem:[#allocation3 + $0xa1] sm:$0xff]
  %v3550 = vld [vmem:[#allocation3 + $0x92] sm:$0xff]
  %v3551 = vld [vmem:[#allocation3 + $0x9a] sm:$0xff]
  %v3552 = vld [vmem:[#allocation3 + $0xa2] sm:$0xff]
  %v3553 = vld [vmem:[#allocation3 + $0x93] sm:$0xff]
  %v3554 = vld [vmem:[#allocation3 + $0x9b] sm:$0xff]
  %v3555 = vld [vmem:[#allocation3 + $0xa3] sm:$0xff]
  %v3556 = vld [vmem:[#allocation3 + $0x9c] sm:$0xff]
  %v3557 = vld [vmem:[#allocation3 + $0xa4] sm:$0xff]
  %v3558 = vld [vmem:[#allocation3 + $0xac] sm:$0xff]
  %v3559 = vld [vmem:[#allocation3 + $0x9d] sm:$0xff]
  %v3560 = vld [vmem:[#allocation3 + $0xa5] sm:$0xff]
  %v3561 = vld [vmem:[#allocation3 + $0xad] sm:$0xff]
  %v3562 = vld [vmem:[#allocation3 + $0x9e] sm:$0xff]
  %v3563 = vld [vmem:[#allocation3 + $0xa6] sm:$0xff]
  %v3564 = vld [vmem:[#allocation3 + $0xae] sm:$0xff]
  %v3565 = vld [vmem:[#allocation3 + $0x9f] sm:$0xff]
  %v3566 = vld [vmem:[#allocation3 + $0xa7] sm:$0xff]
  %v3567 = vld [vmem:[#allocation3 + $0xaf] sm:$0xff]
  %v3568 = vld [vmem:[#allocation3 + $0xa8] sm:$0xff]
  %v3569 = vld [vmem:[#allocation3 + $0xb0] sm:$0xff]
  %v3570 = vld [vmem:[#allocation3 + $0xb8] sm:$0xff]
  %v3571 = vld [vmem:[#allocation3 + $0xa9] sm:$0xff]
  %v3572 = vld [vmem:[#allocation3 + $0xb1] sm:$0xff]
  %v3573 = vld [vmem:[#allocation3 + $0xb9] sm:$0xff]
  %v3574 = vld [vmem:[#allocation3 + $0xaa] sm:$0xff]
  %v3575 = vld [vmem:[#allocation3 + $0xb2] sm:$0xff]
  %v3576 = vld [vmem:[#allocation3 + $0xba] sm:$0xff]
  %v3577 = vld [vmem:[#allocation3 + $0xab] sm:$0xff]
  %v3578 = vld [vmem:[#allocation3 + $0xb3] sm:$0xff]
  %v3579 = vld [vmem:[#allocation3 + $0xbb] sm:$0xff]
  %v3580 = vld [vmem:[#allocation3 + $0xb4] sm:$0xff]
  %v3581 = vld [vmem:[#allocation3 + $0xbc] sm:$0xff]
  %3591 = vrot.lane.b32.xlu0 %v3480, 10
  %v3592 = vpop.permute.xlu0 %3591
  %3593 = vrot.lane.b32.xlu0 %v3481, 10
  %v3594 = vpop.permute.xlu0 %3593
  %3595 = vrot.lane.b32.xlu0 %v3482, 10
  %v3596 = vpop.permute.xlu0 %3595
  %3597 = vrot.lane.b32.xlu0 %v3483, 10
  %v3598 = vpop.permute.xlu0 %3597
  %3599 = vrot.lane.b32.xlu0 %v3484, 10
  %v3600 = vpop.permute.xlu0 %3599
  %3601 = vrot.lane.b32.xlu0 %v3485, 10
  %v3602 = vpop.permute.xlu0 %3601
  %3603 = vrot.lane.b32.xlu0 %v3486, 10
  %v3604 = vpop.permute.xlu0 %3603
  %3605 = vrot.lane.b32.xlu0 %v3487, 10
  %v3606 = vpop.permute.xlu0 %3605
  %3607 = vrot.lane.b32.xlu0 %v3488, 10
  %v3608 = vpop.permute.xlu0 %3607
  %3627 = vrot.lane.b32.xlu0 %v3489, 20
  %v3628 = vpop.permute.xlu0 %3627
  %3629 = vrot.lane.b32.xlu0 %v3490, 20
  %v3630 = vpop.permute.xlu0 %3629
  %3631 = vrot.lane.b32.xlu0 %v3491, 20
  %v3632 = vpop.permute.xlu0 %3631
  %3633 = vrot.lane.b32.xlu0 %v3492, 20
  %v3634 = vpop.permute.xlu0 %3633
  %3635 = vrot.lane.b32.xlu0 %v3493, 20
  %v3636 = vpop.permute.xlu0 %3635
  %3637 = vrot.lane.b32.xlu0 %v3494, 20
  %v3638 = vpop.permute.xlu0 %3637
  %3639 = vrot.lane.b32.xlu0 %v3495, 20
  %v3640 = vpop.permute.xlu0 %3639
  %3641 = vrot.lane.b32.xlu0 %v3496, 20
  %v3642 = vpop.permute.xlu0 %3641
  %3643 = vrot.lane.b32.xlu0 %v3497, 20
  %v3644 = vpop.permute.xlu0 %3643
  %3663 = vrot.lane.b32.xlu0 %v3498, 30
  %v3664 = vpop.permute.xlu0 %3663
  %3665 = vrot.lane.b32.xlu0 %v3499, 30
  %v3666 = vpop.permute.xlu0 %3665
  %3667 = vrot.lane.b32.xlu0 %v3500, 30
  %v3668 = vpop.permute.xlu0 %3667
  %3669 = vrot.lane.b32.xlu0 %v3501, 30
  %v3670 = vpop.permute.xlu0 %3669
  %3671 = vrot.lane.b32.xlu0 %v3502, 30
  %v3672 = vpop.permute.xlu0 %3671
  %3673 = vrot.lane.b32.xlu0 %v3503, 30
  %v3674 = vpop.permute.xlu0 %3673
  %3675 = vrot.lane.b32.xlu0 %v3504, 30
  %v3676 = vpop.permute.xlu0 %3675
  %3677 = vrot.lane.b32.xlu0 %v3505, 30
  %v3678 = vpop.permute.xlu0 %3677
  %3679 = vrot.lane.b32.xlu0 %v3506, 30
  %v3680 = vpop.permute.xlu0 %3679
  %3699 = vrot.lane.b32.xlu0 %v3507, 40
  %v3700 = vpop.permute.xlu0 %3699
  %3701 = vrot.lane.b32.xlu0 %v3508, 40
  %v3702 = vpop.permute.xlu0 %3701
  %3703 = vrot.lane.b32.xlu0 %v3509, 40
  %v3704 = vpop.permute.xlu0 %3703
  %3705 = vrot.lane.b32.xlu0 %v3510, 40
  %v3706 = vpop.permute.xlu0 %3705
  %3707 = vrot.lane.b32.xlu0 %v3511, 40
  %v3708 = vpop.permute.xlu0 %3707
  %3709 = vrot.lane.b32.xlu0 %v3512, 40
  %v3710 = vpop.permute.xlu0 %3709
  %3711 = vrot.lane.b32.xlu0 %v3513, 40
  %v3712 = vpop.permute.xlu0 %3711
  %3713 = vrot.lane.b32.xlu0 %v3514, 40
  %v3714 = vpop.permute.xlu0 %3713
  %3715 = vrot.lane.b32.xlu0 %v3515, 40
  %v3716 = vpop.permute.xlu0 %3715
  %3727 = vrot.lane.b32.xlu0 %v3508, 50
  %v3728 = vpop.permute.xlu0 %3727
  %3729 = vrot.lane.b32.xlu0 %v3509, 50
  %v3730 = vpop.permute.xlu0 %3729
  %3731 = vrot.lane.b32.xlu0 %v3510, 50
  %v3732 = vpop.permute.xlu0 %3731
  %3733 = vrot.lane.b32.xlu0 %v3511, 50
  %v3734 = vpop.permute.xlu0 %3733
  %3735 = vrot.lane.b32.xlu0 %v3512, 50
  %v3736 = vpop.permute.xlu0 %3735
  %3737 = vrot.lane.b32.xlu0 %v3513, 50
  %v3738 = vpop.permute.xlu0 %3737
  %3739 = vrot.lane.b32.xlu0 %v3514, 50
  %v3740 = vpop.permute.xlu0 %3739
  %3741 = vrot.lane.b32.xlu0 %v3515, 50
  %v3742 = vpop.permute.xlu0 %3741
  %3743 = vrot.lane.b32.xlu0 %v3516, 50
  %v3744 = vpop.permute.xlu0 %3743
  %3763 = vrot.lane.b32.xlu0 %v3517, 60
  %v3764 = vpop.permute.xlu0 %3763
  %3765 = vrot.lane.b32.xlu0 %v3518, 60
  %v3766 = vpop.permute.xlu0 %3765
  %3767 = vrot.lane.b32.xlu0 %v3519, 60
  %v3768 = vpop.permute.xlu0 %3767
  %3769 = vrot.lane.b32.xlu0 %v3520, 60
  %v3770 = vpop.permute.xlu0 %3769
  %3771 = vrot.lane.b32.xlu0 %v3521, 60
  %v3772 = vpop.permute.xlu0 %3771
  %3773 = vrot.lane.b32.xlu0 %v3522, 60
  %v3774 = vpop.permute.xlu0 %3773
  %3775 = vrot.lane.b32.xlu0 %v3523, 60
  %v3776 = vpop.permute.xlu0 %3775
  %3777 = vrot.lane.b32.xlu0 %v3524, 60
  %v3778 = vpop.permute.xlu0 %3777
  %3779 = vrot.lane.b32.xlu0 %v3525, 60
  %v3780 = vpop.permute.xlu0 %3779
  %3799 = vrot.lane.b32.xlu0 %v3526, 70
  %v3800 = vpop.permute.xlu0 %3799
  %3801 = vrot.lane.b32.xlu0 %v3527, 70
  %v3802 = vpop.permute.xlu0 %3801
  %3803 = vrot.lane.b32.xlu0 %v3528, 70
  %v3804 = vpop.permute.xlu0 %3803
  %3805 = vrot.lane.b32.xlu0 %v3529, 70
  %v3806 = vpop.permute.xlu0 %3805
  %3807 = vrot.lane.b32.xlu0 %v3530, 70
  %v3808 = vpop.permute.xlu0 %3807
  %3809 = vrot.lane.b32.xlu0 %v3531, 70
  %v3810 = vpop.permute.xlu0 %3809
  %3811 = vrot.lane.b32.xlu0 %v3532, 70
  %v3812 = vpop.permute.xlu0 %3811
  %3813 = vrot.lane.b32.xlu0 %v3533, 70
  %v3814 = vpop.permute.xlu0 %3813
  %3815 = vrot.lane.b32.xlu0 %v3534, 70
  %v3816 = vpop.permute.xlu0 %3815
  %3835 = vrot.lane.b32.xlu0 %v3535, 80
  %v3836 = vpop.permute.xlu0 %3835
  %3837 = vrot.lane.b32.xlu0 %v3536, 80
  %v3838 = vpop.permute.xlu0 %3837
  %3839 = vrot.lane.b32.xlu0 %v3537, 80
  %v3840 = vpop.permute.xlu0 %3839
  %3841 = vrot.lane.b32.xlu0 %v3538, 80
  %v3842 = vpop.permute.xlu0 %3841
  %3843 = vrot.lane.b32.xlu0 %v3539, 80
  %v3844 = vpop.permute.xlu0 %3843
  %3845 = vrot.lane.b32.xlu0 %v3540, 80
  %v3846 = vpop.permute.xlu0 %3845
  %3847 = vrot.lane.b32.xlu0 %v3541, 80
  %v3848 = vpop.permute.xlu0 %3847
  %3849 = vrot.lane.b32.xlu0 %v3542, 80
  %v3850 = vpop.permute.xlu0 %3849
  %3851 = vrot.lane.b32.xlu0 %v3543, 80
  %v3852 = vpop.permute.xlu0 %3851
  %3871 = vrot.lane.b32.xlu0 %v3473, 90
  %v3872 = vpop.permute.xlu0 %3871
  %3873 = vrot.lane.b32.xlu0 %v3474, 90
  %v3874 = vpop.permute.xlu0 %3873
  %3875 = vrot.lane.b32.xlu0 %v3475, 90
  %v3876 = vpop.permute.xlu0 %3875
  %3877 = vrot.lane.b32.xlu0 %v3476, 90
  %v3878 = vpop.permute.xlu0 %3877
  %3879 = vrot.lane.b32.xlu0 %v3477, 90
  %v3880 = vpop.permute.xlu0 %3879
  %3881 = vrot.lane.b32.xlu0 %v3478, 90
  %v3882 = vpop.permute.xlu0 %3881
  %3883 = vrot.lane.b32.xlu0 %v3479, 90
  %v3884 = vpop.permute.xlu0 %3883
  %3885 = vrot.lane.b32.xlu0 %v3544, 90
  %v3886 = vpop.permute.xlu0 %3885
  %3887 = vrot.lane.b32.xlu0 %v3545, 90
  %v3888 = vpop.permute.xlu0 %3887
  %3899 = vrot.lane.b32.xlu0 %v3474, 100
  %v3900 = vpop.permute.xlu0 %3899
  %3901 = vrot.lane.b32.xlu0 %v3475, 100
  %v3902 = vpop.permute.xlu0 %3901
  %3903 = vrot.lane.b32.xlu0 %v3476, 100
  %v3904 = vpop.permute.xlu0 %3903
  %3905 = vrot.lane.b32.xlu0 %v3477, 100
  %v3906 = vpop.permute.xlu0 %3905
  %3907 = vrot.lane.b32.xlu0 %v3478, 100
  %v3908 = vpop.permute.xlu0 %3907
  %3909 = vrot.lane.b32.xlu0 %v3479, 100
  %v3910 = vpop.permute.xlu0 %3909
  %3911 = vrot.lane.b32.xlu0 %v3544, 100
  %v3912 = vpop.permute.xlu0 %3911
  %3913 = vrot.lane.b32.xlu0 %v3545, 100
  %v3914 = vpop.permute.xlu0 %3913
  %3915 = vrot.lane.b32.xlu0 %v3546, 100
  %v3916 = vpop.permute.xlu0 %3915
  %3929 = vrot.lane.b32.xlu0 %v3483, 110
  %v3930 = vpop.permute.xlu0 %3929
  %3931 = vrot.lane.b32.xlu0 %v3484, 110
  %v3932 = vpop.permute.xlu0 %3931
  %3933 = vrot.lane.b32.xlu0 %v3485, 110
  %v3934 = vpop.permute.xlu0 %3933
  %3935 = vrot.lane.b32.xlu0 %v3486, 110
  %v3936 = vpop.permute.xlu0 %3935
  %3937 = vrot.lane.b32.xlu0 %v3487, 110
  %v3938 = vpop.permute.xlu0 %3937
  %3939 = vrot.lane.b32.xlu0 %v3488, 110
  %v3940 = vpop.permute.xlu0 %3939
  %3941 = vrot.lane.b32.xlu0 %v3547, 110
  %v3942 = vpop.permute.xlu0 %3941
  %3943 = vrot.lane.b32.xlu0 %v3548, 110
  %v3944 = vpop.permute.xlu0 %3943
  %3945 = vrot.lane.b32.xlu0 %v3549, 110
  %v3946 = vpop.permute.xlu0 %3945
  %3959 = vrot.lane.b32.xlu0 %v3492, 120
  %v3960 = vpop.permute.xlu0 %3959
  %3961 = vrot.lane.b32.xlu0 %v3493, 120
  %v3962 = vpop.permute.xlu0 %3961
  %3963 = vrot.lane.b32.xlu0 %v3494, 120
  %v3964 = vpop.permute.xlu0 %3963
  %3965 = vrot.lane.b32.xlu0 %v3495, 120
  %v3966 = vpop.permute.xlu0 %3965
  %3967 = vrot.lane.b32.xlu0 %v3496, 120
  %v3968 = vpop.permute.xlu0 %3967
  %3969 = vrot.lane.b32.xlu0 %v3497, 120
  %v3970 = vpop.permute.xlu0 %3969
  %3971 = vrot.lane.b32.xlu0 %v3550, 120
  %v3972 = vpop.permute.xlu0 %3971
  %3973 = vrot.lane.b32.xlu0 %v3551, 120
  %v3974 = vpop.permute.xlu0 %3973
  %3975 = vrot.lane.b32.xlu0 %v3552, 120
  %v3976 = vpop.permute.xlu0 %3975
  %3989 = vrot.lane.b32.xlu0 %v3501, 2
  %v3990 = vpop.permute.xlu0 %3989
  %3991 = vrot.lane.b32.xlu0 %v3502, 2
  %v3992 = vpop.permute.xlu0 %3991
  %3993 = vrot.lane.b32.xlu0 %v3503, 2
  %v3994 = vpop.permute.xlu0 %3993
  %3995 = vrot.lane.b32.xlu0 %v3504, 2
  %v3996 = vpop.permute.xlu0 %3995
  %3997 = vrot.lane.b32.xlu0 %v3505, 2
  %v3998 = vpop.permute.xlu0 %3997
  %3999 = vrot.lane.b32.xlu0 %v3506, 2
  %v4000 = vpop.permute.xlu0 %3999
  %4001 = vrot.lane.b32.xlu0 %v3553, 2
  %v4002 = vpop.permute.xlu0 %4001
  %4003 = vrot.lane.b32.xlu0 %v3554, 2
  %v4004 = vpop.permute.xlu0 %4003
  %4005 = vrot.lane.b32.xlu0 %v3555, 2
  %v4006 = vpop.permute.xlu0 %4005
  %4018 = vrot.lane.b32.xlu0 %v3510, 12
  %v4019 = vpop.permute.xlu0 %4018
  %4020 = vrot.lane.b32.xlu0 %v3511, 12
  %v4021 = vpop.permute.xlu0 %4020
  %4022 = vrot.lane.b32.xlu0 %v3512, 12
  %v4023 = vpop.permute.xlu0 %4022
  %4024 = vrot.lane.b32.xlu0 %v3513, 12
  %v4025 = vpop.permute.xlu0 %4024
  %4026 = vrot.lane.b32.xlu0 %v3514, 12
  %v4027 = vpop.permute.xlu0 %4026
  %4028 = vrot.lane.b32.xlu0 %v3515, 12
  %v4029 = vpop.permute.xlu0 %4028
  %4030 = vrot.lane.b32.xlu0 %v3516, 12
  %v4031 = vpop.permute.xlu0 %4030
  %4032 = vrot.lane.b32.xlu0 %v3556, 12
  %v4033 = vpop.permute.xlu0 %4032
  %4034 = vrot.lane.b32.xlu0 %v3557, 12
  %v4035 = vpop.permute.xlu0 %4034
  %4046 = vrot.lane.b32.xlu0 %v3511, 22
  %v4047 = vpop.permute.xlu0 %4046
  %4048 = vrot.lane.b32.xlu0 %v3512, 22
  %v4049 = vpop.permute.xlu0 %4048
  %4050 = vrot.lane.b32.xlu0 %v3513, 22
  %v4051 = vpop.permute.xlu0 %4050
  %4052 = vrot.lane.b32.xlu0 %v3514, 22
  %v4053 = vpop.permute.xlu0 %4052
  %4054 = vrot.lane.b32.xlu0 %v3515, 22
  %v4055 = vpop.permute.xlu0 %4054
  %4056 = vrot.lane.b32.xlu0 %v3516, 22
  %v4057 = vpop.permute.xlu0 %4056
  %4058 = vrot.lane.b32.xlu0 %v3556, 22
  %v4059 = vpop.permute.xlu0 %4058
  %4060 = vrot.lane.b32.xlu0 %v3557, 22
  %v4061 = vpop.permute.xlu0 %4060
  %4062 = vrot.lane.b32.xlu0 %v3558, 22
  %v4063 = vpop.permute.xlu0 %4062
  %v4073 = vsel %vm453, %v3471, %v3592
  %v4074 = vsel %vm453, %v3472, %v3594
  %v4075 = vsel %vm453, %v3473, %v3596
  %v4076 = vsel %vm453, %v3474, %v3598
  %v4077 = vsel %vm453, %v3475, %v3600
  %v4078 = vsel %vm453, %v3476, %v3602
  %v4079 = vsel %vm453, %v3477, %v3604
  %v4080 = vsel %vm453, %v3478, %v3606
  %v4081 = vsel %vm453, %v3479, %v3608
  %v4082 = vsel %vm2813, %v4073, %v3628
  %v4083 = vsel %vm2813, %v4074, %v3630
  %v4084 = vsel %vm2813, %v4075, %v3632
  %v4085 = vsel %vm2813, %v4076, %v3634
  %v4086 = vsel %vm2813, %v4077, %v3636
  %v4087 = vsel %vm2813, %v4078, %v3638
  %v4088 = vsel %vm2813, %v4079, %v3640
  %v4089 = vsel %vm2813, %v4080, %v3642
  %v4090 = vsel %vm2813, %v4081, %v3644
  %v4091 = vsel %vm2823, %v4082, %v3664
  %v4092 = vsel %vm2823, %v4083, %v3666
  %v4093 = vsel %vm2823, %v4084, %v3668
  %v4094 = vsel %vm2823, %v4085, %v3670
  %v4095 = vsel %vm2823, %v4086, %v3672
  %v4096 = vsel %vm2823, %v4087, %v3674
  %v4097 = vsel %vm2823, %v4088, %v3676
  %v4098 = vsel %vm2823, %v4089, %v3678
  %v4099 = vsel %vm2823, %v4090, %v3680
  %v4100 = vsel %vm2833, %v4091, %v3700
  %v4101 = vsel %vm2833, %v4092, %v3702
  %v4102 = vsel %vm2833, %v4093, %v3704
  %v4103 = vsel %vm2833, %v4094, %v3706
  %v4104 = vsel %vm2833, %v4095, %v3708
  %v4105 = vsel %vm2833, %v4096, %v3710
  %v4106 = vsel %vm2833, %v4097, %v3712
  %v4107 = vsel %vm2833, %v4098, %v3714
  %v4108 = vsel %vm2833, %v4099, %v3716
  %v4109 = vsel %vm2843, %v4100, %v3728
  %v4110 = vsel %vm2843, %v4101, %v3730
  %v4111 = vsel %vm2843, %v4102, %v3732
  %v4112 = vsel %vm2843, %v4103, %v3734
  %v4113 = vsel %vm2843, %v4104, %v3736
  %v4114 = vsel %vm2843, %v4105, %v3738
  %v4115 = vsel %vm2843, %v4106, %v3740
  %v4116 = vsel %vm2843, %v4107, %v3742
  %v4117 = vsel %vm2843, %v4108, %v3744
  %v4118 = vsel %vm2853, %v4109, %v3764
  %v4119 = vsel %vm2853, %v4110, %v3766
  %v4120 = vsel %vm2853, %v4111, %v3768
  %v4121 = vsel %vm2853, %v4112, %v3770
  %v4122 = vsel %vm2853, %v4113, %v3772
  %v4123 = vsel %vm2853, %v4114, %v3774
  %v4124 = vsel %vm2853, %v4115, %v3776
  %v4125 = vsel %vm2853, %v4116, %v3778
  %v4126 = vsel %vm2853, %v4117, %v3780
  %v4127 = vsel %vm2863, %v4118, %v3800
  %v4128 = vsel %vm2863, %v4119, %v3802
  %v4129 = vsel %vm2863, %v4120, %v3804
  %v4130 = vsel %vm2863, %v4121, %v3806
  %v4131 = vsel %vm2863, %v4122, %v3808
  %v4132 = vsel %vm2863, %v4123, %v3810
  %v4133 = vsel %vm2863, %v4124, %v3812
  %v4134 = vsel %vm2863, %v4125, %v3814
  %v4135 = vsel %vm2863, %v4126, %v3816
  %v4136 = vsel %vm2873, %v4127, %v3836
  %v4137 = vsel %vm2873, %v4128, %v3838
  %v4138 = vsel %vm2873, %v4129, %v3840
  %v4139 = vsel %vm2873, %v4130, %v3842
  %v4140 = vsel %vm2873, %v4131, %v3844
  %v4141 = vsel %vm2873, %v4132, %v3846
  %v4142 = vsel %vm2873, %v4133, %v3848
  %v4143 = vsel %vm2873, %v4134, %v3850
  %v4144 = vsel %vm2873, %v4135, %v3852
  %v4145 = vsel %vm2883, %v4136, %v3872
  %v4146 = vsel %vm2883, %v4137, %v3874
  %v4147 = vsel %vm2883, %v4138, %v3876
  %v4148 = vsel %vm2883, %v4139, %v3878
  %v4149 = vsel %vm2883, %v4140, %v3880
  %v4150 = vsel %vm2883, %v4141, %v3882
  %v4151 = vsel %vm2883, %v4142, %v3884
  %v4152 = vsel %vm2883, %v4143, %v3886
  %v4153 = vsel %vm2883, %v4144, %v3888
  %v4154 = vsel %vm2893, %v4145, %v3900
  %v4155 = vsel %vm2893, %v4146, %v3902
  %v4156 = vsel %vm2893, %v4147, %v3904
  %v4157 = vsel %vm2893, %v4148, %v3906
  %v4158 = vsel %vm2893, %v4149, %v3908
  %v4159 = vsel %vm2893, %v4150, %v3910
  %v4160 = vsel %vm2893, %v4151, %v3912
  %v4161 = vsel %vm2893, %v4152, %v3914
  %v4162 = vsel %vm2893, %v4153, %v3916
  %v4163 = vsel %vm2903, %v4154, %v3930
  %v4164 = vsel %vm2903, %v4155, %v3932
  %v4165 = vsel %vm2903, %v4156, %v3934
  %v4166 = vsel %vm2903, %v4157, %v3936
  %v4167 = vsel %vm2903, %v4158, %v3938
  %v4168 = vsel %vm2903, %v4159, %v3940
  %v4169 = vsel %vm2903, %v4160, %v3942
  %v4170 = vsel %vm2903, %v4161, %v3944
  %v4171 = vsel %vm2903, %v4162, %v3946
  %v4172 = vsel %vm2913, %v4163, %v3960
  %v4173 = vsel %vm2913, %v4164, %v3962
  %v4174 = vsel %vm2913, %v4165, %v3964
  %v4175 = vsel %vm2913, %v4166, %v3966
  %v4176 = vsel %vm2913, %v4167, %v3968
  %v4177 = vsel %vm2913, %v4168, %v3970
  %v4178 = vsel %vm2913, %v4169, %v3972
  %v4179 = vsel %vm2913, %v4170, %v3974
  %v4180 = vsel %vm2913, %v4171, %v3976
  %v4181 = vsel %vm2923, %v3960, %v3990
  %v4182 = vsel %vm2923, %v3962, %v3992
  %v4183 = vsel %vm2923, %v3964, %v3994
  %v4184 = vsel %vm2923, %v3966, %v3996
  %v4185 = vsel %vm2923, %v3968, %v3998
  %v4186 = vsel %vm2923, %v3970, %v4000
  %v4187 = vsel %vm2923, %v3972, %v4002
  %v4188 = vsel %vm2923, %v3974, %v4004
  %v4189 = vsel %vm2923, %v3976, %v4006
  %v4190 = vsel %vm2933, %v4181, %v4019
  %v4191 = vsel %vm2933, %v4182, %v4021
  %v4192 = vsel %vm2933, %v4183, %v4023
  %v4193 = vsel %vm2933, %v4184, %v4025
  %v4194 = vsel %vm2933, %v4185, %v4027
  %v4195 = vsel %vm2933, %v4186, %v4029
  %v4196 = vsel %vm2933, %v4187, %v4031
  %v4197 = vsel %vm2933, %v4188, %v4033
  %v4198 = vsel %vm2933, %v4189, %v4035
  %v4199 = vsel %vm2943, %v4190, %v4047
  %v4200 = vsel %vm2943, %v4191, %v4049
  %v4201 = vsel %vm2943, %v4192, %v4051
  %v4202 = vsel %vm2943, %v4193, %v4053
  %v4203 = vsel %vm2943, %v4194, %v4055
  %v4204 = vsel %vm2943, %v4195, %v4057
  %v4205 = vsel %vm2943, %v4196, %v4059
  %v4206 = vsel %vm2943, %v4197, %v4061
  %v4207 = vsel %vm2943, %v4198, %v4063
  %4211 = vrot.lane.b32.xlu0 %v3529, 10
  %v4212 = vpop.permute.xlu0 %4211
  %4213 = vrot.lane.b32.xlu0 %v3530, 10
  %v4214 = vpop.permute.xlu0 %4213
  %4215 = vrot.lane.b32.xlu0 %v3531, 10
  %v4216 = vpop.permute.xlu0 %4215
  %4217 = vrot.lane.b32.xlu0 %v3532, 10
  %v4218 = vpop.permute.xlu0 %4217
  %4219 = vrot.lane.b32.xlu0 %v3533, 10
  %v4220 = vpop.permute.xlu0 %4219
  %4221 = vrot.lane.b32.xlu0 %v3534, 10
  %v4222 = vpop.permute.xlu0 %4221
  %4223 = vrot.lane.b32.xlu0 %v3562, 10
  %v4224 = vpop.permute.xlu0 %4223
  %4225 = vrot.lane.b32.xlu0 %v3563, 10
  %v4226 = vpop.permute.xlu0 %4225
  %4227 = vrot.lane.b32.xlu0 %v3564, 10
  %v4228 = vpop.permute.xlu0 %4227
  %4241 = vrot.lane.b32.xlu0 %v3538, 20
  %v4242 = vpop.permute.xlu0 %4241
  %4243 = vrot.lane.b32.xlu0 %v3539, 20
  %v4244 = vpop.permute.xlu0 %4243
  %4245 = vrot.lane.b32.xlu0 %v3540, 20
  %v4246 = vpop.permute.xlu0 %4245
  %4247 = vrot.lane.b32.xlu0 %v3541, 20
  %v4248 = vpop.permute.xlu0 %4247
  %4249 = vrot.lane.b32.xlu0 %v3542, 20
  %v4250 = vpop.permute.xlu0 %4249
  %4251 = vrot.lane.b32.xlu0 %v3543, 20
  %v4252 = vpop.permute.xlu0 %4251
  %4253 = vrot.lane.b32.xlu0 %v3565, 20
  %v4254 = vpop.permute.xlu0 %4253
  %4255 = vrot.lane.b32.xlu0 %v3566, 20
  %v4256 = vpop.permute.xlu0 %4255
  %4257 = vrot.lane.b32.xlu0 %v3567, 20
  %v4258 = vpop.permute.xlu0 %4257
  %4270 = vrot.lane.b32.xlu0 %v3476, 30
  %v4271 = vpop.permute.xlu0 %4270
  %4272 = vrot.lane.b32.xlu0 %v3477, 30
  %v4273 = vpop.permute.xlu0 %4272
  %4274 = vrot.lane.b32.xlu0 %v3478, 30
  %v4275 = vpop.permute.xlu0 %4274
  %4276 = vrot.lane.b32.xlu0 %v3479, 30
  %v4277 = vpop.permute.xlu0 %4276
  %4278 = vrot.lane.b32.xlu0 %v3544, 30
  %v4279 = vpop.permute.xlu0 %4278
  %4280 = vrot.lane.b32.xlu0 %v3545, 30
  %v4281 = vpop.permute.xlu0 %4280
  %4282 = vrot.lane.b32.xlu0 %v3546, 30
  %v4283 = vpop.permute.xlu0 %4282
  %4284 = vrot.lane.b32.xlu0 %v3568, 30
  %v4285 = vpop.permute.xlu0 %4284
  %4286 = vrot.lane.b32.xlu0 %v3569, 30
  %v4287 = vpop.permute.xlu0 %4286
  %4298 = vrot.lane.b32.xlu0 %v3477, 40
  %v4299 = vpop.permute.xlu0 %4298
  %4300 = vrot.lane.b32.xlu0 %v3478, 40
  %v4301 = vpop.permute.xlu0 %4300
  %4302 = vrot.lane.b32.xlu0 %v3479, 40
  %v4303 = vpop.permute.xlu0 %4302
  %4304 = vrot.lane.b32.xlu0 %v3544, 40
  %v4305 = vpop.permute.xlu0 %4304
  %4306 = vrot.lane.b32.xlu0 %v3545, 40
  %v4307 = vpop.permute.xlu0 %4306
  %4308 = vrot.lane.b32.xlu0 %v3546, 40
  %v4309 = vpop.permute.xlu0 %4308
  %4310 = vrot.lane.b32.xlu0 %v3568, 40
  %v4311 = vpop.permute.xlu0 %4310
  %4312 = vrot.lane.b32.xlu0 %v3569, 40
  %v4313 = vpop.permute.xlu0 %4312
  %4314 = vrot.lane.b32.xlu0 %v3570, 40
  %v4315 = vpop.permute.xlu0 %4314
  %4328 = vrot.lane.b32.xlu0 %v3486, 50
  %v4329 = vpop.permute.xlu0 %4328
  %4330 = vrot.lane.b32.xlu0 %v3487, 50
  %v4331 = vpop.permute.xlu0 %4330
  %4332 = vrot.lane.b32.xlu0 %v3488, 50
  %v4333 = vpop.permute.xlu0 %4332
  %4334 = vrot.lane.b32.xlu0 %v3547, 50
  %v4335 = vpop.permute.xlu0 %4334
  %4336 = vrot.lane.b32.xlu0 %v3548, 50
  %v4337 = vpop.permute.xlu0 %4336
  %4338 = vrot.lane.b32.xlu0 %v3549, 50
  %v4339 = vpop.permute.xlu0 %4338
  %4340 = vrot.lane.b32.xlu0 %v3571, 50
  %v4341 = vpop.permute.xlu0 %4340
  %4342 = vrot.lane.b32.xlu0 %v3572, 50
  %v4343 = vpop.permute.xlu0 %4342
  %4344 = vrot.lane.b32.xlu0 %v3573, 50
  %v4345 = vpop.permute.xlu0 %4344
  %4358 = vrot.lane.b32.xlu0 %v3495, 60
  %v4359 = vpop.permute.xlu0 %4358
  %4360 = vrot.lane.b32.xlu0 %v3496, 60
  %v4361 = vpop.permute.xlu0 %4360
  %4362 = vrot.lane.b32.xlu0 %v3497, 60
  %v4363 = vpop.permute.xlu0 %4362
  %4364 = vrot.lane.b32.xlu0 %v3550, 60
  %v4365 = vpop.permute.xlu0 %4364
  %4366 = vrot.lane.b32.xlu0 %v3551, 60
  %v4367 = vpop.permute.xlu0 %4366
  %4368 = vrot.lane.b32.xlu0 %v3552, 60
  %v4369 = vpop.permute.xlu0 %4368
  %4370 = vrot.lane.b32.xlu0 %v3574, 60
  %v4371 = vpop.permute.xlu0 %4370
  %4372 = vrot.lane.b32.xlu0 %v3575, 60
  %v4373 = vpop.permute.xlu0 %4372
  %4374 = vrot.lane.b32.xlu0 %v3576, 60
  %v4375 = vpop.permute.xlu0 %4374
  %4388 = vrot.lane.b32.xlu0 %v3504, 70
  %v4389 = vpop.permute.xlu0 %4388
  %4390 = vrot.lane.b32.xlu0 %v3505, 70
  %v4391 = vpop.permute.xlu0 %4390
  %4392 = vrot.lane.b32.xlu0 %v3506, 70
  %v4393 = vpop.permute.xlu0 %4392
  %4394 = vrot.lane.b32.xlu0 %v3553, 70
  %v4395 = vpop.permute.xlu0 %4394
  %4396 = vrot.lane.b32.xlu0 %v3554, 70
  %v4397 = vpop.permute.xlu0 %4396
  %4398 = vrot.lane.b32.xlu0 %v3555, 70
  %v4399 = vpop.permute.xlu0 %4398
  %4400 = vrot.lane.b32.xlu0 %v3577, 70
  %v4401 = vpop.permute.xlu0 %4400
  %4402 = vrot.lane.b32.xlu0 %v3578, 70
  %v4403 = vpop.permute.xlu0 %4402
  %4404 = vrot.lane.b32.xlu0 %v3579, 70
  %v4405 = vpop.permute.xlu0 %4404
  %4417 = vrot.lane.b32.xlu0 %v3513, 80
  %v4418 = vpop.permute.xlu0 %4417
  %4419 = vrot.lane.b32.xlu0 %v3514, 80
  %v4420 = vpop.permute.xlu0 %4419
  %4421 = vrot.lane.b32.xlu0 %v3515, 80
  %v4422 = vpop.permute.xlu0 %4421
  %4423 = vrot.lane.b32.xlu0 %v3516, 80
  %v4424 = vpop.permute.xlu0 %4423
  %4425 = vrot.lane.b32.xlu0 %v3556, 80
  %v4426 = vpop.permute.xlu0 %4425
  %4427 = vrot.lane.b32.xlu0 %v3557, 80
  %v4428 = vpop.permute.xlu0 %4427
  %4429 = vrot.lane.b32.xlu0 %v3558, 80
  %v4430 = vpop.permute.xlu0 %4429
  %4431 = vrot.lane.b32.xlu0 %v3580, 80
  %v4432 = vpop.permute.xlu0 %4431
  %4433 = vrot.lane.b32.xlu0 %v3581, 80
  %v4434 = vpop.permute.xlu0 %4433
  %v4444 = vsel %vm453, %v3520, %v4212
  %v4445 = vsel %vm453, %v3521, %v4214
  %v4446 = vsel %vm453, %v3522, %v4216
  %v4447 = vsel %vm453, %v3523, %v4218
  %v4448 = vsel %vm453, %v3524, %v4220
  %v4449 = vsel %vm453, %v3525, %v4222
  %v4450 = vsel %vm453, %v3559, %v4224
  %v4451 = vsel %vm453, %v3560, %v4226
  %v4452 = vsel %vm453, %v3561, %v4228
  %v4453 = vsel %vm2813, %v4444, %v4242
  %v4454 = vsel %vm2813, %v4445, %v4244
  %v4455 = vsel %vm2813, %v4446, %v4246
  %v4456 = vsel %vm2813, %v4447, %v4248
  %v4457 = vsel %vm2813, %v4448, %v4250
  %v4458 = vsel %vm2813, %v4449, %v4252
  %v4459 = vsel %vm2813, %v4450, %v4254
  %v4460 = vsel %vm2813, %v4451, %v4256
  %v4461 = vsel %vm2813, %v4452, %v4258
  %v4462 = vsel %vm2823, %v4453, %v4271
  %v4463 = vsel %vm2823, %v4454, %v4273
  %v4464 = vsel %vm2823, %v4455, %v4275
  %v4465 = vsel %vm2823, %v4456, %v4277
  %v4466 = vsel %vm2823, %v4457, %v4279
  %v4467 = vsel %vm2823, %v4458, %v4281
  %v4468 = vsel %vm2823, %v4459, %v4283
  %v4469 = vsel %vm2823, %v4460, %v4285
  %v4470 = vsel %vm2823, %v4461, %v4287
  %v4471 = vsel %vm2833, %v4462, %v4299
  %v4472 = vsel %vm2833, %v4463, %v4301
  %v4473 = vsel %vm2833, %v4464, %v4303
  %v4474 = vsel %vm2833, %v4465, %v4305
  %v4475 = vsel %vm2833, %v4466, %v4307
  %v4476 = vsel %vm2833, %v4467, %v4309
  %v4477 = vsel %vm2833, %v4468, %v4311
  %v4478 = vsel %vm2833, %v4469, %v4313
  %v4479 = vsel %vm2833, %v4470, %v4315
  %v4480 = vsel %vm2843, %v4471, %v4329
  %v4481 = vsel %vm2843, %v4472, %v4331
  %v4482 = vsel %vm2843, %v4473, %v4333
  %v4483 = vsel %vm2843, %v4474, %v4335
  %v4484 = vsel %vm2843, %v4475, %v4337
  %v4485 = vsel %vm2843, %v4476, %v4339
  %v4486 = vsel %vm2843, %v4477, %v4341
  %v4487 = vsel %vm2843, %v4478, %v4343
  %v4488 = vsel %vm2843, %v4479, %v4345
  %v4489 = vsel %vm2853, %v4480, %v4359
  %v4490 = vsel %vm2853, %v4481, %v4361
  %v4491 = vsel %vm2853, %v4482, %v4363
  %v4492 = vsel %vm2853, %v4483, %v4365
  %v4493 = vsel %vm2853, %v4484, %v4367
  %v4494 = vsel %vm2853, %v4485, %v4369
  %v4495 = vsel %vm2853, %v4486, %v4371
  %v4496 = vsel %vm2853, %v4487, %v4373
  %v4497 = vsel %vm2853, %v4488, %v4375
  %v4498 = vsel %vm2863, %v4489, %v4389
  %v4499 = vsel %vm2863, %v4490, %v4391
  %v4500 = vsel %vm2863, %v4491, %v4393
  %v4501 = vsel %vm2863, %v4492, %v4395
  %v4502 = vsel %vm2863, %v4493, %v4397
  %v4503 = vsel %vm2863, %v4494, %v4399
  %v4504 = vsel %vm2863, %v4495, %v4401
  %v4505 = vsel %vm2863, %v4496, %v4403
  %v4506 = vsel %vm2863, %v4497, %v4405
  %v4507 = vsel %vm2873, %v4498, %v4418
  %v4508 = vsel %vm2873, %v4499, %v4420
  %v4509 = vsel %vm2873, %v4500, %v4422
  %v4510 = vsel %vm2873, %v4501, %v4424
  %v4511 = vsel %vm2873, %v4502, %v4426
  %v4512 = vsel %vm2873, %v4503, %v4428
  %v4513 = vsel %vm2873, %v4504, %v4430
  %v4514 = vsel %vm2873, %v4505, %v4432
  %v4515 = vsel %vm2873, %v4506, %v4434
  %4525 = vrot.lane.b32.xlu0 %v4507, 32
  %v4526 = vpop.permute.xlu0 %4525
  %4527 = vrot.lane.b32.xlu0 %v4508, 32
  %v4528 = vpop.permute.xlu0 %4527
  %4529 = vrot.lane.b32.xlu0 %v4509, 32
  %v4530 = vpop.permute.xlu0 %4529
  %4531 = vrot.lane.b32.xlu0 %v4510, 32
  %v4532 = vpop.permute.xlu0 %4531
  %4533 = vrot.lane.b32.xlu0 %v4511, 32
  %v4534 = vpop.permute.xlu0 %4533
  %4535 = vrot.lane.b32.xlu0 %v4512, 32
  %v4536 = vpop.permute.xlu0 %4535
  %4537 = vrot.lane.b32.xlu0 %v4513, 32
  %v4538 = vpop.permute.xlu0 %4537
  %4539 = vrot.lane.b32.xlu0 %v4514, 32
  %v4540 = vpop.permute.xlu0 %4539
  %4541 = vrot.lane.b32.xlu0 %v4515, 32
  %v4542 = vpop.permute.xlu0 %4541
  %v4552 = vsel %vm3297, %v4199, %v4526
  %v4553 = vsel %vm3297, %v4200, %v4528
  %v4554 = vsel %vm3297, %v4201, %v4530
  %v4555 = vsel %vm3297, %v4202, %v4532
  %v4556 = vsel %vm3297, %v4203, %v4534
  %v4557 = vsel %vm3297, %v4204, %v4536
  %v4558 = vsel %vm3297, %v4205, %v4538
  %v4559 = vsel %vm3297, %v4206, %v4540
  %v4560 = vsel %vm3297, %v4207, %v4542
  %v4562 = vsel %vm3311, %v4552, 0
  %v4565 = vsel %vm3311, %v4553, 0
  %v4568 = vsel %vm3311, %v4554, 0
  %v4571 = vsel %vm3311, %v4555, 0
  %v4574 = vsel %vm3311, %v4556, 0
  %v4577 = vsel %vm3311, %v4557, 0
  %v4580 = vsel %vm3311, %v4558, 0
  %v4583 = vsel %vm3311, %v4559, 0
  %v4586 = vsel %vm3311, %v4560, 0
  %4588 = vmatprep.subr.mxu0 0.0
  %4589 = vmatpush1.msra.mxu0 %v2169
  %4590 = vmatprep.subr.mxu0 0.0
  %4591 = vmatpush1.msra.mxu0 %v2170
  %4592 = vmatprep.subr.mxu0 0.0
  %4593 = vmatpush1.msra.mxu0 %v2171
  %4594 = vmatprep.subr.mxu0 0.0
  %4595 = vmatpush1.msra.mxu0 %v2172
  %4596 = vmatprep.subr.mxu0 0.0
  %4597 = vmatpush1.msra.mxu0 %v2173
  %4598 = vmatprep.subr.mxu0 0.0
  %4599 = vmatpush1.msra.mxu0 %v2174
  %4600 = vmatprep.subr.mxu0 0.0
  %4601 = vmatpush1.msra.mxu0 %v2175
  %4602 = vmatprep.subr.mxu0 0.0
  %4603 = vmatpush1.msra.mxu0 %v2176
  %4604 = vmatprep.subr.mxu0 0.0
  %4605 = vmatpush1.msra.mxu0 %v2177
  %4606 = vmatprep.subr.mxu0 0.0
  %4607 = vmatpush1.msra.mxu0 %v2178
  %4608 = vmatprep.subr.mxu0 0.0
  %4609 = vmatpush1.msra.mxu0 %v2179
  %4610 = vmatprep.subr.mxu0 0.0
  %4611 = vmatpush1.msra.mxu0 %v2180
  %4612 = vmatprep.subr.mxu0 0.0
  %4613 = vmatpush1.msra.mxu0 %v2181
  %4614 = vmatprep.subr.mxu0 0.0
  %4615 = vmatpush1.msra.mxu0 %v2182
  %4616 = vmatprep.subr.mxu0 0.0
  %4617 = vmatpush1.msra.mxu0 %v2183
  %4618 = vmatprep.subr.mxu0 0.0
  %4619 = vmatpush1.msra.mxu0 %v2184
  %4620 = vmatprep.subr.mxu0 0.0
  %4621 = vmatpush1.msra.mxu0 %v2185
  %4622 = vmatprep.subr.mxu0 0.0
  %4623 = vmatpush1.msra.mxu0 %v2186
  %4624 = vmatprep.subr.mxu0 0.0
  %4625 = vmatpush1.msra.mxu0 %v2187
  %4626 = vmatprep.subr.mxu0 0.0
  %4627 = vmatpush1.msra.mxu0 %v2188
  %4628 = vmatprep.subr.mxu0 0.0
  %4629 = vmatpush1.msra.mxu0 %v2189
  %4630 = vmatprep.subr.mxu0 0.0
  %4631 = vmatpush1.msra.mxu0 %v2190
  %4632 = vmatprep.subr.mxu0 0.0
  %4633 = vmatpush1.msra.mxu0 %v2191
  %4634 = vmatprep.subr.mxu0 0.0
  %4635 = vmatpush1.msra.mxu0 %v2192
  %4636 = vmatprep.subr.mxu0 0.0
  %4637 = vmatpush1.msra.mxu0 %v2193
  %4638 = vmatprep.subr.mxu0 0.0
  %4639 = vmatpush1.msra.mxu0 %v2194
  %4640 = vmatprep.subr.mxu0 0.0
  %4641 = vmatpush1.msra.mxu0 %v2195
  %4642 = vmatprep.subr.mxu0 0.0
  %4643 = vmatpush1.msra.mxu0 %v2196
  %4644 = vmatprep.subr.mxu0 0.0
  %4645 = vmatpush1.msra.mxu0 %v2197
  %4646 = vmatprep.subr.mxu0 0.0
  %4647 = vmatpush1.msra.mxu0 %v2198
  %4648 = vmatprep.subr.mxu0 0.0
  %4649 = vmatpush1.msra.mxu0 %v2199
  %4650 = vmatprep.subr.mxu0 0.0
  %4651 = vmatpush1.msra.mxu0 %v3341
  %4652 = vmatprep.mubr.f32.mxu0 %v4562
  %4653 = vmatmul.mubr.f32.gmra.mrb[0].mxu0 %v4172
  %v4654 = vpop.f32.mrb[0].mxu0
  %v4655 = vadd.f32 %v3310, %v4654
  %v4656 = vpop.f32.mrb[0].mxu0
  %4657 = vmatprep.mubr.f32.mxu0 %v4565
  %4658 = vmatmul.mubr.f32.gmra.mrb[0].mxu0 %v4173
  %v4659 = vpop.f32.mrb[0].mxu0
  %v4660 = vadd.f32 %v3310, %v4659
  %v4661 = vpop.f32.mrb[0].mxu0
  %4662 = vmatprep.mubr.f32.mxu0 %v4568
  %4663 = vmatmul.mubr.f32.gmra.mrb[0].mxu0 %v4174
  %v4664 = vpop.f32.mrb[0].mxu0
  %v4665 = vadd.f32 %v3310, %v4664
  %v4666 = vpop.f32.mrb[0].mxu0
  %4667 = vmatprep.mubr.f32.mxu0 %v4571
  %4668 = vmatmul.mubr.f32.gmra.mrb[0].mxu0 %v4175
  %v4669 = vpop.f32.mrb[0].mxu0
  %v4670 = vadd.f32 %v3310, %v4669
  %v4671 = vpop.f32.mrb[0].mxu0
  %4672 = vmatprep.mubr.f32.mxu0 %v4574
  %4673 = vmatmul.mubr.f32.gmra.mrb[0].mxu0 %v4176
  %v4674 = vpop.f32.mrb[0].mxu0
  %v4675 = vadd.f32 %v3310, %v4674
  %v4676 = vpop.f32.mrb[0].mxu0
  %4677 = vmatprep.mubr.f32.mxu0 %v4577
  %4678 = vmatmul.mubr.f32.gmra.mrb[0].mxu0 %v4177
  %v4679 = vpop.f32.mrb[0].mxu0
  %v4680 = vadd.f32 %v3310, %v4679
  %v4681 = vpop.f32.mrb[0].mxu0
  %4682 = vmatprep.mubr.f32.mxu0 %v4580
  %4683 = vmatmul.mubr.f32.gmra.mrb[0].mxu0 %v4178
  %v4684 = vpop.f32.mrb[0].mxu0
  %v4685 = vadd.f32 %v3310, %v4684
  %v4686 = vpop.f32.mrb[0].mxu0
  %4687 = vmatprep.mubr.f32.mxu0 %v4583
  %4688 = vmatmul.mubr.f32.gmra.mrb[0].mxu0 %v4179
  %v4689 = vpop.f32.mrb[0].mxu0
  %v4690 = vadd.f32 %v3310, %v4689
  %v4691 = vpop.f32.mrb[0].mxu0
  %4692 = vmatprep.mubr.f32.mxu0 %v4586
  %4693 = vmatmul.mubr.f32.gmra.mrb[0].mxu0 %v4180
  %v4694 = vpop.f32.mrb[0].mxu0
  %v4695 = vadd.f32 %v3310, %v4694
  %v4696 = vpop.f32.mrb[0].mxu0
  %4697 = vdwg.mxu0
  %v4698 = vmax.f32 %v4655, 0.0
  %v4699 = vmax.f32 %v4660, 0.0
  %v4700 = vmax.f32 %v4665, 0.0
  %v4701 = vmax.f32 %v4670, 0.0
  %v4702 = vmax.f32 %v4675, 0.0
  %v4703 = vmax.f32 %v4680, 0.0
  %v4704 = vmax.f32 %v4685, 0.0
  %v4705 = vmax.f32 %v4690, 0.0
  %v4706 = vmax.f32 %v4695, 0.0
  %4707 = vst.msk [vmem:[#allocation4 + $0x48] sm:$0xff] %vm453, %v4698
  %4708 = vst.msk [vmem:[#allocation4 + $0x50] sm:$0xff] %vm453, %v4699
  %4709 = vst.msk [vmem:[#allocation4 + $0x58] sm:$0xff] %vm453, %v4700
  %4710 = vst.msk [vmem:[#allocation4 + $0x60] sm:$0xff] %vm453, %v4701
  %4711 = vst.msk [vmem:[#allocation4 + $0x68] sm:$0xff] %vm453, %v4702
  %4712 = vst.msk [vmem:[#allocation4 + $0x70] sm:$0xff] %vm453, %v4703
  %4713 = vst.msk [vmem:[#allocation4 + $0x78] sm:$0xff] %vm453, %v4704
  %4714 = vst.msk [vmem:[#allocation4 + $0x80] sm:$0xff] %vm453, %v4705
  %4715 = vst.msk [vmem:[#allocation4 + $0x88] sm:$0xff] %vm453, %v4706
  %v4716 = vld [vmem:[#allocation3 + $0x90] sm:$0xff]
  %v4717 = vld [vmem:[#allocation3 + $0x98] sm:$0xff]
  %v4718 = vld [vmem:[#allocation3 + $0xa0] sm:$0xff]
  %v4719 = vld [vmem:[#allocation3 + $0xa8] sm:$0xff]
  %v4720 = vld [vmem:[#allocation3 + $0xb0] sm:$0xff]
  %v4721 = vld [vmem:[#allocation3 + $0xb8] sm:$0xff]
  %v4722 = vld [vmem:[#allocation3 + $0xc0] sm:$0xff]
  %v4723 = vld [vmem:[#allocation3 + $0xc8] sm:$0xff]
  %v4724 = vld [vmem:[#allocation3 + $0xd0] sm:$0xff]
  %v4725 = vld [vmem:[#allocation3 + $0x91] sm:$0xff]
  %v4726 = vld [vmem:[#allocation3 + $0x99] sm:$0xff]
  %v4727 = vld [vmem:[#allocation3 + $0xa1] sm:$0xff]
  %v4728 = vld [vmem:[#allocation3 + $0xa9] sm:$0xff]
  %v4729 = vld [vmem:[#allocation3 + $0xb1] sm:$0xff]
  %v4730 = vld [vmem:[#allocation3 + $0xb9] sm:$0xff]
  %v4731 = vld [vmem:[#allocation3 + $0xc1] sm:$0xff]
  %v4732 = vld [vmem:[#allocation3 + $0xc9] sm:$0xff]
  %v4733 = vld [vmem:[#allocation3 + $0xd1] sm:$0xff]
  %v4734 = vld [vmem:[#allocation3 + $0x92] sm:$0xff]
  %v4735 = vld [vmem:[#allocation3 + $0x9a] sm:$0xff]
  %v4736 = vld [vmem:[#allocation3 + $0xa2] sm:$0xff]
  %v4737 = vld [vmem:[#allocation3 + $0xaa] sm:$0xff]
  %v4738 = vld [vmem:[#allocation3 + $0xb2] sm:$0xff]
  %v4739 = vld [vmem:[#allocation3 + $0xba] sm:$0xff]
  %v4740 = vld [vmem:[#allocation3 + $0xc2] sm:$0xff]
  %v4741 = vld [vmem:[#allocation3 + $0xca] sm:$0xff]
  %v4742 = vld [vmem:[#allocation3 + $0xd2] sm:$0xff]
  %v4743 = vld [vmem:[#allocation3 + $0x93] sm:$0xff]
  %v4744 = vld [vmem:[#allocation3 + $0x9b] sm:$0xff]
  %v4745 = vld [vmem:[#allocation3 + $0xa3] sm:$0xff]
  %v4746 = vld [vmem:[#allocation3 + $0xab] sm:$0xff]
  %v4747 = vld [vmem:[#allocation3 + $0xb3] sm:$0xff]
  %v4748 = vld [vmem:[#allocation3 + $0xbb] sm:$0xff]
  %v4749 = vld [vmem:[#allocation3 + $0xc3] sm:$0xff]
  %v4750 = vld [vmem:[#allocation3 + $0xcb] sm:$0xff]
  %v4751 = vld [vmem:[#allocation3 + $0xd3] sm:$0xff]
  %v4752 = vld [vmem:[#allocation3 + $0x94] sm:$0xff]
  %v4753 = vld [vmem:[#allocation3 + $0x9c] sm:$0xff]
  %v4754 = vld [vmem:[#allocation3 + $0xa4] sm:$0xff]
  %v4755 = vld [vmem:[#allocation3 + $0xac] sm:$0xff]
  %v4756 = vld [vmem:[#allocation3 + $0xb4] sm:$0xff]
  %v4757 = vld [vmem:[#allocation3 + $0xbc] sm:$0xff]
  %v4758 = vld [vmem:[#allocation3 + $0xc4] sm:$0xff]
  %v4759 = vld [vmem:[#allocation3 + $0xcc] sm:$0xff]
  %v4760 = vld [vmem:[#allocation3 + $0xd4] sm:$0xff]
  %v4761 = vld [vmem:[#allocation3 + $0xdc] sm:$0xff]
  %v4762 = vld [vmem:[#allocation3 + $0x9d] sm:$0xff]
  %v4763 = vld [vmem:[#allocation3 + $0xa5] sm:$0xff]
  %v4764 = vld [vmem:[#allocation3 + $0xad] sm:$0xff]
  %v4765 = vld [vmem:[#allocation3 + $0xb5] sm:$0xff]
  %v4766 = vld [vmem:[#allocation3 + $0xbd] sm:$0xff]
  %v4767 = vld [vmem:[#allocation3 + $0xc5] sm:$0xff]
  %v4768 = vld [vmem:[#allocation3 + $0xcd] sm:$0xff]
  %v4769 = vld [vmem:[#allocation3 + $0xd5] sm:$0xff]
  %v4770 = vld [vmem:[#allocation3 + $0xdd] sm:$0xff]
  %v4771 = vld [vmem:[#allocation3 + $0x9e] sm:$0xff]
  %v4772 = vld [vmem:[#allocation3 + $0xa6] sm:$0xff]
  %v4773 = vld [vmem:[#allocation3 + $0xae] sm:$0xff]
  %v4774 = vld [vmem:[#allocation3 + $0xb6] sm:$0xff]
  %v4775 = vld [vmem:[#allocation3 + $0xbe] sm:$0xff]
  %v4776 = vld [vmem:[#allocation3 + $0xc6] sm:$0xff]
  %v4777 = vld [vmem:[#allocation3 + $0xce] sm:$0xff]
  %v4778 = vld [vmem:[#allocation3 + $0xd6] sm:$0xff]
  %v4779 = vld [vmem:[#allocation3 + $0xde] sm:$0xff]
  %v4780 = vld [vmem:[#allocation3 + $0x9f] sm:$0xff]
  %v4781 = vld [vmem:[#allocation3 + $0xa7] sm:$0xff]
  %v4782 = vld [vmem:[#allocation3 + $0xaf] sm:$0xff]
  %v4783 = vld [vmem:[#allocation3 + $0xb7] sm:$0xff]
  %v4784 = vld [vmem:[#allocation3 + $0xbf] sm:$0xff]
  %v4785 = vld [vmem:[#allocation3 + $0xc7] sm:$0xff]
  %v4786 = vld [vmem:[#allocation3 + $0xcf] sm:$0xff]
  %v4787 = vld [vmem:[#allocation3 + $0xd7] sm:$0xff]
  %v4788 = vld [vmem:[#allocation3 + $0xdf] sm:$0xff]
  %v4789 = vld [vmem:[#allocation3 + $0xd8] sm:$0xff]
  %v4790 = vld [vmem:[#allocation3 + $0xe0] sm:$0xff]
  %v4791 = vld [vmem:[#allocation3 + $0xe8] sm:$0xff]
  %v4792 = vld [vmem:[#allocation3 + $0xd9] sm:$0xff]
  %v4793 = vld [vmem:[#allocation3 + $0xe1] sm:$0xff]
  %v4794 = vld [vmem:[#allocation3 + $0xe9] sm:$0xff]
  %v4795 = vld [vmem:[#allocation3 + $0xda] sm:$0xff]
  %v4796 = vld [vmem:[#allocation3 + $0xe2] sm:$0xff]
  %v4797 = vld [vmem:[#allocation3 + $0xea] sm:$0xff]
  %v4798 = vld [vmem:[#allocation3 + $0xdb] sm:$0xff]
  %v4799 = vld [vmem:[#allocation3 + $0xe3] sm:$0xff]
  %v4800 = vld [vmem:[#allocation3 + $0xeb] sm:$0xff]
  %v4801 = vld [vmem:[#allocation3 + $0xe4] sm:$0xff]
  %v4802 = vld [vmem:[#allocation3 + $0xec] sm:$0xff]
  %v4803 = vld [vmem:[#allocation3 + $0xf4] sm:$0xff]
  %v4804 = vld [vmem:[#allocation3 + $0xe5] sm:$0xff]
  %v4805 = vld [vmem:[#allocation3 + $0xed] sm:$0xff]
  %v4806 = vld [vmem:[#allocation3 + $0xf5] sm:$0xff]
  %v4807 = vld [vmem:[#allocation3 + $0xe6] sm:$0xff]
  %v4808 = vld [vmem:[#allocation3 + $0xee] sm:$0xff]
  %v4809 = vld [vmem:[#allocation3 + $0xf6] sm:$0xff]
  %v4810 = vld [vmem:[#allocation3 + $0xe7] sm:$0xff]
  %v4811 = vld [vmem:[#allocation3 + $0xef] sm:$0xff]
  %v4812 = vld [vmem:[#allocation3 + $0xf7] sm:$0xff]
  %v4813 = vld [vmem:[#allocation3 + $0xf0] sm:$0xff]
  %v4814 = vld [vmem:[#allocation3 + $0xf8] sm:$0xff]
  %v4815 = vld [vmem:[#allocation3 + $0x100] sm:$0xff]
  %v4816 = vld [vmem:[#allocation3 + $0xf1] sm:$0xff]
  %v4817 = vld [vmem:[#allocation3 + $0xf9] sm:$0xff]
  %v4818 = vld [vmem:[#allocation3 + $0x101] sm:$0xff]
  %v4819 = vld [vmem:[#allocation3 + $0xf2] sm:$0xff]
  %v4820 = vld [vmem:[#allocation3 + $0xfa] sm:$0xff]
  %v4821 = vld [vmem:[#allocation3 + $0x102] sm:$0xff]
  %v4822 = vld [vmem:[#allocation3 + $0xf3] sm:$0xff]
  %v4823 = vld [vmem:[#allocation3 + $0xfb] sm:$0xff]
  %v4824 = vld [vmem:[#allocation3 + $0x103] sm:$0xff]
  %v4825 = vld [vmem:[#allocation3 + $0xfc] sm:$0xff]
  %v4826 = vld [vmem:[#allocation3 + $0x104] sm:$0xff]
  %4836 = vrot.lane.b32.xlu0 %v4725, 10
  %v4837 = vpop.permute.xlu0 %4836
  %4838 = vrot.lane.b32.xlu0 %v4726, 10
  %v4839 = vpop.permute.xlu0 %4838
  %4840 = vrot.lane.b32.xlu0 %v4727, 10
  %v4841 = vpop.permute.xlu0 %4840
  %4842 = vrot.lane.b32.xlu0 %v4728, 10
  %v4843 = vpop.permute.xlu0 %4842
  %4844 = vrot.lane.b32.xlu0 %v4729, 10
  %v4845 = vpop.permute.xlu0 %4844
  %4846 = vrot.lane.b32.xlu0 %v4730, 10
  %v4847 = vpop.permute.xlu0 %4846
  %4848 = vrot.lane.b32.xlu0 %v4731, 10
  %v4849 = vpop.permute.xlu0 %4848
  %4850 = vrot.lane.b32.xlu0 %v4732, 10
  %v4851 = vpop.permute.xlu0 %4850
  %4852 = vrot.lane.b32.xlu0 %v4733, 10
  %v4853 = vpop.permute.xlu0 %4852
  %4872 = vrot.lane.b32.xlu0 %v4734, 20
  %v4873 = vpop.permute.xlu0 %4872
  %4874 = vrot.lane.b32.xlu0 %v4735, 20
  %v4875 = vpop.permute.xlu0 %4874
  %4876 = vrot.lane.b32.xlu0 %v4736, 20
  %v4877 = vpop.permute.xlu0 %4876
  %4878 = vrot.lane.b32.xlu0 %v4737, 20
  %v4879 = vpop.permute.xlu0 %4878
  %4880 = vrot.lane.b32.xlu0 %v4738, 20
  %v4881 = vpop.permute.xlu0 %4880
  %4882 = vrot.lane.b32.xlu0 %v4739, 20
  %v4883 = vpop.permute.xlu0 %4882
  %4884 = vrot.lane.b32.xlu0 %v4740, 20
  %v4885 = vpop.permute.xlu0 %4884
  %4886 = vrot.lane.b32.xlu0 %v4741, 20
  %v4887 = vpop.permute.xlu0 %4886
  %4888 = vrot.lane.b32.xlu0 %v4742, 20
  %v4889 = vpop.permute.xlu0 %4888
  %4908 = vrot.lane.b32.xlu0 %v4743, 30
  %v4909 = vpop.permute.xlu0 %4908
  %4910 = vrot.lane.b32.xlu0 %v4744, 30
  %v4911 = vpop.permute.xlu0 %4910
  %4912 = vrot.lane.b32.xlu0 %v4745, 30
  %v4913 = vpop.permute.xlu0 %4912
  %4914 = vrot.lane.b32.xlu0 %v4746, 30
  %v4915 = vpop.permute.xlu0 %4914
  %4916 = vrot.lane.b32.xlu0 %v4747, 30
  %v4917 = vpop.permute.xlu0 %4916
  %4918 = vrot.lane.b32.xlu0 %v4748, 30
  %v4919 = vpop.permute.xlu0 %4918
  %4920 = vrot.lane.b32.xlu0 %v4749, 30
  %v4921 = vpop.permute.xlu0 %4920
  %4922 = vrot.lane.b32.xlu0 %v4750, 30
  %v4923 = vpop.permute.xlu0 %4922
  %4924 = vrot.lane.b32.xlu0 %v4751, 30
  %v4925 = vpop.permute.xlu0 %4924
  %4944 = vrot.lane.b32.xlu0 %v4752, 40
  %v4945 = vpop.permute.xlu0 %4944
  %4946 = vrot.lane.b32.xlu0 %v4753, 40
  %v4947 = vpop.permute.xlu0 %4946
  %4948 = vrot.lane.b32.xlu0 %v4754, 40
  %v4949 = vpop.permute.xlu0 %4948
  %4950 = vrot.lane.b32.xlu0 %v4755, 40
  %v4951 = vpop.permute.xlu0 %4950
  %4952 = vrot.lane.b32.xlu0 %v4756, 40
  %v4953 = vpop.permute.xlu0 %4952
  %4954 = vrot.lane.b32.xlu0 %v4757, 40
  %v4955 = vpop.permute.xlu0 %4954
  %4956 = vrot.lane.b32.xlu0 %v4758, 40
  %v4957 = vpop.permute.xlu0 %4956
  %4958 = vrot.lane.b32.xlu0 %v4759, 40
  %v4959 = vpop.permute.xlu0 %4958
  %4960 = vrot.lane.b32.xlu0 %v4760, 40
  %v4961 = vpop.permute.xlu0 %4960
  %4972 = vrot.lane.b32.xlu0 %v4753, 50
  %v4973 = vpop.permute.xlu0 %4972
  %4974 = vrot.lane.b32.xlu0 %v4754, 50
  %v4975 = vpop.permute.xlu0 %4974
  %4976 = vrot.lane.b32.xlu0 %v4755, 50
  %v4977 = vpop.permute.xlu0 %4976
  %4978 = vrot.lane.b32.xlu0 %v4756, 50
  %v4979 = vpop.permute.xlu0 %4978
  %4980 = vrot.lane.b32.xlu0 %v4757, 50
  %v4981 = vpop.permute.xlu0 %4980
  %4982 = vrot.lane.b32.xlu0 %v4758, 50
  %v4983 = vpop.permute.xlu0 %4982
  %4984 = vrot.lane.b32.xlu0 %v4759, 50
  %v4985 = vpop.permute.xlu0 %4984
  %4986 = vrot.lane.b32.xlu0 %v4760, 50
  %v4987 = vpop.permute.xlu0 %4986
  %4988 = vrot.lane.b32.xlu0 %v4761, 50
  %v4989 = vpop.permute.xlu0 %4988
  %5008 = vrot.lane.b32.xlu0 %v4762, 60
  %v5009 = vpop.permute.xlu0 %5008
  %5010 = vrot.lane.b32.xlu0 %v4763, 60
  %v5011 = vpop.permute.xlu0 %5010
  %5012 = vrot.lane.b32.xlu0 %v4764, 60
  %v5013 = vpop.permute.xlu0 %5012
  %5014 = vrot.lane.b32.xlu0 %v4765, 60
  %v5015 = vpop.permute.xlu0 %5014
  %5016 = vrot.lane.b32.xlu0 %v4766, 60
  %v5017 = vpop.permute.xlu0 %5016
  %5018 = vrot.lane.b32.xlu0 %v4767, 60
  %v5019 = vpop.permute.xlu0 %5018
  %5020 = vrot.lane.b32.xlu0 %v4768, 60
  %v5021 = vpop.permute.xlu0 %5020
  %5022 = vrot.lane.b32.xlu0 %v4769, 60
  %v5023 = vpop.permute.xlu0 %5022
  %5024 = vrot.lane.b32.xlu0 %v4770, 60
  %v5025 = vpop.permute.xlu0 %5024
  %5044 = vrot.lane.b32.xlu0 %v4771, 70
  %v5045 = vpop.permute.xlu0 %5044
  %5046 = vrot.lane.b32.xlu0 %v4772, 70
  %v5047 = vpop.permute.xlu0 %5046
  %5048 = vrot.lane.b32.xlu0 %v4773, 70
  %v5049 = vpop.permute.xlu0 %5048
  %5050 = vrot.lane.b32.xlu0 %v4774, 70
  %v5051 = vpop.permute.xlu0 %5050
  %5052 = vrot.lane.b32.xlu0 %v4775, 70
  %v5053 = vpop.permute.xlu0 %5052
  %5054 = vrot.lane.b32.xlu0 %v4776, 70
  %v5055 = vpop.permute.xlu0 %5054
  %5056 = vrot.lane.b32.xlu0 %v4777, 70
  %v5057 = vpop.permute.xlu0 %5056
  %5058 = vrot.lane.b32.xlu0 %v4778, 70
  %v5059 = vpop.permute.xlu0 %5058
  %5060 = vrot.lane.b32.xlu0 %v4779, 70
  %v5061 = vpop.permute.xlu0 %5060
  %5080 = vrot.lane.b32.xlu0 %v4780, 80
  %v5081 = vpop.permute.xlu0 %5080
  %5082 = vrot.lane.b32.xlu0 %v4781, 80
  %v5083 = vpop.permute.xlu0 %5082
  %5084 = vrot.lane.b32.xlu0 %v4782, 80
  %v5085 = vpop.permute.xlu0 %5084
  %5086 = vrot.lane.b32.xlu0 %v4783, 80
  %v5087 = vpop.permute.xlu0 %5086
  %5088 = vrot.lane.b32.xlu0 %v4784, 80
  %v5089 = vpop.permute.xlu0 %5088
  %5090 = vrot.lane.b32.xlu0 %v4785, 80
  %v5091 = vpop.permute.xlu0 %5090
  %5092 = vrot.lane.b32.xlu0 %v4786, 80
  %v5093 = vpop.permute.xlu0 %5092
  %5094 = vrot.lane.b32.xlu0 %v4787, 80
  %v5095 = vpop.permute.xlu0 %5094
  %5096 = vrot.lane.b32.xlu0 %v4788, 80
  %v5097 = vpop.permute.xlu0 %5096
  %5116 = vrot.lane.b32.xlu0 %v4718, 90
  %v5117 = vpop.permute.xlu0 %5116
  %5118 = vrot.lane.b32.xlu0 %v4719, 90
  %v5119 = vpop.permute.xlu0 %5118
  %5120 = vrot.lane.b32.xlu0 %v4720, 90
  %v5121 = vpop.permute.xlu0 %5120
  %5122 = vrot.lane.b32.xlu0 %v4721, 90
  %v5123 = vpop.permute.xlu0 %5122
  %5124 = vrot.lane.b32.xlu0 %v4722, 90
  %v5125 = vpop.permute.xlu0 %5124
  %5126 = vrot.lane.b32.xlu0 %v4723, 90
  %v5127 = vpop.permute.xlu0 %5126
  %5128 = vrot.lane.b32.xlu0 %v4724, 90
  %v5129 = vpop.permute.xlu0 %5128
  %5130 = vrot.lane.b32.xlu0 %v4789, 90
  %v5131 = vpop.permute.xlu0 %5130
  %5132 = vrot.lane.b32.xlu0 %v4790, 90
  %v5133 = vpop.permute.xlu0 %5132
  %5144 = vrot.lane.b32.xlu0 %v4719, 100
  %v5145 = vpop.permute.xlu0 %5144
  %5146 = vrot.lane.b32.xlu0 %v4720, 100
  %v5147 = vpop.permute.xlu0 %5146
  %5148 = vrot.lane.b32.xlu0 %v4721, 100
  %v5149 = vpop.permute.xlu0 %5148
  %5150 = vrot.lane.b32.xlu0 %v4722, 100
  %v5151 = vpop.permute.xlu0 %5150
  %5152 = vrot.lane.b32.xlu0 %v4723, 100
  %v5153 = vpop.permute.xlu0 %5152
  %5154 = vrot.lane.b32.xlu0 %v4724, 100
  %v5155 = vpop.permute.xlu0 %5154
  %5156 = vrot.lane.b32.xlu0 %v4789, 100
  %v5157 = vpop.permute.xlu0 %5156
  %5158 = vrot.lane.b32.xlu0 %v4790, 100
  %v5159 = vpop.permute.xlu0 %5158
  %5160 = vrot.lane.b32.xlu0 %v4791, 100
  %v5161 = vpop.permute.xlu0 %5160
  %5174 = vrot.lane.b32.xlu0 %v4728, 110
  %v5175 = vpop.permute.xlu0 %5174
  %5176 = vrot.lane.b32.xlu0 %v4729, 110
  %v5177 = vpop.permute.xlu0 %5176
  %5178 = vrot.lane.b32.xlu0 %v4730, 110
  %v5179 = vpop.permute.xlu0 %5178
  %5180 = vrot.lane.b32.xlu0 %v4731, 110
  %v5181 = vpop.permute.xlu0 %5180
  %5182 = vrot.lane.b32.xlu0 %v4732, 110
  %v5183 = vpop.permute.xlu0 %5182
  %5184 = vrot.lane.b32.xlu0 %v4733, 110
  %v5185 = vpop.permute.xlu0 %5184
  %5186 = vrot.lane.b32.xlu0 %v4792, 110
  %v5187 = vpop.permute.xlu0 %5186
  %5188 = vrot.lane.b32.xlu0 %v4793, 110
  %v5189 = vpop.permute.xlu0 %5188
  %5190 = vrot.lane.b32.xlu0 %v4794, 110
  %v5191 = vpop.permute.xlu0 %5190
  %5204 = vrot.lane.b32.xlu0 %v4737, 120
  %v5205 = vpop.permute.xlu0 %5204
  %5206 = vrot.lane.b32.xlu0 %v4738, 120
  %v5207 = vpop.permute.xlu0 %5206
  %5208 = vrot.lane.b32.xlu0 %v4739, 120
  %v5209 = vpop.permute.xlu0 %5208
  %5210 = vrot.lane.b32.xlu0 %v4740, 120
  %v5211 = vpop.permute.xlu0 %5210
  %5212 = vrot.lane.b32.xlu0 %v4741, 120
  %v5213 = vpop.permute.xlu0 %5212
  %5214 = vrot.lane.b32.xlu0 %v4742, 120
  %v5215 = vpop.permute.xlu0 %5214
  %5216 = vrot.lane.b32.xlu0 %v4795, 120
  %v5217 = vpop.permute.xlu0 %5216
  %5218 = vrot.lane.b32.xlu0 %v4796, 120
  %v5219 = vpop.permute.xlu0 %5218
  %5220 = vrot.lane.b32.xlu0 %v4797, 120
  %v5221 = vpop.permute.xlu0 %5220
  %5234 = vrot.lane.b32.xlu0 %v4746, 2
  %v5235 = vpop.permute.xlu0 %5234
  %5236 = vrot.lane.b32.xlu0 %v4747, 2
  %v5237 = vpop.permute.xlu0 %5236
  %5238 = vrot.lane.b32.xlu0 %v4748, 2
  %v5239 = vpop.permute.xlu0 %5238
  %5240 = vrot.lane.b32.xlu0 %v4749, 2
  %v5241 = vpop.permute.xlu0 %5240
  %5242 = vrot.lane.b32.xlu0 %v4750, 2
  %v5243 = vpop.permute.xlu0 %5242
  %5244 = vrot.lane.b32.xlu0 %v4751, 2
  %v5245 = vpop.permute.xlu0 %5244
  %5246 = vrot.lane.b32.xlu0 %v4798, 2
  %v5247 = vpop.permute.xlu0 %5246
  %5248 = vrot.lane.b32.xlu0 %v4799, 2
  %v5249 = vpop.permute.xlu0 %5248
  %5250 = vrot.lane.b32.xlu0 %v4800, 2
  %v5251 = vpop.permute.xlu0 %5250
  %5263 = vrot.lane.b32.xlu0 %v4755, 12
  %v5264 = vpop.permute.xlu0 %5263
  %5265 = vrot.lane.b32.xlu0 %v4756, 12
  %v5266 = vpop.permute.xlu0 %5265
  %5267 = vrot.lane.b32.xlu0 %v4757, 12
  %v5268 = vpop.permute.xlu0 %5267
  %5269 = vrot.lane.b32.xlu0 %v4758, 12
  %v5270 = vpop.permute.xlu0 %5269
  %5271 = vrot.lane.b32.xlu0 %v4759, 12
  %v5272 = vpop.permute.xlu0 %5271
  %5273 = vrot.lane.b32.xlu0 %v4760, 12
  %v5274 = vpop.permute.xlu0 %5273
  %5275 = vrot.lane.b32.xlu0 %v4761, 12
  %v5276 = vpop.permute.xlu0 %5275
  %5277 = vrot.lane.b32.xlu0 %v4801, 12
  %v5278 = vpop.permute.xlu0 %5277
  %5279 = vrot.lane.b32.xlu0 %v4802, 12
  %v5280 = vpop.permute.xlu0 %5279
  %5291 = vrot.lane.b32.xlu0 %v4756, 22
  %v5292 = vpop.permute.xlu0 %5291
  %5293 = vrot.lane.b32.xlu0 %v4757, 22
  %v5294 = vpop.permute.xlu0 %5293
  %5295 = vrot.lane.b32.xlu0 %v4758, 22
  %v5296 = vpop.permute.xlu0 %5295
  %5297 = vrot.lane.b32.xlu0 %v4759, 22
  %v5298 = vpop.permute.xlu0 %5297
  %5299 = vrot.lane.b32.xlu0 %v4760, 22
  %v5300 = vpop.permute.xlu0 %5299
  %5301 = vrot.lane.b32.xlu0 %v4761, 22
  %v5302 = vpop.permute.xlu0 %5301
  %5303 = vrot.lane.b32.xlu0 %v4801, 22
  %v5304 = vpop.permute.xlu0 %5303
  %5305 = vrot.lane.b32.xlu0 %v4802, 22
  %v5306 = vpop.permute.xlu0 %5305
  %5307 = vrot.lane.b32.xlu0 %v4803, 22
  %v5308 = vpop.permute.xlu0 %5307
  %v5318 = vsel %vm453, %v4716, %v4837
  %v5319 = vsel %vm453, %v4717, %v4839
  %v5320 = vsel %vm453, %v4718, %v4841
  %v5321 = vsel %vm453, %v4719, %v4843
  %v5322 = vsel %vm453, %v4720, %v4845
  %v5323 = vsel %vm453, %v4721, %v4847
  %v5324 = vsel %vm453, %v4722, %v4849
  %v5325 = vsel %vm453, %v4723, %v4851
  %v5326 = vsel %vm453, %v4724, %v4853
  %v5327 = vsel %vm2813, %v5318, %v4873
  %v5328 = vsel %vm2813, %v5319, %v4875
  %v5329 = vsel %vm2813, %v5320, %v4877
  %v5330 = vsel %vm2813, %v5321, %v4879
  %v5331 = vsel %vm2813, %v5322, %v4881
  %v5332 = vsel %vm2813, %v5323, %v4883
  %v5333 = vsel %vm2813, %v5324, %v4885
  %v5334 = vsel %vm2813, %v5325, %v4887
  %v5335 = vsel %vm2813, %v5326, %v4889
  %v5336 = vsel %vm2823, %v5327, %v4909
  %v5337 = vsel %vm2823, %v5328, %v4911
  %v5338 = vsel %vm2823, %v5329, %v4913
  %v5339 = vsel %vm2823, %v5330, %v4915
  %v5340 = vsel %vm2823, %v5331, %v4917
  %v5341 = vsel %vm2823, %v5332, %v4919
  %v5342 = vsel %vm2823, %v5333, %v4921
  %v5343 = vsel %vm2823, %v5334, %v4923
  %v5344 = vsel %vm2823, %v5335, %v4925
  %v5345 = vsel %vm2833, %v5336, %v4945
  %v5346 = vsel %vm2833, %v5337, %v4947
  %v5347 = vsel %vm2833, %v5338, %v4949
  %v5348 = vsel %vm2833, %v5339, %v4951
  %v5349 = vsel %vm2833, %v5340, %v4953
  %v5350 = vsel %vm2833, %v5341, %v4955
  %v5351 = vsel %vm2833, %v5342, %v4957
  %v5352 = vsel %vm2833, %v5343, %v4959
  %v5353 = vsel %vm2833, %v5344, %v4961
  %v5354 = vsel %vm2843, %v5345, %v4973
  %v5355 = vsel %vm2843, %v5346, %v4975
  %v5356 = vsel %vm2843, %v5347, %v4977
  %v5357 = vsel %vm2843, %v5348, %v4979
  %v5358 = vsel %vm2843, %v5349, %v4981
  %v5359 = vsel %vm2843, %v5350, %v4983
  %v5360 = vsel %vm2843, %v5351, %v4985
  %v5361 = vsel %vm2843, %v5352, %v4987
  %v5362 = vsel %vm2843, %v5353, %v4989
  %v5363 = vsel %vm2853, %v5354, %v5009
  %v5364 = vsel %vm2853, %v5355, %v5011
  %v5365 = vsel %vm2853, %v5356, %v5013
  %v5366 = vsel %vm2853, %v5357, %v5015
  %v5367 = vsel %vm2853, %v5358, %v5017
  %v5368 = vsel %vm2853, %v5359, %v5019
  %v5369 = vsel %vm2853, %v5360, %v5021
  %v5370 = vsel %vm2853, %v5361, %v5023
  %v5371 = vsel %vm2853, %v5362, %v5025
  %v5372 = vsel %vm2863, %v5363, %v5045
  %v5373 = vsel %vm2863, %v5364, %v5047
  %v5374 = vsel %vm2863, %v5365, %v5049
  %v5375 = vsel %vm2863, %v5366, %v5051
  %v5376 = vsel %vm2863, %v5367, %v5053
  %v5377 = vsel %vm2863, %v5368, %v5055
  %v5378 = vsel %vm2863, %v5369, %v5057
  %v5379 = vsel %vm2863, %v5370, %v5059
  %v5380 = vsel %vm2863, %v5371, %v5061
  %v5381 = vsel %vm2873, %v5372, %v5081
  %v5382 = vsel %vm2873, %v5373, %v5083
  %v5383 = vsel %vm2873, %v5374, %v5085
  %v5384 = vsel %vm2873, %v5375, %v5087
  %v5385 = vsel %vm2873, %v5376, %v5089
  %v5386 = vsel %vm2873, %v5377, %v5091
  %v5387 = vsel %vm2873, %v5378, %v5093
  %v5388 = vsel %vm2873, %v5379, %v5095
  %v5389 = vsel %vm2873, %v5380, %v5097
  %v5390 = vsel %vm2883, %v5381, %v5117
  %v5391 = vsel %vm2883, %v5382, %v5119
  %v5392 = vsel %vm2883, %v5383, %v5121
  %v5393 = vsel %vm2883, %v5384, %v5123
  %v5394 = vsel %vm2883, %v5385, %v5125
  %v5395 = vsel %vm2883, %v5386, %v5127
  %v5396 = vsel %vm2883, %v5387, %v5129
  %v5397 = vsel %vm2883, %v5388, %v5131
  %v5398 = vsel %vm2883, %v5389, %v5133
  %v5399 = vsel %vm2893, %v5390, %v5145
  %v5400 = vsel %vm2893, %v5391, %v5147
  %v5401 = vsel %vm2893, %v5392, %v5149
  %v5402 = vsel %vm2893, %v5393, %v5151
  %v5403 = vsel %vm2893, %v5394, %v5153
  %v5404 = vsel %vm2893, %v5395, %v5155
  %v5405 = vsel %vm2893, %v5396, %v5157
  %v5406 = vsel %vm2893, %v5397, %v5159
  %v5407 = vsel %vm2893, %v5398, %v5161
  %v5408 = vsel %vm2903, %v5399, %v5175
  %v5409 = vsel %vm2903, %v5400, %v5177
  %v5410 = vsel %vm2903, %v5401, %v5179
  %v5411 = vsel %vm2903, %v5402, %v5181
  %v5412 = vsel %vm2903, %v5403, %v5183
  %v5413 = vsel %vm2903, %v5404, %v5185
  %v5414 = vsel %vm2903, %v5405, %v5187
  %v5415 = vsel %vm2903, %v5406, %v5189
  %v5416 = vsel %vm2903, %v5407, %v5191
  %v5417 = vsel %vm2913, %v5408, %v5205
  %v5418 = vsel %vm2913, %v5409, %v5207
  %v5419 = vsel %vm2913, %v5410, %v5209
  %v5420 = vsel %vm2913, %v5411, %v5211
  %v5421 = vsel %vm2913, %v5412, %v5213
  %v5422 = vsel %vm2913, %v5413, %v5215
  %v5423 = vsel %vm2913, %v5414, %v5217
  %v5424 = vsel %vm2913, %v5415, %v5219
  %v5425 = vsel %vm2913, %v5416, %v5221
  %v5426 = vsel %vm2923, %v5205, %v5235
  %v5427 = vsel %vm2923, %v5207, %v5237
  %v5428 = vsel %vm2923, %v5209, %v5239
  %v5429 = vsel %vm2923, %v5211, %v5241
  %v5430 = vsel %vm2923, %v5213, %v5243
  %v5431 = vsel %vm2923, %v5215, %v5245
  %v5432 = vsel %vm2923, %v5217, %v5247
  %v5433 = vsel %vm2923, %v5219, %v5249
  %v5434 = vsel %vm2923, %v5221, %v5251
  %v5435 = vsel %vm2933, %v5426, %v5264
  %v5436 = vsel %vm2933, %v5427, %v5266
  %v5437 = vsel %vm2933, %v5428, %v5268
  %v5438 = vsel %vm2933, %v5429, %v5270
  %v5439 = vsel %vm2933, %v5430, %v5272
  %v5440 = vsel %vm2933, %v5431, %v5274
  %v5441 = vsel %vm2933, %v5432, %v5276
  %v5442 = vsel %vm2933, %v5433, %v5278
  %v5443 = vsel %vm2933, %v5434, %v5280
  %v5444 = vsel %vm2943, %v5435, %v5292
  %v5445 = vsel %vm2943, %v5436, %v5294
  %v5446 = vsel %vm2943, %v5437, %v5296
  %v5447 = vsel %vm2943, %v5438, %v5298
  %v5448 = vsel %vm2943, %v5439, %v5300
  %v5449 = vsel %vm2943, %v5440, %v5302
  %v5450 = vsel %vm2943, %v5441, %v5304
  %v5451 = vsel %vm2943, %v5442, %v5306
  %v5452 = vsel %vm2943, %v5443, %v5308
  %5456 = vrot.lane.b32.xlu0 %v4774, 10
  %v5457 = vpop.permute.xlu0 %5456
  %5458 = vrot.lane.b32.xlu0 %v4775, 10
  %v5459 = vpop.permute.xlu0 %5458
  %5460 = vrot.lane.b32.xlu0 %v4776, 10
  %v5461 = vpop.permute.xlu0 %5460
  %5462 = vrot.lane.b32.xlu0 %v4777, 10
  %v5463 = vpop.permute.xlu0 %5462
  %5464 = vrot.lane.b32.xlu0 %v4778, 10
  %v5465 = vpop.permute.xlu0 %5464
  %5466 = vrot.lane.b32.xlu0 %v4779, 10
  %v5467 = vpop.permute.xlu0 %5466
  %5468 = vrot.lane.b32.xlu0 %v4807, 10
  %v5469 = vpop.permute.xlu0 %5468
  %5470 = vrot.lane.b32.xlu0 %v4808, 10
  %v5471 = vpop.permute.xlu0 %5470
  %5472 = vrot.lane.b32.xlu0 %v4809, 10
  %v5473 = vpop.permute.xlu0 %5472
  %5486 = vrot.lane.b32.xlu0 %v4783, 20
  %v5487 = vpop.permute.xlu0 %5486
  %5488 = vrot.lane.b32.xlu0 %v4784, 20
  %v5489 = vpop.permute.xlu0 %5488
  %5490 = vrot.lane.b32.xlu0 %v4785, 20
  %v5491 = vpop.permute.xlu0 %5490
  %5492 = vrot.lane.b32.xlu0 %v4786, 20
  %v5493 = vpop.permute.xlu0 %5492
  %5494 = vrot.lane.b32.xlu0 %v4787, 20
  %v5495 = vpop.permute.xlu0 %5494
  %5496 = vrot.lane.b32.xlu0 %v4788, 20
  %v5497 = vpop.permute.xlu0 %5496
  %5498 = vrot.lane.b32.xlu0 %v4810, 20
  %v5499 = vpop.permute.xlu0 %5498
  %5500 = vrot.lane.b32.xlu0 %v4811, 20
  %v5501 = vpop.permute.xlu0 %5500
  %5502 = vrot.lane.b32.xlu0 %v4812, 20
  %v5503 = vpop.permute.xlu0 %5502
  %5515 = vrot.lane.b32.xlu0 %v4721, 30
  %v5516 = vpop.permute.xlu0 %5515
  %5517 = vrot.lane.b32.xlu0 %v4722, 30
  %v5518 = vpop.permute.xlu0 %5517
  %5519 = vrot.lane.b32.xlu0 %v4723, 30
  %v5520 = vpop.permute.xlu0 %5519
  %5521 = vrot.lane.b32.xlu0 %v4724, 30
  %v5522 = vpop.permute.xlu0 %5521
  %5523 = vrot.lane.b32.xlu0 %v4789, 30
  %v5524 = vpop.permute.xlu0 %5523
  %5525 = vrot.lane.b32.xlu0 %v4790, 30
  %v5526 = vpop.permute.xlu0 %5525
  %5527 = vrot.lane.b32.xlu0 %v4791, 30
  %v5528 = vpop.permute.xlu0 %5527
  %5529 = vrot.lane.b32.xlu0 %v4813, 30
  %v5530 = vpop.permute.xlu0 %5529
  %5531 = vrot.lane.b32.xlu0 %v4814, 30
  %v5532 = vpop.permute.xlu0 %5531
  %5543 = vrot.lane.b32.xlu0 %v4722, 40
  %v5544 = vpop.permute.xlu0 %5543
  %5545 = vrot.lane.b32.xlu0 %v4723, 40
  %v5546 = vpop.permute.xlu0 %5545
  %5547 = vrot.lane.b32.xlu0 %v4724, 40
  %v5548 = vpop.permute.xlu0 %5547
  %5549 = vrot.lane.b32.xlu0 %v4789, 40
  %v5550 = vpop.permute.xlu0 %5549
  %5551 = vrot.lane.b32.xlu0 %v4790, 40
  %v5552 = vpop.permute.xlu0 %5551
  %5553 = vrot.lane.b32.xlu0 %v4791, 40
  %v5554 = vpop.permute.xlu0 %5553
  %5555 = vrot.lane.b32.xlu0 %v4813, 40
  %v5556 = vpop.permute.xlu0 %5555
  %5557 = vrot.lane.b32.xlu0 %v4814, 40
  %v5558 = vpop.permute.xlu0 %5557
  %5559 = vrot.lane.b32.xlu0 %v4815, 40
  %v5560 = vpop.permute.xlu0 %5559
  %5573 = vrot.lane.b32.xlu0 %v4731, 50
  %v5574 = vpop.permute.xlu0 %5573
  %5575 = vrot.lane.b32.xlu0 %v4732, 50
  %v5576 = vpop.permute.xlu0 %5575
  %5577 = vrot.lane.b32.xlu0 %v4733, 50
  %v5578 = vpop.permute.xlu0 %5577
  %5579 = vrot.lane.b32.xlu0 %v4792, 50
  %v5580 = vpop.permute.xlu0 %5579
  %5581 = vrot.lane.b32.xlu0 %v4793, 50
  %v5582 = vpop.permute.xlu0 %5581
  %5583 = vrot.lane.b32.xlu0 %v4794, 50
  %v5584 = vpop.permute.xlu0 %5583
  %5585 = vrot.lane.b32.xlu0 %v4816, 50
  %v5586 = vpop.permute.xlu0 %5585
  %5587 = vrot.lane.b32.xlu0 %v4817, 50
  %v5588 = vpop.permute.xlu0 %5587
  %5589 = vrot.lane.b32.xlu0 %v4818, 50
  %v5590 = vpop.permute.xlu0 %5589
  %5603 = vrot.lane.b32.xlu0 %v4740, 60
  %v5604 = vpop.permute.xlu0 %5603
  %5605 = vrot.lane.b32.xlu0 %v4741, 60
  %v5606 = vpop.permute.xlu0 %5605
  %5607 = vrot.lane.b32.xlu0 %v4742, 60
  %v5608 = vpop.permute.xlu0 %5607
  %5609 = vrot.lane.b32.xlu0 %v4795, 60
  %v5610 = vpop.permute.xlu0 %5609
  %5611 = vrot.lane.b32.xlu0 %v4796, 60
  %v5612 = vpop.permute.xlu0 %5611
  %5613 = vrot.lane.b32.xlu0 %v4797, 60
  %v5614 = vpop.permute.xlu0 %5613
  %5615 = vrot.lane.b32.xlu0 %v4819, 60
  %v5616 = vpop.permute.xlu0 %5615
  %5617 = vrot.lane.b32.xlu0 %v4820, 60
  %v5618 = vpop.permute.xlu0 %5617
  %5619 = vrot.lane.b32.xlu0 %v4821, 60
  %v5620 = vpop.permute.xlu0 %5619
  %5633 = vrot.lane.b32.xlu0 %v4749, 70
  %v5634 = vpop.permute.xlu0 %5633
  %5635 = vrot.lane.b32.xlu0 %v4750, 70
  %v5636 = vpop.permute.xlu0 %5635
  %5637 = vrot.lane.b32.xlu0 %v4751, 70
  %v5638 = vpop.permute.xlu0 %5637
  %5639 = vrot.lane.b32.xlu0 %v4798, 70
  %v5640 = vpop.permute.xlu0 %5639
  %5641 = vrot.lane.b32.xlu0 %v4799, 70
  %v5642 = vpop.permute.xlu0 %5641
  %5643 = vrot.lane.b32.xlu0 %v4800, 70
  %v5644 = vpop.permute.xlu0 %5643
  %5645 = vrot.lane.b32.xlu0 %v4822, 70
  %v5646 = vpop.permute.xlu0 %5645
  %5647 = vrot.lane.b32.xlu0 %v4823, 70
  %v5648 = vpop.permute.xlu0 %5647
  %5649 = vrot.lane.b32.xlu0 %v4824, 70
  %v5650 = vpop.permute.xlu0 %5649
  %5662 = vrot.lane.b32.xlu0 %v4758, 80
  %v5663 = vpop.permute.xlu0 %5662
  %5664 = vrot.lane.b32.xlu0 %v4759, 80
  %v5665 = vpop.permute.xlu0 %5664
  %5666 = vrot.lane.b32.xlu0 %v4760, 80
  %v5667 = vpop.permute.xlu0 %5666
  %5668 = vrot.lane.b32.xlu0 %v4761, 80
  %v5669 = vpop.permute.xlu0 %5668
  %5670 = vrot.lane.b32.xlu0 %v4801, 80
  %v5671 = vpop.permute.xlu0 %5670
  %5672 = vrot.lane.b32.xlu0 %v4802, 80
  %v5673 = vpop.permute.xlu0 %5672
  %5674 = vrot.lane.b32.xlu0 %v4803, 80
  %v5675 = vpop.permute.xlu0 %5674
  %5676 = vrot.lane.b32.xlu0 %v4825, 80
  %v5677 = vpop.permute.xlu0 %5676
  %5678 = vrot.lane.b32.xlu0 %v4826, 80
  %v5679 = vpop.permute.xlu0 %5678
  %v5689 = vsel %vm453, %v4765, %v5457
  %v5690 = vsel %vm453, %v4766, %v5459
  %v5691 = vsel %vm453, %v4767, %v5461
  %v5692 = vsel %vm453, %v4768, %v5463
  %v5693 = vsel %vm453, %v4769, %v5465
  %v5694 = vsel %vm453, %v4770, %v5467
  %v5695 = vsel %vm453, %v4804, %v5469
  %v5696 = vsel %vm453, %v4805, %v5471
  %v5697 = vsel %vm453, %v4806, %v5473
  %v5698 = vsel %vm2813, %v5689, %v5487
  %v5699 = vsel %vm2813, %v5690, %v5489
  %v5700 = vsel %vm2813, %v5691, %v5491
  %v5701 = vsel %vm2813, %v5692, %v5493
  %v5702 = vsel %vm2813, %v5693, %v5495
  %v5703 = vsel %vm2813, %v5694, %v5497
  %v5704 = vsel %vm2813, %v5695, %v5499
  %v5705 = vsel %vm2813, %v5696, %v5501
  %v5706 = vsel %vm2813, %v5697, %v5503
  %v5707 = vsel %vm2823, %v5698, %v5516
  %v5708 = vsel %vm2823, %v5699, %v5518
  %v5709 = vsel %vm2823, %v5700, %v5520
  %v5710 = vsel %vm2823, %v5701, %v5522
  %v5711 = vsel %vm2823, %v5702, %v5524
  %v5712 = vsel %vm2823, %v5703, %v5526
  %v5713 = vsel %vm2823, %v5704, %v5528
  %v5714 = vsel %vm2823, %v5705, %v5530
  %v5715 = vsel %vm2823, %v5706, %v5532
  %v5716 = vsel %vm2833, %v5707, %v5544
  %v5717 = vsel %vm2833, %v5708, %v5546
  %v5718 = vsel %vm2833, %v5709, %v5548
  %v5719 = vsel %vm2833, %v5710, %v5550
  %v5720 = vsel %vm2833, %v5711, %v5552
  %v5721 = vsel %vm2833, %v5712, %v5554
  %v5722 = vsel %vm2833, %v5713, %v5556
  %v5723 = vsel %vm2833, %v5714, %v5558
  %v5724 = vsel %vm2833, %v5715, %v5560
  %v5725 = vsel %vm2843, %v5716, %v5574
  %v5726 = vsel %vm2843, %v5717, %v5576
  %v5727 = vsel %vm2843, %v5718, %v5578
  %v5728 = vsel %vm2843, %v5719, %v5580
  %v5729 = vsel %vm2843, %v5720, %v5582
  %v5730 = vsel %vm2843, %v5721, %v5584
  %v5731 = vsel %vm2843, %v5722, %v5586
  %v5732 = vsel %vm2843, %v5723, %v5588
  %v5733 = vsel %vm2843, %v5724, %v5590
  %v5734 = vsel %vm2853, %v5725, %v5604
  %v5735 = vsel %vm2853, %v5726, %v5606
  %v5736 = vsel %vm2853, %v5727, %v5608
  %v5737 = vsel %vm2853, %v5728, %v5610
  %v5738 = vsel %vm2853, %v5729, %v5612
  %v5739 = vsel %vm2853, %v5730, %v5614
  %v5740 = vsel %vm2853, %v5731, %v5616
  %v5741 = vsel %vm2853, %v5732, %v5618
  %v5742 = vsel %vm2853, %v5733, %v5620
  %v5743 = vsel %vm2863, %v5734, %v5634
  %v5744 = vsel %vm2863, %v5735, %v5636
  %v5745 = vsel %vm2863, %v5736, %v5638
  %v5746 = vsel %vm2863, %v5737, %v5640
  %v5747 = vsel %vm2863, %v5738, %v5642
  %v5748 = vsel %vm2863, %v5739, %v5644
  %v5749 = vsel %vm2863, %v5740, %v5646
  %v5750 = vsel %vm2863, %v5741, %v5648
  %v5751 = vsel %vm2863, %v5742, %v5650
  %v5752 = vsel %vm2873, %v5743, %v5663
  %v5753 = vsel %vm2873, %v5744, %v5665
  %v5754 = vsel %vm2873, %v5745, %v5667
  %v5755 = vsel %vm2873, %v5746, %v5669
  %v5756 = vsel %vm2873, %v5747, %v5671
  %v5757 = vsel %vm2873, %v5748, %v5673
  %v5758 = vsel %vm2873, %v5749, %v5675
  %v5759 = vsel %vm2873, %v5750, %v5677
  %v5760 = vsel %vm2873, %v5751, %v5679
  %5770 = vrot.lane.b32.xlu0 %v5752, 32
  %v5771 = vpop.permute.xlu0 %5770
  %5772 = vrot.lane.b32.xlu0 %v5753, 32
  %v5773 = vpop.permute.xlu0 %5772
  %5774 = vrot.lane.b32.xlu0 %v5754, 32
  %v5775 = vpop.permute.xlu0 %5774
  %5776 = vrot.lane.b32.xlu0 %v5755, 32
  %v5777 = vpop.permute.xlu0 %5776
  %5778 = vrot.lane.b32.xlu0 %v5756, 32
  %v5779 = vpop.permute.xlu0 %5778
  %5780 = vrot.lane.b32.xlu0 %v5757, 32
  %v5781 = vpop.permute.xlu0 %5780
  %5782 = vrot.lane.b32.xlu0 %v5758, 32
  %v5783 = vpop.permute.xlu0 %5782
  %5784 = vrot.lane.b32.xlu0 %v5759, 32
  %v5785 = vpop.permute.xlu0 %5784
  %5786 = vrot.lane.b32.xlu0 %v5760, 32
  %v5787 = vpop.permute.xlu0 %5786
  %v5797 = vsel %vm3297, %v5444, %v5771
  %v5798 = vsel %vm3297, %v5445, %v5773
  %v5799 = vsel %vm3297, %v5446, %v5775
  %v5800 = vsel %vm3297, %v5447, %v5777
  %v5801 = vsel %vm3297, %v5448, %v5779
  %v5802 = vsel %vm3297, %v5449, %v5781
  %v5803 = vsel %vm3297, %v5450, %v5783
  %v5804 = vsel %vm3297, %v5451, %v5785
  %v5805 = vsel %vm3297, %v5452, %v5787
  %v5807 = vsel %vm3311, %v5797, 0
  %v5810 = vsel %vm3311, %v5798, 0
  %v5813 = vsel %vm3311, %v5799, 0
  %v5816 = vsel %vm3311, %v5800, 0
  %v5819 = vsel %vm3311, %v5801, 0
  %v5822 = vsel %vm3311, %v5802, 0
  %v5825 = vsel %vm3311, %v5803, 0
  %v5828 = vsel %vm3311, %v5804, 0
  %v5831 = vsel %vm3311, %v5805, 0
  %5833 = vmatprep.subr.mxu0 0.0
  %5834 = vmatpush1.msra.mxu0 %v2169
  %5835 = vmatprep.subr.mxu0 0.0
  %5836 = vmatpush1.msra.mxu0 %v2170
  %5837 = vmatprep.subr.mxu0 0.0
  %5838 = vmatpush1.msra.mxu0 %v2171
  %5839 = vmatprep.subr.mxu0 0.0
  %5840 = vmatpush1.msra.mxu0 %v2172
  %5841 = vmatprep.subr.mxu0 0.0
  %5842 = vmatpush1.msra.mxu0 %v2173
  %5843 = vmatprep.subr.mxu0 0.0
  %5844 = vmatpush1.msra.mxu0 %v2174
  %5845 = vmatprep.subr.mxu0 0.0
  %5846 = vmatpush1.msra.mxu0 %v2175
  %5847 = vmatprep.subr.mxu0 0.0
  %5848 = vmatpush1.msra.mxu0 %v2176
  %5849 = vmatprep.subr.mxu0 0.0
  %5850 = vmatpush1.msra.mxu0 %v2177
  %5851 = vmatprep.subr.mxu0 0.0
  %5852 = vmatpush1.msra.mxu0 %v2178
  %5853 = vmatprep.subr.mxu0 0.0
  %5854 = vmatpush1.msra.mxu0 %v2179
  %5855 = vmatprep.subr.mxu0 0.0
  %5856 = vmatpush1.msra.mxu0 %v2180
  %5857 = vmatprep.subr.mxu0 0.0
  %5858 = vmatpush1.msra.mxu0 %v2181
  %5859 = vmatprep.subr.mxu0 0.0
  %5860 = vmatpush1.msra.mxu0 %v2182
  %5861 = vmatprep.subr.mxu0 0.0
  %5862 = vmatpush1.msra.mxu0 %v2183
  %5863 = vmatprep.subr.mxu0 0.0
  %5864 = vmatpush1.msra.mxu0 %v2184
  %5865 = vmatprep.subr.mxu0 0.0
  %5866 = vmatpush1.msra.mxu0 %v2185
  %5867 = vmatprep.subr.mxu0 0.0
  %5868 = vmatpush1.msra.mxu0 %v2186
  %5869 = vmatprep.subr.mxu0 0.0
  %5870 = vmatpush1.msra.mxu0 %v2187
  %5871 = vmatprep.subr.mxu0 0.0
  %5872 = vmatpush1.msra.mxu0 %v2188
  %5873 = vmatprep.subr.mxu0 0.0
  %5874 = vmatpush1.msra.mxu0 %v2189
  %5875 = vmatprep.subr.mxu0 0.0
  %5876 = vmatpush1.msra.mxu0 %v2190
  %5877 = vmatprep.subr.mxu0 0.0
  %5878 = vmatpush1.msra.mxu0 %v2191
  %5879 = vmatprep.subr.mxu0 0.0
  %5880 = vmatpush1.msra.mxu0 %v2192
  %5881 = vmatprep.subr.mxu0 0.0
  %5882 = vmatpush1.msra.mxu0 %v2193
  %5883 = vmatprep.subr.mxu0 0.0
  %5884 = vmatpush1.msra.mxu0 %v2194
  %5885 = vmatprep.subr.mxu0 0.0
  %5886 = vmatpush1.msra.mxu0 %v2195
  %5887 = vmatprep.subr.mxu0 0.0
  %5888 = vmatpush1.msra.mxu0 %v2196
  %5889 = vmatprep.subr.mxu0 0.0
  %5890 = vmatpush1.msra.mxu0 %v2197
  %5891 = vmatprep.subr.mxu0 0.0
  %5892 = vmatpush1.msra.mxu0 %v2198
  %5893 = vmatprep.subr.mxu0 0.0
  %5894 = vmatpush1.msra.mxu0 %v2199
  %5895 = vmatprep.subr.mxu0 0.0
  %5896 = vmatpush1.msra.mxu0 %v3341
  %5897 = vmatprep.mubr.f32.mxu0 %v5807
  %5898 = vmatmul.mubr.f32.gmra.mrb[0].mxu0 %v5417
  %v5899 = vpop.f32.mrb[0].mxu0
  %v5900 = vadd.f32 %v3310, %v5899
  %v5901 = vpop.f32.mrb[0].mxu0
  %5902 = vmatprep.mubr.f32.mxu0 %v5810
  %5903 = vmatmul.mubr.f32.gmra.mrb[0].mxu0 %v5418
  %v5904 = vpop.f32.mrb[0].mxu0
  %v5905 = vadd.f32 %v3310, %v5904
  %v5906 = vpop.f32.mrb[0].mxu0
  %5907 = vmatprep.mubr.f32.mxu0 %v5813
  %5908 = vmatmul.mubr.f32.gmra.mrb[0].mxu0 %v5419
  %v5909 = vpop.f32.mrb[0].mxu0
  %v5910 = vadd.f32 %v3310, %v5909
  %v5911 = vpop.f32.mrb[0].mxu0
  %5912 = vmatprep.mubr.f32.mxu0 %v5816
  %5913 = vmatmul.mubr.f32.gmra.mrb[0].mxu0 %v5420
  %v5914 = vpop.f32.mrb[0].mxu0
  %v5915 = vadd.f32 %v3310, %v5914
  %v5916 = vpop.f32.mrb[0].mxu0
  %5917 = vmatprep.mubr.f32.mxu0 %v5819
  %5918 = vmatmul.mubr.f32.gmra.mrb[0].mxu0 %v5421
  %v5919 = vpop.f32.mrb[0].mxu0
  %v5920 = vadd.f32 %v3310, %v5919
  %v5921 = vpop.f32.mrb[0].mxu0
  %5922 = vmatprep.mubr.f32.mxu0 %v5822
  %5923 = vmatmul.mubr.f32.gmra.mrb[0].mxu0 %v5422
  %v5924 = vpop.f32.mrb[0].mxu0
  %v5925 = vadd.f32 %v3310, %v5924
  %v5926 = vpop.f32.mrb[0].mxu0
  %5927 = vmatprep.mubr.f32.mxu0 %v5825
  %5928 = vmatmul.mubr.f32.gmra.mrb[0].mxu0 %v5423
  %v5929 = vpop.f32.mrb[0].mxu0
  %v5930 = vadd.f32 %v3310, %v5929
  %v5931 = vpop.f32.mrb[0].mxu0
  %5932 = vmatprep.mubr.f32.mxu0 %v5828
  %5933 = vmatmul.mubr.f32.gmra.mrb[0].mxu0 %v5424
  %v5934 = vpop.f32.mrb[0].mxu0
  %v5935 = vadd.f32 %v3310, %v5934
  %v5936 = vpop.f32.mrb[0].mxu0
  %5937 = vmatprep.mubr.f32.mxu0 %v5831
  %5938 = vmatmul.mubr.f32.gmra.mrb[0].mxu0 %v5425
  %v5939 = vpop.f32.mrb[0].mxu0
  %v5940 = vadd.f32 %v3310, %v5939
  %v5941 = vpop.f32.mrb[0].mxu0
  %5942 = vdwg.mxu0
  %v5943 = vmax.f32 %v5900, 0.0
  %v5944 = vmax.f32 %v5905, 0.0
  %v5945 = vmax.f32 %v5910, 0.0
  %v5946 = vmax.f32 %v5915, 0.0
  %v5947 = vmax.f32 %v5920, 0.0
  %v5948 = vmax.f32 %v5925, 0.0
  %v5949 = vmax.f32 %v5930, 0.0
  %v5950 = vmax.f32 %v5935, 0.0
  %v5951 = vmax.f32 %v5940, 0.0
  %5952 = vst.msk [vmem:[#allocation4 + $0x90] sm:$0xff] %vm453, %v5943
  %5953 = vst.msk [vmem:[#allocation4 + $0x98] sm:$0xff] %vm453, %v5944
  %5954 = vst.msk [vmem:[#allocation4 + $0xa0] sm:$0xff] %vm453, %v5945
  %5955 = vst.msk [vmem:[#allocation4 + $0xa8] sm:$0xff] %vm453, %v5946
  %5956 = vst.msk [vmem:[#allocation4 + $0xb0] sm:$0xff] %vm453, %v5947
  %5957 = vst.msk [vmem:[#allocation4 + $0xb8] sm:$0xff] %vm453, %v5948
  %5958 = vst.msk [vmem:[#allocation4 + $0xc0] sm:$0xff] %vm453, %v5949
  %5959 = vst.msk [vmem:[#allocation4 + $0xc8] sm:$0xff] %vm453, %v5950
  %5960 = vst.msk [vmem:[#allocation4 + $0xd0] sm:$0xff] %vm453, %v5951
  %v5961 = vld [vmem:[#allocation3 + $0xd8] sm:$0xff]
  %v5962 = vld [vmem:[#allocation3 + $0xe0] sm:$0xff]
  %v5963 = vld [vmem:[#allocation3 + $0xe8] sm:$0xff]
  %v5964 = vld [vmem:[#allocation3 + $0xf0] sm:$0xff]
  %v5965 = vld [vmem:[#allocation3 + $0xf8] sm:$0xff]
  %v5966 = vld [vmem:[#allocation3 + $0x100] sm:$0xff]
  %v5967 = vld [vmem:[#allocation3 + $0x108] sm:$0xff]
  %v5968 = vld [vmem:[#allocation3 + $0x110] sm:$0xff]
  %v5969 = vld [vmem:[#allocation3 + $0x118] sm:$0xff]
  %v5970 = vld [vmem:[#allocation3 + $0xd9] sm:$0xff]
  %v5971 = vld [vmem:[#allocation3 + $0xe1] sm:$0xff]
  %v5972 = vld [vmem:[#allocation3 + $0xe9] sm:$0xff]
  %v5973 = vld [vmem:[#allocation3 + $0xf1] sm:$0xff]
  %v5974 = vld [vmem:[#allocation3 + $0xf9] sm:$0xff]
  %v5975 = vld [vmem:[#allocation3 + $0x101] sm:$0xff]
  %v5976 = vld [vmem:[#allocation3 + $0x109] sm:$0xff]
  %v5977 = vld [vmem:[#allocation3 + $0x111] sm:$0xff]
  %v5978 = vld [vmem:[#allocation3 + $0x119] sm:$0xff]
  %v5979 = vld [vmem:[#allocation3 + $0xda] sm:$0xff]
  %v5980 = vld [vmem:[#allocation3 + $0xe2] sm:$0xff]
  %v5981 = vld [vmem:[#allocation3 + $0xea] sm:$0xff]
  %v5982 = vld [vmem:[#allocation3 + $0xf2] sm:$0xff]
  %v5983 = vld [vmem:[#allocation3 + $0xfa] sm:$0xff]
  %v5984 = vld [vmem:[#allocation3 + $0x102] sm:$0xff]
  %v5985 = vld [vmem:[#allocation3 + $0x10a] sm:$0xff]
  %v5986 = vld [vmem:[#allocation3 + $0x112] sm:$0xff]
  %v5987 = vld [vmem:[#allocation3 + $0x11a] sm:$0xff]
  %v5988 = vld [vmem:[#allocation3 + $0xdb] sm:$0xff]
  %v5989 = vld [vmem:[#allocation3 + $0xe3] sm:$0xff]
  %v5990 = vld [vmem:[#allocation3 + $0xeb] sm:$0xff]
  %v5991 = vld [vmem:[#allocation3 + $0xf3] sm:$0xff]
  %v5992 = vld [vmem:[#allocation3 + $0xfb] sm:$0xff]
  %v5993 = vld [vmem:[#allocation3 + $0x103] sm:$0xff]
  %v5994 = vld [vmem:[#allocation3 + $0x10b] sm:$0xff]
  %v5995 = vld [vmem:[#allocation3 + $0x113] sm:$0xff]
  %v5996 = vld [vmem:[#allocation3 + $0x11b] sm:$0xff]
  %v5997 = vld [vmem:[#allocation3 + $0xdc] sm:$0xff]
  %v5998 = vld [vmem:[#allocation3 + $0xe4] sm:$0xff]
  %v5999 = vld [vmem:[#allocation3 + $0xec] sm:$0xff]
  %v6000 = vld [vmem:[#allocation3 + $0xf4] sm:$0xff]
  %v6001 = vld [vmem:[#allocation3 + $0xfc] sm:$0xff]
  %v6002 = vld [vmem:[#allocation3 + $0x104] sm:$0xff]
  %v6003 = vld [vmem:[#allocation3 + $0x10c] sm:$0xff]
  %v6004 = vld [vmem:[#allocation3 + $0x114] sm:$0xff]
  %v6005 = vld [vmem:[#allocation3 + $0x11c] sm:$0xff]
  %v6006 = vld [vmem:[#allocation3 + $0x124] sm:$0xff]
  %v6007 = vld [vmem:[#allocation3 + $0xe5] sm:$0xff]
  %v6008 = vld [vmem:[#allocation3 + $0xed] sm:$0xff]
  %v6009 = vld [vmem:[#allocation3 + $0xf5] sm:$0xff]
  %v6010 = vld [vmem:[#allocation3 + $0xfd] sm:$0xff]
  %v6011 = vld [vmem:[#allocation3 + $0x105] sm:$0xff]
  %v6012 = vld [vmem:[#allocation3 + $0x10d] sm:$0xff]
  %v6013 = vld [vmem:[#allocation3 + $0x115] sm:$0xff]
  %v6014 = vld [vmem:[#allocation3 + $0x11d] sm:$0xff]
  %v6015 = vld [vmem:[#allocation3 + $0x125] sm:$0xff]
  %v6016 = vld [vmem:[#allocation3 + $0xe6] sm:$0xff]
  %v6017 = vld [vmem:[#allocation3 + $0xee] sm:$0xff]
  %v6018 = vld [vmem:[#allocation3 + $0xf6] sm:$0xff]
  %v6019 = vld [vmem:[#allocation3 + $0xfe] sm:$0xff]
  %v6020 = vld [vmem:[#allocation3 + $0x106] sm:$0xff]
  %v6021 = vld [vmem:[#allocation3 + $0x10e] sm:$0xff]
  %v6022 = vld [vmem:[#allocation3 + $0x116] sm:$0xff]
  %v6023 = vld [vmem:[#allocation3 + $0x11e] sm:$0xff]
  %v6024 = vld [vmem:[#allocation3 + $0x126] sm:$0xff]
  %v6025 = vld [vmem:[#allocation3 + $0xe7] sm:$0xff]
  %v6026 = vld [vmem:[#allocation3 + $0xef] sm:$0xff]
  %v6027 = vld [vmem:[#allocation3 + $0xf7] sm:$0xff]
  %v6028 = vld [vmem:[#allocation3 + $0xff] sm:$0xff]
  %v6029 = vld [vmem:[#allocation3 + $0x107] sm:$0xff]
  %v6030 = vld [vmem:[#allocation3 + $0x10f] sm:$0xff]
  %v6031 = vld [vmem:[#allocation3 + $0x117] sm:$0xff]
  %v6032 = vld [vmem:[#allocation3 + $0x11f] sm:$0xff]
  %v6033 = vld [vmem:[#allocation3 + $0x127] sm:$0xff]
  %v6034 = vld [vmem:[#allocation3 + $0x120] sm:$0xff]
  %v6035 = vld [vmem:[#allocation3 + $0x128] sm:$0xff]
  %v6036 = vld [vmem:[#allocation3 + $0x130] sm:$0xff]
  %v6037 = vld [vmem:[#allocation3 + $0x121] sm:$0xff]
  %v6038 = vld [vmem:[#allocation3 + $0x129] sm:$0xff]
  %v6039 = vld [vmem:[#allocation3 + $0x131] sm:$0xff]
  %v6040 = vld [vmem:[#allocation3 + $0x122] sm:$0xff]
  %v6041 = vld [vmem:[#allocation3 + $0x12a] sm:$0xff]
  %v6042 = vld [vmem:[#allocation3 + $0x132] sm:$0xff]
  %v6043 = vld [vmem:[#allocation3 + $0x123] sm:$0xff]
  %v6044 = vld [vmem:[#allocation3 + $0x12b] sm:$0xff]
  %v6045 = vld [vmem:[#allocation3 + $0x133] sm:$0xff]
  %v6046 = vld [vmem:[#allocation3 + $0x12c] sm:$0xff]
  %v6047 = vld [vmem:[#allocation3 + $0x134] sm:$0xff]
  %v6048 = vld [vmem:[#allocation3 + $0x13c] sm:$0xff]
  %v6049 = vld [vmem:[#allocation3 + $0x12d] sm:$0xff]
  %v6050 = vld [vmem:[#allocation3 + $0x135] sm:$0xff]
  %v6051 = vld [vmem:[#allocation3 + $0x13d] sm:$0xff]
  %v6052 = vld [vmem:[#allocation3 + $0x12e] sm:$0xff]
  %v6053 = vld [vmem:[#allocation3 + $0x136] sm:$0xff]
  %v6054 = vld [vmem:[#allocation3 + $0x13e] sm:$0xff]
  %v6055 = vld [vmem:[#allocation3 + $0x12f] sm:$0xff]
  %v6056 = vld [vmem:[#allocation3 + $0x137] sm:$0xff]
  %v6057 = vld [vmem:[#allocation3 + $0x13f] sm:$0xff]
  %v6058 = vld [vmem:[#allocation3 + $0x138] sm:$0xff]
  %v6059 = vld [vmem:[#allocation3 + $0x140] sm:$0xff]
  %v6060 = vld [vmem:[#allocation3 + $0x148] sm:$0xff]
  %v6061 = vld [vmem:[#allocation3 + $0x139] sm:$0xff]
  %v6062 = vld [vmem:[#allocation3 + $0x141] sm:$0xff]
  %v6063 = vld [vmem:[#allocation3 + $0x149] sm:$0xff]
  %v6064 = vld [vmem:[#allocation3 + $0x13a] sm:$0xff]
  %v6065 = vld [vmem:[#allocation3 + $0x142] sm:$0xff]
  %v6066 = vld [vmem:[#allocation3 + $0x14a] sm:$0xff]
  %v6067 = vld [vmem:[#allocation3 + $0x13b] sm:$0xff]
  %v6068 = vld [vmem:[#allocation3 + $0x143] sm:$0xff]
  %v6069 = vld [vmem:[#allocation3 + $0x14b] sm:$0xff]
  %v6070 = vld [vmem:[#allocation3 + $0x144] sm:$0xff]
  %v6071 = vld [vmem:[#allocation3 + $0x14c] sm:$0xff]
  %6081 = vrot.lane.b32.xlu0 %v5970, 10
  %v6082 = vpop.permute.xlu0 %6081
  %6083 = vrot.lane.b32.xlu0 %v5971, 10
  %v6084 = vpop.permute.xlu0 %6083
  %6085 = vrot.lane.b32.xlu0 %v5972, 10
  %v6086 = vpop.permute.xlu0 %6085
  %6087 = vrot.lane.b32.xlu0 %v5973, 10
  %v6088 = vpop.permute.xlu0 %6087
  %6089 = vrot.lane.b32.xlu0 %v5974, 10
  %v6090 = vpop.permute.xlu0 %6089
  %6091 = vrot.lane.b32.xlu0 %v5975, 10
  %v6092 = vpop.permute.xlu0 %6091
  %6093 = vrot.lane.b32.xlu0 %v5976, 10
  %v6094 = vpop.permute.xlu0 %6093
  %6095 = vrot.lane.b32.xlu0 %v5977, 10
  %v6096 = vpop.permute.xlu0 %6095
  %6097 = vrot.lane.b32.xlu0 %v5978, 10
  %v6098 = vpop.permute.xlu0 %6097
  %6117 = vrot.lane.b32.xlu0 %v5979, 20
  %v6118 = vpop.permute.xlu0 %6117
  %6119 = vrot.lane.b32.xlu0 %v5980, 20
  %v6120 = vpop.permute.xlu0 %6119
  %6121 = vrot.lane.b32.xlu0 %v5981, 20
  %v6122 = vpop.permute.xlu0 %6121
  %6123 = vrot.lane.b32.xlu0 %v5982, 20
  %v6124 = vpop.permute.xlu0 %6123
  %6125 = vrot.lane.b32.xlu0 %v5983, 20
  %v6126 = vpop.permute.xlu0 %6125
  %6127 = vrot.lane.b32.xlu0 %v5984, 20
  %v6128 = vpop.permute.xlu0 %6127
  %6129 = vrot.lane.b32.xlu0 %v5985, 20
  %v6130 = vpop.permute.xlu0 %6129
  %6131 = vrot.lane.b32.xlu0 %v5986, 20
  %v6132 = vpop.permute.xlu0 %6131
  %6133 = vrot.lane.b32.xlu0 %v5987, 20
  %v6134 = vpop.permute.xlu0 %6133
  %6153 = vrot.lane.b32.xlu0 %v5988, 30
  %v6154 = vpop.permute.xlu0 %6153
  %6155 = vrot.lane.b32.xlu0 %v5989, 30
  %v6156 = vpop.permute.xlu0 %6155
  %6157 = vrot.lane.b32.xlu0 %v5990, 30
  %v6158 = vpop.permute.xlu0 %6157
  %6159 = vrot.lane.b32.xlu0 %v5991, 30
  %v6160 = vpop.permute.xlu0 %6159
  %6161 = vrot.lane.b32.xlu0 %v5992, 30
  %v6162 = vpop.permute.xlu0 %6161
  %6163 = vrot.lane.b32.xlu0 %v5993, 30
  %v6164 = vpop.permute.xlu0 %6163
  %6165 = vrot.lane.b32.xlu0 %v5994, 30
  %v6166 = vpop.permute.xlu0 %6165
  %6167 = vrot.lane.b32.xlu0 %v5995, 30
  %v6168 = vpop.permute.xlu0 %6167
  %6169 = vrot.lane.b32.xlu0 %v5996, 30
  %v6170 = vpop.permute.xlu0 %6169
  %6189 = vrot.lane.b32.xlu0 %v5997, 40
  %v6190 = vpop.permute.xlu0 %6189
  %6191 = vrot.lane.b32.xlu0 %v5998, 40
  %v6192 = vpop.permute.xlu0 %6191
  %6193 = vrot.lane.b32.xlu0 %v5999, 40
  %v6194 = vpop.permute.xlu0 %6193
  %6195 = vrot.lane.b32.xlu0 %v6000, 40
  %v6196 = vpop.permute.xlu0 %6195
  %6197 = vrot.lane.b32.xlu0 %v6001, 40
  %v6198 = vpop.permute.xlu0 %6197
  %6199 = vrot.lane.b32.xlu0 %v6002, 40
  %v6200 = vpop.permute.xlu0 %6199
  %6201 = vrot.lane.b32.xlu0 %v6003, 40
  %v6202 = vpop.permute.xlu0 %6201
  %6203 = vrot.lane.b32.xlu0 %v6004, 40
  %v6204 = vpop.permute.xlu0 %6203
  %6205 = vrot.lane.b32.xlu0 %v6005, 40
  %v6206 = vpop.permute.xlu0 %6205
  %6217 = vrot.lane.b32.xlu0 %v5998, 50
  %v6218 = vpop.permute.xlu0 %6217
  %6219 = vrot.lane.b32.xlu0 %v5999, 50
  %v6220 = vpop.permute.xlu0 %6219
  %6221 = vrot.lane.b32.xlu0 %v6000, 50
  %v6222 = vpop.permute.xlu0 %6221
  %6223 = vrot.lane.b32.xlu0 %v6001, 50
  %v6224 = vpop.permute.xlu0 %6223
  %6225 = vrot.lane.b32.xlu0 %v6002, 50
  %v6226 = vpop.permute.xlu0 %6225
  %6227 = vrot.lane.b32.xlu0 %v6003, 50
  %v6228 = vpop.permute.xlu0 %6227
  %6229 = vrot.lane.b32.xlu0 %v6004, 50
  %v6230 = vpop.permute.xlu0 %6229
  %6231 = vrot.lane.b32.xlu0 %v6005, 50
  %v6232 = vpop.permute.xlu0 %6231
  %6233 = vrot.lane.b32.xlu0 %v6006, 50
  %v6234 = vpop.permute.xlu0 %6233
  %6253 = vrot.lane.b32.xlu0 %v6007, 60
  %v6254 = vpop.permute.xlu0 %6253
  %6255 = vrot.lane.b32.xlu0 %v6008, 60
  %v6256 = vpop.permute.xlu0 %6255
  %6257 = vrot.lane.b32.xlu0 %v6009, 60
  %v6258 = vpop.permute.xlu0 %6257
  %6259 = vrot.lane.b32.xlu0 %v6010, 60
  %v6260 = vpop.permute.xlu0 %6259
  %6261 = vrot.lane.b32.xlu0 %v6011, 60
  %v6262 = vpop.permute.xlu0 %6261
  %6263 = vrot.lane.b32.xlu0 %v6012, 60
  %v6264 = vpop.permute.xlu0 %6263
  %6265 = vrot.lane.b32.xlu0 %v6013, 60
  %v6266 = vpop.permute.xlu0 %6265
  %6267 = vrot.lane.b32.xlu0 %v6014, 60
  %v6268 = vpop.permute.xlu0 %6267
  %6269 = vrot.lane.b32.xlu0 %v6015, 60
  %v6270 = vpop.permute.xlu0 %6269
  %6289 = vrot.lane.b32.xlu0 %v6016, 70
  %v6290 = vpop.permute.xlu0 %6289
  %6291 = vrot.lane.b32.xlu0 %v6017, 70
  %v6292 = vpop.permute.xlu0 %6291
  %6293 = vrot.lane.b32.xlu0 %v6018, 70
  %v6294 = vpop.permute.xlu0 %6293
  %6295 = vrot.lane.b32.xlu0 %v6019, 70
  %v6296 = vpop.permute.xlu0 %6295
  %6297 = vrot.lane.b32.xlu0 %v6020, 70
  %v6298 = vpop.permute.xlu0 %6297
  %6299 = vrot.lane.b32.xlu0 %v6021, 70
  %v6300 = vpop.permute.xlu0 %6299
  %6301 = vrot.lane.b32.xlu0 %v6022, 70
  %v6302 = vpop.permute.xlu0 %6301
  %6303 = vrot.lane.b32.xlu0 %v6023, 70
  %v6304 = vpop.permute.xlu0 %6303
  %6305 = vrot.lane.b32.xlu0 %v6024, 70
  %v6306 = vpop.permute.xlu0 %6305
  %6325 = vrot.lane.b32.xlu0 %v6025, 80
  %v6326 = vpop.permute.xlu0 %6325
  %6327 = vrot.lane.b32.xlu0 %v6026, 80
  %v6328 = vpop.permute.xlu0 %6327
  %6329 = vrot.lane.b32.xlu0 %v6027, 80
  %v6330 = vpop.permute.xlu0 %6329
  %6331 = vrot.lane.b32.xlu0 %v6028, 80
  %v6332 = vpop.permute.xlu0 %6331
  %6333 = vrot.lane.b32.xlu0 %v6029, 80
  %v6334 = vpop.permute.xlu0 %6333
  %6335 = vrot.lane.b32.xlu0 %v6030, 80
  %v6336 = vpop.permute.xlu0 %6335
  %6337 = vrot.lane.b32.xlu0 %v6031, 80
  %v6338 = vpop.permute.xlu0 %6337
  %6339 = vrot.lane.b32.xlu0 %v6032, 80
  %v6340 = vpop.permute.xlu0 %6339
  %6341 = vrot.lane.b32.xlu0 %v6033, 80
  %v6342 = vpop.permute.xlu0 %6341
  %6361 = vrot.lane.b32.xlu0 %v5963, 90
  %v6362 = vpop.permute.xlu0 %6361
  %6363 = vrot.lane.b32.xlu0 %v5964, 90
  %v6364 = vpop.permute.xlu0 %6363
  %6365 = vrot.lane.b32.xlu0 %v5965, 90
  %v6366 = vpop.permute.xlu0 %6365
  %6367 = vrot.lane.b32.xlu0 %v5966, 90
  %v6368 = vpop.permute.xlu0 %6367
  %6369 = vrot.lane.b32.xlu0 %v5967, 90
  %v6370 = vpop.permute.xlu0 %6369
  %6371 = vrot.lane.b32.xlu0 %v5968, 90
  %v6372 = vpop.permute.xlu0 %6371
  %6373 = vrot.lane.b32.xlu0 %v5969, 90
  %v6374 = vpop.permute.xlu0 %6373
  %6375 = vrot.lane.b32.xlu0 %v6034, 90
  %v6376 = vpop.permute.xlu0 %6375
  %6377 = vrot.lane.b32.xlu0 %v6035, 90
  %v6378 = vpop.permute.xlu0 %6377
  %6389 = vrot.lane.b32.xlu0 %v5964, 100
  %v6390 = vpop.permute.xlu0 %6389
  %6391 = vrot.lane.b32.xlu0 %v5965, 100
  %v6392 = vpop.permute.xlu0 %6391
  %6393 = vrot.lane.b32.xlu0 %v5966, 100
  %v6394 = vpop.permute.xlu0 %6393
  %6395 = vrot.lane.b32.xlu0 %v5967, 100
  %v6396 = vpop.permute.xlu0 %6395
  %6397 = vrot.lane.b32.xlu0 %v5968, 100
  %v6398 = vpop.permute.xlu0 %6397
  %6399 = vrot.lane.b32.xlu0 %v5969, 100
  %v6400 = vpop.permute.xlu0 %6399
  %6401 = vrot.lane.b32.xlu0 %v6034, 100
  %v6402 = vpop.permute.xlu0 %6401
  %6403 = vrot.lane.b32.xlu0 %v6035, 100
  %v6404 = vpop.permute.xlu0 %6403
  %6405 = vrot.lane.b32.xlu0 %v6036, 100
  %v6406 = vpop.permute.xlu0 %6405
  %6419 = vrot.lane.b32.xlu0 %v5973, 110
  %v6420 = vpop.permute.xlu0 %6419
  %6421 = vrot.lane.b32.xlu0 %v5974, 110
  %v6422 = vpop.permute.xlu0 %6421
  %6423 = vrot.lane.b32.xlu0 %v5975, 110
  %v6424 = vpop.permute.xlu0 %6423
  %6425 = vrot.lane.b32.xlu0 %v5976, 110
  %v6426 = vpop.permute.xlu0 %6425
  %6427 = vrot.lane.b32.xlu0 %v5977, 110
  %v6428 = vpop.permute.xlu0 %6427
  %6429 = vrot.lane.b32.xlu0 %v5978, 110
  %v6430 = vpop.permute.xlu0 %6429
  %6431 = vrot.lane.b32.xlu0 %v6037, 110
  %v6432 = vpop.permute.xlu0 %6431
  %6433 = vrot.lane.b32.xlu0 %v6038, 110
  %v6434 = vpop.permute.xlu0 %6433
  %6435 = vrot.lane.b32.xlu0 %v6039, 110
  %v6436 = vpop.permute.xlu0 %6435
  %6449 = vrot.lane.b32.xlu0 %v5982, 120
  %v6450 = vpop.permute.xlu0 %6449
  %6451 = vrot.lane.b32.xlu0 %v5983, 120
  %v6452 = vpop.permute.xlu0 %6451
  %6453 = vrot.lane.b32.xlu0 %v5984, 120
  %v6454 = vpop.permute.xlu0 %6453
  %6455 = vrot.lane.b32.xlu0 %v5985, 120
  %v6456 = vpop.permute.xlu0 %6455
  %6457 = vrot.lane.b32.xlu0 %v5986, 120
  %v6458 = vpop.permute.xlu0 %6457
  %6459 = vrot.lane.b32.xlu0 %v5987, 120
  %v6460 = vpop.permute.xlu0 %6459
  %6461 = vrot.lane.b32.xlu0 %v6040, 120
  %v6462 = vpop.permute.xlu0 %6461
  %6463 = vrot.lane.b32.xlu0 %v6041, 120
  %v6464 = vpop.permute.xlu0 %6463
  %6465 = vrot.lane.b32.xlu0 %v6042, 120
  %v6466 = vpop.permute.xlu0 %6465
  %6479 = vrot.lane.b32.xlu0 %v5991, 2
  %v6480 = vpop.permute.xlu0 %6479
  %6481 = vrot.lane.b32.xlu0 %v5992, 2
  %v6482 = vpop.permute.xlu0 %6481
  %6483 = vrot.lane.b32.xlu0 %v5993, 2
  %v6484 = vpop.permute.xlu0 %6483
  %6485 = vrot.lane.b32.xlu0 %v5994, 2
  %v6486 = vpop.permute.xlu0 %6485
  %6487 = vrot.lane.b32.xlu0 %v5995, 2
  %v6488 = vpop.permute.xlu0 %6487
  %6489 = vrot.lane.b32.xlu0 %v5996, 2
  %v6490 = vpop.permute.xlu0 %6489
  %6491 = vrot.lane.b32.xlu0 %v6043, 2
  %v6492 = vpop.permute.xlu0 %6491
  %6493 = vrot.lane.b32.xlu0 %v6044, 2
  %v6494 = vpop.permute.xlu0 %6493
  %6495 = vrot.lane.b32.xlu0 %v6045, 2
  %v6496 = vpop.permute.xlu0 %6495
  %6508 = vrot.lane.b32.xlu0 %v6000, 12
  %v6509 = vpop.permute.xlu0 %6508
  %6510 = vrot.lane.b32.xlu0 %v6001, 12
  %v6511 = vpop.permute.xlu0 %6510
  %6512 = vrot.lane.b32.xlu0 %v6002, 12
  %v6513 = vpop.permute.xlu0 %6512
  %6514 = vrot.lane.b32.xlu0 %v6003, 12
  %v6515 = vpop.permute.xlu0 %6514
  %6516 = vrot.lane.b32.xlu0 %v6004, 12
  %v6517 = vpop.permute.xlu0 %6516
  %6518 = vrot.lane.b32.xlu0 %v6005, 12
  %v6519 = vpop.permute.xlu0 %6518
  %6520 = vrot.lane.b32.xlu0 %v6006, 12
  %v6521 = vpop.permute.xlu0 %6520
  %6522 = vrot.lane.b32.xlu0 %v6046, 12
  %v6523 = vpop.permute.xlu0 %6522
  %6524 = vrot.lane.b32.xlu0 %v6047, 12
  %v6525 = vpop.permute.xlu0 %6524
  %6536 = vrot.lane.b32.xlu0 %v6001, 22
  %v6537 = vpop.permute.xlu0 %6536
  %6538 = vrot.lane.b32.xlu0 %v6002, 22
  %v6539 = vpop.permute.xlu0 %6538
  %6540 = vrot.lane.b32.xlu0 %v6003, 22
  %v6541 = vpop.permute.xlu0 %6540
  %6542 = vrot.lane.b32.xlu0 %v6004, 22
  %v6543 = vpop.permute.xlu0 %6542
  %6544 = vrot.lane.b32.xlu0 %v6005, 22
  %v6545 = vpop.permute.xlu0 %6544
  %6546 = vrot.lane.b32.xlu0 %v6006, 22
  %v6547 = vpop.permute.xlu0 %6546
  %6548 = vrot.lane.b32.xlu0 %v6046, 22
  %v6549 = vpop.permute.xlu0 %6548
  %6550 = vrot.lane.b32.xlu0 %v6047, 22
  %v6551 = vpop.permute.xlu0 %6550
  %6552 = vrot.lane.b32.xlu0 %v6048, 22
  %v6553 = vpop.permute.xlu0 %6552
  %v6563 = vsel %vm453, %v5961, %v6082
  %v6564 = vsel %vm453, %v5962, %v6084
  %v6565 = vsel %vm453, %v5963, %v6086
  %v6566 = vsel %vm453, %v5964, %v6088
  %v6567 = vsel %vm453, %v5965, %v6090
  %v6568 = vsel %vm453, %v5966, %v6092
  %v6569 = vsel %vm453, %v5967, %v6094
  %v6570 = vsel %vm453, %v5968, %v6096
  %v6571 = vsel %vm453, %v5969, %v6098
  %v6572 = vsel %vm2813, %v6563, %v6118
  %v6573 = vsel %vm2813, %v6564, %v6120
  %v6574 = vsel %vm2813, %v6565, %v6122
  %v6575 = vsel %vm2813, %v6566, %v6124
  %v6576 = vsel %vm2813, %v6567, %v6126
  %v6577 = vsel %vm2813, %v6568, %v6128
  %v6578 = vsel %vm2813, %v6569, %v6130
  %v6579 = vsel %vm2813, %v6570, %v6132
  %v6580 = vsel %vm2813, %v6571, %v6134
  %v6581 = vsel %vm2823, %v6572, %v6154
  %v6582 = vsel %vm2823, %v6573, %v6156
  %v6583 = vsel %vm2823, %v6574, %v6158
  %v6584 = vsel %vm2823, %v6575, %v6160
  %v6585 = vsel %vm2823, %v6576, %v6162
  %v6586 = vsel %vm2823, %v6577, %v6164
  %v6587 = vsel %vm2823, %v6578, %v6166
  %v6588 = vsel %vm2823, %v6579, %v6168
  %v6589 = vsel %vm2823, %v6580, %v6170
  %v6590 = vsel %vm2833, %v6581, %v6190
  %v6591 = vsel %vm2833, %v6582, %v6192
  %v6592 = vsel %vm2833, %v6583, %v6194
  %v6593 = vsel %vm2833, %v6584, %v6196
  %v6594 = vsel %vm2833, %v6585, %v6198
  %v6595 = vsel %vm2833, %v6586, %v6200
  %v6596 = vsel %vm2833, %v6587, %v6202
  %v6597 = vsel %vm2833, %v6588, %v6204
  %v6598 = vsel %vm2833, %v6589, %v6206
  %v6599 = vsel %vm2843, %v6590, %v6218
  %v6600 = vsel %vm2843, %v6591, %v6220
  %v6601 = vsel %vm2843, %v6592, %v6222
  %v6602 = vsel %vm2843, %v6593, %v6224
  %v6603 = vsel %vm2843, %v6594, %v6226
  %v6604 = vsel %vm2843, %v6595, %v6228
  %v6605 = vsel %vm2843, %v6596, %v6230
  %v6606 = vsel %vm2843, %v6597, %v6232
  %v6607 = vsel %vm2843, %v6598, %v6234
  %v6608 = vsel %vm2853, %v6599, %v6254
  %v6609 = vsel %vm2853, %v6600, %v6256
  %v6610 = vsel %vm2853, %v6601, %v6258
  %v6611 = vsel %vm2853, %v6602, %v6260
  %v6612 = vsel %vm2853, %v6603, %v6262
  %v6613 = vsel %vm2853, %v6604, %v6264
  %v6614 = vsel %vm2853, %v6605, %v6266
  %v6615 = vsel %vm2853, %v6606, %v6268
  %v6616 = vsel %vm2853, %v6607, %v6270
  %v6617 = vsel %vm2863, %v6608, %v6290
  %v6618 = vsel %vm2863, %v6609, %v6292
  %v6619 = vsel %vm2863, %v6610, %v6294
  %v6620 = vsel %vm2863, %v6611, %v6296
  %v6621 = vsel %vm2863, %v6612, %v6298
  %v6622 = vsel %vm2863, %v6613, %v6300
  %v6623 = vsel %vm2863, %v6614, %v6302
  %v6624 = vsel %vm2863, %v6615, %v6304
  %v6625 = vsel %vm2863, %v6616, %v6306
  %v6626 = vsel %vm2873, %v6617, %v6326
  %v6627 = vsel %vm2873, %v6618, %v6328
  %v6628 = vsel %vm2873, %v6619, %v6330
  %v6629 = vsel %vm2873, %v6620, %v6332
  %v6630 = vsel %vm2873, %v6621, %v6334
  %v6631 = vsel %vm2873, %v6622, %v6336
  %v6632 = vsel %vm2873, %v6623, %v6338
  %v6633 = vsel %vm2873, %v6624, %v6340
  %v6634 = vsel %vm2873, %v6625, %v6342
  %v6635 = vsel %vm2883, %v6626, %v6362
  %v6636 = vsel %vm2883, %v6627, %v6364
  %v6637 = vsel %vm2883, %v6628, %v6366
  %v6638 = vsel %vm2883, %v6629, %v6368
  %v6639 = vsel %vm2883, %v6630, %v6370
  %v6640 = vsel %vm2883, %v6631, %v6372
  %v6641 = vsel %vm2883, %v6632, %v6374
  %v6642 = vsel %vm2883, %v6633, %v6376
  %v6643 = vsel %vm2883, %v6634, %v6378
  %v6644 = vsel %vm2893, %v6635, %v6390
  %v6645 = vsel %vm2893, %v6636, %v6392
  %v6646 = vsel %vm2893, %v6637, %v6394
  %v6647 = vsel %vm2893, %v6638, %v6396
  %v6648 = vsel %vm2893, %v6639, %v6398
  %v6649 = vsel %vm2893, %v6640, %v6400
  %v6650 = vsel %vm2893, %v6641, %v6402
  %v6651 = vsel %vm2893, %v6642, %v6404
  %v6652 = vsel %vm2893, %v6643, %v6406
  %v6653 = vsel %vm2903, %v6644, %v6420
  %v6654 = vsel %vm2903, %v6645, %v6422
  %v6655 = vsel %vm2903, %v6646, %v6424
  %v6656 = vsel %vm2903, %v6647, %v6426
  %v6657 = vsel %vm2903, %v6648, %v6428
  %v6658 = vsel %vm2903, %v6649, %v6430
  %v6659 = vsel %vm2903, %v6650, %v6432
  %v6660 = vsel %vm2903, %v6651, %v6434
  %v6661 = vsel %vm2903, %v6652, %v6436
  %v6662 = vsel %vm2913, %v6653, %v6450
  %v6663 = vsel %vm2913, %v6654, %v6452
  %v6664 = vsel %vm2913, %v6655, %v6454
  %v6665 = vsel %vm2913, %v6656, %v6456
  %v6666 = vsel %vm2913, %v6657, %v6458
  %v6667 = vsel %vm2913, %v6658, %v6460
  %v6668 = vsel %vm2913, %v6659, %v6462
  %v6669 = vsel %vm2913, %v6660, %v6464
  %v6670 = vsel %vm2913, %v6661, %v6466
  %v6671 = vsel %vm2923, %v6450, %v6480
  %v6672 = vsel %vm2923, %v6452, %v6482
  %v6673 = vsel %vm2923, %v6454, %v6484
  %v6674 = vsel %vm2923, %v6456, %v6486
  %v6675 = vsel %vm2923, %v6458, %v6488
  %v6676 = vsel %vm2923, %v6460, %v6490
  %v6677 = vsel %vm2923, %v6462, %v6492
  %v6678 = vsel %vm2923, %v6464, %v6494
  %v6679 = vsel %vm2923, %v6466, %v6496
  %v6680 = vsel %vm2933, %v6671, %v6509
  %v6681 = vsel %vm2933, %v6672, %v6511
  %v6682 = vsel %vm2933, %v6673, %v6513
  %v6683 = vsel %vm2933, %v6674, %v6515
  %v6684 = vsel %vm2933, %v6675, %v6517
  %v6685 = vsel %vm2933, %v6676, %v6519
  %v6686 = vsel %vm2933, %v6677, %v6521
  %v6687 = vsel %vm2933, %v6678, %v6523
  %v6688 = vsel %vm2933, %v6679, %v6525
  %v6689 = vsel %vm2943, %v6680, %v6537
  %v6690 = vsel %vm2943, %v6681, %v6539
  %v6691 = vsel %vm2943, %v6682, %v6541
  %v6692 = vsel %vm2943, %v6683, %v6543
  %v6693 = vsel %vm2943, %v6684, %v6545
  %v6694 = vsel %vm2943, %v6685, %v6547
  %v6695 = vsel %vm2943, %v6686, %v6549
  %v6696 = vsel %vm2943, %v6687, %v6551
  %v6697 = vsel %vm2943, %v6688, %v6553
  %6701 = vrot.lane.b32.xlu0 %v6019, 10
  %v6702 = vpop.permute.xlu0 %6701
  %6703 = vrot.lane.b32.xlu0 %v6020, 10
  %v6704 = vpop.permute.xlu0 %6703
  %6705 = vrot.lane.b32.xlu0 %v6021, 10
  %v6706 = vpop.permute.xlu0 %6705
  %6707 = vrot.lane.b32.xlu0 %v6022, 10
  %v6708 = vpop.permute.xlu0 %6707
  %6709 = vrot.lane.b32.xlu0 %v6023, 10
  %v6710 = vpop.permute.xlu0 %6709
  %6711 = vrot.lane.b32.xlu0 %v6024, 10
  %v6712 = vpop.permute.xlu0 %6711
  %6713 = vrot.lane.b32.xlu0 %v6052, 10
  %v6714 = vpop.permute.xlu0 %6713
  %6715 = vrot.lane.b32.xlu0 %v6053, 10
  %v6716 = vpop.permute.xlu0 %6715
  %6717 = vrot.lane.b32.xlu0 %v6054, 10
  %v6718 = vpop.permute.xlu0 %6717
  %6731 = vrot.lane.b32.xlu0 %v6028, 20
  %v6732 = vpop.permute.xlu0 %6731
  %6733 = vrot.lane.b32.xlu0 %v6029, 20
  %v6734 = vpop.permute.xlu0 %6733
  %6735 = vrot.lane.b32.xlu0 %v6030, 20
  %v6736 = vpop.permute.xlu0 %6735
  %6737 = vrot.lane.b32.xlu0 %v6031, 20
  %v6738 = vpop.permute.xlu0 %6737
  %6739 = vrot.lane.b32.xlu0 %v6032, 20
  %v6740 = vpop.permute.xlu0 %6739
  %6741 = vrot.lane.b32.xlu0 %v6033, 20
  %v6742 = vpop.permute.xlu0 %6741
  %6743 = vrot.lane.b32.xlu0 %v6055, 20
  %v6744 = vpop.permute.xlu0 %6743
  %6745 = vrot.lane.b32.xlu0 %v6056, 20
  %v6746 = vpop.permute.xlu0 %6745
  %6747 = vrot.lane.b32.xlu0 %v6057, 20
  %v6748 = vpop.permute.xlu0 %6747
  %6760 = vrot.lane.b32.xlu0 %v5966, 30
  %v6761 = vpop.permute.xlu0 %6760
  %6762 = vrot.lane.b32.xlu0 %v5967, 30
  %v6763 = vpop.permute.xlu0 %6762
  %6764 = vrot.lane.b32.xlu0 %v5968, 30
  %v6765 = vpop.permute.xlu0 %6764
  %6766 = vrot.lane.b32.xlu0 %v5969, 30
  %v6767 = vpop.permute.xlu0 %6766
  %6768 = vrot.lane.b32.xlu0 %v6034, 30
  %v6769 = vpop.permute.xlu0 %6768
  %6770 = vrot.lane.b32.xlu0 %v6035, 30
  %v6771 = vpop.permute.xlu0 %6770
  %6772 = vrot.lane.b32.xlu0 %v6036, 30
  %v6773 = vpop.permute.xlu0 %6772
  %6774 = vrot.lane.b32.xlu0 %v6058, 30
  %v6775 = vpop.permute.xlu0 %6774
  %6776 = vrot.lane.b32.xlu0 %v6059, 30
  %v6777 = vpop.permute.xlu0 %6776
  %6788 = vrot.lane.b32.xlu0 %v5967, 40
  %v6789 = vpop.permute.xlu0 %6788
  %6790 = vrot.lane.b32.xlu0 %v5968, 40
  %v6791 = vpop.permute.xlu0 %6790
  %6792 = vrot.lane.b32.xlu0 %v5969, 40
  %v6793 = vpop.permute.xlu0 %6792
  %6794 = vrot.lane.b32.xlu0 %v6034, 40
  %v6795 = vpop.permute.xlu0 %6794
  %6796 = vrot.lane.b32.xlu0 %v6035, 40
  %v6797 = vpop.permute.xlu0 %6796
  %6798 = vrot.lane.b32.xlu0 %v6036, 40
  %v6799 = vpop.permute.xlu0 %6798
  %6800 = vrot.lane.b32.xlu0 %v6058, 40
  %v6801 = vpop.permute.xlu0 %6800
  %6802 = vrot.lane.b32.xlu0 %v6059, 40
  %v6803 = vpop.permute.xlu0 %6802
  %6804 = vrot.lane.b32.xlu0 %v6060, 40
  %v6805 = vpop.permute.xlu0 %6804
  %6818 = vrot.lane.b32.xlu0 %v5976, 50
  %v6819 = vpop.permute.xlu0 %6818
  %6820 = vrot.lane.b32.xlu0 %v5977, 50
  %v6821 = vpop.permute.xlu0 %6820
  %6822 = vrot.lane.b32.xlu0 %v5978, 50
  %v6823 = vpop.permute.xlu0 %6822
  %6824 = vrot.lane.b32.xlu0 %v6037, 50
  %v6825 = vpop.permute.xlu0 %6824
  %6826 = vrot.lane.b32.xlu0 %v6038, 50
  %v6827 = vpop.permute.xlu0 %6826
  %6828 = vrot.lane.b32.xlu0 %v6039, 50
  %v6829 = vpop.permute.xlu0 %6828
  %6830 = vrot.lane.b32.xlu0 %v6061, 50
  %v6831 = vpop.permute.xlu0 %6830
  %6832 = vrot.lane.b32.xlu0 %v6062, 50
  %v6833 = vpop.permute.xlu0 %6832
  %6834 = vrot.lane.b32.xlu0 %v6063, 50
  %v6835 = vpop.permute.xlu0 %6834
  %6848 = vrot.lane.b32.xlu0 %v5985, 60
  %v6849 = vpop.permute.xlu0 %6848
  %6850 = vrot.lane.b32.xlu0 %v5986, 60
  %v6851 = vpop.permute.xlu0 %6850
  %6852 = vrot.lane.b32.xlu0 %v5987, 60
  %v6853 = vpop.permute.xlu0 %6852
  %6854 = vrot.lane.b32.xlu0 %v6040, 60
  %v6855 = vpop.permute.xlu0 %6854
  %6856 = vrot.lane.b32.xlu0 %v6041, 60
  %v6857 = vpop.permute.xlu0 %6856
  %6858 = vrot.lane.b32.xlu0 %v6042, 60
  %v6859 = vpop.permute.xlu0 %6858
  %6860 = vrot.lane.b32.xlu0 %v6064, 60
  %v6861 = vpop.permute.xlu0 %6860
  %6862 = vrot.lane.b32.xlu0 %v6065, 60
  %v6863 = vpop.permute.xlu0 %6862
  %6864 = vrot.lane.b32.xlu0 %v6066, 60
  %v6865 = vpop.permute.xlu0 %6864
  %6878 = vrot.lane.b32.xlu0 %v5994, 70
  %v6879 = vpop.permute.xlu0 %6878
  %6880 = vrot.lane.b32.xlu0 %v5995, 70
  %v6881 = vpop.permute.xlu0 %6880
  %6882 = vrot.lane.b32.xlu0 %v5996, 70
  %v6883 = vpop.permute.xlu0 %6882
  %6884 = vrot.lane.b32.xlu0 %v6043, 70
  %v6885 = vpop.permute.xlu0 %6884
  %6886 = vrot.lane.b32.xlu0 %v6044, 70
  %v6887 = vpop.permute.xlu0 %6886
  %6888 = vrot.lane.b32.xlu0 %v6045, 70
  %v6889 = vpop.permute.xlu0 %6888
  %6890 = vrot.lane.b32.xlu0 %v6067, 70
  %v6891 = vpop.permute.xlu0 %6890
  %6892 = vrot.lane.b32.xlu0 %v6068, 70
  %v6893 = vpop.permute.xlu0 %6892
  %6894 = vrot.lane.b32.xlu0 %v6069, 70
  %v6895 = vpop.permute.xlu0 %6894
  %6907 = vrot.lane.b32.xlu0 %v6003, 80
  %v6908 = vpop.permute.xlu0 %6907
  %6909 = vrot.lane.b32.xlu0 %v6004, 80
  %v6910 = vpop.permute.xlu0 %6909
  %6911 = vrot.lane.b32.xlu0 %v6005, 80
  %v6912 = vpop.permute.xlu0 %6911
  %6913 = vrot.lane.b32.xlu0 %v6006, 80
  %v6914 = vpop.permute.xlu0 %6913
  %6915 = vrot.lane.b32.xlu0 %v6046, 80
  %v6916 = vpop.permute.xlu0 %6915
  %6917 = vrot.lane.b32.xlu0 %v6047, 80
  %v6918 = vpop.permute.xlu0 %6917
  %6919 = vrot.lane.b32.xlu0 %v6048, 80
  %v6920 = vpop.permute.xlu0 %6919
  %6921 = vrot.lane.b32.xlu0 %v6070, 80
  %v6922 = vpop.permute.xlu0 %6921
  %6923 = vrot.lane.b32.xlu0 %v6071, 80
  %v6924 = vpop.permute.xlu0 %6923
  %v6934 = vsel %vm453, %v6010, %v6702
  %v6935 = vsel %vm453, %v6011, %v6704
  %v6936 = vsel %vm453, %v6012, %v6706
  %v6937 = vsel %vm453, %v6013, %v6708
  %v6938 = vsel %vm453, %v6014, %v6710
  %v6939 = vsel %vm453, %v6015, %v6712
  %v6940 = vsel %vm453, %v6049, %v6714
  %v6941 = vsel %vm453, %v6050, %v6716
  %v6942 = vsel %vm453, %v6051, %v6718
  %v6943 = vsel %vm2813, %v6934, %v6732
  %v6944 = vsel %vm2813, %v6935, %v6734
  %v6945 = vsel %vm2813, %v6936, %v6736
  %v6946 = vsel %vm2813, %v6937, %v6738
  %v6947 = vsel %vm2813, %v6938, %v6740
  %v6948 = vsel %vm2813, %v6939, %v6742
  %v6949 = vsel %vm2813, %v6940, %v6744
  %v6950 = vsel %vm2813, %v6941, %v6746
  %v6951 = vsel %vm2813, %v6942, %v6748
  %v6952 = vsel %vm2823, %v6943, %v6761
  %v6953 = vsel %vm2823, %v6944, %v6763
  %v6954 = vsel %vm2823, %v6945, %v6765
  %v6955 = vsel %vm2823, %v6946, %v6767
  %v6956 = vsel %vm2823, %v6947, %v6769
  %v6957 = vsel %vm2823, %v6948, %v6771
  %v6958 = vsel %vm2823, %v6949, %v6773
  %v6959 = vsel %vm2823, %v6950, %v6775
  %v6960 = vsel %vm2823, %v6951, %v6777
  %v6961 = vsel %vm2833, %v6952, %v6789
  %v6962 = vsel %vm2833, %v6953, %v6791
  %v6963 = vsel %vm2833, %v6954, %v6793
  %v6964 = vsel %vm2833, %v6955, %v6795
  %v6965 = vsel %vm2833, %v6956, %v6797
  %v6966 = vsel %vm2833, %v6957, %v6799
  %v6967 = vsel %vm2833, %v6958, %v6801
  %v6968 = vsel %vm2833, %v6959, %v6803
  %v6969 = vsel %vm2833, %v6960, %v6805
  %v6970 = vsel %vm2843, %v6961, %v6819
  %v6971 = vsel %vm2843, %v6962, %v6821
  %v6972 = vsel %vm2843, %v6963, %v6823
  %v6973 = vsel %vm2843, %v6964, %v6825
  %v6974 = vsel %vm2843, %v6965, %v6827
  %v6975 = vsel %vm2843, %v6966, %v6829
  %v6976 = vsel %vm2843, %v6967, %v6831
  %v6977 = vsel %vm2843, %v6968, %v6833
  %v6978 = vsel %vm2843, %v6969, %v6835
  %v6979 = vsel %vm2853, %v6970, %v6849
  %v6980 = vsel %vm2853, %v6971, %v6851
  %v6981 = vsel %vm2853, %v6972, %v6853
  %v6982 = vsel %vm2853, %v6973, %v6855
  %v6983 = vsel %vm2853, %v6974, %v6857
  %v6984 = vsel %vm2853, %v6975, %v6859
  %v6985 = vsel %vm2853, %v6976, %v6861
  %v6986 = vsel %vm2853, %v6977, %v6863
  %v6987 = vsel %vm2853, %v6978, %v6865
  %v6988 = vsel %vm2863, %v6979, %v6879
  %v6989 = vsel %vm2863, %v6980, %v6881
  %v6990 = vsel %vm2863, %v6981, %v6883
  %v6991 = vsel %vm2863, %v6982, %v6885
  %v6992 = vsel %vm2863, %v6983, %v6887
  %v6993 = vsel %vm2863, %v6984, %v6889
  %v6994 = vsel %vm2863, %v6985, %v6891
  %v6995 = vsel %vm2863, %v6986, %v6893
  %v6996 = vsel %vm2863, %v6987, %v6895
  %v6997 = vsel %vm2873, %v6988, %v6908
  %v6998 = vsel %vm2873, %v6989, %v6910
  %v6999 = vsel %vm2873, %v6990, %v6912
  %v7000 = vsel %vm2873, %v6991, %v6914
  %v7001 = vsel %vm2873, %v6992, %v6916
  %v7002 = vsel %vm2873, %v6993, %v6918
  %v7003 = vsel %vm2873, %v6994, %v6920
  %v7004 = vsel %vm2873, %v6995, %v6922
  %v7005 = vsel %vm2873, %v6996, %v6924
  %7015 = vrot.lane.b32.xlu0 %v6997, 32
  %v7016 = vpop.permute.xlu0 %7015
  %7017 = vrot.lane.b32.xlu0 %v6998, 32
  %v7018 = vpop.permute.xlu0 %7017
  %7019 = vrot.lane.b32.xlu0 %v6999, 32
  %v7020 = vpop.permute.xlu0 %7019
  %7021 = vrot.lane.b32.xlu0 %v7000, 32
  %v7022 = vpop.permute.xlu0 %7021
  %7023 = vrot.lane.b32.xlu0 %v7001, 32
  %v7024 = vpop.permute.xlu0 %7023
  %7025 = vrot.lane.b32.xlu0 %v7002, 32
  %v7026 = vpop.permute.xlu0 %7025
  %7027 = vrot.lane.b32.xlu0 %v7003, 32
  %v7028 = vpop.permute.xlu0 %7027
  %7029 = vrot.lane.b32.xlu0 %v7004, 32
  %v7030 = vpop.permute.xlu0 %7029
  %7031 = vrot.lane.b32.xlu0 %v7005, 32
  %v7032 = vpop.permute.xlu0 %7031
  %v7042 = vsel %vm3297, %v6689, %v7016
  %v7043 = vsel %vm3297, %v6690, %v7018
  %v7044 = vsel %vm3297, %v6691, %v7020
  %v7045 = vsel %vm3297, %v6692, %v7022
  %v7046 = vsel %vm3297, %v6693, %v7024
  %v7047 = vsel %vm3297, %v6694, %v7026
  %v7048 = vsel %vm3297, %v6695, %v7028
  %v7049 = vsel %vm3297, %v6696, %v7030
  %v7050 = vsel %vm3297, %v6697, %v7032
  %v7052 = vsel %vm3311, %v7042, 0
  %v7055 = vsel %vm3311, %v7043, 0
  %v7058 = vsel %vm3311, %v7044, 0
  %v7061 = vsel %vm3311, %v7045, 0
  %v7064 = vsel %vm3311, %v7046, 0
  %v7067 = vsel %vm3311, %v7047, 0
  %v7070 = vsel %vm3311, %v7048, 0
  %v7073 = vsel %vm3311, %v7049, 0
  %v7076 = vsel %vm3311, %v7050, 0
  %7078 = vmatprep.subr.mxu0 0.0
  %7079 = vmatpush1.msra.mxu0 %v2169
  %7080 = vmatprep.subr.mxu0 0.0
  %7081 = vmatpush1.msra.mxu0 %v2170
  %7082 = vmatprep.subr.mxu0 0.0
  %7083 = vmatpush1.msra.mxu0 %v2171
  %7084 = vmatprep.subr.mxu0 0.0
  %7085 = vmatpush1.msra.mxu0 %v2172
  %7086 = vmatprep.subr.mxu0 0.0
  %7087 = vmatpush1.msra.mxu0 %v2173
  %7088 = vmatprep.subr.mxu0 0.0
  %7089 = vmatpush1.msra.mxu0 %v2174
  %7090 = vmatprep.subr.mxu0 0.0
  %7091 = vmatpush1.msra.mxu0 %v2175
  %7092 = vmatprep.subr.mxu0 0.0
  %7093 = vmatpush1.msra.mxu0 %v2176
  %7094 = vmatprep.subr.mxu0 0.0
  %7095 = vmatpush1.msra.mxu0 %v2177
  %7096 = vmatprep.subr.mxu0 0.0
  %7097 = vmatpush1.msra.mxu0 %v2178
  %7098 = vmatprep.subr.mxu0 0.0
  %7099 = vmatpush1.msra.mxu0 %v2179
  %7100 = vmatprep.subr.mxu0 0.0
  %7101 = vmatpush1.msra.mxu0 %v2180
  %7102 = vmatprep.subr.mxu0 0.0
  %7103 = vmatpush1.msra.mxu0 %v2181
  %7104 = vmatprep.subr.mxu0 0.0
  %7105 = vmatpush1.msra.mxu0 %v2182
  %7106 = vmatprep.subr.mxu0 0.0
  %7107 = vmatpush1.msra.mxu0 %v2183
  %7108 = vmatprep.subr.mxu0 0.0
  %7109 = vmatpush1.msra.mxu0 %v2184
  %7110 = vmatprep.subr.mxu0 0.0
  %7111 = vmatpush1.msra.mxu0 %v2185
  %7112 = vmatprep.subr.mxu0 0.0
  %7113 = vmatpush1.msra.mxu0 %v2186
  %7114 = vmatprep.subr.mxu0 0.0
  %7115 = vmatpush1.msra.mxu0 %v2187
  %7116 = vmatprep.subr.mxu0 0.0
  %7117 = vmatpush1.msra.mxu0 %v2188
  %7118 = vmatprep.subr.mxu0 0.0
  %7119 = vmatpush1.msra.mxu0 %v2189
  %7120 = vmatprep.subr.mxu0 0.0
  %7121 = vmatpush1.msra.mxu0 %v2190
  %7122 = vmatprep.subr.mxu0 0.0
  %7123 = vmatpush1.msra.mxu0 %v2191
  %7124 = vmatprep.subr.mxu0 0.0
  %7125 = vmatpush1.msra.mxu0 %v2192
  %7126 = vmatprep.subr.mxu0 0.0
  %7127 = vmatpush1.msra.mxu0 %v2193
  %7128 = vmatprep.subr.mxu0 0.0
  %7129 = vmatpush1.msra.mxu0 %v2194
  %7130 = vmatprep.subr.mxu0 0.0
  %7131 = vmatpush1.msra.mxu0 %v2195
  %7132 = vmatprep.subr.mxu0 0.0
  %7133 = vmatpush1.msra.mxu0 %v2196
  %7134 = vmatprep.subr.mxu0 0.0
  %7135 = vmatpush1.msra.mxu0 %v2197
  %7136 = vmatprep.subr.mxu0 0.0
  %7137 = vmatpush1.msra.mxu0 %v2198
  %7138 = vmatprep.subr.mxu0 0.0
  %7139 = vmatpush1.msra.mxu0 %v2199
  %7140 = vmatprep.subr.mxu0 0.0
  %7141 = vmatpush1.msra.mxu0 %v3341
  %7142 = vmatprep.mubr.f32.mxu0 %v7052
  %7143 = vmatmul.mubr.f32.gmra.mrb[0].mxu0 %v6662
  %v7144 = vpop.f32.mrb[0].mxu0
  %v7145 = vadd.f32 %v3310, %v7144
  %v7146 = vpop.f32.mrb[0].mxu0
  %7147 = vmatprep.mubr.f32.mxu0 %v7055
  %7148 = vmatmul.mubr.f32.gmra.mrb[0].mxu0 %v6663
  %v7149 = vpop.f32.mrb[0].mxu0
  %v7150 = vadd.f32 %v3310, %v7149
  %v7151 = vpop.f32.mrb[0].mxu0
  %7152 = vmatprep.mubr.f32.mxu0 %v7058
  %7153 = vmatmul.mubr.f32.gmra.mrb[0].mxu0 %v6664
  %v7154 = vpop.f32.mrb[0].mxu0
  %v7155 = vadd.f32 %v3310, %v7154
  %v7156 = vpop.f32.mrb[0].mxu0
  %7157 = vmatprep.mubr.f32.mxu0 %v7061
  %7158 = vmatmul.mubr.f32.gmra.mrb[0].mxu0 %v6665
  %v7159 = vpop.f32.mrb[0].mxu0
  %v7160 = vadd.f32 %v3310, %v7159
  %v7161 = vpop.f32.mrb[0].mxu0
  %7162 = vmatprep.mubr.f32.mxu0 %v7064
  %7163 = vmatmul.mubr.f32.gmra.mrb[0].mxu0 %v6666
  %v7164 = vpop.f32.mrb[0].mxu0
  %v7165 = vadd.f32 %v3310, %v7164
  %v7166 = vpop.f32.mrb[0].mxu0
  %7167 = vmatprep.mubr.f32.mxu0 %v7067
  %7168 = vmatmul.mubr.f32.gmra.mrb[0].mxu0 %v6667
  %v7169 = vpop.f32.mrb[0].mxu0
  %v7170 = vadd.f32 %v3310, %v7169
  %v7171 = vpop.f32.mrb[0].mxu0
  %7172 = vmatprep.mubr.f32.mxu0 %v7070
  %7173 = vmatmul.mubr.f32.gmra.mrb[0].mxu0 %v6668
  %v7174 = vpop.f32.mrb[0].mxu0
  %v7175 = vadd.f32 %v3310, %v7174
  %v7176 = vpop.f32.mrb[0].mxu0
  %7177 = vmatprep.mubr.f32.mxu0 %v7073
  %7178 = vmatmul.mubr.f32.gmra.mrb[0].mxu0 %v6669
  %v7179 = vpop.f32.mrb[0].mxu0
  %v7180 = vadd.f32 %v3310, %v7179
  %v7181 = vpop.f32.mrb[0].mxu0
  %7182 = vmatprep.mubr.f32.mxu0 %v7076
  %7183 = vmatmul.mubr.f32.gmra.mrb[0].mxu0 %v6670
  %v7184 = vpop.f32.mrb[0].mxu0
  %v7185 = vadd.f32 %v3310, %v7184
  %v7186 = vpop.f32.mrb[0].mxu0
  %7187 = vdwg.mxu0
  %v7188 = vmax.f32 %v7145, 0.0
  %v7189 = vmax.f32 %v7150, 0.0
  %v7190 = vmax.f32 %v7155, 0.0
  %v7191 = vmax.f32 %v7160, 0.0
  %v7192 = vmax.f32 %v7165, 0.0
  %v7193 = vmax.f32 %v7170, 0.0
  %v7194 = vmax.f32 %v7175, 0.0
  %v7195 = vmax.f32 %v7180, 0.0
  %v7196 = vmax.f32 %v7185, 0.0
  %7197 = vst.msk [vmem:[#allocation4 + $0xd8] sm:$0xff] %vm453, %v7188
  %7198 = vst.msk [vmem:[#allocation4 + $0xe0] sm:$0xff] %vm453, %v7189
  %7199 = vst.msk [vmem:[#allocation4 + $0xe8] sm:$0xff] %vm453, %v7190
  %7200 = vst.msk [vmem:[#allocation4 + $0xf0] sm:$0xff] %vm453, %v7191
  %7201 = vst.msk [vmem:[#allocation4 + $0xf8] sm:$0xff] %vm453, %v7192
  %7202 = vst.msk [vmem:[#allocation4 + $0x100] sm:$0xff] %vm453, %v7193
  %7203 = vst.msk [vmem:[#allocation4 + $0x108] sm:$0xff] %vm453, %v7194
  %7204 = vst.msk [vmem:[#allocation4 + $0x110] sm:$0xff] %vm453, %v7195
  %7205 = vst.msk [vmem:[#allocation4 + $0x118] sm:$0xff] %vm453, %v7196
  %v7206 = vld [vmem:[#allocation4] ss:$144 sm:$0x3]
  %s7207 = scalar_lea.vmem [#allocation4], 1
  %v7208 = vld [vmem:[%s7207] ss:$144 sm:$0x3]
  %v7209 = vmax.f32 %v7206, %v7208
  %s7210 = scalar_lea.vmem [#allocation4], 12
  %v7211 = vld [vmem:[%s7210] ss:$144 sm:$0x3]
  %v7212 = vmax.f32 %v7209, %v7211
  %s7213 = scalar_lea.vmem [#allocation4], 13
  %v7214 = vld [vmem:[%s7213] ss:$144 sm:$0x3]
  %v7215 = vmax.f32 %v7212, %v7214
  %s7216 = scalar_lea.vmem [#allocation4], 2
  %v7217 = vld [vmem:[%s7216] ss:$144 sm:$0x3]
  %s7218 = scalar_lea.vmem [#allocation4], 3
  %v7219 = vld [vmem:[%s7218] ss:$144 sm:$0x3]
  %v7220 = vmax.f32 %v7217, %v7219
  %s7221 = scalar_lea.vmem [#allocation4], 14
  %v7222 = vld [vmem:[%s7221] ss:$144 sm:$0x3]
  %v7223 = vmax.f32 %v7220, %v7222
  %s7224 = scalar_lea.vmem [#allocation4], 15
  %v7225 = vld [vmem:[%s7224] ss:$144 sm:$0x3]
  %v7226 = vmax.f32 %v7223, %v7225
  %s7227 = scalar_lea.vmem [#allocation4], 4
  %v7228 = vld [vmem:[%s7227] ss:$144 sm:$0x3]
  %s7229 = scalar_lea.vmem [#allocation4], 5
  %v7230 = vld [vmem:[%s7229] ss:$144 sm:$0x3]
  %v7231 = vmax.f32 %v7228, %v7230
  %s7232 = scalar_lea.vmem [#allocation4], 16
  %v7233 = vld [vmem:[%s7232] ss:$144 sm:$0x3]
  %v7234 = vmax.f32 %v7231, %v7233
  %s7235 = scalar_lea.vmem [#allocation4], 17
  %v7236 = vld [vmem:[%s7235] ss:$144 sm:$0x3]
  %v7237 = vmax.f32 %v7234, %v7236
  %s7238 = scalar_lea.vmem [#allocation4], 6
  %v7239 = vld [vmem:[%s7238] ss:$144 sm:$0x3]
  %s7240 = scalar_lea.vmem [#allocation4], 7
  %v7241 = vld [vmem:[%s7240] ss:$144 sm:$0x3]
  %v7242 = vmax.f32 %v7239, %v7241
  %s7243 = scalar_lea.vmem [#allocation4], 18
  %v7244 = vld [vmem:[%s7243] ss:$144 sm:$0x3]
  %v7245 = vmax.f32 %v7242, %v7244
  %s7246 = scalar_lea.vmem [#allocation4], 19
  %v7247 = vld [vmem:[%s7246] ss:$144 sm:$0x3]
  %v7248 = vmax.f32 %v7245, %v7247
  %s7249 = scalar_lea.vmem [#allocation4], 24
  %v7250 = vld [vmem:[%s7249] ss:$144 sm:$0x3]
  %s7251 = scalar_lea.vmem [#allocation4], 25
  %v7252 = vld [vmem:[%s7251] ss:$144 sm:$0x3]
  %v7253 = vmax.f32 %v7250, %v7252
  %s7254 = scalar_lea.vmem [#allocation4], 36
  %v7255 = vld [vmem:[%s7254] ss:$144 sm:$0x3]
  %v7256 = vmax.f32 %v7253, %v7255
  %s7257 = scalar_lea.vmem [#allocation4], 37
  %v7258 = vld [vmem:[%s7257] ss:$144 sm:$0x3]
  %v7259 = vmax.f32 %v7256, %v7258
  %s7260 = scalar_lea.vmem [#allocation4], 26
  %v7261 = vld [vmem:[%s7260] ss:$144 sm:$0x3]
  %s7262 = scalar_lea.vmem [#allocation4], 27
  %v7263 = vld [vmem:[%s7262] ss:$144 sm:$0x3]
  %v7264 = vmax.f32 %v7261, %v7263
  %s7265 = scalar_lea.vmem [#allocation4], 38
  %v7266 = vld [vmem:[%s7265] ss:$144 sm:$0x3]
  %v7267 = vmax.f32 %v7264, %v7266
  %s7268 = scalar_lea.vmem [#allocation4], 39
  %v7269 = vld [vmem:[%s7268] ss:$144 sm:$0x3]
  %v7270 = vmax.f32 %v7267, %v7269
  %s7271 = scalar_lea.vmem [#allocation4], 28
  %v7272 = vld [vmem:[%s7271] ss:$144 sm:$0x3]
  %s7273 = scalar_lea.vmem [#allocation4], 29
  %v7274 = vld [vmem:[%s7273] ss:$144 sm:$0x3]
  %v7275 = vmax.f32 %v7272, %v7274
  %s7276 = scalar_lea.vmem [#allocation4], 40
  %v7277 = vld [vmem:[%s7276] ss:$144 sm:$0x3]
  %v7278 = vmax.f32 %v7275, %v7277
  %s7279 = scalar_lea.vmem [#allocation4], 41
  %v7280 = vld [vmem:[%s7279] ss:$144 sm:$0x3]
  %v7281 = vmax.f32 %v7278, %v7280
  %s7282 = scalar_lea.vmem [#allocation4], 30
  %v7283 = vld [vmem:[%s7282] ss:$144 sm:$0x3]
  %s7284 = scalar_lea.vmem [#allocation4], 31
  %v7285 = vld [vmem:[%s7284] ss:$144 sm:$0x3]
  %v7286 = vmax.f32 %v7283, %v7285
  %s7287 = scalar_lea.vmem [#allocation4], 42
  %v7288 = vld [vmem:[%s7287] ss:$144 sm:$0x3]
  %v7289 = vmax.f32 %v7286, %v7288
  %s7290 = scalar_lea.vmem [#allocation4], 43
  %v7291 = vld [vmem:[%s7290] ss:$144 sm:$0x3]
  %v7292 = vmax.f32 %v7289, %v7291
  %s7293 = scalar_lea.vmem [#allocation4], 48
  %v7294 = vld [vmem:[%s7293] ss:$144 sm:$0x3]
  %s7295 = scalar_lea.vmem [#allocation4], 49
  %v7296 = vld [vmem:[%s7295] ss:$144 sm:$0x3]
  %v7297 = vmax.f32 %v7294, %v7296
  %s7298 = scalar_lea.vmem [#allocation4], 60
  %v7299 = vld [vmem:[%s7298] ss:$144 sm:$0x3]
  %v7300 = vmax.f32 %v7297, %v7299
  %s7301 = scalar_lea.vmem [#allocation4], 61
  %v7302 = vld [vmem:[%s7301] ss:$144 sm:$0x3]
  %v7303 = vmax.f32 %v7300, %v7302
  %s7304 = scalar_lea.vmem [#allocation4], 50
  %v7305 = vld [vmem:[%s7304] ss:$144 sm:$0x3]
  %s7306 = scalar_lea.vmem [#allocation4], 51
  %v7307 = vld [vmem:[%s7306] ss:$144 sm:$0x3]
  %v7308 = vmax.f32 %v7305, %v7307
  %s7309 = scalar_lea.vmem [#allocation4], 62
  %v7310 = vld [vmem:[%s7309] ss:$144 sm:$0x3]
  %v7311 = vmax.f32 %v7308, %v7310
  %s7312 = scalar_lea.vmem [#allocation4], 63
  %v7313 = vld [vmem:[%s7312] ss:$144 sm:$0x3]
  %v7314 = vmax.f32 %v7311, %v7313
  %s7315 = scalar_lea.vmem [#allocation4], 52
  %v7316 = vld [vmem:[%s7315] ss:$144 sm:$0x3]
  %s7317 = scalar_lea.vmem [#allocation4], 53
  %v7318 = vld [vmem:[%s7317] ss:$144 sm:$0x3]
  %v7319 = vmax.f32 %v7316, %v7318
  %s7320 = scalar_lea.vmem [#allocation4], 64
  %v7321 = vld [vmem:[%s7320] ss:$144 sm:$0x3]
  %v7322 = vmax.f32 %v7319, %v7321
  %s7323 = scalar_lea.vmem [#allocation4], 65
  %v7324 = vld [vmem:[%s7323] ss:$144 sm:$0x3]
  %v7325 = vmax.f32 %v7322, %v7324
  %s7326 = scalar_lea.vmem [#allocation4], 54
  %v7327 = vld [vmem:[%s7326] ss:$144 sm:$0x3]
  %s7328 = scalar_lea.vmem [#allocation4], 55
  %v7329 = vld [vmem:[%s7328] ss:$144 sm:$0x3]
  %v7330 = vmax.f32 %v7327, %v7329
  %s7331 = scalar_lea.vmem [#allocation4], 66
  %v7332 = vld [vmem:[%s7331] ss:$144 sm:$0x3]
  %v7333 = vmax.f32 %v7330, %v7332
  %s7334 = scalar_lea.vmem [#allocation4], 67
  %v7335 = vld [vmem:[%s7334] ss:$144 sm:$0x3]
  %v7336 = vmax.f32 %v7333, %v7335
  %s7337 = scalar_lea.vmem [#allocation4], 72
  %v7338 = vld [vmem:[%s7337] ss:$144 sm:$0x3]
  %s7339 = scalar_lea.vmem [#allocation4], 73
  %v7340 = vld [vmem:[%s7339] ss:$144 sm:$0x3]
  %v7341 = vmax.f32 %v7338, %v7340
  %s7342 = scalar_lea.vmem [#allocation4], 84
  %v7343 = vld [vmem:[%s7342] ss:$144 sm:$0x3]
  %v7344 = vmax.f32 %v7341, %v7343
  %s7345 = scalar_lea.vmem [#allocation4], 85
  %v7346 = vld [vmem:[%s7345] ss:$144 sm:$0x3]
  %v7347 = vmax.f32 %v7344, %v7346
  %s7348 = scalar_lea.vmem [#allocation4], 74
  %v7349 = vld [vmem:[%s7348] ss:$144 sm:$0x3]
  %s7350 = scalar_lea.vmem [#allocation4], 75
  %v7351 = vld [vmem:[%s7350] ss:$144 sm:$0x3]
  %v7352 = vmax.f32 %v7349, %v7351
  %s7353 = scalar_lea.vmem [#allocation4], 86
  %v7354 = vld [vmem:[%s7353] ss:$144 sm:$0x3]
  %v7355 = vmax.f32 %v7352, %v7354
  %s7356 = scalar_lea.vmem [#allocation4], 87
  %v7357 = vld [vmem:[%s7356] ss:$144 sm:$0x3]
  %v7358 = vmax.f32 %v7355, %v7357
  %s7359 = scalar_lea.vmem [#allocation4], 76
  %v7360 = vld [vmem:[%s7359] ss:$144 sm:$0x3]
  %s7361 = scalar_lea.vmem [#allocation4], 77
  %v7362 = vld [vmem:[%s7361] ss:$144 sm:$0x3]
  %v7363 = vmax.f32 %v7360, %v7362
  %s7364 = scalar_lea.vmem [#allocation4], 88
  %v7365 = vld [vmem:[%s7364] ss:$144 sm:$0x3]
  %v7366 = vmax.f32 %v7363, %v7365
  %s7367 = scalar_lea.vmem [#allocation4], 89
  %v7368 = vld [vmem:[%s7367] ss:$144 sm:$0x3]
  %v7369 = vmax.f32 %v7366, %v7368
  %s7370 = scalar_lea.vmem [#allocation4], 78
  %v7371 = vld [vmem:[%s7370] ss:$144 sm:$0x3]
  %s7372 = scalar_lea.vmem [#allocation4], 79
  %v7373 = vld [vmem:[%s7372] ss:$144 sm:$0x3]
  %v7374 = vmax.f32 %v7371, %v7373
  %s7375 = scalar_lea.vmem [#allocation4], 90
  %v7376 = vld [vmem:[%s7375] ss:$144 sm:$0x3]
  %v7377 = vmax.f32 %v7374, %v7376
  %s7378 = scalar_lea.vmem [#allocation4], 91
  %v7379 = vld [vmem:[%s7378] ss:$144 sm:$0x3]
  %v7380 = vmax.f32 %v7377, %v7379
  %7382 = vrot.lane.b32.xlu0 %v7226, 10
  %v7383 = vpop.permute.xlu0 %7382
  %7386 = vrot.lane.b32.xlu0 %v7237, 20
  %v7387 = vpop.permute.xlu0 %7386
  %7390 = vrot.lane.b32.xlu0 %v7248, 30
  %v7391 = vpop.permute.xlu0 %7390
  %7394 = vrot.lane.b32.xlu0 %v7259, 40
  %v7395 = vpop.permute.xlu0 %7394
  %7398 = vrot.lane.b32.xlu0 %v7270, 50
  %v7399 = vpop.permute.xlu0 %7398
  %7402 = vrot.lane.b32.xlu0 %v7281, 60
  %v7403 = vpop.permute.xlu0 %7402
  %7406 = vrot.lane.b32.xlu0 %v7292, 70
  %v7407 = vpop.permute.xlu0 %7406
  %7410 = vrot.lane.b32.xlu0 %v7303, 80
  %v7411 = vpop.permute.xlu0 %7410
  %7414 = vrot.lane.b32.xlu0 %v7314, 90
  %v7415 = vpop.permute.xlu0 %7414
  %7418 = vrot.lane.b32.xlu0 %v7325, 100
  %v7419 = vpop.permute.xlu0 %7418
  %7422 = vrot.lane.b32.xlu0 %v7336, 110
  %v7423 = vpop.permute.xlu0 %7422
  %7426 = vrot.lane.b32.xlu0 %v7347, 120
  %v7427 = vpop.permute.xlu0 %7426
  %7430 = vrot.lane.b32.xlu0 %v7358, 2
  %v7431 = vpop.permute.xlu0 %7430
  %7434 = vrot.lane.b32.xlu0 %v7369, 12
  %v7435 = vpop.permute.xlu0 %7434
  %7438 = vrot.lane.b32.xlu0 %v7380, 22
  %v7439 = vpop.permute.xlu0 %7438
  %v7441 = vsel %vm453, %v7215, %v7383
  %v7442 = vsel %vm2813, %v7441, %v7387
  %v7443 = vsel %vm2823, %v7442, %v7391
  %v7444 = vsel %vm2833, %v7443, %v7395
  %v7445 = vsel %vm2843, %v7444, %v7399
  %v7446 = vsel %vm2853, %v7445, %v7403
  %v7447 = vsel %vm2863, %v7446, %v7407
  %v7448 = vsel %vm2873, %v7447, %v7411
  %v7449 = vsel %vm2883, %v7448, %v7415
  %v7450 = vsel %vm2893, %v7449, %v7419
  %v7451 = vsel %vm2903, %v7450, %v7423
  %v7452 = vsel %vm2913, %v7451, %v7427
  %v7453 = vsel %vm2923, %v7427, %v7431
  %v7454 = vsel %vm2933, %v7453, %v7435
  %v7455 = vsel %vm2943, %v7454, %v7439
  %v7456 = vld [vmem:[%s2] sm:$0xff]
  %v7457 = vld [vmem:[%s2 + $0x8] sm:$0xff]
  %v7458 = vld [vmem:[%s2 + $0x10] sm:$0xff]
  %v7459 = vld [vmem:[%s2 + $0x18] sm:$0xff]
  %v7460 = vld [vmem:[%s2 + $0x20] sm:$0xff]
  %v7461 = vld [vmem:[%s2 + $0x28] sm:$0xff]
  %v7462 = vld [vmem:[%s2 + $0x30] sm:$0xff]
  %v7463 = vld [vmem:[%s2 + $0x38] sm:$0xff]
  %v7464 = vld [vmem:[%s2 + $0x40] sm:$0xff]
  %v7465 = vld [vmem:[%s2 + $0x48] sm:$0xff]
  %v7466 = vld [vmem:[%s2 + $0x50] sm:$0xff]
  %v7467 = vld [vmem:[%s2 + $0x58] sm:$0xff]
  %v7468 = vld [vmem:[%s2 + $0x60] sm:$0xff]
  %v7469 = vld [vmem:[%s2 + $0x68] sm:$0xff]
  %v7470 = vld [vmem:[%s2 + $0x70] sm:$0xff]
  %v7471 = vld [vmem:[%s2 + $0x78] sm:$0xff]
  %v7472 = vld [vmem:[%s2 + $0x80] sm:$0xff]
  %v7473 = vld [vmem:[%s2 + $0x88] sm:$0xff]
  %v7474 = vld [vmem:[%s2 + $0x90] sm:$0xff]
  %v7475 = vld [vmem:[%s2 + $0x98] sm:$0xff]
  %v7476 = vld [vmem:[%s2 + $0xa0] sm:$0xff]
  %v7477 = vld [vmem:[%s2 + $0xa8] sm:$0xff]
  %v7478 = vld [vmem:[%s2 + $0xb0] sm:$0xff]
  %v7479 = vld [vmem:[%s2 + $0xb8] sm:$0xff]
  %v7480 = vld [vmem:[%s2 + $0xc0] sm:$0xff]
  %v7481 = vld [vmem:[%s2 + $0xc8] sm:$0xff]
  %v7482 = vld [vmem:[%s2 + $0xd0] sm:$0xff]
  %v7483 = vld [vmem:[%s2 + $0xd8] sm:$0xff]
  %v7484 = vld [vmem:[%s2 + $0xe0] sm:$0xff]
  %v7485 = vld [vmem:[%s2 + $0xe8] sm:$0xff]
  %v7486 = vld [vmem:[%s2 + $0xf0] sm:$0xff]
  %v7487 = vld [vmem:[%s2 + $0xf8] sm:$0xff]
  %v7488 = vld [vmem:[%s2 + $0x100] sm:$0xff]
  %v7489 = vld [vmem:[%s2 + $0x108] sm:$0xff]
  %v7490 = vld [vmem:[%s2 + $0x110] sm:$0xff]
  %v7491 = vld [vmem:[%s2 + $0x118] sm:$0xff]
  %v7492 = vld [vmem:[%s2 + $0x120] sm:$0x1]
  %v7493 = vld [vmem:[%s2 + $0x121] sm:$0x1]
  %v7494 = vld [vmem:[%s2 + $0x122] sm:$0x1]
  %v7495 = vlaneseq
  %v7496 = vshrl.u32 %v7495, 7
  %v7497 = vsub.s32 0, %v7496
  %v7498 = vrot.slane %v7492, %v7497
  %v7500 = vsel %vm3297, %v7455, 0
  %7502 = vmatprep.subr.mxu0 0.0
  %7503 = vmatpush1.msra.mxu0 %v7456
  %7504 = vmatprep.subr.mxu0 0.0
  %7505 = vmatpush1.msra.mxu0 %v7457
  %7506 = vmatprep.subr.mxu0 0.0
  %7507 = vmatpush1.msra.mxu0 %v7458
  %7508 = vmatprep.subr.mxu0 0.0
  %7509 = vmatpush1.msra.mxu0 %v7459
  %7510 = vmatprep.subr.mxu0 0.0
  %7511 = vmatpush1.msra.mxu0 %v7460
  %7512 = vmatprep.subr.mxu0 0.0
  %7513 = vmatpush1.msra.mxu0 %v7461
  %7514 = vmatprep.subr.mxu0 0.0
  %7515 = vmatpush1.msra.mxu0 %v7462
  %7516 = vmatprep.subr.mxu0 0.0
  %7517 = vmatpush1.msra.mxu0 %v7463
  %7518 = vmatprep.subr.mxu0 0.0
  %7519 = vmatpush1.msra.mxu0 %v7464
  %7520 = vmatprep.subr.mxu0 0.0
  %7521 = vmatpush1.msra.mxu0 %v7465
  %7522 = vmatprep.subr.mxu0 0.0
  %7523 = vmatpush1.msra.mxu0 %v7466
  %7524 = vmatprep.subr.mxu0 0.0
  %7525 = vmatpush1.msra.mxu0 %v7467
  %7526 = vmatprep.subr.mxu0 0.0
  %7527 = vmatpush1.msra.mxu0 %v7468
  %7528 = vmatprep.subr.mxu0 0.0
  %7529 = vmatpush1.msra.mxu0 %v7469
  %7530 = vmatprep.subr.mxu0 0.0
  %7531 = vmatpush1.msra.mxu0 %v7470
  %7532 = vmatprep.subr.mxu0 0.0
  %7533 = vmatpush1.msra.mxu0 %v7471
  %7534 = vmatprep.subr.mxu0 0.0
  %7535 = vmatpush1.msra.mxu0 %v7472
  %7536 = vmatprep.subr.mxu0 0.0
  %7537 = vmatpush1.msra.mxu0 %v7473
  %7538 = vmatprep.subr.mxu0 0.0
  %7539 = vmatpush1.msra.mxu0 %v7474
  %7540 = vmatprep.subr.mxu0 0.0
  %7541 = vmatpush1.msra.mxu0 %v7475
  %7542 = vmatprep.subr.mxu0 0.0
  %7543 = vmatpush1.msra.mxu0 0.0
  %7544 = vmatprep.subr.mxu0 0.0
  %7545 = vmatpush1.msra.mxu0 0.0
  %7546 = vmatprep.subr.mxu0 0.0
  %7547 = vmatpush1.msra.mxu0 0.0
  %7548 = vmatprep.subr.mxu0 0.0
  %7549 = vmatpush1.msra.mxu0 0.0
  %7550 = vmatprep.subr.mxu0 0.0
  %7551 = vmatpush1.msra.mxu0 0.0
  %7552 = vmatprep.subr.mxu0 0.0
  %7553 = vmatpush1.msra.mxu0 0.0
  %7554 = vmatprep.subr.mxu0 0.0
  %7555 = vmatpush1.msra.mxu0 0.0
  %7556 = vmatprep.subr.mxu0 0.0
  %7557 = vmatpush1.msra.mxu0 0.0
  %7558 = vmatprep.subr.mxu0 0.0
  %7559 = vmatpush1.msra.mxu0 0.0
  %7560 = vmatprep.subr.mxu0 0.0
  %7561 = vmatpush1.msra.mxu0 0.0
  %7562 = vmatprep.subr.mxu0 0.0
  %7563 = vmatpush1.msra.mxu0 0.0
  %7564 = vmatprep.subr.mxu0 0.0
  %7565 = vmatpush1.msra.mxu0 0.0
  %7566 = vmatprep.mubr.f32.mxu0 %v7500
  %7567 = vmatmul.mubr.f32.gmra.mrb[0].mxu0 %v7452
  %v7568 = vpop.f32.mrb[0].mxu0
  %v7569 = vadd.f32 %v7498, %v7568
  %v7570 = vpop.f32.mrb[0].mxu0
  %7571 = vdwg.mxu0
  %v7572 = vmax.f32 %v7569, 0.0
  %v7573 = vlaneseq
  %v7574 = vshrl.u32 %v7573, 7
  %v7575 = vsub.s32 0, %v7574
  %v7576 = vrot.slane %v7493, %v7575
  %vm7577 = vcmask 523264
  %v7579 = vsel %vm7577, %v7572, 0
  %7581 = vmatprep.subr.mxu0 0.0
  %7582 = vmatpush1.msra.mxu0 %v7476
  %7583 = vmatprep.subr.mxu0 0.0
  %7584 = vmatpush1.msra.mxu0 %v7477
  %7585 = vmatprep.subr.mxu0 0.0
  %7586 = vmatpush1.msra.mxu0 %v7478
  %7587 = vmatprep.subr.mxu0 0.0
  %7588 = vmatpush1.msra.mxu0 %v7479
  %7589 = vmatprep.subr.mxu0 0.0
  %7590 = vmatpush1.msra.mxu0 %v7480
  %7591 = vmatprep.subr.mxu0 0.0
  %7592 = vmatpush1.msra.mxu0 %v7481
  %7593 = vmatprep.subr.mxu0 0.0
  %7594 = vmatpush1.msra.mxu0 %v7482
  %7595 = vmatprep.subr.mxu0 0.0
  %7596 = vmatpush1.msra.mxu0 %v7483
  %7597 = vmatprep.subr.mxu0 0.0
  %7598 = vmatpush1.msra.mxu0 0.0
  %7599 = vmatprep.subr.mxu0 0.0
  %7600 = vmatpush1.msra.mxu0 0.0
  %7601 = vmatprep.subr.mxu0 0.0
  %7602 = vmatpush1.msra.mxu0 0.0
  %7603 = vmatprep.subr.mxu0 0.0
  %7604 = vmatpush1.msra.mxu0 0.0
  %7605 = vmatprep.subr.mxu0 0.0
  %7606 = vmatpush1.msra.mxu0 0.0
  %7607 = vmatprep.subr.mxu0 0.0
  %7608 = vmatpush1.msra.mxu0 0.0
  %7609 = vmatprep.subr.mxu0 0.0
  %7610 = vmatpush1.msra.mxu0 0.0
  %7611 = vmatprep.subr.mxu0 0.0
  %7612 = vmatpush1.msra.mxu0 0.0
  %7613 = vmatprep.subr.mxu0 0.0
  %7614 = vmatpush1.msra.mxu0 0.0
  %7615 = vmatprep.subr.mxu0 0.0
  %7616 = vmatpush1.msra.mxu0 0.0
  %7617 = vmatprep.subr.mxu0 0.0
  %7618 = vmatpush1.msra.mxu0 0.0
  %7619 = vmatprep.subr.mxu0 0.0
  %7620 = vmatpush1.msra.mxu0 0.0
  %7621 = vmatprep.subr.mxu0 0.0
  %7622 = vmatpush1.msra.mxu0 0.0
  %7623 = vmatprep.subr.mxu0 0.0
  %7624 = vmatpush1.msra.mxu0 0.0
  %7625 = vmatprep.subr.mxu0 0.0
  %7626 = vmatpush1.msra.mxu0 0.0
  %7627 = vmatprep.subr.mxu0 0.0
  %7628 = vmatpush1.msra.mxu0 0.0
  %7629 = vmatprep.subr.mxu0 0.0
  %7630 = vmatpush1.msra.mxu0 0.0
  %7631 = vmatprep.subr.mxu0 0.0
  %7632 = vmatpush1.msra.mxu0 0.0
  %7633 = vmatprep.subr.mxu0 0.0
  %7634 = vmatpush1.msra.mxu0 0.0
  %7635 = vmatprep.subr.mxu0 0.0
  %7636 = vmatpush1.msra.mxu0 0.0
  %7637 = vmatprep.subr.mxu0 0.0
  %7638 = vmatpush1.msra.mxu0 0.0
  %7639 = vmatprep.subr.mxu0 0.0
  %7640 = vmatpush1.msra.mxu0 0.0
  %7641 = vmatprep.subr.mxu0 0.0
  %7642 = vmatpush1.msra.mxu0 0.0
  %7643 = vmatprep.subr.mxu0 0.0
  %7644 = vmatpush1.msra.mxu0 0.0
  %7645 = vmatprep.mubr.f32.mxu0 0.0
  %7646 = vmatmul.mubr.f32.gmra.mrb[0].mxu0 %v7579
  %v7647 = vpop.f32.mrb[0].mxu0
  %v7648 = vadd.f32 %v7576, %v7647
  %v7649 = vpop.f32.mrb[0].mxu0
  %7650 = vdwg.mxu0
  %v7651 = vmax.f32 %v7648, 0.0
  %v7652 = vlaneseq
  %v7653 = vshrl.u32 %v7652, 7
  %v7654 = vsub.s32 0, %v7653
  %v7655 = vrot.slane %v7494, %v7654
  %v7657 = vsel %vm7577, %v7651, 0
  %7659 = vmatprep.subr.mxu0 0.0
  %7660 = vmatpush1.msra.mxu0 %v7484
  %7661 = vmatprep.subr.mxu0 0.0
  %7662 = vmatpush1.msra.mxu0 %v7485
  %7663 = vmatprep.subr.mxu0 0.0
  %7664 = vmatpush1.msra.mxu0 %v7486
  %7665 = vmatprep.subr.mxu0 0.0
  %7666 = vmatpush1.msra.mxu0 %v7487
  %7667 = vmatprep.subr.mxu0 0.0
  %7668 = vmatpush1.msra.mxu0 %v7488
  %7669 = vmatprep.subr.mxu0 0.0
  %7670 = vmatpush1.msra.mxu0 %v7489
  %7671 = vmatprep.subr.mxu0 0.0
  %7672 = vmatpush1.msra.mxu0 %v7490
  %7673 = vmatprep.subr.mxu0 0.0
  %7674 = vmatpush1.msra.mxu0 %v7491
  %7675 = vmatprep.subr.mxu0 0.0
  %7676 = vmatpush1.msra.mxu0 0.0
  %7677 = vmatprep.subr.mxu0 0.0
  %7678 = vmatpush1.msra.mxu0 0.0
  %7679 = vmatprep.subr.mxu0 0.0
  %7680 = vmatpush1.msra.mxu0 0.0
  %7681 = vmatprep.subr.mxu0 0.0
  %7682 = vmatpush1.msra.mxu0 0.0
  %7683 = vmatprep.subr.mxu0 0.0
  %7684 = vmatpush1.msra.mxu0 0.0
  %7685 = vmatprep.subr.mxu0 0.0
  %7686 = vmatpush1.msra.mxu0 0.0
  %7687 = vmatprep.subr.mxu0 0.0
  %7688 = vmatpush1.msra.mxu0 0.0
  %7689 = vmatprep.subr.mxu0 0.0
  %7690 = vmatpush1.msra.mxu0 0.0
  %7691 = vmatprep.subr.mxu0 0.0
  %7692 = vmatpush1.msra.mxu0 0.0
  %7693 = vmatprep.subr.mxu0 0.0
  %7694 = vmatpush1.msra.mxu0 0.0
  %7695 = vmatprep.subr.mxu0 0.0
  %7696 = vmatpush1.msra.mxu0 0.0
  %7697 = vmatprep.subr.mxu0 0.0
  %7698 = vmatpush1.msra.mxu0 0.0
  %7699 = vmatprep.subr.mxu0 0.0
  %7700 = vmatpush1.msra.mxu0 0.0
  %7701 = vmatprep.subr.mxu0 0.0
  %7702 = vmatpush1.msra.mxu0 0.0
  %7703 = vmatprep.subr.mxu0 0.0
  %7704 = vmatpush1.msra.mxu0 0.0
  %7705 = vmatprep.subr.mxu0 0.0
  %7706 = vmatpush1.msra.mxu0 0.0
  %7707 = vmatprep.subr.mxu0 0.0
  %7708 = vmatpush1.msra.mxu0 0.0
  %7709 = vmatprep.subr.mxu0 0.0
  %7710 = vmatpush1.msra.mxu0 0.0
  %7711 = vmatprep.subr.mxu0 0.0
  %7712 = vmatpush1.msra.mxu0 0.0
  %7713 = vmatprep.subr.mxu0 0.0
  %7714 = vmatpush1.msra.mxu0 0.0
  %7715 = vmatprep.subr.mxu0 0.0
  %7716 = vmatpush1.msra.mxu0 0.0
  %7717 = vmatprep.subr.mxu0 0.0
  %7718 = vmatpush1.msra.mxu0 0.0
  %7719 = vmatprep.subr.mxu0 0.0
  %7720 = vmatpush1.msra.mxu0 0.0
  %7721 = vmatprep.subr.mxu0 0.0
  %7722 = vmatpush1.msra.mxu0 0.0
  %7723 = vmatprep.mubr.f32.mxu0 0.0
  %7724 = vmatmul.mubr.f32.gmra.mrb[0].mxu0 %v7657
  %v7725 = vpop.f32.mrb[0].mxu0
  %v7726 = vadd.f32 %v7655, %v7725
  %v7727 = vpop.f32.mrb[0].mxu0
  %7728 = vdwg.mxu0
  %vm7729 = vcmask 74752
  %7730 = vst.msk [vmem:[%s3] sm:$0x3] %vm7729, %v7726
  // Predicated region
  $region14: #{ppo_rewards_forward.1} parent=0 // pred_check
    _
  $region15: #{ppo_rewards_forward.1} parent=0 // pred_check_branch
    %7732 = sbr.rel (0) target = $region17
  $region16: #{ppo_rewards_forward.1} parent=0 // pred_region
    _
  $region17: #{ppo_rewards_forward.1} parent=0 // pred_fallthru
    _
  // Predicated region
  $region18: #{ppo_rewards_forward.1} parent=0 // pred_check
    _
  $region19: #{ppo_rewards_forward.1} parent=0 // pred_check_branch
    %7734 = sbr.rel (0) target = $region21
  $region20: #{ppo_rewards_forward.1} parent=0 // pred_region
    _
  $region21: #{ppo_rewards_forward.1} parent=0 // pred_fallthru
    _

</llo_original>
